<compile_context>
chip_gen: v5e
topology: v5e:2x2
jax: 0.10.0
libtpu: 0.0.40
codegen_flags: <defaults>
</compile_context>

<pallas_src>
import functools

import jax
import jax.numpy as jnp
from jax import lax
from jax.experimental import pallas as pl
from jax.experimental.pallas import tpu as pltpu


@functools.lru_cache(maxsize=None)
def _vmem_limit_bytes():
    """Generation-aware VMEM budget (~3/4 of physical, clamped)."""
    cap = 64 * 1024 * 1024
    try:
        cap = int(pltpu.get_tpu_info().vmem_capacity_bytes)
    except Exception:
        pass
    return max(32 * 1024 * 1024, min((cap * 3) // 4, 96 * 1024 * 1024))


def _pick_tile(dim, cands):
    for c in cands:
        if c <= dim and dim % c == 0:
            return c
    return None


# ----------------------------------------------------------------------------
# GEMM with fused bias (+ ReLU): used for fc1 / fc2
# ----------------------------------------------------------------------------
def _matmul_bias_kernel(x_ref, w_ref, b_ref, o_ref, *, relu, single_k):
    part = jnp.dot(x_ref[...], w_ref[...], preferred_element_type=jnp.float32)
    if single_k:
        # One grid step along K: fully fused, no accumulator passes.
        out = part + b_ref[...]
        if relu:
            out = jnp.maximum(out, 0.0)
        o_ref[...] = out
    else:
        # Multi-step K: accumulate directly into the (f32, output-resident)
        # o_ref block -- no VMEM scratch.
        k = pl.program_id(2)

        @pl.when(k == 0)
        def _():
            o_ref[...] = part

        @pl.when(k > 0)
        def _():
            o_ref[...] = o_ref[...] + part

        @pl.when(k == pl.num_programs(2) - 1)
        def _():
            out = o_ref[...] + b_ref[...]
            if relu:
                out = jnp.maximum(out, 0.0)
            o_ref[...] = out


def matmul_bias(x, w, b, *, relu):
    """relu?(x @ w + b); bf16 MXU inputs, f32 accumulation/output."""
    M, K = x.shape
    K2, N = w.shape
    assert K == K2 and b.shape == (N,)
    itm = x.dtype.itemsize

    if (M * K + K * N) * itm + M * N * 4 <= 8 * 1024 * 1024:
        tm, tn, tk = M, N, K                 # single grid step (fc layers here)
    else:
        tm = _pick_tile(M, (256, 128)) or M
        tn = _pick_tile(N, (512, 256, 128)) or N
        tk = _pick_tile(K, (512, 256, 128)) or K
        tile_bytes = 2 * (tm * tk + tk * tn) * itm + tm * tn * 4
        assert tile_bytes <= _vmem_limit_bytes(), (
            "matmul_bias tile choice would not fit VMEM; extend tile candidates")

    grid = (M // tm, N // tn, K // tk)       # K (reduction) axis last
    kernel = functools.partial(_matmul_bias_kernel, relu=relu,
                               single_k=(grid[2] == 1))
    return pl.pallas_call(
        kernel,
        out_shape=jax.ShapeDtypeStruct((M, N), jnp.float32),
        grid=grid,
        in_specs=[
            pl.BlockSpec((tm, tk), lambda i, j, k: (i, k)),
            pl.BlockSpec((tk, tn), lambda i, j, k: (k, j)),
            pl.BlockSpec((1, tn), lambda i, j, k: (0, j)),
        ],
        out_specs=pl.BlockSpec((tm, tn), lambda i, j, k: (i, j)),
        compiler_params=pltpu.CompilerParams(
            dimension_semantics=("parallel", "parallel", "arbitrary"),
            vmem_limit_bytes=_vmem_limit_bytes()),
    )(x, w, b.reshape(1, N).astype(jnp.float32))


# ----------------------------------------------------------------------------
# Fused 3x3 conv (valid, stride 1) + bias + ReLU + 2x2/2 max-pool, per image.
# ----------------------------------------------------------------------------
def _conv_relu_pool_kernel(x_ref, w_ref, b_ref, sel_ref, o_ref, *,
                           W, Hp, Wp, tap_offsets):
    """One image per grid step.

    x_ref:   (rows_in, K)      f32  spatially flattened image; row p is spatial
                                    position (p // W, p % W).
    w_ref:   (n_taps, K, Cout) bf16 per-tap weights (n_taps=1 for the K=27
                                    im2col'd conv1, 9 otherwise).
    b_ref:   (1, Cout)         f32
    sel_ref: (2, Wp, W)        bf16 0/1 even / odd column selectors.
    o_ref:   (Hp, Wp, Cout)    f32  pooled output.

    For pooled row hp, the two needed conv rows (2*hp, 2*hp+1) are contiguous
    in the flat layout, so each tap is ONE (2W, K) x (K, Cout) dot.  The tap
    dots are accumulated into a local value (no VMEM read-modify-write), then
    bias + ReLU + vertical max + horizontal 2:1 down-select (0/1 selection
    matmuls, which also mask the W-2..W-1 garbage columns of the flat-row
    trick) are fused and the pooled row is stored once.
    """
    sel_even = sel_ref[0]
    sel_odd = sel_ref[1]
    # TODO(synk): at 200x200 (Hp=99) convert this static unroll to a
    # lax.fori_loop over row blocks + a "parallel" row-block grid axis (v7x).
    for hp in range(Hp):
        base = 2 * hp * W
        acc = None
        for t, off in enumerate(tap_offsets):
            xs = x_ref[pl.ds(base + off, 2 * W), :].astype(jnp.bfloat16)
            d = jnp.dot(xs, w_ref[t], preferred_element_type=jnp.float32)
            acc = d if acc is None else acc + d
        acc = jnp.maximum(acc + b_ref[...], 0.0)                 # bias + ReLU
        v = jnp.maximum(acc[:W], acc[W:]).astype(jnp.bfloat16)   # vertical max
        # TODO(synk): pltpu.roll(v, -1, axis=0) + a single selection matmul
        # would halve the pool's MXU pushes (XLU slot is idle here).
        p = jnp.maximum(
            jnp.dot(sel_even, v, preferred_element_type=jnp.float32),
            jnp.dot(sel_odd, v, preferred_element_type=jnp.float32))
        o_ref[hp] = p.astype(o_ref.dtype)


def conv3x3_relu_pool(x, w, b, sel, *, H, W):
    """x: (N, rows_in, K) flat images; w: (n_taps, K, Cout) bf16; b: (Cout,).

    Returns pooled activations (N, Hp, Wp, Cout) f32.
    """
    n, rows_in, K = x.shape
    n_taps, K2, Cout = w.shape
    Hp, Wp = (H - 2) // 2, (W - 2) // 2
    assert K2 == K and b.shape == (Cout,) and sel.shape == (2, Wp, W)
    if n_taps == 1:                      # im2col'd conv (K already folds taps)
        tap_offsets = (0,)
    else:
        assert n_taps == 9
        tap_offsets = tuple(kh * W + kw for kh in range(3) for kw in range(3))
    assert rows_in >= 2 * Hp * W + max(tap_offsets), "input rows too short"

    kernel = functools.partial(_conv_relu_pool_kernel, W=W, Hp=Hp, Wp=Wp,
                               tap_offsets=tap_offsets)
    return pl.pallas_call(
        kernel,
        out_shape=jax.ShapeDtypeStruct((n, Hp, Wp, Cout), jnp.float32),
        grid=(n,),
        in_specs=[
            pl.BlockSpec((None, rows_in, K), lambda i: (i, 0, 0)),
            pl.BlockSpec((n_taps, K, Cout), lambda i: (0, 0, 0)),
            pl.BlockSpec((1, Cout), lambda i: (0, 0)),
            pl.BlockSpec((2, Wp, W), lambda i: (0, 0, 0)),
        ],
        out_specs=pl.BlockSpec((None, Hp, Wp, Cout), lambda i: (i, 0, 0, 0)),
        compiler_params=pltpu.CompilerParams(
            dimension_semantics=("parallel",),
            vmem_limit_bytes=_vmem_limit_bytes()),
    )(x, w, b.reshape(1, Cout), sel)


# ----------------------------------------------------------------------------
# One-time parameter / layout prep (outside the hot path)
# ----------------------------------------------------------------------------
def prepare_params(params, input_hw):
    """Fold all layout work into the weights once:
       - conv1 -> single (1, 27, 32) im2col weight (K order = kh, kw, cin),
       - conv2/3 -> per-tap (9, Cin, Cout) matrices,
       - 0/1 even/odd pooling column selectors per conv layer,
       - fc1 columns re-permuted so the NHWC-flat activation matches the
         PyTorch NCHW .view() flatten; fc weights pre-transposed to (K, N).
       All MXU weights in bf16; biases f32.  True output-channel counts are
       kept (no pad-to-128) -- padding them back is a one-line sweep here."""
    bf16 = jnp.bfloat16
    f32 = jnp.float32

    def conv_tap_w(w_oihw):
        co, ci, kh, kw = w_oihw.shape
        return jnp.transpose(w_oihw, (2, 3, 1, 0)).reshape(kh * kw, ci, co).astype(bf16)

    def sel_mat(w_img):
        wp = (w_img - 2) // 2
        cols = jnp.arange(w_img)[None, :]
        j2 = 2 * jnp.arange(wp)[:, None]
        return jnp.stack([cols == j2, cols == j2 + 1]).astype(bf16)

    H1, W1 = input_hw
    H2, W2 = (H1 - 2) // 2, (W1 - 2) // 2
    H3, W3 = (H2 - 2) // 2, (W2 - 2) // 2
    Hp3, Wp3 = (H3 - 2) // 2, (W3 - 2) // 2

    c1w = conv_tap_w(params["conv1_w"]).reshape(1, 27, -1)   # (1, 27, 32)
    c2w = conv_tap_w(params["conv2_w"])                      # (9, 32, 64)
    c3w = conv_tap_w(params["conv3_w"])                      # (9, 64, 128)

    # fc1: original columns are NCHW (c, h, w); permute to (h, w, c) so the
    # NHWC-flat activation can be used directly; store transposed as (K, N).
    c3_out = params["conv3_w"].shape[0]
    f1 = params["fc1_w"]                                     # (512, C*Hp3*Wp3)
    nf1 = f1.shape[0]
    f1 = f1.reshape(nf1, c3_out, Hp3, Wp3)
    f1 = jnp.transpose(f1, (0, 2, 3, 1)).reshape(nf1, Hp3 * Wp3 * c3_out)
    fc1_w_t = jnp.transpose(f1).astype(bf16)                 # (fc1_in, 512)
    fc2_w_t = jnp.transpose(params["fc2_w"]).astype(bf16)    # (512, classes)

    return {
        "conv1_w": c1w, "conv1_b": params["conv1_b"].astype(f32),
        "conv2_w": c2w, "conv2_b": params["conv2_b"].astype(f32),
        "conv3_w": c3w, "conv3_b": params["conv3_b"].astype(f32),
        "sel1": sel_mat(W1), "sel2": sel_mat(W2), "sel3": sel_mat(W3),
        "fc1_w": fc1_w_t, "fc1_b": params["fc1_b"].astype(f32),
        "fc2_w": fc2_w_t, "fc2_b": params["fc2_b"].astype(f32),
    }


# ----------------------------------------------------------------------------
# Full forward pass
# ----------------------------------------------------------------------------
def simple_cnn_forward(x_nchw, p):
    n, cin, H, W = x_nchw.shape
    # NCHW -> flat NHWC rows (n, H*W, Cin).
    x = jnp.transpose(x_nchw, (0, 2, 3, 1)).reshape(n, H * W, cin)
    # conv1 consumes a tiny K=27 im2col (review-blessed): row p holds the
    # 3x3xCin patch at flat position p, so the kernel does ONE K=27 dot per
    # pooled row pair instead of nine K=3 dots.
    xp = jnp.pad(x, ((0, 0), (0, 2 * W + 2), (0, 0)))
    x = jnp.concatenate(
        [xp[:, kh * W + kw: kh * W + kw + H * W, :]
         for kh in range(3) for kw in range(3)], axis=-1)        # (n, H*W, 27)
    x = conv3x3_relu_pool(x, p["conv1_w"], p["conv1_b"], p["sel1"], H=H, W=W)

    def to_flat_padded(y):
        # (n, Hp, Wp, C) -> flat spatial rows + 2 zero rows so the next conv's
        # shifted flat-row loads stay in bounds.
        # TODO(synk): fold the 2 pad rows into the conv kernel's own output
        # (write Hp*Wp+2 flat rows) to drop this small per-layer HBM copy.
        nb, hh, ww, c = y.shape
        return jnp.pad(y.reshape(nb, hh * ww, c), ((0, 0), (0, 2), (0, 0)))

    H, W = (H - 2) // 2, (W - 2) // 2
    x = conv3x3_relu_pool(to_flat_padded(x), p["conv2_w"], p["conv2_b"],
                          p["sel2"], H=H, W=W)
    H, W = (H - 2) // 2, (W - 2) // 2
    x = conv3x3_relu_pool(to_flat_padded(x), p["conv3_w"], p["conv3_b"],
                          p["sel3"], H=H, W=W)

    # Flatten (h, w, c); the PyTorch NCHW .view() permutation is baked into
    # fc1's columns at prep time.  FC GEMMs run with bf16 MXU inputs.
    x = x.reshape(n, -1).astype(jnp.bfloat16)
    x = matmul_bias(x, p["fc1_w"], p["fc1_b"], relu=True)
    # nn.Dropout(0.5) is the identity in eval/inference.
    # TODO(synk): training-mode dropout (PRNG mask) not implemented.
    x = matmul_bias(x.astype(jnp.bfloat16), p["fc2_w"], p["fc2_b"], relu=False)
    return x


# ----------------------------------------------------------------------------
# Pure-JAX reference (uses the ORIGINAL f32 params)
# ----------------------------------------------------------------------------
def reference_forward(x_nchw, params):
    hi = lax.Precision.HIGHEST

    def conv(x, w, b):
        y = lax.conv_general_dilated(
            x, w, (1, 1), "VALID",
            dimension_numbers=("NCHW", "OIHW", "NCHW"), precision=hi)
        return jax.nn.relu(y + b[None, :, None, None])

    def pool(x):
        return lax.reduce_window(x, -jnp.inf, lax.max,
                                 (1, 1, 2, 2), (1, 1, 2, 2), "VALID")

    x = pool(conv(x_nchw, params["conv1_w"], params["conv1_b"]))
    x = pool(conv(x, params["conv2_w"], params["conv2_b"]))
    x = pool(conv(x, params["conv3_w"], params["conv3_b"]))
    x = x.reshape(x.shape[0], -1)
    x = jax.nn.relu(jnp.dot(x, params["fc1_w"].T, precision=hi) + params["fc1_b"])
    x = jnp.dot(x, params["fc2_w"].T, precision=hi) + params["fc2_b"]
    return x


if __name__ == "__main__":
    key = jax.random.PRNGKey(0)
    ks = jax.random.split(key, 11)

    N, H, W = 2, 32, 32          # small stand-in for the 200x200 PyTorch input
    num_classes = 29
    # spatial trace: 32 ->conv 30 ->pool 15 ->conv 13 ->pool 6 ->conv 4 ->pool 2
    fc1_in = 128 * 2 * 2         # = 512

    params = {
        "conv1_w": jax.random.normal(ks[0], (32, 3, 3, 3), jnp.float32) * 0.10,
        "conv1_b": jax.random.normal(ks[1], (32,), jnp.float32) * 0.10,
        "conv2_w": jax.random.normal(ks[2], (64, 32, 3, 3), jnp.float32) * 0.05,
        "conv2_b": jax.random.normal(ks[3], (64,), jnp.float32) * 0.05,
        "conv3_w": jax.random.normal(ks[4], (128, 64, 3, 3), jnp.float32) * 0.05,
        "conv3_b": jax.random.normal(ks[5], (128,), jnp.float32) * 0.05,
        "fc1_w": jax.random.normal(ks[6], (512, fc1_in), jnp.float32) * 0.05,
        "fc1_b": jax.random.normal(ks[7], (512,), jnp.float32) * 0.05,
        "fc2_w": jax.random.normal(ks[8], (num_classes, 512), jnp.float32) * 0.05,
        "fc2_b": jax.random.normal(ks[9], (num_classes,), jnp.float32) * 0.05,
    }

    x = jax.random.normal(ks[10], (N, 3, H, W), jnp.float32)

    # One-time weight / layout prep (outside the hot path).
    prepped = prepare_params(params, input_hw=(H, W))

    fwd = jax.jit(simple_cnn_forward)
    out = jax.block_until_ready(fwd(x, prepped))
    ref = jax.block_until_ready(reference_forward(x, params))

    assert out.shape == (N, num_classes), out.shape
    rel_err = jnp.max(jnp.abs(out - ref)) / (jnp.max(jnp.abs(ref)) + 1e-6)
    # Tolerance is set by the bf16 MXU inputs (weights + in-kernel casts);
    # an all-f32 build of the same kernels matches the reference to ~1e-5.
    assert rel_err < 3e-2, f"mismatch vs reference: rel_err={float(rel_err)}"

    print("KERNEL_OK")
</pallas_src>

<mosaic_0001>
module attributes {stable_mosaic.version = 11 : i64} {
  func.func @_conv_relu_pool_kernel(%arg0: i32, %arg1: memref<1x1024x27xf32, #tpu.memory_space<vmem>>, %arg2: memref<1x27x32xbf16, #tpu.memory_space<vmem>>, %arg3: memref<1x32xf32, #tpu.memory_space<vmem>>, %arg4: memref<2x15x32xbf16, #tpu.memory_space<vmem>>, %arg5: memref<1x15x15x32xf32, #tpu.memory_space<vmem>>) attributes {dimension_semantics = [#tpu.dimension_semantics<parallel>], iteration_bounds = array<i64: 2>, scalar_prefetch = 0 : i64, scratch_operands = 0 : i64, tpu.core_type = #tpu.core_type<tc>, window_params = [{transform_indices = @transform_0, window_bounds = array<i64: 1, 1024, 27>}, {pipeline_mode = #tpu.pipeline_mode<synchronous>, transform_indices = @transform_1, window_bounds = array<i64: 1, 27, 32>}, {pipeline_mode = #tpu.pipeline_mode<synchronous>, transform_indices = @transform_2, window_bounds = array<i64: 1, 32>}, {pipeline_mode = #tpu.pipeline_mode<synchronous>, transform_indices = @transform_3, window_bounds = array<i64: 2, 15, 32>}, {transform_indices = @transform_4, window_bounds = array<i64: 1, 15, 15, 32>}]} {
    %c0 = arith.constant 0 : index
    %c0_0 = arith.constant 0 : index
    %c0_1 = arith.constant 0 : index
    %0 = vector.load %arg4[%c0, %c0_0, %c0_1] : memref<2x15x32xbf16, #tpu.memory_space<vmem>>, vector<1x15x32xbf16>
    %1 = vector.shape_cast %0 : vector<1x15x32xbf16> to vector<15x32xbf16>
    %c1 = arith.constant 1 : index
    %c0_2 = arith.constant 0 : index
    %c0_3 = arith.constant 0 : index
    %2 = vector.load %arg4[%c1, %c0_2, %c0_3] : memref<2x15x32xbf16, #tpu.memory_space<vmem>>, vector<1x15x32xbf16>
    %3 = vector.shape_cast %2 : vector<1x15x32xbf16> to vector<15x32xbf16>
    %c0_4 = arith.constant 0 : index
    %c0_5 = arith.constant 0 : index
    %c0_6 = arith.constant 0 : index
    %4 = vector.load %arg1[%c0_4, %c0_5, %c0_6] : memref<1x1024x27xf32, #tpu.memory_space<vmem>>, vector<1x64x27xf32>
    %5 = vector.shape_cast %4 : vector<1x64x27xf32> to vector<64x27xf32>
    %6 = arith.truncf %5 : vector<64x27xf32> to vector<64x27xbf16>
    %c0_7 = arith.constant 0 : index
    %c0_8 = arith.constant 0 : index
    %c0_9 = arith.constant 0 : index
    %7 = vector.load %arg2[%c0_7, %c0_8, %c0_9] : memref<1x27x32xbf16, #tpu.memory_space<vmem>>, vector<1x27x32xbf16>
    %8 = vector.shape_cast %7 : vector<1x27x32xbf16> to vector<27x32xbf16>
    %cst = arith.constant dense<0.000000e+00> : vector<64x32xf32>
    %9 = tpu.matmul %6, %8, %cst {dimension_numbers = #tpu.dot_dimension_numbers<[1], [0], [0], [1], [0, 0, 1, 1], [], []>} : vector<64x27xbf16>, vector<27x32xbf16>, vector<64x32xf32> -> vector<64x32xf32>
    %c0_10 = arith.constant 0 : index
    %c0_11 = arith.constant 0 : index
    %10 = vector.load %arg3[%c0_10, %c0_11] : memref<1x32xf32, #tpu.memory_space<vmem>>, vector<1x32xf32>
    %11 = vector.broadcast %10 : vector<1x32xf32> to vector<64x32xf32>
    %12 = arith.addf %9, %11 : vector<64x32xf32>
    %cst_12 = arith.constant 0.000000e+00 : f32
    %13 = vector.broadcast %cst_12 : f32 to vector<64x32xf32>
    %14 = arith.maximumf %12, %13 : vector<64x32xf32>
    %15 = vector.extract_strided_slice %14 {offsets = [0, 0], sizes = [32, 32], strides = [1, 1]} : vector<64x32xf32> to vector<32x32xf32>
    %16 = vector.extract_strided_slice %14 {offsets = [32, 0], sizes = [32, 32], strides = [1, 1]} : vector<64x32xf32> to vector<32x32xf32>
    %17 = arith.maximumf %15, %16 : vector<32x32xf32>
    %18 = arith.truncf %17 : vector<32x32xf32> to vector<32x32xbf16>
    %cst_13 = arith.constant dense<0.000000e+00> : vector<15x32xf32>
    %19 = tpu.matmul %1, %18, %cst_13 {dimension_numbers = #tpu.dot_dimension_numbers<[1], [0], [0], [1], [0, 0, 1, 1], [], []>} : vector<15x32xbf16>, vector<32x32xbf16>, vector<15x32xf32> -> vector<15x32xf32>
    %cst_14 = arith.constant dense<0.000000e+00> : vector<15x32xf32>
    %20 = tpu.matmul %3, %18, %cst_14 {dimension_numbers = #tpu.dot_dimension_numbers<[1], [0], [0], [1], [0, 0, 1, 1], [], []>} : vector<15x32xbf16>, vector<32x32xbf16>, vector<15x32xf32> -> vector<15x32xf32>
    %21 = arith.maximumf %19, %20 : vector<15x32xf32>
    %c0_15 = arith.constant 0 : index
    %c0_16 = arith.constant 0 : index
    %c0_17 = arith.constant 0 : index
    %c0_18 = arith.constant 0 : index
    %22 = vector.load %arg5[%c0_15, %c0_16, %c0_17, %c0_18] : memref<1x15x15x32xf32, #tpu.memory_space<vmem>>, vector<1x1x15x32xf32>
    %23 = vector.shape_cast %22 : vector<1x1x15x32xf32> to vector<15x32xf32>
    %24 = vector.shape_cast %21 : vector<15x32xf32> to vector<1x1x15x32xf32>
    tpu.vector_store %arg5[%c0_15, %c0_16, %c0_17, %c0_18], %24 {strides = array<i32>} : memref<1x15x15x32xf32, #tpu.memory_space<vmem>>, vector<1x1x15x32xf32>,
    %c0_19 = arith.constant 0 : index
    %c64 = arith.constant 64 : index
    %c0_20 = arith.constant 0 : index
    %25 = vector.load %arg1[%c0_19, %c64, %c0_20] : memref<1x1024x27xf32, #tpu.memory_space<vmem>>, vector<1x64x27xf32>
    %26 = vector.shape_cast %25 : vector<1x64x27xf32> to vector<64x27xf32>
    %27 = arith.truncf %26 : vector<64x27xf32> to vector<64x27xbf16>
    %c0_21 = arith.constant 0 : index
    %c0_22 = arith.constant 0 : index
    %c0_23 = arith.constant 0 : index
    %28 = vector.load %arg2[%c0_21, %c0_22, %c0_23] : memref<1x27x32xbf16, #tpu.memory_space<vmem>>, vector<1x27x32xbf16>
    %29 = vector.shape_cast %28 : vector<1x27x32xbf16> to vector<27x32xbf16>
    %cst_24 = arith.constant dense<0.000000e+00> : vector<64x32xf32>
    %30 = tpu.matmul %27, %29, %cst_24 {dimension_numbers = #tpu.dot_dimension_numbers<[1], [0], [0], [1], [0, 0, 1, 1], [], []>} : vector<64x27xbf16>, vector<27x32xbf16>, vector<64x32xf32> -> vector<64x32xf32>
    %c0_25 = arith.constant 0 : index
    %c0_26 = arith.constant 0 : index
    %31 = vector.load %arg3[%c0_25, %c0_26] : memref<1x32xf32, #tpu.memory_space<vmem>>, vector<1x32xf32>
    %32 = vector.broadcast %31 : vector<1x32xf32> to vector<64x32xf32>
    %33 = arith.addf %30, %32 : vector<64x32xf32>
    %cst_27 = arith.constant 0.000000e+00 : f32
    %34 = vector.broadcast %cst_27 : f32 to vector<64x32xf32>
    %35 = arith.maximumf %33, %34 : vector<64x32xf32>
    %36 = vector.extract_strided_slice %35 {offsets = [0, 0], sizes = [32, 32], strides = [1, 1]} : vector<64x32xf32> to vector<32x32xf32>
    %37 = vector.extract_strided_slice %35 {offsets = [32, 0], sizes = [32, 32], strides = [1, 1]} : vector<64x32xf32> to vector<32x32xf32>
    %38 = arith.maximumf %36, %37 : vector<32x32xf32>
    %39 = arith.truncf %38 : vector<32x32xf32> to vector<32x32xbf16>
    %cst_28 = arith.constant dense<0.000000e+00> : vector<15x32xf32>
    %40 = tpu.matmul %1, %39, %cst_28 {dimension_numbers = #tpu.dot_dimension_numbers<[1], [0], [0], [1], [0, 0, 1, 1], [], []>} : vector<15x32xbf16>, vector<32x32xbf16>, vector<15x32xf32> -> vector<15x32xf32>
    %cst_29 = arith.constant dense<0.000000e+00> : vector<15x32xf32>
    %41 = tpu.matmul %3, %39, %cst_29 {dimension_numbers = #tpu.dot_dimension_numbers<[1], [0], [0], [1], [0, 0, 1, 1], [], []>} : vector<15x32xbf16>, vector<32x32xbf16>, vector<15x32xf32> -> vector<15x32xf32>
    %42 = arith.maximumf %40, %41 : vector<15x32xf32>
    %c0_30 = arith.constant 0 : index
    %c1_31 = arith.constant 1 : index
    %c0_32 = arith.constant 0 : index
    %c0_33 = arith.constant 0 : index
    %43 = vector.load %arg5[%c0_30, %c1_31, %c0_32, %c0_33] : memref<1x15x15x32xf32, #tpu.memory_space<vmem>>, vector<1x1x15x32xf32>
    %44 = vector.shape_cast %43 : vector<1x1x15x32xf32> to vector<15x32xf32>
    %45 = vector.shape_cast %42 : vector<15x32xf32> to vector<1x1x15x32xf32>
    tpu.vector_store %arg5[%c0_30, %c1_31, %c0_32, %c0_33], %45 {strides = array<i32>} : memref<1x15x15x32xf32, #tpu.memory_space<vmem>>, vector<1x1x15x32xf32>,
    %c0_34 = arith.constant 0 : index
    %c128 = arith.constant 128 : index
    %c0_35 = arith.constant 0 : index
    %46 = vector.load %arg1[%c0_34, %c128, %c0_35] : memref<1x1024x27xf32, #tpu.memory_space<vmem>>, vector<1x64x27xf32>
    %47 = vector.shape_cast %46 : vector<1x64x27xf32> to vector<64x27xf32>
    %48 = arith.truncf %47 : vector<64x27xf32> to vector<64x27xbf16>
    %c0_36 = arith.constant 0 : index
    %c0_37 = arith.constant 0 : index
    %c0_38 = arith.constant 0 : index
    %49 = vector.load %arg2[%c0_36, %c0_37, %c0_38] : memref<1x27x32xbf16, #tpu.memory_space<vmem>>, vector<1x27x32xbf16>
    %50 = vector.shape_cast %49 : vector<1x27x32xbf16> to vector<27x32xbf16>
    %cst_39 = arith.constant dense<0.000000e+00> : vector<64x32xf32>
    %51 = tpu.matmul %48, %50, %cst_39 {dimension_numbers = #tpu.dot_dimension_numbers<[1], [0], [0], [1], [0, 0, 1, 1], [], []>} : vector<64x27xbf16>, vector<27x32xbf16>, vector<64x32xf32> -> vector<64x32xf32>
    %c0_40 = arith.constant 0 : index
    %c0_41 = arith.constant 0 : index
    %52 = vector.load %arg3[%c0_40, %c0_41] : memref<1x32xf32, #tpu.memory_space<vmem>>, vector<1x32xf32>
    %53 = vector.broadcast %52 : vector<1x32xf32> to vector<64x32xf32>
    %54 = arith.addf %51, %53 : vector<64x32xf32>
    %cst_42 = arith.constant 0.000000e+00 : f32
    %55 = vector.broadcast %cst_42 : f32 to vector<64x32xf32>
    %56 = arith.maximumf %54, %55 : vector<64x32xf32>
    %57 = vector.extract_strided_slice %56 {offsets = [0, 0], sizes = [32, 32], strides = [1, 1]} : vector<64x32xf32> to vector<32x32xf32>
    %58 = vector.extract_strided_slice %56 {offsets = [32, 0], sizes = [32, 32], strides = [1, 1]} : vector<64x32xf32> to vector<32x32xf32>
    %59 = arith.maximumf %57, %58 : vector<32x32xf32>
    %60 = arith.truncf %59 : vector<32x32xf32> to vector<32x32xbf16>
    %cst_43 = arith.constant dense<0.000000e+00> : vector<15x32xf32>
    %61 = tpu.matmul %1, %60, %cst_43 {dimension_numbers = #tpu.dot_dimension_numbers<[1], [0], [0], [1], [0, 0, 1, 1], [], []>} : vector<15x32xbf16>, vector<32x32xbf16>, vector<15x32xf32> -> vector<15x32xf32>
    %cst_44 = arith.constant dense<0.000000e+00> : vector<15x32xf32>
    %62 = tpu.matmul %3, %60, %cst_44 {dimension_numbers = #tpu.dot_dimension_numbers<[1], [0], [0], [1], [0, 0, 1, 1], [], []>} : vector<15x32xbf16>, vector<32x32xbf16>, vector<15x32xf32> -> vector<15x32xf32>
    %63 = arith.maximumf %61, %62 : vector<15x32xf32>
    %c0_45 = arith.constant 0 : index
    %c2 = arith.constant 2 : index
    %c0_46 = arith.constant 0 : index
    %c0_47 = arith.constant 0 : index
    %64 = vector.load %arg5[%c0_45, %c2, %c0_46, %c0_47] : memref<1x15x15x32xf32, #tpu.memory_space<vmem>>, vector<1x1x15x32xf32>
    %65 = vector.shape_cast %64 : vector<1x1x15x32xf32> to vector<15x32xf32>
    %66 = vector.shape_cast %63 : vector<15x32xf32> to vector<1x1x15x32xf32>
    tpu.vector_store %arg5[%c0_45, %c2, %c0_46, %c0_47], %66 {strides = array<i32>} : memref<1x15x15x32xf32, #tpu.memory_space<vmem>>, vector<1x1x15x32xf32>,
    %c0_48 = arith.constant 0 : index
    %c192 = arith.constant 192 : index
    %c0_49 = arith.constant 0 : index
    %67 = vector.load %arg1[%c0_48, %c192, %c0_49] : memref<1x1024x27xf32, #tpu.memory_space<vmem>>, vector<1x64x27xf32>
    %68 = vector.shape_cast %67 : vector<1x64x27xf32> to vector<64x27xf32>
    %69 = arith.truncf %68 : vector<64x27xf32> to vector<64x27xbf16>
    %c0_50 = arith.constant 0 : index
    %c0_51 = arith.constant 0 : index
    %c0_52 = arith.constant 0 : index
    %70 = vector.load %arg2[%c0_50, %c0_51, %c0_52] : memref<1x27x32xbf16, #tpu.memory_space<vmem>>, vector<1x27x32xbf16>
    %71 = vector.shape_cast %70 : vector<1x27x32xbf16> to vector<27x32xbf16>
    %cst_53 = arith.constant dense<0.000000e+00> : vector<64x32xf32>
    %72 = tpu.matmul %69, %71, %cst_53 {dimension_numbers = #tpu.dot_dimension_numbers<[1], [0], [0], [1], [0, 0, 1, 1], [], []>} : vector<64x27xbf16>, vector<27x32xbf16>, vector<64x32xf32> -> vector<64x32xf32>
    %c0_54 = arith.constant 0 : index
    %c0_55 = arith.constant 0 : index
    %73 = vector.load %arg3[%c0_54, %c0_55] : memref<1x32xf32, #tpu.memory_space<vmem>>, vector<1x32xf32>
    %74 = vector.broadcast %73 : vector<1x32xf32> to vector<64x32xf32>
    %75 = arith.addf %72, %74 : vector<64x32xf32>
    %cst_56 = arith.constant 0.000000e+00 : f32
    %76 = vector.broadcast %cst_56 : f32 to vector<64x32xf32>
    %77 = arith.maximumf %75, %76 : vector<64x32xf32>
    %78 = vector.extract_strided_slice %77 {offsets = [0, 0], sizes = [32, 32], strides = [1, 1]} : vector<64x32xf32> to vector<32x32xf32>
    %79 = vector.extract_strided_slice %77 {offsets = [32, 0], sizes = [32, 32], strides = [1, 1]} : vector<64x32xf32> to vector<32x32xf32>
    %80 = arith.maximumf %78, %79 : vector<32x32xf32>
    %81 = arith.truncf %80 : vector<32x32xf32> to vector<32x32xbf16>
    %cst_57 = arith.constant dense<0.000000e+00> : vector<15x32xf32>
    %82 = tpu.matmul %1, %81, %cst_57 {dimension_numbers = #tpu.dot_dimension_numbers<[1], [0], [0], [1], [0, 0, 1, 1], [], []>} : vector<15x32xbf16>, vector<32x32xbf16>, vector<15x32xf32> -> vector<15x32xf32>
    %cst_58 = arith.constant dense<0.000000e+00> : vector<15x32xf32>
    %83 = tpu.matmul %3, %81, %cst_58 {dimension_numbers = #tpu.dot_dimension_numbers<[1], [0], [0], [1], [0, 0, 1, 1], [], []>} : vector<15x32xbf16>, vector<32x32xbf16>, vector<15x32xf32> -> vector<15x32xf32>
    %84 = arith.maximumf %82, %83 : vector<15x32xf32>
    %c0_59 = arith.constant 0 : index
    %c3 = arith.constant 3 : index
    %c0_60 = arith.constant 0 : index
    %c0_61 = arith.constant 0 : index
    %85 = vector.load %arg5[%c0_59, %c3, %c0_60, %c0_61] : memref<1x15x15x32xf32, #tpu.memory_space<vmem>>, vector<1x1x15x32xf32>
    %86 = vector.shape_cast %85 : vector<1x1x15x32xf32> to vector<15x32xf32>
    %87 = vector.shape_cast %84 : vector<15x32xf32> to vector<1x1x15x32xf32>
    tpu.vector_store %arg5[%c0_59, %c3, %c0_60, %c0_61], %87 {strides = array<i32>} : memref<1x15x15x32xf32, #tpu.memory_space<vmem>>, vector<1x1x15x32xf32>,
    %c0_62 = arith.constant 0 : index
    %c256 = arith.constant 256 : index
    %c0_63 = arith.constant 0 : index
    %88 = vector.load %arg1[%c0_62, %c256, %c0_63] : memref<1x1024x27xf32, #tpu.memory_space<vmem>>, vector<1x64x27xf32>
    %89 = vector.shape_cast %88 : vector<1x64x27xf32> to vector<64x27xf32>
    %90 = arith.truncf %89 : vector<64x27xf32> to vector<64x27xbf16>
    %c0_64 = arith.constant 0 : index
    %c0_65 = arith.constant 0 : index
    %c0_66 = arith.constant 0 : index
    %91 = vector.load %arg2[%c0_64, %c0_65, %c0_66] : memref<1x27x32xbf16, #tpu.memory_space<vmem>>, vector<1x27x32xbf16>
    %92 = vector.shape_cast %91 : vector<1x27x32xbf16> to vector<27x32xbf16>
    %cst_67 = arith.constant dense<0.000000e+00> : vector<64x32xf32>
    %93 = tpu.matmul %90, %92, %cst_67 {dimension_numbers = #tpu.dot_dimension_numbers<[1], [0], [0], [1], [0, 0, 1, 1], [], []>} : vector<64x27xbf16>, vector<27x32xbf16>, vector<64x32xf32> -> vector<64x32xf32>
    %c0_68 = arith.constant 0 : index
    %c0_69 = arith.constant 0 : index
    %94 = vector.load %arg3[%c0_68, %c0_69] : memref<1x32xf32, #tpu.memory_space<vmem>>, vector<1x32xf32>
    %95 = vector.broadcast %94 : vector<1x32xf32> to vector<64x32xf32>
    %96 = arith.addf %93, %95 : vector<64x32xf32>
    %cst_70 = arith.constant 0.000000e+00 : f32
    %97 = vector.broadcast %cst_70 : f32 to vector<64x32xf32>
    %98 = arith.maximumf %96, %97 : vector<64x32xf32>
    %99 = vector.extract_strided_slice %98 {offsets = [0, 0], sizes = [32, 32], strides = [1, 1]} : vector<64x32xf32> to vector<32x32xf32>
    %100 = vector.extract_strided_slice %98 {offsets = [32, 0], sizes = [32, 32], strides = [1, 1]} : vector<64x32xf32> to vector<32x32xf32>
    %101 = arith.maximumf %99, %100 : vector<32x32xf32>
    %102 = arith.truncf %101 : vector<32x32xf32> to vector<32x32xbf16>
    %cst_71 = arith.constant dense<0.000000e+00> : vector<15x32xf32>
    %103 = tpu.matmul %1, %102, %cst_71 {dimension_numbers = #tpu.dot_dimension_numbers<[1], [0], [0], [1], [0, 0, 1, 1], [], []>} : vector<15x32xbf16>, vector<32x32xbf16>, vector<15x32xf32> -> vector<15x32xf32>
    %cst_72 = arith.constant dense<0.000000e+00> : vector<15x32xf32>
    %104 = tpu.matmul %3, %102, %cst_72 {dimension_numbers = #tpu.dot_dimension_numbers<[1], [0], [0], [1], [0, 0, 1, 1], [], []>} : vector<15x32xbf16>, vector<32x32xbf16>, vector<15x32xf32> -> vector<15x32xf32>
    %105 = arith.maximumf %103, %104 : vector<15x32xf32>
    %c0_73 = arith.constant 0 : index
    %c4 = arith.constant 4 : index
    %c0_74 = arith.constant 0 : index
    %c0_75 = arith.constant 0 : index
    %106 = vector.load %arg5[%c0_73, %c4, %c0_74, %c0_75] : memref<1x15x15x32xf32, #tpu.memory_space<vmem>>, vector<1x1x15x32xf32>
    %107 = vector.shape_cast %106 : vector<1x1x15x32xf32> to vector<15x32xf32>
    %108 = vector.shape_cast %105 : vector<15x32xf32> to vector<1x1x15x32xf32>
    tpu.vector_store %arg5[%c0_73, %c4, %c0_74, %c0_75], %108 {strides = array<i32>} : memref<1x15x15x32xf32, #tpu.memory_space<vmem>>, vector<1x1x15x32xf32>,
    %c0_76 = arith.constant 0 : index
    %c320 = arith.constant 320 : index
    %c0_77 = arith.constant 0 : index
    %109 = vector.load %arg1[%c0_76, %c320, %c0_77] : memref<1x1024x27xf32, #tpu.memory_space<vmem>>, vector<1x64x27xf32>
    %110 = vector.shape_cast %109 : vector<1x64x27xf32> to vector<64x27xf32>
    %111 = arith.truncf %110 : vector<64x27xf32> to vector<64x27xbf16>
    %c0_78 = arith.constant 0 : index
    %c0_79 = arith.constant 0 : index
    %c0_80 = arith.constant 0 : index
    %112 = vector.load %arg2[%c0_78, %c0_79, %c0_80] : memref<1x27x32xbf16, #tpu.memory_space<vmem>>, vector<1x27x32xbf16>
    %113 = vector.shape_cast %112 : vector<1x27x32xbf16> to vector<27x32xbf16>
    %cst_81 = arith.constant dense<0.000000e+00> : vector<64x32xf32>
    %114 = tpu.matmul %111, %113, %cst_81 {dimension_numbers = #tpu.dot_dimension_numbers<[1], [0], [0], [1], [0, 0, 1, 1], [], []>} : vector<64x27xbf16>, vector<27x32xbf16>, vector<64x32xf32> -> vector<64x32xf32>
    %c0_82 = arith.constant 0 : index
    %c0_83 = arith.constant 0 : index
    %115 = vector.load %arg3[%c0_82, %c0_83] : memref<1x32xf32, #tpu.memory_space<vmem>>, vector<1x32xf32>
    %116 = vector.broadcast %115 : vector<1x32xf32> to vector<64x32xf32>
    %117 = arith.addf %114, %116 : vector<64x32xf32>
    %cst_84 = arith.constant 0.000000e+00 : f32
    %118 = vector.broadcast %cst_84 : f32 to vector<64x32xf32>
    %119 = arith.maximumf %117, %118 : vector<64x32xf32>
    %120 = vector.extract_strided_slice %119 {offsets = [0, 0], sizes = [32, 32], strides = [1, 1]} : vector<64x32xf32> to vector<32x32xf32>
    %121 = vector.extract_strided_slice %119 {offsets = [32, 0], sizes = [32, 32], strides = [1, 1]} : vector<64x32xf32> to vector<32x32xf32>
    %122 = arith.maximumf %120, %121 : vector<32x32xf32>
    %123 = arith.truncf %122 : vector<32x32xf32> to vector<32x32xbf16>
    %cst_85 = arith.constant dense<0.000000e+00> : vector<15x32xf32>
    %124 = tpu.matmul %1, %123, %cst_85 {dimension_numbers = #tpu.dot_dimension_numbers<[1], [0], [0], [1], [0, 0, 1, 1], [], []>} : vector<15x32xbf16>, vector<32x32xbf16>, vector<15x32xf32> -> vector<15x32xf32>
    %cst_86 = arith.constant dense<0.000000e+00> : vector<15x32xf32>
    %125 = tpu.matmul %3, %123, %cst_86 {dimension_numbers = #tpu.dot_dimension_numbers<[1], [0], [0], [1], [0, 0, 1, 1], [], []>} : vector<15x32xbf16>, vector<32x32xbf16>, vector<15x32xf32> -> vector<15x32xf32>
    %126 = arith.maximumf %124, %125 : vector<15x32xf32>
    %c0_87 = arith.constant 0 : index
    %c5 = arith.constant 5 : index
    %c0_88 = arith.constant 0 : index
    %c0_89 = arith.constant 0 : index
    %127 = vector.load %arg5[%c0_87, %c5, %c0_88, %c0_89] : memref<1x15x15x32xf32, #tpu.memory_space<vmem>>, vector<1x1x15x32xf32>
    %128 = vector.shape_cast %127 : vector<1x1x15x32xf32> to vector<15x32xf32>
    %129 = vector.shape_cast %126 : vector<15x32xf32> to vector<1x1x15x32xf32>
    tpu.vector_store %arg5[%c0_87, %c5, %c0_88, %c0_89], %129 {strides = array<i32>} : memref<1x15x15x32xf32, #tpu.memory_space<vmem>>, vector<1x1x15x32xf32>,
    %c0_90 = arith.constant 0 : index
    %c384 = arith.constant 384 : index
    %c0_91 = arith.constant 0 : index
    %130 = vector.load %arg1[%c0_90, %c384, %c0_91] : memref<1x1024x27xf32, #tpu.memory_space<vmem>>, vector<1x64x27xf32>
    %131 = vector.shape_cast %130 : vector<1x64x27xf32> to vector<64x27xf32>
    %132 = arith.truncf %131 : vector<64x27xf32> to vector<64x27xbf16>
    %c0_92 = arith.constant 0 : index
    %c0_93 = arith.constant 0 : index
    %c0_94 = arith.constant 0 : index
    %133 = vector.load %arg2[%c0_92, %c0_93, %c0_94] : memref<1x27x32xbf16, #tpu.memory_space<vmem>>, vector<1x27x32xbf16>
    %134 = vector.shape_cast %133 : vector<1x27x32xbf16> to vector<27x32xbf16>
    %cst_95 = arith.constant dense<0.000000e+00> : vector<64x32xf32>
    %135 = tpu.matmul %132, %134, %cst_95 {dimension_numbers = #tpu.dot_dimension_numbers<[1], [0], [0], [1], [0, 0, 1, 1], [], []>} : vector<64x27xbf16>, vector<27x32xbf16>, vector<64x32xf32> -> vector<64x32xf32>
    %c0_96 = arith.constant 0 : index
    %c0_97 = arith.constant 0 : index
    %136 = vector.load %arg3[%c0_96, %c0_97] : memref<1x32xf32, #tpu.memory_space<vmem>>, vector<1x32xf32>
    %137 = vector.broadcast %136 : vector<1x32xf32> to vector<64x32xf32>
    %138 = arith.addf %135, %137 : vector<64x32xf32>
    %cst_98 = arith.constant 0.000000e+00 : f32
    %139 = vector.broadcast %cst_98 : f32 to vector<64x32xf32>
    %140 = arith.maximumf %138, %139 : vector<64x32xf32>
    %141 = vector.extract_strided_slice %140 {offsets = [0, 0], sizes = [32, 32], strides = [1, 1]} : vector<64x32xf32> to vector<32x32xf32>
    %142 = vector.extract_strided_slice %140 {offsets = [32, 0], sizes = [32, 32], strides = [1, 1]} : vector<64x32xf32> to vector<32x32xf32>
    %143 = arith.maximumf %141, %142 : vector<32x32xf32>
    %144 = arith.truncf %143 : vector<32x32xf32> to vector<32x32xbf16>
    %cst_99 = arith.constant dense<0.000000e+00> : vector<15x32xf32>
    %145 = tpu.matmul %1, %144, %cst_99 {dimension_numbers = #tpu.dot_dimension_numbers<[1], [0], [0], [1], [0, 0, 1, 1], [], []>} : vector<15x32xbf16>, vector<32x32xbf16>, vector<15x32xf32> -> vector<15x32xf32>
    %cst_100 = arith.constant dense<0.000000e+00> : vector<15x32xf32>
    %146 = tpu.matmul %3, %144, %cst_100 {dimension_numbers = #tpu.dot_dimension_numbers<[1], [0], [0], [1], [0, 0, 1, 1], [], []>} : vector<15x32xbf16>, vector<32x32xbf16>, vector<15x32xf32> -> vector<15x32xf32>
    %147 = arith.maximumf %145, %146 : vector<15x32xf32>
    %c0_101 = arith.constant 0 : index
    %c6 = arith.constant 6 : index
    %c0_102 = arith.constant 0 : index
    %c0_103 = arith.constant 0 : index
    %148 = vector.load %arg5[%c0_101, %c6, %c0_102, %c0_103] : memref<1x15x15x32xf32, #tpu.memory_space<vmem>>, vector<1x1x15x32xf32>
    %149 = vector.shape_cast %148 : vector<1x1x15x32xf32> to vector<15x32xf32>
    %150 = vector.shape_cast %147 : vector<15x32xf32> to vector<1x1x15x32xf32>
    tpu.vector_store %arg5[%c0_101, %c6, %c0_102, %c0_103], %150 {strides = array<i32>} : memref<1x15x15x32xf32, #tpu.memory_space<vmem>>, vector<1x1x15x32xf32>,
    %c0_104 = arith.constant 0 : index
    %c448 = arith.constant 448 : index
    %c0_105 = arith.constant 0 : index
    %151 = vector.load %arg1[%c0_104, %c448, %c0_105] : memref<1x1024x27xf32, #tpu.memory_space<vmem>>, vector<1x64x27xf32>
    %152 = vector.shape_cast %151 : vector<1x64x27xf32> to vector<64x27xf32>
    %153 = arith.truncf %152 : vector<64x27xf32> to vector<64x27xbf16>
    %c0_106 = arith.constant 0 : index
    %c0_107 = arith.constant 0 : index
    %c0_108 = arith.constant 0 : index
    %154 = vector.load %arg2[%c0_106, %c0_107, %c0_108] : memref<1x27x32xbf16, #tpu.memory_space<vmem>>, vector<1x27x32xbf16>
    %155 = vector.shape_cast %154 : vector<1x27x32xbf16> to vector<27x32xbf16>
    %cst_109 = arith.constant dense<0.000000e+00> : vector<64x32xf32>
    %156 = tpu.matmul %153, %155, %cst_109 {dimension_numbers = #tpu.dot_dimension_numbers<[1], [0], [0], [1], [0, 0, 1, 1], [], []>} : vector<64x27xbf16>, vector<27x32xbf16>, vector<64x32xf32> -> vector<64x32xf32>
    %c0_110 = arith.constant 0 : index
    %c0_111 = arith.constant 0 : index
    %157 = vector.load %arg3[%c0_110, %c0_111] : memref<1x32xf32, #tpu.memory_space<vmem>>, vector<1x32xf32>
    %158 = vector.broadcast %157 : vector<1x32xf32> to vector<64x32xf32>
    %159 = arith.addf %156, %158 : vector<64x32xf32>
    %cst_112 = arith.constant 0.000000e+00 : f32
    %160 = vector.broadcast %cst_112 : f32 to vector<64x32xf32>
    %161 = arith.maximumf %159, %160 : vector<64x32xf32>
    %162 = vector.extract_strided_slice %161 {offsets = [0, 0], sizes = [32, 32], strides = [1, 1]} : vector<64x32xf32> to vector<32x32xf32>
    %163 = vector.extract_strided_slice %161 {offsets = [32, 0], sizes = [32, 32], strides = [1, 1]} : vector<64x32xf32> to vector<32x32xf32>
    %164 = arith.maximumf %162, %163 : vector<32x32xf32>
    %165 = arith.truncf %164 : vector<32x32xf32> to vector<32x32xbf16>
    %cst_113 = arith.constant dense<0.000000e+00> : vector<15x32xf32>
    %166 = tpu.matmul %1, %165, %cst_113 {dimension_numbers = #tpu.dot_dimension_numbers<[1], [0], [0], [1], [0, 0, 1, 1], [], []>} : vector<15x32xbf16>, vector<32x32xbf16>, vector<15x32xf32> -> vector<15x32xf32>
    %cst_114 = arith.constant dense<0.000000e+00> : vector<15x32xf32>
    %167 = tpu.matmul %3, %165, %cst_114 {dimension_numbers = #tpu.dot_dimension_numbers<[1], [0], [0], [1], [0, 0, 1, 1], [], []>} : vector<15x32xbf16>, vector<32x32xbf16>, vector<15x32xf32> -> vector<15x32xf32>
    %168 = arith.maximumf %166, %167 : vector<15x32xf32>
    %c0_115 = arith.constant 0 : index
    %c7 = arith.constant 7 : index
    %c0_116 = arith.constant 0 : index
    %c0_117 = arith.constant 0 : index
    %169 = vector.load %arg5[%c0_115, %c7, %c0_116, %c0_117] : memref<1x15x15x32xf32, #tpu.memory_space<vmem>>, vector<1x1x15x32xf32>
    %170 = vector.shape_cast %169 : vector<1x1x15x32xf32> to vector<15x32xf32>
    %171 = vector.shape_cast %168 : vector<15x32xf32> to vector<1x1x15x32xf32>
    tpu.vector_store %arg5[%c0_115, %c7, %c0_116, %c0_117], %171 {strides = array<i32>} : memref<1x15x15x32xf32, #tpu.memory_space<vmem>>, vector<1x1x15x32xf32>,
    %c0_118 = arith.constant 0 : index
    %c512 = arith.constant 512 : index
    %c0_119 = arith.constant 0 : index
    %172 = vector.load %arg1[%c0_118, %c512, %c0_119] : memref<1x1024x27xf32, #tpu.memory_space<vmem>>, vector<1x64x27xf32>
    %173 = vector.shape_cast %172 : vector<1x64x27xf32> to vector<64x27xf32>
    %174 = arith.truncf %173 : vector<64x27xf32> to vector<64x27xbf16>
    %c0_120 = arith.constant 0 : index
    %c0_121 = arith.constant 0 : index
    %c0_122 = arith.constant 0 : index
    %175 = vector.load %arg2[%c0_120, %c0_121, %c0_122] : memref<1x27x32xbf16, #tpu.memory_space<vmem>>, vector<1x27x32xbf16>
    %176 = vector.shape_cast %175 : vector<1x27x32xbf16> to vector<27x32xbf16>
    %cst_123 = arith.constant dense<0.000000e+00> : vector<64x32xf32>
    %177 = tpu.matmul %174, %176, %cst_123 {dimension_numbers = #tpu.dot_dimension_numbers<[1], [0], [0], [1], [0, 0, 1, 1], [], []>} : vector<64x27xbf16>, vector<27x32xbf16>, vector<64x32xf32> -> vector<64x32xf32>
    %c0_124 = arith.constant 0 : index
    %c0_125 = arith.constant 0 : index
    %178 = vector.load %arg3[%c0_124, %c0_125] : memref<1x32xf32, #tpu.memory_space<vmem>>, vector<1x32xf32>
    %179 = vector.broadcast %178 : vector<1x32xf32> to vector<64x32xf32>
    %180 = arith.addf %177, %179 : vector<64x32xf32>
    %cst_126 = arith.constant 0.000000e+00 : f32
    %181 = vector.broadcast %cst_126 : f32 to vector<64x32xf32>
    %182 = arith.maximumf %180, %181 : vector<64x32xf32>
    %183 = vector.extract_strided_slice %182 {offsets = [0, 0], sizes = [32, 32], strides = [1, 1]} : vector<64x32xf32> to vector<32x32xf32>
    %184 = vector.extract_strided_slice %182 {offsets = [32, 0], sizes = [32, 32], strides = [1, 1]} : vector<64x32xf32> to vector<32x32xf32>
    %185 = arith.maximumf %183, %184 : vector<32x32xf32>
    %186 = arith.truncf %185 : vector<32x32xf32> to vector<32x32xbf16>
    %cst_127 = arith.constant dense<0.000000e+00> : vector<15x32xf32>
    %187 = tpu.matmul %1, %186, %cst_127 {dimension_numbers = #tpu.dot_dimension_numbers<[1], [0], [0], [1], [0, 0, 1, 1], [], []>} : vector<15x32xbf16>, vector<32x32xbf16>, vector<15x32xf32> -> vector<15x32xf32>
    %cst_128 = arith.constant dense<0.000000e+00> : vector<15x32xf32>
    %188 = tpu.matmul %3, %186, %cst_128 {dimension_numbers = #tpu.dot_dimension_numbers<[1], [0], [0], [1], [0, 0, 1, 1], [], []>} : vector<15x32xbf16>, vector<32x32xbf16>, vector<15x32xf32> -> vector<15x32xf32>
    %189 = arith.maximumf %187, %188 : vector<15x32xf32>
    %c0_129 = arith.constant 0 : index
    %c8 = arith.constant 8 : index
    %c0_130 = arith.constant 0 : index
    %c0_131 = arith.constant 0 : index
    %190 = vector.load %arg5[%c0_129, %c8, %c0_130, %c0_131] : memref<1x15x15x32xf32, #tpu.memory_space<vmem>>, vector<1x1x15x32xf32>
    %191 = vector.shape_cast %190 : vector<1x1x15x32xf32> to vector<15x32xf32>
    %192 = vector.shape_cast %189 : vector<15x32xf32> to vector<1x1x15x32xf32>
    tpu.vector_store %arg5[%c0_129, %c8, %c0_130, %c0_131], %192 {strides = array<i32>} : memref<1x15x15x32xf32, #tpu.memory_space<vmem>>, vector<1x1x15x32xf32>,
    %c0_132 = arith.constant 0 : index
    %c576 = arith.constant 576 : index
    %c0_133 = arith.constant 0 : index
    %193 = vector.load %arg1[%c0_132, %c576, %c0_133] : memref<1x1024x27xf32, #tpu.memory_space<vmem>>, vector<1x64x27xf32>
    %194 = vector.shape_cast %193 : vector<1x64x27xf32> to vector<64x27xf32>
    %195 = arith.truncf %194 : vector<64x27xf32> to vector<64x27xbf16>
    %c0_134 = arith.constant 0 : index
    %c0_135 = arith.constant 0 : index
    %c0_136 = arith.constant 0 : index
    %196 = vector.load %arg2[%c0_134, %c0_135, %c0_136] : memref<1x27x32xbf16, #tpu.memory_space<vmem>>, vector<1x27x32xbf16>
    %197 = vector.shape_cast %196 : vector<1x27x32xbf16> to vector<27x32xbf16>
    %cst_137 = arith.constant dense<0.000000e+00> : vector<64x32xf32>
    %198 = tpu.matmul %195, %197, %cst_137 {dimension_numbers = #tpu.dot_dimension_numbers<[1], [0], [0], [1], [0, 0, 1, 1], [], []>} : vector<64x27xbf16>, vector<27x32xbf16>, vector<64x32xf32> -> vector<64x32xf32>
    %c0_138 = arith.constant 0 : index
    %c0_139 = arith.constant 0 : index
    %199 = vector.load %arg3[%c0_138, %c0_139] : memref<1x32xf32, #tpu.memory_space<vmem>>, vector<1x32xf32>
    %200 = vector.broadcast %199 : vector<1x32xf32> to vector<64x32xf32>
    %201 = arith.addf %198, %200 : vector<64x32xf32>
    %cst_140 = arith.constant 0.000000e+00 : f32
    %202 = vector.broadcast %cst_140 : f32 to vector<64x32xf32>
    %203 = arith.maximumf %201, %202 : vector<64x32xf32>
    %204 = vector.extract_strided_slice %203 {offsets = [0, 0], sizes = [32, 32], strides = [1, 1]} : vector<64x32xf32> to vector<32x32xf32>
    %205 = vector.extract_strided_slice %203 {offsets = [32, 0], sizes = [32, 32], strides = [1, 1]} : vector<64x32xf32> to vector<32x32xf32>
    %206 = arith.maximumf %204, %205 : vector<32x32xf32>
    %207 = arith.truncf %206 : vector<32x32xf32> to vector<32x32xbf16>
    %cst_141 = arith.constant dense<0.000000e+00> : vector<15x32xf32>
    %208 = tpu.matmul %1, %207, %cst_141 {dimension_numbers = #tpu.dot_dimension_numbers<[1], [0], [0], [1], [0, 0, 1, 1], [], []>} : vector<15x32xbf16>, vector<32x32xbf16>, vector<15x32xf32> -> vector<15x32xf32>
    %cst_142 = arith.constant dense<0.000000e+00> : vector<15x32xf32>
    %209 = tpu.matmul %3, %207, %cst_142 {dimension_numbers = #tpu.dot_dimension_numbers<[1], [0], [0], [1], [0, 0, 1, 1], [], []>} : vector<15x32xbf16>, vector<32x32xbf16>, vector<15x32xf32> -> vector<15x32xf32>
    %210 = arith.maximumf %208, %209 : vector<15x32xf32>
    %c0_143 = arith.constant 0 : index
    %c9 = arith.constant 9 : index
    %c0_144 = arith.constant 0 : index
    %c0_145 = arith.constant 0 : index
    %211 = vector.load %arg5[%c0_143, %c9, %c0_144, %c0_145] : memref<1x15x15x32xf32, #tpu.memory_space<vmem>>, vector<1x1x15x32xf32>
    %212 = vector.shape_cast %211 : vector<1x1x15x32xf32> to vector<15x32xf32>
    %213 = vector.shape_cast %210 : vector<15x32xf32> to vector<1x1x15x32xf32>
    tpu.vector_store %arg5[%c0_143, %c9, %c0_144, %c0_145], %213 {strides = array<i32>} : memref<1x15x15x32xf32, #tpu.memory_space<vmem>>, vector<1x1x15x32xf32>,
    %c0_146 = arith.constant 0 : index
    %c640 = arith.constant 640 : index
    %c0_147 = arith.constant 0 : index
    %214 = vector.load %arg1[%c0_146, %c640, %c0_147] : memref<1x1024x27xf32, #tpu.memory_space<vmem>>, vector<1x64x27xf32>
    %215 = vector.shape_cast %214 : vector<1x64x27xf32> to vector<64x27xf32>
    %216 = arith.truncf %215 : vector<64x27xf32> to vector<64x27xbf16>
    %c0_148 = arith.constant 0 : index
    %c0_149 = arith.constant 0 : index
    %c0_150 = arith.constant 0 : index
    %217 = vector.load %arg2[%c0_148, %c0_149, %c0_150] : memref<1x27x32xbf16, #tpu.memory_space<vmem>>, vector<1x27x32xbf16>
    %218 = vector.shape_cast %217 : vector<1x27x32xbf16> to vector<27x32xbf16>
    %cst_151 = arith.constant dense<0.000000e+00> : vector<64x32xf32>
    %219 = tpu.matmul %216, %218, %cst_151 {dimension_numbers = #tpu.dot_dimension_numbers<[1], [0], [0], [1], [0, 0, 1, 1], [], []>} : vector<64x27xbf16>, vector<27x32xbf16>, vector<64x32xf32> -> vector<64x32xf32>
    %c0_152 = arith.constant 0 : index
    %c0_153 = arith.constant 0 : index
    %220 = vector.load %arg3[%c0_152, %c0_153] : memref<1x32xf32, #tpu.memory_space<vmem>>, vector<1x32xf32>
    %221 = vector.broadcast %220 : vector<1x32xf32> to vector<64x32xf32>
    %222 = arith.addf %219, %221 : vector<64x32xf32>
    %cst_154 = arith.constant 0.000000e+00 : f32
    %223 = vector.broadcast %cst_154 : f32 to vector<64x32xf32>
    %224 = arith.maximumf %222, %223 : vector<64x32xf32>
    %225 = vector.extract_strided_slice %224 {offsets = [0, 0], sizes = [32, 32], strides = [1, 1]} : vector<64x32xf32> to vector<32x32xf32>
    %226 = vector.extract_strided_slice %224 {offsets = [32, 0], sizes = [32, 32], strides = [1, 1]} : vector<64x32xf32> to vector<32x32xf32>
    %227 = arith.maximumf %225, %226 : vector<32x32xf32>
    %228 = arith.truncf %227 : vector<32x32xf32> to vector<32x32xbf16>
    %cst_155 = arith.constant dense<0.000000e+00> : vector<15x32xf32>
    %229 = tpu.matmul %1, %228, %cst_155 {dimension_numbers = #tpu.dot_dimension_numbers<[1], [0], [0], [1], [0, 0, 1, 1], [], []>} : vector<15x32xbf16>, vector<32x32xbf16>, vector<15x32xf32> -> vector<15x32xf32>
    %cst_156 = arith.constant dense<0.000000e+00> : vector<15x32xf32>
    %230 = tpu.matmul %3, %228, %cst_156 {dimension_numbers = #tpu.dot_dimension_numbers<[1], [0], [0], [1], [0, 0, 1, 1], [], []>} : vector<15x32xbf16>, vector<32x32xbf16>, vector<15x32xf32> -> vector<15x32xf32>
    %231 = arith.maximumf %229, %230 : vector<15x32xf32>
    %c0_157 = arith.constant 0 : index
    %c10 = arith.constant 10 : index
    %c0_158 = arith.constant 0 : index
    %c0_159 = arith.constant 0 : index
    %232 = vector.load %arg5[%c0_157, %c10, %c0_158, %c0_159] : memref<1x15x15x32xf32, #tpu.memory_space<vmem>>, vector<1x1x15x32xf32>
    %233 = vector.shape_cast %232 : vector<1x1x15x32xf32> to vector<15x32xf32>
    %234 = vector.shape_cast %231 : vector<15x32xf32> to vector<1x1x15x32xf32>
    tpu.vector_store %arg5[%c0_157, %c10, %c0_158, %c0_159], %234 {strides = array<i32>} : memref<1x15x15x32xf32, #tpu.memory_space<vmem>>, vector<1x1x15x32xf32>,
    %c0_160 = arith.constant 0 : index
    %c704 = arith.constant 704 : index
    %c0_161 = arith.constant 0 : index
    %235 = vector.load %arg1[%c0_160, %c704, %c0_161] : memref<1x1024x27xf32, #tpu.memory_space<vmem>>, vector<1x64x27xf32>
    %236 = vector.shape_cast %235 : vector<1x64x27xf32> to vector<64x27xf32>
    %237 = arith.truncf %236 : vector<64x27xf32> to vector<64x27xbf16>
    %c0_162 = arith.constant 0 : index
    %c0_163 = arith.constant 0 : index
    %c0_164 = arith.constant 0 : index
    %238 = vector.load %arg2[%c0_162, %c0_163, %c0_164] : memref<1x27x32xbf16, #tpu.memory_space<vmem>>, vector<1x27x32xbf16>
    %239 = vector.shape_cast %238 : vector<1x27x32xbf16> to vector<27x32xbf16>
    %cst_165 = arith.constant dense<0.000000e+00> : vector<64x32xf32>
    %240 = tpu.matmul %237, %239, %cst_165 {dimension_numbers = #tpu.dot_dimension_numbers<[1], [0], [0], [1], [0, 0, 1, 1], [], []>} : vector<64x27xbf16>, vector<27x32xbf16>, vector<64x32xf32> -> vector<64x32xf32>
    %c0_166 = arith.constant 0 : index
    %c0_167 = arith.constant 0 : index
    %241 = vector.load %arg3[%c0_166, %c0_167] : memref<1x32xf32, #tpu.memory_space<vmem>>, vector<1x32xf32>
    %242 = vector.broadcast %241 : vector<1x32xf32> to vector<64x32xf32>
    %243 = arith.addf %240, %242 : vector<64x32xf32>
    %cst_168 = arith.constant 0.000000e+00 : f32
    %244 = vector.broadcast %cst_168 : f32 to vector<64x32xf32>
    %245 = arith.maximumf %243, %244 : vector<64x32xf32>
    %246 = vector.extract_strided_slice %245 {offsets = [0, 0], sizes = [32, 32], strides = [1, 1]} : vector<64x32xf32> to vector<32x32xf32>
    %247 = vector.extract_strided_slice %245 {offsets = [32, 0], sizes = [32, 32], strides = [1, 1]} : vector<64x32xf32> to vector<32x32xf32>
    %248 = arith.maximumf %246, %247 : vector<32x32xf32>
    %249 = arith.truncf %248 : vector<32x32xf32> to vector<32x32xbf16>
    %cst_169 = arith.constant dense<0.000000e+00> : vector<15x32xf32>
    %250 = tpu.matmul %1, %249, %cst_169 {dimension_numbers = #tpu.dot_dimension_numbers<[1], [0], [0], [1], [0, 0, 1, 1], [], []>} : vector<15x32xbf16>, vector<32x32xbf16>, vector<15x32xf32> -> vector<15x32xf32>
    %cst_170 = arith.constant dense<0.000000e+00> : vector<15x32xf32>
    %251 = tpu.matmul %3, %249, %cst_170 {dimension_numbers = #tpu.dot_dimension_numbers<[1], [0], [0], [1], [0, 0, 1, 1], [], []>} : vector<15x32xbf16>, vector<32x32xbf16>, vector<15x32xf32> -> vector<15x32xf32>
    %252 = arith.maximumf %250, %251 : vector<15x32xf32>
    %c0_171 = arith.constant 0 : index
    %c11 = arith.constant 11 : index
    %c0_172 = arith.constant 0 : index
    %c0_173 = arith.constant 0 : index
    %253 = vector.load %arg5[%c0_171, %c11, %c0_172, %c0_173] : memref<1x15x15x32xf32, #tpu.memory_space<vmem>>, vector<1x1x15x32xf32>
    %254 = vector.shape_cast %253 : vector<1x1x15x32xf32> to vector<15x32xf32>
    %255 = vector.shape_cast %252 : vector<15x32xf32> to vector<1x1x15x32xf32>
    tpu.vector_store %arg5[%c0_171, %c11, %c0_172, %c0_173], %255 {strides = array<i32>} : memref<1x15x15x32xf32, #tpu.memory_space<vmem>>, vector<1x1x15x32xf32>,
    %c0_174 = arith.constant 0 : index
    %c768 = arith.constant 768 : index
    %c0_175 = arith.constant 0 : index
    %256 = vector.load %arg1[%c0_174, %c768, %c0_175] : memref<1x1024x27xf32, #tpu.memory_space<vmem>>, vector<1x64x27xf32>
    %257 = vector.shape_cast %256 : vector<1x64x27xf32> to vector<64x27xf32>
    %258 = arith.truncf %257 : vector<64x27xf32> to vector<64x27xbf16>
    %c0_176 = arith.constant 0 : index
    %c0_177 = arith.constant 0 : index
    %c0_178 = arith.constant 0 : index
    %259 = vector.load %arg2[%c0_176, %c0_177, %c0_178] : memref<1x27x32xbf16, #tpu.memory_space<vmem>>, vector<1x27x32xbf16>
    %260 = vector.shape_cast %259 : vector<1x27x32xbf16> to vector<27x32xbf16>
    %cst_179 = arith.constant dense<0.000000e+00> : vector<64x32xf32>
    %261 = tpu.matmul %258, %260, %cst_179 {dimension_numbers = #tpu.dot_dimension_numbers<[1], [0], [0], [1], [0, 0, 1, 1], [], []>} : vector<64x27xbf16>, vector<27x32xbf16>, vector<64x32xf32> -> vector<64x32xf32>
    %c0_180 = arith.constant 0 : index
    %c0_181 = arith.constant 0 : index
    %262 = vector.load %arg3[%c0_180, %c0_181] : memref<1x32xf32, #tpu.memory_space<vmem>>, vector<1x32xf32>
    %263 = vector.broadcast %262 : vector<1x32xf32> to vector<64x32xf32>
    %264 = arith.addf %261, %263 : vector<64x32xf32>
    %cst_182 = arith.constant 0.000000e+00 : f32
    %265 = vector.broadcast %cst_182 : f32 to vector<64x32xf32>
    %266 = arith.maximumf %264, %265 : vector<64x32xf32>
    %267 = vector.extract_strided_slice %266 {offsets = [0, 0], sizes = [32, 32], strides = [1, 1]} : vector<64x32xf32> to vector<32x32xf32>
    %268 = vector.extract_strided_slice %266 {offsets = [32, 0], sizes = [32, 32], strides = [1, 1]} : vector<64x32xf32> to vector<32x32xf32>
    %269 = arith.maximumf %267, %268 : vector<32x32xf32>
    %270 = arith.truncf %269 : vector<32x32xf32> to vector<32x32xbf16>
    %cst_183 = arith.constant dense<0.000000e+00> : vector<15x32xf32>
    %271 = tpu.matmul %1, %270, %cst_183 {dimension_numbers = #tpu.dot_dimension_numbers<[1], [0], [0], [1], [0, 0, 1, 1], [], []>} : vector<15x32xbf16>, vector<32x32xbf16>, vector<15x32xf32> -> vector<15x32xf32>
    %cst_184 = arith.constant dense<0.000000e+00> : vector<15x32xf32>
    %272 = tpu.matmul %3, %270, %cst_184 {dimension_numbers = #tpu.dot_dimension_numbers<[1], [0], [0], [1], [0, 0, 1, 1], [], []>} : vector<15x32xbf16>, vector<32x32xbf16>, vector<15x32xf32> -> vector<15x32xf32>
    %273 = arith.maximumf %271, %272 : vector<15x32xf32>
    %c0_185 = arith.constant 0 : index
    %c12 = arith.constant 12 : index
    %c0_186 = arith.constant 0 : index
    %c0_187 = arith.constant 0 : index
    %274 = vector.load %arg5[%c0_185, %c12, %c0_186, %c0_187] : memref<1x15x15x32xf32, #tpu.memory_space<vmem>>, vector<1x1x15x32xf32>
    %275 = vector.shape_cast %274 : vector<1x1x15x32xf32> to vector<15x32xf32>
    %276 = vector.shape_cast %273 : vector<15x32xf32> to vector<1x1x15x32xf32>
    tpu.vector_store %arg5[%c0_185, %c12, %c0_186, %c0_187], %276 {strides = array<i32>} : memref<1x15x15x32xf32, #tpu.memory_space<vmem>>, vector<1x1x15x32xf32>,
    %c0_188 = arith.constant 0 : index
    %c832 = arith.constant 832 : index
    %c0_189 = arith.constant 0 : index
    %277 = vector.load %arg1[%c0_188, %c832, %c0_189] : memref<1x1024x27xf32, #tpu.memory_space<vmem>>, vector<1x64x27xf32>
    %278 = vector.shape_cast %277 : vector<1x64x27xf32> to vector<64x27xf32>
    %279 = arith.truncf %278 : vector<64x27xf32> to vector<64x27xbf16>
    %c0_190 = arith.constant 0 : index
    %c0_191 = arith.constant 0 : index
    %c0_192 = arith.constant 0 : index
    %280 = vector.load %arg2[%c0_190, %c0_191, %c0_192] : memref<1x27x32xbf16, #tpu.memory_space<vmem>>, vector<1x27x32xbf16>
    %281 = vector.shape_cast %280 : vector<1x27x32xbf16> to vector<27x32xbf16>
    %cst_193 = arith.constant dense<0.000000e+00> : vector<64x32xf32>
    %282 = tpu.matmul %279, %281, %cst_193 {dimension_numbers = #tpu.dot_dimension_numbers<[1], [0], [0], [1], [0, 0, 1, 1], [], []>} : vector<64x27xbf16>, vector<27x32xbf16>, vector<64x32xf32> -> vector<64x32xf32>
    %c0_194 = arith.constant 0 : index
    %c0_195 = arith.constant 0 : index
    %283 = vector.load %arg3[%c0_194, %c0_195] : memref<1x32xf32, #tpu.memory_space<vmem>>, vector<1x32xf32>
    %284 = vector.broadcast %283 : vector<1x32xf32> to vector<64x32xf32>
    %285 = arith.addf %282, %284 : vector<64x32xf32>
    %cst_196 = arith.constant 0.000000e+00 : f32
    %286 = vector.broadcast %cst_196 : f32 to vector<64x32xf32>
    %287 = arith.maximumf %285, %286 : vector<64x32xf32>
    %288 = vector.extract_strided_slice %287 {offsets = [0, 0], sizes = [32, 32], strides = [1, 1]} : vector<64x32xf32> to vector<32x32xf32>
    %289 = vector.extract_strided_slice %287 {offsets = [32, 0], sizes = [32, 32], strides = [1, 1]} : vector<64x32xf32> to vector<32x32xf32>
    %290 = arith.maximumf %288, %289 : vector<32x32xf32>
    %291 = arith.truncf %290 : vector<32x32xf32> to vector<32x32xbf16>
    %cst_197 = arith.constant dense<0.000000e+00> : vector<15x32xf32>
    %292 = tpu.matmul %1, %291, %cst_197 {dimension_numbers = #tpu.dot_dimension_numbers<[1], [0], [0], [1], [0, 0, 1, 1], [], []>} : vector<15x32xbf16>, vector<32x32xbf16>, vector<15x32xf32> -> vector<15x32xf32>
    %cst_198 = arith.constant dense<0.000000e+00> : vector<15x32xf32>
    %293 = tpu.matmul %3, %291, %cst_198 {dimension_numbers = #tpu.dot_dimension_numbers<[1], [0], [0], [1], [0, 0, 1, 1], [], []>} : vector<15x32xbf16>, vector<32x32xbf16>, vector<15x32xf32> -> vector<15x32xf32>
    %294 = arith.maximumf %292, %293 : vector<15x32xf32>
    %c0_199 = arith.constant 0 : index
    %c13 = arith.constant 13 : index
    %c0_200 = arith.constant 0 : index
    %c0_201 = arith.constant 0 : index
    %295 = vector.load %arg5[%c0_199, %c13, %c0_200, %c0_201] : memref<1x15x15x32xf32, #tpu.memory_space<vmem>>, vector<1x1x15x32xf32>
    %296 = vector.shape_cast %295 : vector<1x1x15x32xf32> to vector<15x32xf32>
    %297 = vector.shape_cast %294 : vector<15x32xf32> to vector<1x1x15x32xf32>
    tpu.vector_store %arg5[%c0_199, %c13, %c0_200, %c0_201], %297 {strides = array<i32>} : memref<1x15x15x32xf32, #tpu.memory_space<vmem>>, vector<1x1x15x32xf32>,
    %c0_202 = arith.constant 0 : index
    %c896 = arith.constant 896 : index
    %c0_203 = arith.constant 0 : index
    %298 = vector.load %arg1[%c0_202, %c896, %c0_203] : memref<1x1024x27xf32, #tpu.memory_space<vmem>>, vector<1x64x27xf32>
    %299 = vector.shape_cast %298 : vector<1x64x27xf32> to vector<64x27xf32>
    %300 = arith.truncf %299 : vector<64x27xf32> to vector<64x27xbf16>
    %c0_204 = arith.constant 0 : index
    %c0_205 = arith.constant 0 : index
    %c0_206 = arith.constant 0 : index
    %301 = vector.load %arg2[%c0_204, %c0_205, %c0_206] : memref<1x27x32xbf16, #tpu.memory_space<vmem>>, vector<1x27x32xbf16>
    %302 = vector.shape_cast %301 : vector<1x27x32xbf16> to vector<27x32xbf16>
    %cst_207 = arith.constant dense<0.000000e+00> : vector<64x32xf32>
    %303 = tpu.matmul %300, %302, %cst_207 {dimension_numbers = #tpu.dot_dimension_numbers<[1], [0], [0], [1], [0, 0, 1, 1], [], []>} : vector<64x27xbf16>, vector<27x32xbf16>, vector<64x32xf32> -> vector<64x32xf32>
    %c0_208 = arith.constant 0 : index
    %c0_209 = arith.constant 0 : index
    %304 = vector.load %arg3[%c0_208, %c0_209] : memref<1x32xf32, #tpu.memory_space<vmem>>, vector<1x32xf32>
    %305 = vector.broadcast %304 : vector<1x32xf32> to vector<64x32xf32>
    %306 = arith.addf %303, %305 : vector<64x32xf32>
    %cst_210 = arith.constant 0.000000e+00 : f32
    %307 = vector.broadcast %cst_210 : f32 to vector<64x32xf32>
    %308 = arith.maximumf %306, %307 : vector<64x32xf32>
    %309 = vector.extract_strided_slice %308 {offsets = [0, 0], sizes = [32, 32], strides = [1, 1]} : vector<64x32xf32> to vector<32x32xf32>
    %310 = vector.extract_strided_slice %308 {offsets = [32, 0], sizes = [32, 32], strides = [1, 1]} : vector<64x32xf32> to vector<32x32xf32>
    %311 = arith.maximumf %309, %310 : vector<32x32xf32>
    %312 = arith.truncf %311 : vector<32x32xf32> to vector<32x32xbf16>
    %cst_211 = arith.constant dense<0.000000e+00> : vector<15x32xf32>
    %313 = tpu.matmul %1, %312, %cst_211 {dimension_numbers = #tpu.dot_dimension_numbers<[1], [0], [0], [1], [0, 0, 1, 1], [], []>} : vector<15x32xbf16>, vector<32x32xbf16>, vector<15x32xf32> -> vector<15x32xf32>
    %cst_212 = arith.constant dense<0.000000e+00> : vector<15x32xf32>
    %314 = tpu.matmul %3, %312, %cst_212 {dimension_numbers = #tpu.dot_dimension_numbers<[1], [0], [0], [1], [0, 0, 1, 1], [], []>} : vector<15x32xbf16>, vector<32x32xbf16>, vector<15x32xf32> -> vector<15x32xf32>
    %315 = arith.maximumf %313, %314 : vector<15x32xf32>
    %c0_213 = arith.constant 0 : index
    %c14 = arith.constant 14 : index
    %c0_214 = arith.constant 0 : index
    %c0_215 = arith.constant 0 : index
    %316 = vector.load %arg5[%c0_213, %c14, %c0_214, %c0_215] : memref<1x15x15x32xf32, #tpu.memory_space<vmem>>, vector<1x1x15x32xf32>
    %317 = vector.shape_cast %316 : vector<1x1x15x32xf32> to vector<15x32xf32>
    %318 = vector.shape_cast %315 : vector<15x32xf32> to vector<1x1x15x32xf32>
    tpu.vector_store %arg5[%c0_213, %c14, %c0_214, %c0_215], %318 {strides = array<i32>} : memref<1x15x15x32xf32, #tpu.memory_space<vmem>>, vector<1x1x15x32xf32>,
    return
  }
  func.func @transform_0(%arg0: i32) -> (i32, i32, i32) {
    %c0_i32 = arith.constant 0 : i32
    %c0_i32_0 = arith.constant 0 : i32
    %c0_i32_1 = arith.constant 0 : i32
    return %arg0, %c0_i32, %c0_i32_0 : i32, i32, i32
  }
  func.func @transform_1(%arg0: i32) -> (i32, i32, i32) {
    %c0_i32 = arith.constant 0 : i32
    %c0_i32_0 = arith.constant 0 : i32
    %c0_i32_1 = arith.constant 0 : i32
    %c0_i32_2 = arith.constant 0 : i32
    return %c0_i32, %c0_i32_0, %c0_i32_1 : i32, i32, i32
  }
  func.func @transform_2(%arg0: i32) -> (i32, i32) {
    %c0_i32 = arith.constant 0 : i32
    %c0_i32_0 = arith.constant 0 : i32
    %c0_i32_1 = arith.constant 0 : i32
    return %c0_i32, %c0_i32_0 : i32, i32
  }
  func.func @transform_3(%arg0: i32) -> (i32, i32, i32) {
    %c0_i32 = arith.constant 0 : i32
    %c0_i32_0 = arith.constant 0 : i32
    %c0_i32_1 = arith.constant 0 : i32
    %c0_i32_2 = arith.constant 0 : i32
    return %c0_i32, %c0_i32_0, %c0_i32_1 : i32, i32, i32
  }
  func.func @transform_4(%arg0: i32) -> (i32, i32, i32, i32) {
    %c0_i32 = arith.constant 0 : i32
    %c0_i32_0 = arith.constant 0 : i32
    %c0_i32_1 = arith.constant 0 : i32
    %c0_i32_2 = arith.constant 0 : i32
    return %arg0, %c0_i32, %c0_i32_0, %c0_i32_1 : i32, i32, i32, i32
  }
}

module attributes {stable_mosaic.version = 11 : i64} {
  func.func @_conv_relu_pool_kernel(%arg0: i32, %arg1: memref<1x227x32xf32, #tpu.memory_space<vmem>>, %arg2: memref<9x32x64xbf16, #tpu.memory_space<vmem>>, %arg3: memref<1x64xf32, #tpu.memory_space<vmem>>, %arg4: memref<2x6x15xbf16, #tpu.memory_space<vmem>>, %arg5: memref<1x6x6x64xf32, #tpu.memory_space<vmem>>) attributes {dimension_semantics = [#tpu.dimension_semantics<parallel>], iteration_bounds = array<i64: 2>, scalar_prefetch = 0 : i64, scratch_operands = 0 : i64, tpu.core_type = #tpu.core_type<tc>, window_params = [{transform_indices = @transform_0, window_bounds = array<i64: 1, 227, 32>}, {pipeline_mode = #tpu.pipeline_mode<synchronous>, transform_indices = @transform_1, window_bounds = array<i64: 9, 32, 64>}, {pipeline_mode = #tpu.pipeline_mode<synchronous>, transform_indices = @transform_2, window_bounds = array<i64: 1, 64>}, {pipeline_mode = #tpu.pipeline_mode<synchronous>, transform_indices = @transform_3, window_bounds = array<i64: 2, 6, 15>}, {transform_indices = @transform_4, window_bounds = array<i64: 1, 6, 6, 64>}]} {
    %c0 = arith.constant 0 : index
    %c0_0 = arith.constant 0 : index
    %c0_1 = arith.constant 0 : index
    %0 = vector.load %arg4[%c0, %c0_0, %c0_1] : memref<2x6x15xbf16, #tpu.memory_space<vmem>>, vector<1x6x15xbf16>
    %1 = vector.shape_cast %0 : vector<1x6x15xbf16> to vector<6x15xbf16>
    %c1 = arith.constant 1 : index
    %c0_2 = arith.constant 0 : index
    %c0_3 = arith.constant 0 : index
    %2 = vector.load %arg4[%c1, %c0_2, %c0_3] : memref<2x6x15xbf16, #tpu.memory_space<vmem>>, vector<1x6x15xbf16>
    %3 = vector.shape_cast %2 : vector<1x6x15xbf16> to vector<6x15xbf16>
    %c0_4 = arith.constant 0 : index
    %c0_5 = arith.constant 0 : index
    %c0_6 = arith.constant 0 : index
    %4 = vector.load %arg1[%c0_4, %c0_5, %c0_6] : memref<1x227x32xf32, #tpu.memory_space<vmem>>, vector<1x30x32xf32>
    %5 = vector.shape_cast %4 : vector<1x30x32xf32> to vector<30x32xf32>
    %6 = arith.truncf %5 : vector<30x32xf32> to vector<30x32xbf16>
    %c0_7 = arith.constant 0 : index
    %c0_8 = arith.constant 0 : index
    %c0_9 = arith.constant 0 : index
    %7 = vector.load %arg2[%c0_7, %c0_8, %c0_9] : memref<9x32x64xbf16, #tpu.memory_space<vmem>>, vector<1x32x64xbf16>
    %8 = vector.shape_cast %7 : vector<1x32x64xbf16> to vector<32x64xbf16>
    %cst = arith.constant dense<0.000000e+00> : vector<30x64xf32>
    %9 = tpu.matmul %6, %8, %cst {dimension_numbers = #tpu.dot_dimension_numbers<[1], [0], [0], [1], [0, 0, 1, 1], [], []>} : vector<30x32xbf16>, vector<32x64xbf16>, vector<30x64xf32> -> vector<30x64xf32>
    %c0_10 = arith.constant 0 : index
    %c1_11 = arith.constant 1 : index
    %c0_12 = arith.constant 0 : index
    %10 = vector.load %arg1[%c0_10, %c1_11, %c0_12] : memref<1x227x32xf32, #tpu.memory_space<vmem>>, vector<1x30x32xf32>
    %11 = vector.shape_cast %10 : vector<1x30x32xf32> to vector<30x32xf32>
    %12 = arith.truncf %11 : vector<30x32xf32> to vector<30x32xbf16>
    %c1_13 = arith.constant 1 : index
    %c0_14 = arith.constant 0 : index
    %c0_15 = arith.constant 0 : index
    %13 = vector.load %arg2[%c1_13, %c0_14, %c0_15] : memref<9x32x64xbf16, #tpu.memory_space<vmem>>, vector<1x32x64xbf16>
    %14 = vector.shape_cast %13 : vector<1x32x64xbf16> to vector<32x64xbf16>
    %cst_16 = arith.constant dense<0.000000e+00> : vector<30x64xf32>
    %15 = tpu.matmul %12, %14, %cst_16 {dimension_numbers = #tpu.dot_dimension_numbers<[1], [0], [0], [1], [0, 0, 1, 1], [], []>} : vector<30x32xbf16>, vector<32x64xbf16>, vector<30x64xf32> -> vector<30x64xf32>
    %16 = arith.addf %9, %15 : vector<30x64xf32>
    %c0_17 = arith.constant 0 : index
    %c2 = arith.constant 2 : index
    %c0_18 = arith.constant 0 : index
    %17 = vector.load %arg1[%c0_17, %c2, %c0_18] : memref<1x227x32xf32, #tpu.memory_space<vmem>>, vector<1x30x32xf32>
    %18 = vector.shape_cast %17 : vector<1x30x32xf32> to vector<30x32xf32>
    %19 = arith.truncf %18 : vector<30x32xf32> to vector<30x32xbf16>
    %c2_19 = arith.constant 2 : index
    %c0_20 = arith.constant 0 : index
    %c0_21 = arith.constant 0 : index
    %20 = vector.load %arg2[%c2_19, %c0_20, %c0_21] : memref<9x32x64xbf16, #tpu.memory_space<vmem>>, vector<1x32x64xbf16>
    %21 = vector.shape_cast %20 : vector<1x32x64xbf16> to vector<32x64xbf16>
    %cst_22 = arith.constant dense<0.000000e+00> : vector<30x64xf32>
    %22 = tpu.matmul %19, %21, %cst_22 {dimension_numbers = #tpu.dot_dimension_numbers<[1], [0], [0], [1], [0, 0, 1, 1], [], []>} : vector<30x32xbf16>, vector<32x64xbf16>, vector<30x64xf32> -> vector<30x64xf32>
    %23 = arith.addf %16, %22 : vector<30x64xf32>
    %c0_23 = arith.constant 0 : index
    %c15 = arith.constant 15 : index
    %c0_24 = arith.constant 0 : index
    %24 = vector.load %arg1[%c0_23, %c15, %c0_24] : memref<1x227x32xf32, #tpu.memory_space<vmem>>, vector<1x30x32xf32>
    %25 = vector.shape_cast %24 : vector<1x30x32xf32> to vector<30x32xf32>
    %26 = arith.truncf %25 : vector<30x32xf32> to vector<30x32xbf16>
    %c3 = arith.constant 3 : index
    %c0_25 = arith.constant 0 : index
    %c0_26 = arith.constant 0 : index
    %27 = vector.load %arg2[%c3, %c0_25, %c0_26] : memref<9x32x64xbf16, #tpu.memory_space<vmem>>, vector<1x32x64xbf16>
    %28 = vector.shape_cast %27 : vector<1x32x64xbf16> to vector<32x64xbf16>
    %cst_27 = arith.constant dense<0.000000e+00> : vector<30x64xf32>
    %29 = tpu.matmul %26, %28, %cst_27 {dimension_numbers = #tpu.dot_dimension_numbers<[1], [0], [0], [1], [0, 0, 1, 1], [], []>} : vector<30x32xbf16>, vector<32x64xbf16>, vector<30x64xf32> -> vector<30x64xf32>
    %30 = arith.addf %23, %29 : vector<30x64xf32>
    %c0_28 = arith.constant 0 : index
    %c16 = arith.constant 16 : index
    %c0_29 = arith.constant 0 : index
    %31 = vector.load %arg1[%c0_28, %c16, %c0_29] : memref<1x227x32xf32, #tpu.memory_space<vmem>>, vector<1x30x32xf32>
    %32 = vector.shape_cast %31 : vector<1x30x32xf32> to vector<30x32xf32>
    %33 = arith.truncf %32 : vector<30x32xf32> to vector<30x32xbf16>
    %c4 = arith.constant 4 : index
    %c0_30 = arith.constant 0 : index
    %c0_31 = arith.constant 0 : index
    %34 = vector.load %arg2[%c4, %c0_30, %c0_31] : memref<9x32x64xbf16, #tpu.memory_space<vmem>>, vector<1x32x64xbf16>
    %35 = vector.shape_cast %34 : vector<1x32x64xbf16> to vector<32x64xbf16>
    %cst_32 = arith.constant dense<0.000000e+00> : vector<30x64xf32>
    %36 = tpu.matmul %33, %35, %cst_32 {dimension_numbers = #tpu.dot_dimension_numbers<[1], [0], [0], [1], [0, 0, 1, 1], [], []>} : vector<30x32xbf16>, vector<32x64xbf16>, vector<30x64xf32> -> vector<30x64xf32>
    %37 = arith.addf %30, %36 : vector<30x64xf32>
    %c0_33 = arith.constant 0 : index
    %c17 = arith.constant 17 : index
    %c0_34 = arith.constant 0 : index
    %38 = vector.load %arg1[%c0_33, %c17, %c0_34] : memref<1x227x32xf32, #tpu.memory_space<vmem>>, vector<1x30x32xf32>
    %39 = vector.shape_cast %38 : vector<1x30x32xf32> to vector<30x32xf32>
    %40 = arith.truncf %39 : vector<30x32xf32> to vector<30x32xbf16>
    %c5 = arith.constant 5 : index
    %c0_35 = arith.constant 0 : index
    %c0_36 = arith.constant 0 : index
    %41 = vector.load %arg2[%c5, %c0_35, %c0_36] : memref<9x32x64xbf16, #tpu.memory_space<vmem>>, vector<1x32x64xbf16>
    %42 = vector.shape_cast %41 : vector<1x32x64xbf16> to vector<32x64xbf16>
    %cst_37 = arith.constant dense<0.000000e+00> : vector<30x64xf32>
    %43 = tpu.matmul %40, %42, %cst_37 {dimension_numbers = #tpu.dot_dimension_numbers<[1], [0], [0], [1], [0, 0, 1, 1], [], []>} : vector<30x32xbf16>, vector<32x64xbf16>, vector<30x64xf32> -> vector<30x64xf32>
    %44 = arith.addf %37, %43 : vector<30x64xf32>
    %c0_38 = arith.constant 0 : index
    %c30 = arith.constant 30 : index
    %c0_39 = arith.constant 0 : index
    %45 = vector.load %arg1[%c0_38, %c30, %c0_39] : memref<1x227x32xf32, #tpu.memory_space<vmem>>, vector<1x30x32xf32>
    %46 = vector.shape_cast %45 : vector<1x30x32xf32> to vector<30x32xf32>
    %47 = arith.truncf %46 : vector<30x32xf32> to vector<30x32xbf16>
    %c6 = arith.constant 6 : index
    %c0_40 = arith.constant 0 : index
    %c0_41 = arith.constant 0 : index
    %48 = vector.load %arg2[%c6, %c0_40, %c0_41] : memref<9x32x64xbf16, #tpu.memory_space<vmem>>, vector<1x32x64xbf16>
    %49 = vector.shape_cast %48 : vector<1x32x64xbf16> to vector<32x64xbf16>
    %cst_42 = arith.constant dense<0.000000e+00> : vector<30x64xf32>
    %50 = tpu.matmul %47, %49, %cst_42 {dimension_numbers = #tpu.dot_dimension_numbers<[1], [0], [0], [1], [0, 0, 1, 1], [], []>} : vector<30x32xbf16>, vector<32x64xbf16>, vector<30x64xf32> -> vector<30x64xf32>
    %51 = arith.addf %44, %50 : vector<30x64xf32>
    %c0_43 = arith.constant 0 : index
    %c31 = arith.constant 31 : index
    %c0_44 = arith.constant 0 : index
    %52 = vector.load %arg1[%c0_43, %c31, %c0_44] : memref<1x227x32xf32, #tpu.memory_space<vmem>>, vector<1x30x32xf32>
    %53 = vector.shape_cast %52 : vector<1x30x32xf32> to vector<30x32xf32>
    %54 = arith.truncf %53 : vector<30x32xf32> to vector<30x32xbf16>
    %c7 = arith.constant 7 : index
    %c0_45 = arith.constant 0 : index
    %c0_46 = arith.constant 0 : index
    %55 = vector.load %arg2[%c7, %c0_45, %c0_46] : memref<9x32x64xbf16, #tpu.memory_space<vmem>>, vector<1x32x64xbf16>
    %56 = vector.shape_cast %55 : vector<1x32x64xbf16> to vector<32x64xbf16>
    %cst_47 = arith.constant dense<0.000000e+00> : vector<30x64xf32>
    %57 = tpu.matmul %54, %56, %cst_47 {dimension_numbers = #tpu.dot_dimension_numbers<[1], [0], [0], [1], [0, 0, 1, 1], [], []>} : vector<30x32xbf16>, vector<32x64xbf16>, vector<30x64xf32> -> vector<30x64xf32>
    %58 = arith.addf %51, %57 : vector<30x64xf32>
    %c0_48 = arith.constant 0 : index
    %c32 = arith.constant 32 : index
    %c0_49 = arith.constant 0 : index
    %59 = vector.load %arg1[%c0_48, %c32, %c0_49] : memref<1x227x32xf32, #tpu.memory_space<vmem>>, vector<1x30x32xf32>
    %60 = vector.shape_cast %59 : vector<1x30x32xf32> to vector<30x32xf32>
    %61 = arith.truncf %60 : vector<30x32xf32> to vector<30x32xbf16>
    %c8 = arith.constant 8 : index
    %c0_50 = arith.constant 0 : index
    %c0_51 = arith.constant 0 : index
    %62 = vector.load %arg2[%c8, %c0_50, %c0_51] : memref<9x32x64xbf16, #tpu.memory_space<vmem>>, vector<1x32x64xbf16>
    %63 = vector.shape_cast %62 : vector<1x32x64xbf16> to vector<32x64xbf16>
    %cst_52 = arith.constant dense<0.000000e+00> : vector<30x64xf32>
    %64 = tpu.matmul %61, %63, %cst_52 {dimension_numbers = #tpu.dot_dimension_numbers<[1], [0], [0], [1], [0, 0, 1, 1], [], []>} : vector<30x32xbf16>, vector<32x64xbf16>, vector<30x64xf32> -> vector<30x64xf32>
    %65 = arith.addf %58, %64 : vector<30x64xf32>
    %c0_53 = arith.constant 0 : index
    %c0_54 = arith.constant 0 : index
    %66 = vector.load %arg3[%c0_53, %c0_54] : memref<1x64xf32, #tpu.memory_space<vmem>>, vector<1x64xf32>
    %67 = vector.broadcast %66 : vector<1x64xf32> to vector<30x64xf32>
    %68 = arith.addf %65, %67 : vector<30x64xf32>
    %cst_55 = arith.constant 0.000000e+00 : f32
    %69 = vector.broadcast %cst_55 : f32 to vector<30x64xf32>
    %70 = arith.maximumf %68, %69 : vector<30x64xf32>
    %71 = vector.extract_strided_slice %70 {offsets = [0, 0], sizes = [15, 64], strides = [1, 1]} : vector<30x64xf32> to vector<15x64xf32>
    %72 = vector.extract_strided_slice %70 {offsets = [15, 0], sizes = [15, 64], strides = [1, 1]} : vector<30x64xf32> to vector<15x64xf32>
    %73 = arith.maximumf %71, %72 : vector<15x64xf32>
    %74 = arith.truncf %73 : vector<15x64xf32> to vector<15x64xbf16>
    %cst_56 = arith.constant dense<0.000000e+00> : vector<6x64xf32>
    %75 = tpu.matmul %1, %74, %cst_56 {dimension_numbers = #tpu.dot_dimension_numbers<[1], [0], [0], [1], [0, 0, 1, 1], [], []>} : vector<6x15xbf16>, vector<15x64xbf16>, vector<6x64xf32> -> vector<6x64xf32>
    %cst_57 = arith.constant dense<0.000000e+00> : vector<6x64xf32>
    %76 = tpu.matmul %3, %74, %cst_57 {dimension_numbers = #tpu.dot_dimension_numbers<[1], [0], [0], [1], [0, 0, 1, 1], [], []>} : vector<6x15xbf16>, vector<15x64xbf16>, vector<6x64xf32> -> vector<6x64xf32>
    %77 = arith.maximumf %75, %76 : vector<6x64xf32>
    %c0_58 = arith.constant 0 : index
    %c0_59 = arith.constant 0 : index
    %c0_60 = arith.constant 0 : index
    %c0_61 = arith.constant 0 : index
    %78 = vector.load %arg5[%c0_58, %c0_59, %c0_60, %c0_61] : memref<1x6x6x64xf32, #tpu.memory_space<vmem>>, vector<1x1x6x64xf32>
    %79 = vector.shape_cast %78 : vector<1x1x6x64xf32> to vector<6x64xf32>
    %80 = vector.shape_cast %77 : vector<6x64xf32> to vector<1x1x6x64xf32>
    tpu.vector_store %arg5[%c0_58, %c0_59, %c0_60, %c0_61], %80 {strides = array<i32>} : memref<1x6x6x64xf32, #tpu.memory_space<vmem>>, vector<1x1x6x64xf32>,
    %c0_62 = arith.constant 0 : index
    %c30_63 = arith.constant 30 : index
    %c0_64 = arith.constant 0 : index
    %81 = vector.load %arg1[%c0_62, %c30_63, %c0_64] : memref<1x227x32xf32, #tpu.memory_space<vmem>>, vector<1x30x32xf32>
    %82 = vector.shape_cast %81 : vector<1x30x32xf32> to vector<30x32xf32>
    %83 = arith.truncf %82 : vector<30x32xf32> to vector<30x32xbf16>
    %c0_65 = arith.constant 0 : index
    %c0_66 = arith.constant 0 : index
    %c0_67 = arith.constant 0 : index
    %84 = vector.load %arg2[%c0_65, %c0_66, %c0_67] : memref<9x32x64xbf16, #tpu.memory_space<vmem>>, vector<1x32x64xbf16>
    %85 = vector.shape_cast %84 : vector<1x32x64xbf16> to vector<32x64xbf16>
    %cst_68 = arith.constant dense<0.000000e+00> : vector<30x64xf32>
    %86 = tpu.matmul %83, %85, %cst_68 {dimension_numbers = #tpu.dot_dimension_numbers<[1], [0], [0], [1], [0, 0, 1, 1], [], []>} : vector<30x32xbf16>, vector<32x64xbf16>, vector<30x64xf32> -> vector<30x64xf32>
    %c0_69 = arith.constant 0 : index
    %c31_70 = arith.constant 31 : index
    %c0_71 = arith.constant 0 : index
    %87 = vector.load %arg1[%c0_69, %c31_70, %c0_71] : memref<1x227x32xf32, #tpu.memory_space<vmem>>, vector<1x30x32xf32>
    %88 = vector.shape_cast %87 : vector<1x30x32xf32> to vector<30x32xf32>
    %89 = arith.truncf %88 : vector<30x32xf32> to vector<30x32xbf16>
    %c1_72 = arith.constant 1 : index
    %c0_73 = arith.constant 0 : index
    %c0_74 = arith.constant 0 : index
    %90 = vector.load %arg2[%c1_72, %c0_73, %c0_74] : memref<9x32x64xbf16, #tpu.memory_space<vmem>>, vector<1x32x64xbf16>
    %91 = vector.shape_cast %90 : vector<1x32x64xbf16> to vector<32x64xbf16>
    %cst_75 = arith.constant dense<0.000000e+00> : vector<30x64xf32>
    %92 = tpu.matmul %89, %91, %cst_75 {dimension_numbers = #tpu.dot_dimension_numbers<[1], [0], [0], [1], [0, 0, 1, 1], [], []>} : vector<30x32xbf16>, vector<32x64xbf16>, vector<30x64xf32> -> vector<30x64xf32>
    %93 = arith.addf %86, %92 : vector<30x64xf32>
    %c0_76 = arith.constant 0 : index
    %c32_77 = arith.constant 32 : index
    %c0_78 = arith.constant 0 : index
    %94 = vector.load %arg1[%c0_76, %c32_77, %c0_78] : memref<1x227x32xf32, #tpu.memory_space<vmem>>, vector<1x30x32xf32>
    %95 = vector.shape_cast %94 : vector<1x30x32xf32> to vector<30x32xf32>
    %96 = arith.truncf %95 : vector<30x32xf32> to vector<30x32xbf16>
    %c2_79 = arith.constant 2 : index
    %c0_80 = arith.constant 0 : index
    %c0_81 = arith.constant 0 : index
    %97 = vector.load %arg2[%c2_79, %c0_80, %c0_81] : memref<9x32x64xbf16, #tpu.memory_space<vmem>>, vector<1x32x64xbf16>
    %98 = vector.shape_cast %97 : vector<1x32x64xbf16> to vector<32x64xbf16>
    %cst_82 = arith.constant dense<0.000000e+00> : vector<30x64xf32>
    %99 = tpu.matmul %96, %98, %cst_82 {dimension_numbers = #tpu.dot_dimension_numbers<[1], [0], [0], [1], [0, 0, 1, 1], [], []>} : vector<30x32xbf16>, vector<32x64xbf16>, vector<30x64xf32> -> vector<30x64xf32>
    %100 = arith.addf %93, %99 : vector<30x64xf32>
    %c0_83 = arith.constant 0 : index
    %c45 = arith.constant 45 : index
    %c0_84 = arith.constant 0 : index
    %101 = vector.load %arg1[%c0_83, %c45, %c0_84] : memref<1x227x32xf32, #tpu.memory_space<vmem>>, vector<1x30x32xf32>
    %102 = vector.shape_cast %101 : vector<1x30x32xf32> to vector<30x32xf32>
    %103 = arith.truncf %102 : vector<30x32xf32> to vector<30x32xbf16>
    %c3_85 = arith.constant 3 : index
    %c0_86 = arith.constant 0 : index
    %c0_87 = arith.constant 0 : index
    %104 = vector.load %arg2[%c3_85, %c0_86, %c0_87] : memref<9x32x64xbf16, #tpu.memory_space<vmem>>, vector<1x32x64xbf16>
    %105 = vector.shape_cast %104 : vector<1x32x64xbf16> to vector<32x64xbf16>
    %cst_88 = arith.constant dense<0.000000e+00> : vector<30x64xf32>
    %106 = tpu.matmul %103, %105, %cst_88 {dimension_numbers = #tpu.dot_dimension_numbers<[1], [0], [0], [1], [0, 0, 1, 1], [], []>} : vector<30x32xbf16>, vector<32x64xbf16>, vector<30x64xf32> -> vector<30x64xf32>
    %107 = arith.addf %100, %106 : vector<30x64xf32>
    %c0_89 = arith.constant 0 : index
    %c46 = arith.constant 46 : index
    %c0_90 = arith.constant 0 : index
    %108 = vector.load %arg1[%c0_89, %c46, %c0_90] : memref<1x227x32xf32, #tpu.memory_space<vmem>>, vector<1x30x32xf32>
    %109 = vector.shape_cast %108 : vector<1x30x32xf32> to vector<30x32xf32>
    %110 = arith.truncf %109 : vector<30x32xf32> to vector<30x32xbf16>
    %c4_91 = arith.constant 4 : index
    %c0_92 = arith.constant 0 : index
    %c0_93 = arith.constant 0 : index
    %111 = vector.load %arg2[%c4_91, %c0_92, %c0_93] : memref<9x32x64xbf16, #tpu.memory_space<vmem>>, vector<1x32x64xbf16>
    %112 = vector.shape_cast %111 : vector<1x32x64xbf16> to vector<32x64xbf16>
    %cst_94 = arith.constant dense<0.000000e+00> : vector<30x64xf32>
    %113 = tpu.matmul %110, %112, %cst_94 {dimension_numbers = #tpu.dot_dimension_numbers<[1], [0], [0], [1], [0, 0, 1, 1], [], []>} : vector<30x32xbf16>, vector<32x64xbf16>, vector<30x64xf32> -> vector<30x64xf32>
    %114 = arith.addf %107, %113 : vector<30x64xf32>
    %c0_95 = arith.constant 0 : index
    %c47 = arith.constant 47 : index
    %c0_96 = arith.constant 0 : index
    %115 = vector.load %arg1[%c0_95, %c47, %c0_96] : memref<1x227x32xf32, #tpu.memory_space<vmem>>, vector<1x30x32xf32>
    %116 = vector.shape_cast %115 : vector<1x30x32xf32> to vector<30x32xf32>
    %117 = arith.truncf %116 : vector<30x32xf32> to vector<30x32xbf16>
    %c5_97 = arith.constant 5 : index
    %c0_98 = arith.constant 0 : index
    %c0_99 = arith.constant 0 : index
    %118 = vector.load %arg2[%c5_97, %c0_98, %c0_99] : memref<9x32x64xbf16, #tpu.memory_space<vmem>>, vector<1x32x64xbf16>
    %119 = vector.shape_cast %118 : vector<1x32x64xbf16> to vector<32x64xbf16>
    %cst_100 = arith.constant dense<0.000000e+00> : vector<30x64xf32>
    %120 = tpu.matmul %117, %119, %cst_100 {dimension_numbers = #tpu.dot_dimension_numbers<[1], [0], [0], [1], [0, 0, 1, 1], [], []>} : vector<30x32xbf16>, vector<32x64xbf16>, vector<30x64xf32> -> vector<30x64xf32>
    %121 = arith.addf %114, %120 : vector<30x64xf32>
    %c0_101 = arith.constant 0 : index
    %c60 = arith.constant 60 : index
    %c0_102 = arith.constant 0 : index
    %122 = vector.load %arg1[%c0_101, %c60, %c0_102] : memref<1x227x32xf32, #tpu.memory_space<vmem>>, vector<1x30x32xf32>
    %123 = vector.shape_cast %122 : vector<1x30x32xf32> to vector<30x32xf32>
    %124 = arith.truncf %123 : vector<30x32xf32> to vector<30x32xbf16>
    %c6_103 = arith.constant 6 : index
    %c0_104 = arith.constant 0 : index
    %c0_105 = arith.constant 0 : index
    %125 = vector.load %arg2[%c6_103, %c0_104, %c0_105] : memref<9x32x64xbf16, #tpu.memory_space<vmem>>, vector<1x32x64xbf16>
    %126 = vector.shape_cast %125 : vector<1x32x64xbf16> to vector<32x64xbf16>
    %cst_106 = arith.constant dense<0.000000e+00> : vector<30x64xf32>
    %127 = tpu.matmul %124, %126, %cst_106 {dimension_numbers = #tpu.dot_dimension_numbers<[1], [0], [0], [1], [0, 0, 1, 1], [], []>} : vector<30x32xbf16>, vector<32x64xbf16>, vector<30x64xf32> -> vector<30x64xf32>
    %128 = arith.addf %121, %127 : vector<30x64xf32>
    %c0_107 = arith.constant 0 : index
    %c61 = arith.constant 61 : index
    %c0_108 = arith.constant 0 : index
    %129 = vector.load %arg1[%c0_107, %c61, %c0_108] : memref<1x227x32xf32, #tpu.memory_space<vmem>>, vector<1x30x32xf32>
    %130 = vector.shape_cast %129 : vector<1x30x32xf32> to vector<30x32xf32>
    %131 = arith.truncf %130 : vector<30x32xf32> to vector<30x32xbf16>
    %c7_109 = arith.constant 7 : index
    %c0_110 = arith.constant 0 : index
    %c0_111 = arith.constant 0 : index
    %132 = vector.load %arg2[%c7_109, %c0_110, %c0_111] : memref<9x32x64xbf16, #tpu.memory_space<vmem>>, vector<1x32x64xbf16>
    %133 = vector.shape_cast %132 : vector<1x32x64xbf16> to vector<32x64xbf16>
    %cst_112 = arith.constant dense<0.000000e+00> : vector<30x64xf32>
    %134 = tpu.matmul %131, %133, %cst_112 {dimension_numbers = #tpu.dot_dimension_numbers<[1], [0], [0], [1], [0, 0, 1, 1], [], []>} : vector<30x32xbf16>, vector<32x64xbf16>, vector<30x64xf32> -> vector<30x64xf32>
    %135 = arith.addf %128, %134 : vector<30x64xf32>
    %c0_113 = arith.constant 0 : index
    %c62 = arith.constant 62 : index
    %c0_114 = arith.constant 0 : index
    %136 = vector.load %arg1[%c0_113, %c62, %c0_114] : memref<1x227x32xf32, #tpu.memory_space<vmem>>, vector<1x30x32xf32>
    %137 = vector.shape_cast %136 : vector<1x30x32xf32> to vector<30x32xf32>
    %138 = arith.truncf %137 : vector<30x32xf32> to vector<30x32xbf16>
    %c8_115 = arith.constant 8 : index
    %c0_116 = arith.constant 0 : index
    %c0_117 = arith.constant 0 : index
    %139 = vector.load %arg2[%c8_115, %c0_116, %c0_117] : memref<9x32x64xbf16, #tpu.memory_space<vmem>>, vector<1x32x64xbf16>
    %140 = vector.shape_cast %139 : vector<1x32x64xbf16> to vector<32x64xbf16>
    %cst_118 = arith.constant dense<0.000000e+00> : vector<30x64xf32>
    %141 = tpu.matmul %138, %140, %cst_118 {dimension_numbers = #tpu.dot_dimension_numbers<[1], [0], [0], [1], [0, 0, 1, 1], [], []>} : vector<30x32xbf16>, vector<32x64xbf16>, vector<30x64xf32> -> vector<30x64xf32>
    %142 = arith.addf %135, %141 : vector<30x64xf32>
    %c0_119 = arith.constant 0 : index
    %c0_120 = arith.constant 0 : index
    %143 = vector.load %arg3[%c0_119, %c0_120] : memref<1x64xf32, #tpu.memory_space<vmem>>, vector<1x64xf32>
    %144 = vector.broadcast %143 : vector<1x64xf32> to vector<30x64xf32>
    %145 = arith.addf %142, %144 : vector<30x64xf32>
    %cst_121 = arith.constant 0.000000e+00 : f32
    %146 = vector.broadcast %cst_121 : f32 to vector<30x64xf32>
    %147 = arith.maximumf %145, %146 : vector<30x64xf32>
    %148 = vector.extract_strided_slice %147 {offsets = [0, 0], sizes = [15, 64], strides = [1, 1]} : vector<30x64xf32> to vector<15x64xf32>
    %149 = vector.extract_strided_slice %147 {offsets = [15, 0], sizes = [15, 64], strides = [1, 1]} : vector<30x64xf32> to vector<15x64xf32>
    %150 = arith.maximumf %148, %149 : vector<15x64xf32>
    %151 = arith.truncf %150 : vector<15x64xf32> to vector<15x64xbf16>
    %cst_122 = arith.constant dense<0.000000e+00> : vector<6x64xf32>
    %152 = tpu.matmul %1, %151, %cst_122 {dimension_numbers = #tpu.dot_dimension_numbers<[1], [0], [0], [1], [0, 0, 1, 1], [], []>} : vector<6x15xbf16>, vector<15x64xbf16>, vector<6x64xf32> -> vector<6x64xf32>
    %cst_123 = arith.constant dense<0.000000e+00> : vector<6x64xf32>
    %153 = tpu.matmul %3, %151, %cst_123 {dimension_numbers = #tpu.dot_dimension_numbers<[1], [0], [0], [1], [0, 0, 1, 1], [], []>} : vector<6x15xbf16>, vector<15x64xbf16>, vector<6x64xf32> -> vector<6x64xf32>
    %154 = arith.maximumf %152, %153 : vector<6x64xf32>
    %c0_124 = arith.constant 0 : index
    %c1_125 = arith.constant 1 : index
    %c0_126 = arith.constant 0 : index
    %c0_127 = arith.constant 0 : index
    %155 = vector.load %arg5[%c0_124, %c1_125, %c0_126, %c0_127] : memref<1x6x6x64xf32, #tpu.memory_space<vmem>>, vector<1x1x6x64xf32>
    %156 = vector.shape_cast %155 : vector<1x1x6x64xf32> to vector<6x64xf32>
    %157 = vector.shape_cast %154 : vector<6x64xf32> to vector<1x1x6x64xf32>
    tpu.vector_store %arg5[%c0_124, %c1_125, %c0_126, %c0_127], %157 {strides = array<i32>} : memref<1x6x6x64xf32, #tpu.memory_space<vmem>>, vector<1x1x6x64xf32>,
    %c0_128 = arith.constant 0 : index
    %c60_129 = arith.constant 60 : index
    %c0_130 = arith.constant 0 : index
    %158 = vector.load %arg1[%c0_128, %c60_129, %c0_130] : memref<1x227x32xf32, #tpu.memory_space<vmem>>, vector<1x30x32xf32>
    %159 = vector.shape_cast %158 : vector<1x30x32xf32> to vector<30x32xf32>
    %160 = arith.truncf %159 : vector<30x32xf32> to vector<30x32xbf16>
    %c0_131 = arith.constant 0 : index
    %c0_132 = arith.constant 0 : index
    %c0_133 = arith.constant 0 : index
    %161 = vector.load %arg2[%c0_131, %c0_132, %c0_133] : memref<9x32x64xbf16, #tpu.memory_space<vmem>>, vector<1x32x64xbf16>
    %162 = vector.shape_cast %161 : vector<1x32x64xbf16> to vector<32x64xbf16>
    %cst_134 = arith.constant dense<0.000000e+00> : vector<30x64xf32>
    %163 = tpu.matmul %160, %162, %cst_134 {dimension_numbers = #tpu.dot_dimension_numbers<[1], [0], [0], [1], [0, 0, 1, 1], [], []>} : vector<30x32xbf16>, vector<32x64xbf16>, vector<30x64xf32> -> vector<30x64xf32>
    %c0_135 = arith.constant 0 : index
    %c61_136 = arith.constant 61 : index
    %c0_137 = arith.constant 0 : index
    %164 = vector.load %arg1[%c0_135, %c61_136, %c0_137] : memref<1x227x32xf32, #tpu.memory_space<vmem>>, vector<1x30x32xf32>
    %165 = vector.shape_cast %164 : vector<1x30x32xf32> to vector<30x32xf32>
    %166 = arith.truncf %165 : vector<30x32xf32> to vector<30x32xbf16>
    %c1_138 = arith.constant 1 : index
    %c0_139 = arith.constant 0 : index
    %c0_140 = arith.constant 0 : index
    %167 = vector.load %arg2[%c1_138, %c0_139, %c0_140] : memref<9x32x64xbf16, #tpu.memory_space<vmem>>, vector<1x32x64xbf16>
    %168 = vector.shape_cast %167 : vector<1x32x64xbf16> to vector<32x64xbf16>
    %cst_141 = arith.constant dense<0.000000e+00> : vector<30x64xf32>
    %169 = tpu.matmul %166, %168, %cst_141 {dimension_numbers = #tpu.dot_dimension_numbers<[1], [0], [0], [1], [0, 0, 1, 1], [], []>} : vector<30x32xbf16>, vector<32x64xbf16>, vector<30x64xf32> -> vector<30x64xf32>
    %170 = arith.addf %163, %169 : vector<30x64xf32>
    %c0_142 = arith.constant 0 : index
    %c62_143 = arith.constant 62 : index
    %c0_144 = arith.constant 0 : index
    %171 = vector.load %arg1[%c0_142, %c62_143, %c0_144] : memref<1x227x32xf32, #tpu.memory_space<vmem>>, vector<1x30x32xf32>
    %172 = vector.shape_cast %171 : vector<1x30x32xf32> to vector<30x32xf32>
    %173 = arith.truncf %172 : vector<30x32xf32> to vector<30x32xbf16>
    %c2_145 = arith.constant 2 : index
    %c0_146 = arith.constant 0 : index
    %c0_147 = arith.constant 0 : index
    %174 = vector.load %arg2[%c2_145, %c0_146, %c0_147] : memref<9x32x64xbf16, #tpu.memory_space<vmem>>, vector<1x32x64xbf16>
    %175 = vector.shape_cast %174 : vector<1x32x64xbf16> to vector<32x64xbf16>
    %cst_148 = arith.constant dense<0.000000e+00> : vector<30x64xf32>
    %176 = tpu.matmul %173, %175, %cst_148 {dimension_numbers = #tpu.dot_dimension_numbers<[1], [0], [0], [1], [0, 0, 1, 1], [], []>} : vector<30x32xbf16>, vector<32x64xbf16>, vector<30x64xf32> -> vector<30x64xf32>
    %177 = arith.addf %170, %176 : vector<30x64xf32>
    %c0_149 = arith.constant 0 : index
    %c75 = arith.constant 75 : index
    %c0_150 = arith.constant 0 : index
    %178 = vector.load %arg1[%c0_149, %c75, %c0_150] : memref<1x227x32xf32, #tpu.memory_space<vmem>>, vector<1x30x32xf32>
    %179 = vector.shape_cast %178 : vector<1x30x32xf32> to vector<30x32xf32>
    %180 = arith.truncf %179 : vector<30x32xf32> to vector<30x32xbf16>
    %c3_151 = arith.constant 3 : index
    %c0_152 = arith.constant 0 : index
    %c0_153 = arith.constant 0 : index
    %181 = vector.load %arg2[%c3_151, %c0_152, %c0_153] : memref<9x32x64xbf16, #tpu.memory_space<vmem>>, vector<1x32x64xbf16>
    %182 = vector.shape_cast %181 : vector<1x32x64xbf16> to vector<32x64xbf16>
    %cst_154 = arith.constant dense<0.000000e+00> : vector<30x64xf32>
    %183 = tpu.matmul %180, %182, %cst_154 {dimension_numbers = #tpu.dot_dimension_numbers<[1], [0], [0], [1], [0, 0, 1, 1], [], []>} : vector<30x32xbf16>, vector<32x64xbf16>, vector<30x64xf32> -> vector<30x64xf32>
    %184 = arith.addf %177, %183 : vector<30x64xf32>
    %c0_155 = arith.constant 0 : index
    %c76 = arith.constant 76 : index
    %c0_156 = arith.constant 0 : index
    %185 = vector.load %arg1[%c0_155, %c76, %c0_156] : memref<1x227x32xf32, #tpu.memory_space<vmem>>, vector<1x30x32xf32>
    %186 = vector.shape_cast %185 : vector<1x30x32xf32> to vector<30x32xf32>
    %187 = arith.truncf %186 : vector<30x32xf32> to vector<30x32xbf16>
    %c4_157 = arith.constant 4 : index
    %c0_158 = arith.constant 0 : index
    %c0_159 = arith.constant 0 : index
    %188 = vector.load %arg2[%c4_157, %c0_158, %c0_159] : memref<9x32x64xbf16, #tpu.memory_space<vmem>>, vector<1x32x64xbf16>
    %189 = vector.shape_cast %188 : vector<1x32x64xbf16> to vector<32x64xbf16>
    %cst_160 = arith.constant dense<0.000000e+00> : vector<30x64xf32>
    %190 = tpu.matmul %187, %189, %cst_160 {dimension_numbers = #tpu.dot_dimension_numbers<[1], [0], [0], [1], [0, 0, 1, 1], [], []>} : vector<30x32xbf16>, vector<32x64xbf16>, vector<30x64xf32> -> vector<30x64xf32>
    %191 = arith.addf %184, %190 : vector<30x64xf32>
    %c0_161 = arith.constant 0 : index
    %c77 = arith.constant 77 : index
    %c0_162 = arith.constant 0 : index
    %192 = vector.load %arg1[%c0_161, %c77, %c0_162] : memref<1x227x32xf32, #tpu.memory_space<vmem>>, vector<1x30x32xf32>
    %193 = vector.shape_cast %192 : vector<1x30x32xf32> to vector<30x32xf32>
    %194 = arith.truncf %193 : vector<30x32xf32> to vector<30x32xbf16>
    %c5_163 = arith.constant 5 : index
    %c0_164 = arith.constant 0 : index
    %c0_165 = arith.constant 0 : index
    %195 = vector.load %arg2[%c5_163, %c0_164, %c0_165] : memref<9x32x64xbf16, #tpu.memory_space<vmem>>, vector<1x32x64xbf16>
    %196 = vector.shape_cast %195 : vector<1x32x64xbf16> to vector<32x64xbf16>
    %cst_166 = arith.constant dense<0.000000e+00> : vector<30x64xf32>
    %197 = tpu.matmul %194, %196, %cst_166 {dimension_numbers = #tpu.dot_dimension_numbers<[1], [0], [0], [1], [0, 0, 1, 1], [], []>} : vector<30x32xbf16>, vector<32x64xbf16>, vector<30x64xf32> -> vector<30x64xf32>
    %198 = arith.addf %191, %197 : vector<30x64xf32>
    %c0_167 = arith.constant 0 : index
    %c90 = arith.constant 90 : index
    %c0_168 = arith.constant 0 : index
    %199 = vector.load %arg1[%c0_167, %c90, %c0_168] : memref<1x227x32xf32, #tpu.memory_space<vmem>>, vector<1x30x32xf32>
    %200 = vector.shape_cast %199 : vector<1x30x32xf32> to vector<30x32xf32>
    %201 = arith.truncf %200 : vector<30x32xf32> to vector<30x32xbf16>
    %c6_169 = arith.constant 6 : index
    %c0_170 = arith.constant 0 : index
    %c0_171 = arith.constant 0 : index
    %202 = vector.load %arg2[%c6_169, %c0_170, %c0_171] : memref<9x32x64xbf16, #tpu.memory_space<vmem>>, vector<1x32x64xbf16>
    %203 = vector.shape_cast %202 : vector<1x32x64xbf16> to vector<32x64xbf16>
    %cst_172 = arith.constant dense<0.000000e+00> : vector<30x64xf32>
    %204 = tpu.matmul %201, %203, %cst_172 {dimension_numbers = #tpu.dot_dimension_numbers<[1], [0], [0], [1], [0, 0, 1, 1], [], []>} : vector<30x32xbf16>, vector<32x64xbf16>, vector<30x64xf32> -> vector<30x64xf32>
    %205 = arith.addf %198, %204 : vector<30x64xf32>
    %c0_173 = arith.constant 0 : index
    %c91 = arith.constant 91 : index
    %c0_174 = arith.constant 0 : index
    %206 = vector.load %arg1[%c0_173, %c91, %c0_174] : memref<1x227x32xf32, #tpu.memory_space<vmem>>, vector<1x30x32xf32>
    %207 = vector.shape_cast %206 : vector<1x30x32xf32> to vector<30x32xf32>
    %208 = arith.truncf %207 : vector<30x32xf32> to vector<30x32xbf16>
    %c7_175 = arith.constant 7 : index
    %c0_176 = arith.constant 0 : index
    %c0_177 = arith.constant 0 : index
    %209 = vector.load %arg2[%c7_175, %c0_176, %c0_177] : memref<9x32x64xbf16, #tpu.memory_space<vmem>>, vector<1x32x64xbf16>
    %210 = vector.shape_cast %209 : vector<1x32x64xbf16> to vector<32x64xbf16>
    %cst_178 = arith.constant dense<0.000000e+00> : vector<30x64xf32>
    %211 = tpu.matmul %208, %210, %cst_178 {dimension_numbers = #tpu.dot_dimension_numbers<[1], [0], [0], [1], [0, 0, 1, 1], [], []>} : vector<30x32xbf16>, vector<32x64xbf16>, vector<30x64xf32> -> vector<30x64xf32>
    %212 = arith.addf %205, %211 : vector<30x64xf32>
    %c0_179 = arith.constant 0 : index
    %c92 = arith.constant 92 : index
    %c0_180 = arith.constant 0 : index
    %213 = vector.load %arg1[%c0_179, %c92, %c0_180] : memref<1x227x32xf32, #tpu.memory_space<vmem>>, vector<1x30x32xf32>
    %214 = vector.shape_cast %213 : vector<1x30x32xf32> to vector<30x32xf32>
    %215 = arith.truncf %214 : vector<30x32xf32> to vector<30x32xbf16>
    %c8_181 = arith.constant 8 : index
    %c0_182 = arith.constant 0 : index
    %c0_183 = arith.constant 0 : index
    %216 = vector.load %arg2[%c8_181, %c0_182, %c0_183] : memref<9x32x64xbf16, #tpu.memory_space<vmem>>, vector<1x32x64xbf16>
    %217 = vector.shape_cast %216 : vector<1x32x64xbf16> to vector<32x64xbf16>
    %cst_184 = arith.constant dense<0.000000e+00> : vector<30x64xf32>
    %218 = tpu.matmul %215, %217, %cst_184 {dimension_numbers = #tpu.dot_dimension_numbers<[1], [0], [0], [1], [0, 0, 1, 1], [], []>} : vector<30x32xbf16>, vector<32x64xbf16>, vector<30x64xf32> -> vector<30x64xf32>
    %219 = arith.addf %212, %218 : vector<30x64xf32>
    %c0_185 = arith.constant 0 : index
    %c0_186 = arith.constant 0 : index
    %220 = vector.load %arg3[%c0_185, %c0_186] : memref<1x64xf32, #tpu.memory_space<vmem>>, vector<1x64xf32>
    %221 = vector.broadcast %220 : vector<1x64xf32> to vector<30x64xf32>
    %222 = arith.addf %219, %221 : vector<30x64xf32>
    %cst_187 = arith.constant 0.000000e+00 : f32
    %223 = vector.broadcast %cst_187 : f32 to vector<30x64xf32>
    %224 = arith.maximumf %222, %223 : vector<30x64xf32>
    %225 = vector.extract_strided_slice %224 {offsets = [0, 0], sizes = [15, 64], strides = [1, 1]} : vector<30x64xf32> to vector<15x64xf32>
    %226 = vector.extract_strided_slice %224 {offsets = [15, 0], sizes = [15, 64], strides = [1, 1]} : vector<30x64xf32> to vector<15x64xf32>
    %227 = arith.maximumf %225, %226 : vector<15x64xf32>
    %228 = arith.truncf %227 : vector<15x64xf32> to vector<15x64xbf16>
    %cst_188 = arith.constant dense<0.000000e+00> : vector<6x64xf32>
    %229 = tpu.matmul %1, %228, %cst_188 {dimension_numbers = #tpu.dot_dimension_numbers<[1], [0], [0], [1], [0, 0, 1, 1], [], []>} : vector<6x15xbf16>, vector<15x64xbf16>, vector<6x64xf32> -> vector<6x64xf32>
    %cst_189 = arith.constant dense<0.000000e+00> : vector<6x64xf32>
    %230 = tpu.matmul %3, %228, %cst_189 {dimension_numbers = #tpu.dot_dimension_numbers<[1], [0], [0], [1], [0, 0, 1, 1], [], []>} : vector<6x15xbf16>, vector<15x64xbf16>, vector<6x64xf32> -> vector<6x64xf32>
    %231 = arith.maximumf %229, %230 : vector<6x64xf32>
    %c0_190 = arith.constant 0 : index
    %c2_191 = arith.constant 2 : index
    %c0_192 = arith.constant 0 : index
    %c0_193 = arith.constant 0 : index
    %232 = vector.load %arg5[%c0_190, %c2_191, %c0_192, %c0_193] : memref<1x6x6x64xf32, #tpu.memory_space<vmem>>, vector<1x1x6x64xf32>
    %233 = vector.shape_cast %232 : vector<1x1x6x64xf32> to vector<6x64xf32>
    %234 = vector.shape_cast %231 : vector<6x64xf32> to vector<1x1x6x64xf32>
    tpu.vector_store %arg5[%c0_190, %c2_191, %c0_192, %c0_193], %234 {strides = array<i32>} : memref<1x6x6x64xf32, #tpu.memory_space<vmem>>, vector<1x1x6x64xf32>,
    %c0_194 = arith.constant 0 : index
    %c90_195 = arith.constant 90 : index
    %c0_196 = arith.constant 0 : index
    %235 = vector.load %arg1[%c0_194, %c90_195, %c0_196] : memref<1x227x32xf32, #tpu.memory_space<vmem>>, vector<1x30x32xf32>
    %236 = vector.shape_cast %235 : vector<1x30x32xf32> to vector<30x32xf32>
    %237 = arith.truncf %236 : vector<30x32xf32> to vector<30x32xbf16>
    %c0_197 = arith.constant 0 : index
    %c0_198 = arith.constant 0 : index
    %c0_199 = arith.constant 0 : index
    %238 = vector.load %arg2[%c0_197, %c0_198, %c0_199] : memref<9x32x64xbf16, #tpu.memory_space<vmem>>, vector<1x32x64xbf16>
    %239 = vector.shape_cast %238 : vector<1x32x64xbf16> to vector<32x64xbf16>
    %cst_200 = arith.constant dense<0.000000e+00> : vector<30x64xf32>
    %240 = tpu.matmul %237, %239, %cst_200 {dimension_numbers = #tpu.dot_dimension_numbers<[1], [0], [0], [1], [0, 0, 1, 1], [], []>} : vector<30x32xbf16>, vector<32x64xbf16>, vector<30x64xf32> -> vector<30x64xf32>
    %c0_201 = arith.constant 0 : index
    %c91_202 = arith.constant 91 : index
    %c0_203 = arith.constant 0 : index
    %241 = vector.load %arg1[%c0_201, %c91_202, %c0_203] : memref<1x227x32xf32, #tpu.memory_space<vmem>>, vector<1x30x32xf32>
    %242 = vector.shape_cast %241 : vector<1x30x32xf32> to vector<30x32xf32>
    %243 = arith.truncf %242 : vector<30x32xf32> to vector<30x32xbf16>
    %c1_204 = arith.constant 1 : index
    %c0_205 = arith.constant 0 : index
    %c0_206 = arith.constant 0 : index
    %244 = vector.load %arg2[%c1_204, %c0_205, %c0_206] : memref<9x32x64xbf16, #tpu.memory_space<vmem>>, vector<1x32x64xbf16>
    %245 = vector.shape_cast %244 : vector<1x32x64xbf16> to vector<32x64xbf16>
    %cst_207 = arith.constant dense<0.000000e+00> : vector<30x64xf32>
    %246 = tpu.matmul %243, %245, %cst_207 {dimension_numbers = #tpu.dot_dimension_numbers<[1], [0], [0], [1], [0, 0, 1, 1], [], []>} : vector<30x32xbf16>, vector<32x64xbf16>, vector<30x64xf32> -> vector<30x64xf32>
    %247 = arith.addf %240, %246 : vector<30x64xf32>
    %c0_208 = arith.constant 0 : index
    %c92_209 = arith.constant 92 : index
    %c0_210 = arith.constant 0 : index
    %248 = vector.load %arg1[%c0_208, %c92_209, %c0_210] : memref<1x227x32xf32, #tpu.memory_space<vmem>>, vector<1x30x32xf32>
    %249 = vector.shape_cast %248 : vector<1x30x32xf32> to vector<30x32xf32>
    %250 = arith.truncf %249 : vector<30x32xf32> to vector<30x32xbf16>
    %c2_211 = arith.constant 2 : index
    %c0_212 = arith.constant 0 : index
    %c0_213 = arith.constant 0 : index
    %251 = vector.load %arg2[%c2_211, %c0_212, %c0_213] : memref<9x32x64xbf16, #tpu.memory_space<vmem>>, vector<1x32x64xbf16>
    %252 = vector.shape_cast %251 : vector<1x32x64xbf16> to vector<32x64xbf16>
    %cst_214 = arith.constant dense<0.000000e+00> : vector<30x64xf32>
    %253 = tpu.matmul %250, %252, %cst_214 {dimension_numbers = #tpu.dot_dimension_numbers<[1], [0], [0], [1], [0, 0, 1, 1], [], []>} : vector<30x32xbf16>, vector<32x64xbf16>, vector<30x64xf32> -> vector<30x64xf32>
    %254 = arith.addf %247, %253 : vector<30x64xf32>
    %c0_215 = arith.constant 0 : index
    %c105 = arith.constant 105 : index
    %c0_216 = arith.constant 0 : index
    %255 = vector.load %arg1[%c0_215, %c105, %c0_216] : memref<1x227x32xf32, #tpu.memory_space<vmem>>, vector<1x30x32xf32>
    %256 = vector.shape_cast %255 : vector<1x30x32xf32> to vector<30x32xf32>
    %257 = arith.truncf %256 : vector<30x32xf32> to vector<30x32xbf16>
    %c3_217 = arith.constant 3 : index
    %c0_218 = arith.constant 0 : index
    %c0_219 = arith.constant 0 : index
    %258 = vector.load %arg2[%c3_217, %c0_218, %c0_219] : memref<9x32x64xbf16, #tpu.memory_space<vmem>>, vector<1x32x64xbf16>
    %259 = vector.shape_cast %258 : vector<1x32x64xbf16> to vector<32x64xbf16>
    %cst_220 = arith.constant dense<0.000000e+00> : vector<30x64xf32>
    %260 = tpu.matmul %257, %259, %cst_220 {dimension_numbers = #tpu.dot_dimension_numbers<[1], [0], [0], [1], [0, 0, 1, 1], [], []>} : vector<30x32xbf16>, vector<32x64xbf16>, vector<30x64xf32> -> vector<30x64xf32>
    %261 = arith.addf %254, %260 : vector<30x64xf32>
    %c0_221 = arith.constant 0 : index
    %c106 = arith.constant 106 : index
    %c0_222 = arith.constant 0 : index
    %262 = vector.load %arg1[%c0_221, %c106, %c0_222] : memref<1x227x32xf32, #tpu.memory_space<vmem>>, vector<1x30x32xf32>
    %263 = vector.shape_cast %262 : vector<1x30x32xf32> to vector<30x32xf32>
    %264 = arith.truncf %263 : vector<30x32xf32> to vector<30x32xbf16>
    %c4_223 = arith.constant 4 : index
    %c0_224 = arith.constant 0 : index
    %c0_225 = arith.constant 0 : index
    %265 = vector.load %arg2[%c4_223, %c0_224, %c0_225] : memref<9x32x64xbf16, #tpu.memory_space<vmem>>, vector<1x32x64xbf16>
    %266 = vector.shape_cast %265 : vector<1x32x64xbf16> to vector<32x64xbf16>
    %cst_226 = arith.constant dense<0.000000e+00> : vector<30x64xf32>
    %267 = tpu.matmul %264, %266, %cst_226 {dimension_numbers = #tpu.dot_dimension_numbers<[1], [0], [0], [1], [0, 0, 1, 1], [], []>} : vector<30x32xbf16>, vector<32x64xbf16>, vector<30x64xf32> -> vector<30x64xf32>
    %268 = arith.addf %261, %267 : vector<30x64xf32>
    %c0_227 = arith.constant 0 : index
    %c107 = arith.constant 107 : index
    %c0_228 = arith.constant 0 : index
    %269 = vector.load %arg1[%c0_227, %c107, %c0_228] : memref<1x227x32xf32, #tpu.memory_space<vmem>>, vector<1x30x32xf32>
    %270 = vector.shape_cast %269 : vector<1x30x32xf32> to vector<30x32xf32>
    %271 = arith.truncf %270 : vector<30x32xf32> to vector<30x32xbf16>
    %c5_229 = arith.constant 5 : index
    %c0_230 = arith.constant 0 : index
    %c0_231 = arith.constant 0 : index
    %272 = vector.load %arg2[%c5_229, %c0_230, %c0_231] : memref<9x32x64xbf16, #tpu.memory_space<vmem>>, vector<1x32x64xbf16>
    %273 = vector.shape_cast %272 : vector<1x32x64xbf16> to vector<32x64xbf16>
    %cst_232 = arith.constant dense<0.000000e+00> : vector<30x64xf32>
    %274 = tpu.matmul %271, %273, %cst_232 {dimension_numbers = #tpu.dot_dimension_numbers<[1], [0], [0], [1], [0, 0, 1, 1], [], []>} : vector<30x32xbf16>, vector<32x64xbf16>, vector<30x64xf32> -> vector<30x64xf32>
    %275 = arith.addf %268, %274 : vector<30x64xf32>
    %c0_233 = arith.constant 0 : index
    %c120 = arith.constant 120 : index
    %c0_234 = arith.constant 0 : index
    %276 = vector.load %arg1[%c0_233, %c120, %c0_234] : memref<1x227x32xf32, #tpu.memory_space<vmem>>, vector<1x30x32xf32>
    %277 = vector.shape_cast %276 : vector<1x30x32xf32> to vector<30x32xf32>
    %278 = arith.truncf %277 : vector<30x32xf32> to vector<30x32xbf16>
    %c6_235 = arith.constant 6 : index
    %c0_236 = arith.constant 0 : index
    %c0_237 = arith.constant 0 : index
    %279 = vector.load %arg2[%c6_235, %c0_236, %c0_237] : memref<9x32x64xbf16, #tpu.memory_space<vmem>>, vector<1x32x64xbf16>
    %280 = vector.shape_cast %279 : vector<1x32x64xbf16> to vector<32x64xbf16>
    %cst_238 = arith.constant dense<0.000000e+00> : vector<30x64xf32>
    %281 = tpu.matmul %278, %280, %cst_238 {dimension_numbers = #tpu.dot_dimension_numbers<[1], [0], [0], [1], [0, 0, 1, 1], [], []>} : vector<30x32xbf16>, vector<32x64xbf16>, vector<30x64xf32> -> vector<30x64xf32>
    %282 = arith.addf %275, %281 : vector<30x64xf32>
    %c0_239 = arith.constant 0 : index
    %c121 = arith.constant 121 : index
    %c0_240 = arith.constant 0 : index
    %283 = vector.load %arg1[%c0_239, %c121, %c0_240] : memref<1x227x32xf32, #tpu.memory_space<vmem>>, vector<1x30x32xf32>
    %284 = vector.shape_cast %283 : vector<1x30x32xf32> to vector<30x32xf32>
    %285 = arith.truncf %284 : vector<30x32xf32> to vector<30x32xbf16>
    %c7_241 = arith.constant 7 : index
    %c0_242 = arith.constant 0 : index
    %c0_243 = arith.constant 0 : index
    %286 = vector.load %arg2[%c7_241, %c0_242, %c0_243] : memref<9x32x64xbf16, #tpu.memory_space<vmem>>, vector<1x32x64xbf16>
    %287 = vector.shape_cast %286 : vector<1x32x64xbf16> to vector<32x64xbf16>
    %cst_244 = arith.constant dense<0.000000e+00> : vector<30x64xf32>
    %288 = tpu.matmul %285, %287, %cst_244 {dimension_numbers = #tpu.dot_dimension_numbers<[1], [0], [0], [1], [0, 0, 1, 1], [], []>} : vector<30x32xbf16>, vector<32x64xbf16>, vector<30x64xf32> -> vector<30x64xf32>
    %289 = arith.addf %282, %288 : vector<30x64xf32>
    %c0_245 = arith.constant 0 : index
    %c122 = arith.constant 122 : index
    %c0_246 = arith.constant 0 : index
    %290 = vector.load %arg1[%c0_245, %c122, %c0_246] : memref<1x227x32xf32, #tpu.memory_space<vmem>>, vector<1x30x32xf32>
    %291 = vector.shape_cast %290 : vector<1x30x32xf32> to vector<30x32xf32>
    %292 = arith.truncf %291 : vector<30x32xf32> to vector<30x32xbf16>
    %c8_247 = arith.constant 8 : index
    %c0_248 = arith.constant 0 : index
    %c0_249 = arith.constant 0 : index
    %293 = vector.load %arg2[%c8_247, %c0_248, %c0_249] : memref<9x32x64xbf16, #tpu.memory_space<vmem>>, vector<1x32x64xbf16>
    %294 = vector.shape_cast %293 : vector<1x32x64xbf16> to vector<32x64xbf16>
    %cst_250 = arith.constant dense<0.000000e+00> : vector<30x64xf32>
    %295 = tpu.matmul %292, %294, %cst_250 {dimension_numbers = #tpu.dot_dimension_numbers<[1], [0], [0], [1], [0, 0, 1, 1], [], []>} : vector<30x32xbf16>, vector<32x64xbf16>, vector<30x64xf32> -> vector<30x64xf32>
    %296 = arith.addf %289, %295 : vector<30x64xf32>
    %c0_251 = arith.constant 0 : index
    %c0_252 = arith.constant 0 : index
    %297 = vector.load %arg3[%c0_251, %c0_252] : memref<1x64xf32, #tpu.memory_space<vmem>>, vector<1x64xf32>
    %298 = vector.broadcast %297 : vector<1x64xf32> to vector<30x64xf32>
    %299 = arith.addf %296, %298 : vector<30x64xf32>
    %cst_253 = arith.constant 0.000000e+00 : f32
    %300 = vector.broadcast %cst_253 : f32 to vector<30x64xf32>
    %301 = arith.maximumf %299, %300 : vector<30x64xf32>
    %302 = vector.extract_strided_slice %301 {offsets = [0, 0], sizes = [15, 64], strides = [1, 1]} : vector<30x64xf32> to vector<15x64xf32>
    %303 = vector.extract_strided_slice %301 {offsets = [15, 0], sizes = [15, 64], strides = [1, 1]} : vector<30x64xf32> to vector<15x64xf32>
    %304 = arith.maximumf %302, %303 : vector<15x64xf32>
    %305 = arith.truncf %304 : vector<15x64xf32> to vector<15x64xbf16>
    %cst_254 = arith.constant dense<0.000000e+00> : vector<6x64xf32>
    %306 = tpu.matmul %1, %305, %cst_254 {dimension_numbers = #tpu.dot_dimension_numbers<[1], [0], [0], [1], [0, 0, 1, 1], [], []>} : vector<6x15xbf16>, vector<15x64xbf16>, vector<6x64xf32> -> vector<6x64xf32>
    %cst_255 = arith.constant dense<0.000000e+00> : vector<6x64xf32>
    %307 = tpu.matmul %3, %305, %cst_255 {dimension_numbers = #tpu.dot_dimension_numbers<[1], [0], [0], [1], [0, 0, 1, 1], [], []>} : vector<6x15xbf16>, vector<15x64xbf16>, vector<6x64xf32> -> vector<6x64xf32>
    %308 = arith.maximumf %306, %307 : vector<6x64xf32>
    %c0_256 = arith.constant 0 : index
    %c3_257 = arith.constant 3 : index
    %c0_258 = arith.constant 0 : index
    %c0_259 = arith.constant 0 : index
    %309 = vector.load %arg5[%c0_256, %c3_257, %c0_258, %c0_259] : memref<1x6x6x64xf32, #tpu.memory_space<vmem>>, vector<1x1x6x64xf32>
    %310 = vector.shape_cast %309 : vector<1x1x6x64xf32> to vector<6x64xf32>
    %311 = vector.shape_cast %308 : vector<6x64xf32> to vector<1x1x6x64xf32>
    tpu.vector_store %arg5[%c0_256, %c3_257, %c0_258, %c0_259], %311 {strides = array<i32>} : memref<1x6x6x64xf32, #tpu.memory_space<vmem>>, vector<1x1x6x64xf32>,
    %c0_260 = arith.constant 0 : index
    %c120_261 = arith.constant 120 : index
    %c0_262 = arith.constant 0 : index
    %312 = vector.load %arg1[%c0_260, %c120_261, %c0_262] : memref<1x227x32xf32, #tpu.memory_space<vmem>>, vector<1x30x32xf32>
    %313 = vector.shape_cast %312 : vector<1x30x32xf32> to vector<30x32xf32>
    %314 = arith.truncf %313 : vector<30x32xf32> to vector<30x32xbf16>
    %c0_263 = arith.constant 0 : index
    %c0_264 = arith.constant 0 : index
    %c0_265 = arith.constant 0 : index
    %315 = vector.load %arg2[%c0_263, %c0_264, %c0_265] : memref<9x32x64xbf16, #tpu.memory_space<vmem>>, vector<1x32x64xbf16>
    %316 = vector.shape_cast %315 : vector<1x32x64xbf16> to vector<32x64xbf16>
    %cst_266 = arith.constant dense<0.000000e+00> : vector<30x64xf32>
    %317 = tpu.matmul %314, %316, %cst_266 {dimension_numbers = #tpu.dot_dimension_numbers<[1], [0], [0], [1], [0, 0, 1, 1], [], []>} : vector<30x32xbf16>, vector<32x64xbf16>, vector<30x64xf32> -> vector<30x64xf32>
    %c0_267 = arith.constant 0 : index
    %c121_268 = arith.constant 121 : index
    %c0_269 = arith.constant 0 : index
    %318 = vector.load %arg1[%c0_267, %c121_268, %c0_269] : memref<1x227x32xf32, #tpu.memory_space<vmem>>, vector<1x30x32xf32>
    %319 = vector.shape_cast %318 : vector<1x30x32xf32> to vector<30x32xf32>
    %320 = arith.truncf %319 : vector<30x32xf32> to vector<30x32xbf16>
    %c1_270 = arith.constant 1 : index
    %c0_271 = arith.constant 0 : index
    %c0_272 = arith.constant 0 : index
    %321 = vector.load %arg2[%c1_270, %c0_271, %c0_272] : memref<9x32x64xbf16, #tpu.memory_space<vmem>>, vector<1x32x64xbf16>
    %322 = vector.shape_cast %321 : vector<1x32x64xbf16> to vector<32x64xbf16>
    %cst_273 = arith.constant dense<0.000000e+00> : vector<30x64xf32>
    %323 = tpu.matmul %320, %322, %cst_273 {dimension_numbers = #tpu.dot_dimension_numbers<[1], [0], [0], [1], [0, 0, 1, 1], [], []>} : vector<30x32xbf16>, vector<32x64xbf16>, vector<30x64xf32> -> vector<30x64xf32>
    %324 = arith.addf %317, %323 : vector<30x64xf32>
    %c0_274 = arith.constant 0 : index
    %c122_275 = arith.constant 122 : index
    %c0_276 = arith.constant 0 : index
    %325 = vector.load %arg1[%c0_274, %c122_275, %c0_276] : memref<1x227x32xf32, #tpu.memory_space<vmem>>, vector<1x30x32xf32>
    %326 = vector.shape_cast %325 : vector<1x30x32xf32> to vector<30x32xf32>
    %327 = arith.truncf %326 : vector<30x32xf32> to vector<30x32xbf16>
    %c2_277 = arith.constant 2 : index
    %c0_278 = arith.constant 0 : index
    %c0_279 = arith.constant 0 : index
    %328 = vector.load %arg2[%c2_277, %c0_278, %c0_279] : memref<9x32x64xbf16, #tpu.memory_space<vmem>>, vector<1x32x64xbf16>
    %329 = vector.shape_cast %328 : vector<1x32x64xbf16> to vector<32x64xbf16>
    %cst_280 = arith.constant dense<0.000000e+00> : vector<30x64xf32>
    %330 = tpu.matmul %327, %329, %cst_280 {dimension_numbers = #tpu.dot_dimension_numbers<[1], [0], [0], [1], [0, 0, 1, 1], [], []>} : vector<30x32xbf16>, vector<32x64xbf16>, vector<30x64xf32> -> vector<30x64xf32>
    %331 = arith.addf %324, %330 : vector<30x64xf32>
    %c0_281 = arith.constant 0 : index
    %c135 = arith.constant 135 : index
    %c0_282 = arith.constant 0 : index
    %332 = vector.load %arg1[%c0_281, %c135, %c0_282] : memref<1x227x32xf32, #tpu.memory_space<vmem>>, vector<1x30x32xf32>
    %333 = vector.shape_cast %332 : vector<1x30x32xf32> to vector<30x32xf32>
    %334 = arith.truncf %333 : vector<30x32xf32> to vector<30x32xbf16>
    %c3_283 = arith.constant 3 : index
    %c0_284 = arith.constant 0 : index
    %c0_285 = arith.constant 0 : index
    %335 = vector.load %arg2[%c3_283, %c0_284, %c0_285] : memref<9x32x64xbf16, #tpu.memory_space<vmem>>, vector<1x32x64xbf16>
    %336 = vector.shape_cast %335 : vector<1x32x64xbf16> to vector<32x64xbf16>
    %cst_286 = arith.constant dense<0.000000e+00> : vector<30x64xf32>
    %337 = tpu.matmul %334, %336, %cst_286 {dimension_numbers = #tpu.dot_dimension_numbers<[1], [0], [0], [1], [0, 0, 1, 1], [], []>} : vector<30x32xbf16>, vector<32x64xbf16>, vector<30x64xf32> -> vector<30x64xf32>
    %338 = arith.addf %331, %337 : vector<30x64xf32>
    %c0_287 = arith.constant 0 : index
    %c136 = arith.constant 136 : index
    %c0_288 = arith.constant 0 : index
    %339 = vector.load %arg1[%c0_287, %c136, %c0_288] : memref<1x227x32xf32, #tpu.memory_space<vmem>>, vector<1x30x32xf32>
    %340 = vector.shape_cast %339 : vector<1x30x32xf32> to vector<30x32xf32>
    %341 = arith.truncf %340 : vector<30x32xf32> to vector<30x32xbf16>
    %c4_289 = arith.constant 4 : index
    %c0_290 = arith.constant 0 : index
    %c0_291 = arith.constant 0 : index
    %342 = vector.load %arg2[%c4_289, %c0_290, %c0_291] : memref<9x32x64xbf16, #tpu.memory_space<vmem>>, vector<1x32x64xbf16>
    %343 = vector.shape_cast %342 : vector<1x32x64xbf16> to vector<32x64xbf16>
    %cst_292 = arith.constant dense<0.000000e+00> : vector<30x64xf32>
    %344 = tpu.matmul %341, %343, %cst_292 {dimension_numbers = #tpu.dot_dimension_numbers<[1], [0], [0], [1], [0, 0, 1, 1], [], []>} : vector<30x32xbf16>, vector<32x64xbf16>, vector<30x64xf32> -> vector<30x64xf32>
    %345 = arith.addf %338, %344 : vector<30x64xf32>
    %c0_293 = arith.constant 0 : index
    %c137 = arith.constant 137 : index
    %c0_294 = arith.constant 0 : index
    %346 = vector.load %arg1[%c0_293, %c137, %c0_294] : memref<1x227x32xf32, #tpu.memory_space<vmem>>, vector<1x30x32xf32>
    %347 = vector.shape_cast %346 : vector<1x30x32xf32> to vector<30x32xf32>
    %348 = arith.truncf %347 : vector<30x32xf32> to vector<30x32xbf16>
    %c5_295 = arith.constant 5 : index
    %c0_296 = arith.constant 0 : index
    %c0_297 = arith.constant 0 : index
    %349 = vector.load %arg2[%c5_295, %c0_296, %c0_297] : memref<9x32x64xbf16, #tpu.memory_space<vmem>>, vector<1x32x64xbf16>
    %350 = vector.shape_cast %349 : vector<1x32x64xbf16> to vector<32x64xbf16>
    %cst_298 = arith.constant dense<0.000000e+00> : vector<30x64xf32>
    %351 = tpu.matmul %348, %350, %cst_298 {dimension_numbers = #tpu.dot_dimension_numbers<[1], [0], [0], [1], [0, 0, 1, 1], [], []>} : vector<30x32xbf16>, vector<32x64xbf16>, vector<30x64xf32> -> vector<30x64xf32>
    %352 = arith.addf %345, %351 : vector<30x64xf32>
    %c0_299 = arith.constant 0 : index
    %c150 = arith.constant 150 : index
    %c0_300 = arith.constant 0 : index
    %353 = vector.load %arg1[%c0_299, %c150, %c0_300] : memref<1x227x32xf32, #tpu.memory_space<vmem>>, vector<1x30x32xf32>
    %354 = vector.shape_cast %353 : vector<1x30x32xf32> to vector<30x32xf32>
    %355 = arith.truncf %354 : vector<30x32xf32> to vector<30x32xbf16>
    %c6_301 = arith.constant 6 : index
    %c0_302 = arith.constant 0 : index
    %c0_303 = arith.constant 0 : index
    %356 = vector.load %arg2[%c6_301, %c0_302, %c0_303] : memref<9x32x64xbf16, #tpu.memory_space<vmem>>, vector<1x32x64xbf16>
    %357 = vector.shape_cast %356 : vector<1x32x64xbf16> to vector<32x64xbf16>
    %cst_304 = arith.constant dense<0.000000e+00> : vector<30x64xf32>
    %358 = tpu.matmul %355, %357, %cst_304 {dimension_numbers = #tpu.dot_dimension_numbers<[1], [0], [0], [1], [0, 0, 1, 1], [], []>} : vector<30x32xbf16>, vector<32x64xbf16>, vector<30x64xf32> -> vector<30x64xf32>
    %359 = arith.addf %352, %358 : vector<30x64xf32>
    %c0_305 = arith.constant 0 : index
    %c151 = arith.constant 151 : index
    %c0_306 = arith.constant 0 : index
    %360 = vector.load %arg1[%c0_305, %c151, %c0_306] : memref<1x227x32xf32, #tpu.memory_space<vmem>>, vector<1x30x32xf32>
    %361 = vector.shape_cast %360 : vector<1x30x32xf32> to vector<30x32xf32>
    %362 = arith.truncf %361 : vector<30x32xf32> to vector<30x32xbf16>
    %c7_307 = arith.constant 7 : index
    %c0_308 = arith.constant 0 : index
    %c0_309 = arith.constant 0 : index
    %363 = vector.load %arg2[%c7_307, %c0_308, %c0_309] : memref<9x32x64xbf16, #tpu.memory_space<vmem>>, vector<1x32x64xbf16>
    %364 = vector.shape_cast %363 : vector<1x32x64xbf16> to vector<32x64xbf16>
    %cst_310 = arith.constant dense<0.000000e+00> : vector<30x64xf32>
    %365 = tpu.matmul %362, %364, %cst_310 {dimension_numbers = #tpu.dot_dimension_numbers<[1], [0], [0], [1], [0, 0, 1, 1], [], []>} : vector<30x32xbf16>, vector<32x64xbf16>, vector<30x64xf32> -> vector<30x64xf32>
    %366 = arith.addf %359, %365 : vector<30x64xf32>
    %c0_311 = arith.constant 0 : index
    %c152 = arith.constant 152 : index
    %c0_312 = arith.constant 0 : index
    %367 = vector.load %arg1[%c0_311, %c152, %c0_312] : memref<1x227x32xf32, #tpu.memory_space<vmem>>, vector<1x30x32xf32>
    %368 = vector.shape_cast %367 : vector<1x30x32xf32> to vector<30x32xf32>
    %369 = arith.truncf %368 : vector<30x32xf32> to vector<30x32xbf16>
    %c8_313 = arith.constant 8 : index
    %c0_314 = arith.constant 0 : index
    %c0_315 = arith.constant 0 : index
    %370 = vector.load %arg2[%c8_313, %c0_314, %c0_315] : memref<9x32x64xbf16, #tpu.memory_space<vmem>>, vector<1x32x64xbf16>
    %371 = vector.shape_cast %370 : vector<1x32x64xbf16> to vector<32x64xbf16>
    %cst_316 = arith.constant dense<0.000000e+00> : vector<30x64xf32>
    %372 = tpu.matmul %369, %371, %cst_316 {dimension_numbers = #tpu.dot_dimension_numbers<[1], [0], [0], [1], [0, 0, 1, 1], [], []>} : vector<30x32xbf16>, vector<32x64xbf16>, vector<30x64xf32> -> vector<30x64xf32>
    %373 = arith.addf %366, %372 : vector<30x64xf32>
    %c0_317 = arith.constant 0 : index
    %c0_318 = arith.constant 0 : index
    %374 = vector.load %arg3[%c0_317, %c0_318] : memref<1x64xf32, #tpu.memory_space<vmem>>, vector<1x64xf32>
    %375 = vector.broadcast %374 : vector<1x64xf32> to vector<30x64xf32>
    %376 = arith.addf %373, %375 : vector<30x64xf32>
    %cst_319 = arith.constant 0.000000e+00 : f32
    %377 = vector.broadcast %cst_319 : f32 to vector<30x64xf32>
    %378 = arith.maximumf %376, %377 : vector<30x64xf32>
    %379 = vector.extract_strided_slice %378 {offsets = [0, 0], sizes = [15, 64], strides = [1, 1]} : vector<30x64xf32> to vector<15x64xf32>
    %380 = vector.extract_strided_slice %378 {offsets = [15, 0], sizes = [15, 64], strides = [1, 1]} : vector<30x64xf32> to vector<15x64xf32>
    %381 = arith.maximumf %379, %380 : vector<15x64xf32>
    %382 = arith.truncf %381 : vector<15x64xf32> to vector<15x64xbf16>
    %cst_320 = arith.constant dense<0.000000e+00> : vector<6x64xf32>
    %383 = tpu.matmul %1, %382, %cst_320 {dimension_numbers = #tpu.dot_dimension_numbers<[1], [0], [0], [1], [0, 0, 1, 1], [], []>} : vector<6x15xbf16>, vector<15x64xbf16>, vector<6x64xf32> -> vector<6x64xf32>
    %cst_321 = arith.constant dense<0.000000e+00> : vector<6x64xf32>
    %384 = tpu.matmul %3, %382, %cst_321 {dimension_numbers = #tpu.dot_dimension_numbers<[1], [0], [0], [1], [0, 0, 1, 1], [], []>} : vector<6x15xbf16>, vector<15x64xbf16>, vector<6x64xf32> -> vector<6x64xf32>
    %385 = arith.maximumf %383, %384 : vector<6x64xf32>
    %c0_322 = arith.constant 0 : index
    %c4_323 = arith.constant 4 : index
    %c0_324 = arith.constant 0 : index
    %c0_325 = arith.constant 0 : index
    %386 = vector.load %arg5[%c0_322, %c4_323, %c0_324, %c0_325] : memref<1x6x6x64xf32, #tpu.memory_space<vmem>>, vector<1x1x6x64xf32>
    %387 = vector.shape_cast %386 : vector<1x1x6x64xf32> to vector<6x64xf32>
    %388 = vector.shape_cast %385 : vector<6x64xf32> to vector<1x1x6x64xf32>
    tpu.vector_store %arg5[%c0_322, %c4_323, %c0_324, %c0_325], %388 {strides = array<i32>} : memref<1x6x6x64xf32, #tpu.memory_space<vmem>>, vector<1x1x6x64xf32>,
    %c0_326 = arith.constant 0 : index
    %c150_327 = arith.constant 150 : index
    %c0_328 = arith.constant 0 : index
    %389 = vector.load %arg1[%c0_326, %c150_327, %c0_328] : memref<1x227x32xf32, #tpu.memory_space<vmem>>, vector<1x30x32xf32>
    %390 = vector.shape_cast %389 : vector<1x30x32xf32> to vector<30x32xf32>
    %391 = arith.truncf %390 : vector<30x32xf32> to vector<30x32xbf16>
    %c0_329 = arith.constant 0 : index
    %c0_330 = arith.constant 0 : index
    %c0_331 = arith.constant 0 : index
    %392 = vector.load %arg2[%c0_329, %c0_330, %c0_331] : memref<9x32x64xbf16, #tpu.memory_space<vmem>>, vector<1x32x64xbf16>
    %393 = vector.shape_cast %392 : vector<1x32x64xbf16> to vector<32x64xbf16>
    %cst_332 = arith.constant dense<0.000000e+00> : vector<30x64xf32>
    %394 = tpu.matmul %391, %393, %cst_332 {dimension_numbers = #tpu.dot_dimension_numbers<[1], [0], [0], [1], [0, 0, 1, 1], [], []>} : vector<30x32xbf16>, vector<32x64xbf16>, vector<30x64xf32> -> vector<30x64xf32>
    %c0_333 = arith.constant 0 : index
    %c151_334 = arith.constant 151 : index
    %c0_335 = arith.constant 0 : index
    %395 = vector.load %arg1[%c0_333, %c151_334, %c0_335] : memref<1x227x32xf32, #tpu.memory_space<vmem>>, vector<1x30x32xf32>
    %396 = vector.shape_cast %395 : vector<1x30x32xf32> to vector<30x32xf32>
    %397 = arith.truncf %396 : vector<30x32xf32> to vector<30x32xbf16>
    %c1_336 = arith.constant 1 : index
    %c0_337 = arith.constant 0 : index
    %c0_338 = arith.constant 0 : index
    %398 = vector.load %arg2[%c1_336, %c0_337, %c0_338] : memref<9x32x64xbf16, #tpu.memory_space<vmem>>, vector<1x32x64xbf16>
    %399 = vector.shape_cast %398 : vector<1x32x64xbf16> to vector<32x64xbf16>
    %cst_339 = arith.constant dense<0.000000e+00> : vector<30x64xf32>
    %400 = tpu.matmul %397, %399, %cst_339 {dimension_numbers = #tpu.dot_dimension_numbers<[1], [0], [0], [1], [0, 0, 1, 1], [], []>} : vector<30x32xbf16>, vector<32x64xbf16>, vector<30x64xf32> -> vector<30x64xf32>
    %401 = arith.addf %394, %400 : vector<30x64xf32>
    %c0_340 = arith.constant 0 : index
    %c152_341 = arith.constant 152 : index
    %c0_342 = arith.constant 0 : index
    %402 = vector.load %arg1[%c0_340, %c152_341, %c0_342] : memref<1x227x32xf32, #tpu.memory_space<vmem>>, vector<1x30x32xf32>
    %403 = vector.shape_cast %402 : vector<1x30x32xf32> to vector<30x32xf32>
    %404 = arith.truncf %403 : vector<30x32xf32> to vector<30x32xbf16>
    %c2_343 = arith.constant 2 : index
    %c0_344 = arith.constant 0 : index
    %c0_345 = arith.constant 0 : index
    %405 = vector.load %arg2[%c2_343, %c0_344, %c0_345] : memref<9x32x64xbf16, #tpu.memory_space<vmem>>, vector<1x32x64xbf16>
    %406 = vector.shape_cast %405 : vector<1x32x64xbf16> to vector<32x64xbf16>
    %cst_346 = arith.constant dense<0.000000e+00> : vector<30x64xf32>
    %407 = tpu.matmul %404, %406, %cst_346 {dimension_numbers = #tpu.dot_dimension_numbers<[1], [0], [0], [1], [0, 0, 1, 1], [], []>} : vector<30x32xbf16>, vector<32x64xbf16>, vector<30x64xf32> -> vector<30x64xf32>
    %408 = arith.addf %401, %407 : vector<30x64xf32>
    %c0_347 = arith.constant 0 : index
    %c165 = arith.constant 165 : index
    %c0_348 = arith.constant 0 : index
    %409 = vector.load %arg1[%c0_347, %c165, %c0_348] : memref<1x227x32xf32, #tpu.memory_space<vmem>>, vector<1x30x32xf32>
    %410 = vector.shape_cast %409 : vector<1x30x32xf32> to vector<30x32xf32>
    %411 = arith.truncf %410 : vector<30x32xf32> to vector<30x32xbf16>
    %c3_349 = arith.constant 3 : index
    %c0_350 = arith.constant 0 : index
    %c0_351 = arith.constant 0 : index
    %412 = vector.load %arg2[%c3_349, %c0_350, %c0_351] : memref<9x32x64xbf16, #tpu.memory_space<vmem>>, vector<1x32x64xbf16>
    %413 = vector.shape_cast %412 : vector<1x32x64xbf16> to vector<32x64xbf16>
    %cst_352 = arith.constant dense<0.000000e+00> : vector<30x64xf32>
    %414 = tpu.matmul %411, %413, %cst_352 {dimension_numbers = #tpu.dot_dimension_numbers<[1], [0], [0], [1], [0, 0, 1, 1], [], []>} : vector<30x32xbf16>, vector<32x64xbf16>, vector<30x64xf32> -> vector<30x64xf32>
    %415 = arith.addf %408, %414 : vector<30x64xf32>
    %c0_353 = arith.constant 0 : index
    %c166 = arith.constant 166 : index
    %c0_354 = arith.constant 0 : index
    %416 = vector.load %arg1[%c0_353, %c166, %c0_354] : memref<1x227x32xf32, #tpu.memory_space<vmem>>, vector<1x30x32xf32>
    %417 = vector.shape_cast %416 : vector<1x30x32xf32> to vector<30x32xf32>
    %418 = arith.truncf %417 : vector<30x32xf32> to vector<30x32xbf16>
    %c4_355 = arith.constant 4 : index
    %c0_356 = arith.constant 0 : index
    %c0_357 = arith.constant 0 : index
    %419 = vector.load %arg2[%c4_355, %c0_356, %c0_357] : memref<9x32x64xbf16, #tpu.memory_space<vmem>>, vector<1x32x64xbf16>
    %420 = vector.shape_cast %419 : vector<1x32x64xbf16> to vector<32x64xbf16>
    %cst_358 = arith.constant dense<0.000000e+00> : vector<30x64xf32>
    %421 = tpu.matmul %418, %420, %cst_358 {dimension_numbers = #tpu.dot_dimension_numbers<[1], [0], [0], [1], [0, 0, 1, 1], [], []>} : vector<30x32xbf16>, vector<32x64xbf16>, vector<30x64xf32> -> vector<30x64xf32>
    %422 = arith.addf %415, %421 : vector<30x64xf32>
    %c0_359 = arith.constant 0 : index
    %c167 = arith.constant 167 : index
    %c0_360 = arith.constant 0 : index
    %423 = vector.load %arg1[%c0_359, %c167, %c0_360] : memref<1x227x32xf32, #tpu.memory_space<vmem>>, vector<1x30x32xf32>
    %424 = vector.shape_cast %423 : vector<1x30x32xf32> to vector<30x32xf32>
    %425 = arith.truncf %424 : vector<30x32xf32> to vector<30x32xbf16>
    %c5_361 = arith.constant 5 : index
    %c0_362 = arith.constant 0 : index
    %c0_363 = arith.constant 0 : index
    %426 = vector.load %arg2[%c5_361, %c0_362, %c0_363] : memref<9x32x64xbf16, #tpu.memory_space<vmem>>, vector<1x32x64xbf16>
    %427 = vector.shape_cast %426 : vector<1x32x64xbf16> to vector<32x64xbf16>
    %cst_364 = arith.constant dense<0.000000e+00> : vector<30x64xf32>
    %428 = tpu.matmul %425, %427, %cst_364 {dimension_numbers = #tpu.dot_dimension_numbers<[1], [0], [0], [1], [0, 0, 1, 1], [], []>} : vector<30x32xbf16>, vector<32x64xbf16>, vector<30x64xf32> -> vector<30x64xf32>
    %429 = arith.addf %422, %428 : vector<30x64xf32>
    %c0_365 = arith.constant 0 : index
    %c180 = arith.constant 180 : index
    %c0_366 = arith.constant 0 : index
    %430 = vector.load %arg1[%c0_365, %c180, %c0_366] : memref<1x227x32xf32, #tpu.memory_space<vmem>>, vector<1x30x32xf32>
    %431 = vector.shape_cast %430 : vector<1x30x32xf32> to vector<30x32xf32>
    %432 = arith.truncf %431 : vector<30x32xf32> to vector<30x32xbf16>
    %c6_367 = arith.constant 6 : index
    %c0_368 = arith.constant 0 : index
    %c0_369 = arith.constant 0 : index
    %433 = vector.load %arg2[%c6_367, %c0_368, %c0_369] : memref<9x32x64xbf16, #tpu.memory_space<vmem>>, vector<1x32x64xbf16>
    %434 = vector.shape_cast %433 : vector<1x32x64xbf16> to vector<32x64xbf16>
    %cst_370 = arith.constant dense<0.000000e+00> : vector<30x64xf32>
    %435 = tpu.matmul %432, %434, %cst_370 {dimension_numbers = #tpu.dot_dimension_numbers<[1], [0], [0], [1], [0, 0, 1, 1], [], []>} : vector<30x32xbf16>, vector<32x64xbf16>, vector<30x64xf32> -> vector<30x64xf32>
    %436 = arith.addf %429, %435 : vector<30x64xf32>
    %c0_371 = arith.constant 0 : index
    %c181 = arith.constant 181 : index
    %c0_372 = arith.constant 0 : index
    %437 = vector.load %arg1[%c0_371, %c181, %c0_372] : memref<1x227x32xf32, #tpu.memory_space<vmem>>, vector<1x30x32xf32>
    %438 = vector.shape_cast %437 : vector<1x30x32xf32> to vector<30x32xf32>
    %439 = arith.truncf %438 : vector<30x32xf32> to vector<30x32xbf16>
    %c7_373 = arith.constant 7 : index
    %c0_374 = arith.constant 0 : index
    %c0_375 = arith.constant 0 : index
    %440 = vector.load %arg2[%c7_373, %c0_374, %c0_375] : memref<9x32x64xbf16, #tpu.memory_space<vmem>>, vector<1x32x64xbf16>
    %441 = vector.shape_cast %440 : vector<1x32x64xbf16> to vector<32x64xbf16>
    %cst_376 = arith.constant dense<0.000000e+00> : vector<30x64xf32>
    %442 = tpu.matmul %439, %441, %cst_376 {dimension_numbers = #tpu.dot_dimension_numbers<[1], [0], [0], [1], [0, 0, 1, 1], [], []>} : vector<30x32xbf16>, vector<32x64xbf16>, vector<30x64xf32> -> vector<30x64xf32>
    %443 = arith.addf %436, %442 : vector<30x64xf32>
    %c0_377 = arith.constant 0 : index
    %c182 = arith.constant 182 : index
    %c0_378 = arith.constant 0 : index
    %444 = vector.load %arg1[%c0_377, %c182, %c0_378] : memref<1x227x32xf32, #tpu.memory_space<vmem>>, vector<1x30x32xf32>
    %445 = vector.shape_cast %444 : vector<1x30x32xf32> to vector<30x32xf32>
    %446 = arith.truncf %445 : vector<30x32xf32> to vector<30x32xbf16>
    %c8_379 = arith.constant 8 : index
    %c0_380 = arith.constant 0 : index
    %c0_381 = arith.constant 0 : index
    %447 = vector.load %arg2[%c8_379, %c0_380, %c0_381] : memref<9x32x64xbf16, #tpu.memory_space<vmem>>, vector<1x32x64xbf16>
    %448 = vector.shape_cast %447 : vector<1x32x64xbf16> to vector<32x64xbf16>
    %cst_382 = arith.constant dense<0.000000e+00> : vector<30x64xf32>
    %449 = tpu.matmul %446, %448, %cst_382 {dimension_numbers = #tpu.dot_dimension_numbers<[1], [0], [0], [1], [0, 0, 1, 1], [], []>} : vector<30x32xbf16>, vector<32x64xbf16>, vector<30x64xf32> -> vector<30x64xf32>
    %450 = arith.addf %443, %449 : vector<30x64xf32>
    %c0_383 = arith.constant 0 : index
    %c0_384 = arith.constant 0 : index
    %451 = vector.load %arg3[%c0_383, %c0_384] : memref<1x64xf32, #tpu.memory_space<vmem>>, vector<1x64xf32>
    %452 = vector.broadcast %451 : vector<1x64xf32> to vector<30x64xf32>
    %453 = arith.addf %450, %452 : vector<30x64xf32>
    %cst_385 = arith.constant 0.000000e+00 : f32
    %454 = vector.broadcast %cst_385 : f32 to vector<30x64xf32>
    %455 = arith.maximumf %453, %454 : vector<30x64xf32>
    %456 = vector.extract_strided_slice %455 {offsets = [0, 0], sizes = [15, 64], strides = [1, 1]} : vector<30x64xf32> to vector<15x64xf32>
    %457 = vector.extract_strided_slice %455 {offsets = [15, 0], sizes = [15, 64], strides = [1, 1]} : vector<30x64xf32> to vector<15x64xf32>
    %458 = arith.maximumf %456, %457 : vector<15x64xf32>
    %459 = arith.truncf %458 : vector<15x64xf32> to vector<15x64xbf16>
    %cst_386 = arith.constant dense<0.000000e+00> : vector<6x64xf32>
    %460 = tpu.matmul %1, %459, %cst_386 {dimension_numbers = #tpu.dot_dimension_numbers<[1], [0], [0], [1], [0, 0, 1, 1], [], []>} : vector<6x15xbf16>, vector<15x64xbf16>, vector<6x64xf32> -> vector<6x64xf32>
    %cst_387 = arith.constant dense<0.000000e+00> : vector<6x64xf32>
    %461 = tpu.matmul %3, %459, %cst_387 {dimension_numbers = #tpu.dot_dimension_numbers<[1], [0], [0], [1], [0, 0, 1, 1], [], []>} : vector<6x15xbf16>, vector<15x64xbf16>, vector<6x64xf32> -> vector<6x64xf32>
    %462 = arith.maximumf %460, %461 : vector<6x64xf32>
    %c0_388 = arith.constant 0 : index
    %c5_389 = arith.constant 5 : index
    %c0_390 = arith.constant 0 : index
    %c0_391 = arith.constant 0 : index
    %463 = vector.load %arg5[%c0_388, %c5_389, %c0_390, %c0_391] : memref<1x6x6x64xf32, #tpu.memory_space<vmem>>, vector<1x1x6x64xf32>
    %464 = vector.shape_cast %463 : vector<1x1x6x64xf32> to vector<6x64xf32>
    %465 = vector.shape_cast %462 : vector<6x64xf32> to vector<1x1x6x64xf32>
    tpu.vector_store %arg5[%c0_388, %c5_389, %c0_390, %c0_391], %465 {strides = array<i32>} : memref<1x6x6x64xf32, #tpu.memory_space<vmem>>, vector<1x1x6x64xf32>,
    return
  }
  func.func @transform_0(%arg0: i32) -> (i32, i32, i32) {
    %c0_i32 = arith.constant 0 : i32
    %c0_i32_0 = arith.constant 0 : i32
    %c0_i32_1 = arith.constant 0 : i32
    return %arg0, %c0_i32, %c0_i32_0 : i32, i32, i32
  }
  func.func @transform_1(%arg0: i32) -> (i32, i32, i32) {
    %c0_i32 = arith.constant 0 : i32
    %c0_i32_0 = arith.constant 0 : i32
    %c0_i32_1 = arith.constant 0 : i32
    %c0_i32_2 = arith.constant 0 : i32
    return %c0_i32, %c0_i32_0, %c0_i32_1 : i32, i32, i32
  }
  func.func @transform_2(%arg0: i32) -> (i32, i32) {
    %c0_i32 = arith.constant 0 : i32
    %c0_i32_0 = arith.constant 0 : i32
    %c0_i32_1 = arith.constant 0 : i32
    return %c0_i32, %c0_i32_0 : i32, i32
  }
  func.func @transform_3(%arg0: i32) -> (i32, i32, i32) {
    %c0_i32 = arith.constant 0 : i32
    %c0_i32_0 = arith.constant 0 : i32
    %c0_i32_1 = arith.constant 0 : i32
    %c0_i32_2 = arith.constant 0 : i32
    return %c0_i32, %c0_i32_0, %c0_i32_1 : i32, i32, i32
  }
  func.func @transform_4(%arg0: i32) -> (i32, i32, i32, i32) {
    %c0_i32 = arith.constant 0 : i32
    %c0_i32_0 = arith.constant 0 : i32
    %c0_i32_1 = arith.constant 0 : i32
    %c0_i32_2 = arith.constant 0 : i32
    return %arg0, %c0_i32, %c0_i32_0, %c0_i32_1 : i32, i32, i32, i32
  }
}

module attributes {stable_mosaic.version = 11 : i64} {
  func.func @_conv_relu_pool_kernel(%arg0: i32, %arg1: memref<1x38x64xf32, #tpu.memory_space<vmem>>, %arg2: memref<9x64x128xbf16, #tpu.memory_space<vmem>>, %arg3: memref<1x128xf32, #tpu.memory_space<vmem>>, %arg4: memref<2x2x6xbf16, #tpu.memory_space<vmem>>, %arg5: memref<1x2x2x128xf32, #tpu.memory_space<vmem>>) attributes {dimension_semantics = [#tpu.dimension_semantics<parallel>], iteration_bounds = array<i64: 2>, scalar_prefetch = 0 : i64, scratch_operands = 0 : i64, tpu.core_type = #tpu.core_type<tc>, window_params = [{transform_indices = @transform_0, window_bounds = array<i64: 1, 38, 64>}, {pipeline_mode = #tpu.pipeline_mode<synchronous>, transform_indices = @transform_1, window_bounds = array<i64: 9, 64, 128>}, {pipeline_mode = #tpu.pipeline_mode<synchronous>, transform_indices = @transform_2, window_bounds = array<i64: 1, 128>}, {pipeline_mode = #tpu.pipeline_mode<synchronous>, transform_indices = @transform_3, window_bounds = array<i64: 2, 2, 6>}, {transform_indices = @transform_4, window_bounds = array<i64: 1, 2, 2, 128>}]} {
    %c0 = arith.constant 0 : index
    %c0_0 = arith.constant 0 : index
    %c0_1 = arith.constant 0 : index
    %0 = vector.load %arg4[%c0, %c0_0, %c0_1] : memref<2x2x6xbf16, #tpu.memory_space<vmem>>, vector<1x2x6xbf16>
    %1 = vector.shape_cast %0 : vector<1x2x6xbf16> to vector<2x6xbf16>
    %c1 = arith.constant 1 : index
    %c0_2 = arith.constant 0 : index
    %c0_3 = arith.constant 0 : index
    %2 = vector.load %arg4[%c1, %c0_2, %c0_3] : memref<2x2x6xbf16, #tpu.memory_space<vmem>>, vector<1x2x6xbf16>
    %3 = vector.shape_cast %2 : vector<1x2x6xbf16> to vector<2x6xbf16>
    %c0_4 = arith.constant 0 : index
    %c0_5 = arith.constant 0 : index
    %c0_6 = arith.constant 0 : index
    %4 = vector.load %arg1[%c0_4, %c0_5, %c0_6] : memref<1x38x64xf32, #tpu.memory_space<vmem>>, vector<1x12x64xf32>
    %5 = vector.shape_cast %4 : vector<1x12x64xf32> to vector<12x64xf32>
    %6 = arith.truncf %5 : vector<12x64xf32> to vector<12x64xbf16>
    %c0_7 = arith.constant 0 : index
    %c0_8 = arith.constant 0 : index
    %c0_9 = arith.constant 0 : index
    %7 = vector.load %arg2[%c0_7, %c0_8, %c0_9] : memref<9x64x128xbf16, #tpu.memory_space<vmem>>, vector<1x64x128xbf16>
    %8 = vector.shape_cast %7 : vector<1x64x128xbf16> to vector<64x128xbf16>
    %cst = arith.constant dense<0.000000e+00> : vector<12x128xf32>
    %9 = tpu.matmul %6, %8, %cst {dimension_numbers = #tpu.dot_dimension_numbers<[1], [0], [0], [1], [0, 0, 1, 1], [], []>} : vector<12x64xbf16>, vector<64x128xbf16>, vector<12x128xf32> -> vector<12x128xf32>
    %c0_10 = arith.constant 0 : index
    %c1_11 = arith.constant 1 : index
    %c0_12 = arith.constant 0 : index
    %10 = vector.load %arg1[%c0_10, %c1_11, %c0_12] : memref<1x38x64xf32, #tpu.memory_space<vmem>>, vector<1x12x64xf32>
    %11 = vector.shape_cast %10 : vector<1x12x64xf32> to vector<12x64xf32>
    %12 = arith.truncf %11 : vector<12x64xf32> to vector<12x64xbf16>
    %c1_13 = arith.constant 1 : index
    %c0_14 = arith.constant 0 : index
    %c0_15 = arith.constant 0 : index
    %13 = vector.load %arg2[%c1_13, %c0_14, %c0_15] : memref<9x64x128xbf16, #tpu.memory_space<vmem>>, vector<1x64x128xbf16>
    %14 = vector.shape_cast %13 : vector<1x64x128xbf16> to vector<64x128xbf16>
    %cst_16 = arith.constant dense<0.000000e+00> : vector<12x128xf32>
    %15 = tpu.matmul %12, %14, %cst_16 {dimension_numbers = #tpu.dot_dimension_numbers<[1], [0], [0], [1], [0, 0, 1, 1], [], []>} : vector<12x64xbf16>, vector<64x128xbf16>, vector<12x128xf32> -> vector<12x128xf32>
    %16 = arith.addf %9, %15 : vector<12x128xf32>
    %c0_17 = arith.constant 0 : index
    %c2 = arith.constant 2 : index
    %c0_18 = arith.constant 0 : index
    %17 = vector.load %arg1[%c0_17, %c2, %c0_18] : memref<1x38x64xf32, #tpu.memory_space<vmem>>, vector<1x12x64xf32>
    %18 = vector.shape_cast %17 : vector<1x12x64xf32> to vector<12x64xf32>
    %19 = arith.truncf %18 : vector<12x64xf32> to vector<12x64xbf16>
    %c2_19 = arith.constant 2 : index
    %c0_20 = arith.constant 0 : index
    %c0_21 = arith.constant 0 : index
    %20 = vector.load %arg2[%c2_19, %c0_20, %c0_21] : memref<9x64x128xbf16, #tpu.memory_space<vmem>>, vector<1x64x128xbf16>
    %21 = vector.shape_cast %20 : vector<1x64x128xbf16> to vector<64x128xbf16>
    %cst_22 = arith.constant dense<0.000000e+00> : vector<12x128xf32>
    %22 = tpu.matmul %19, %21, %cst_22 {dimension_numbers = #tpu.dot_dimension_numbers<[1], [0], [0], [1], [0, 0, 1, 1], [], []>} : vector<12x64xbf16>, vector<64x128xbf16>, vector<12x128xf32> -> vector<12x128xf32>
    %23 = arith.addf %16, %22 : vector<12x128xf32>
    %c0_23 = arith.constant 0 : index
    %c6 = arith.constant 6 : index
    %c0_24 = arith.constant 0 : index
    %24 = vector.load %arg1[%c0_23, %c6, %c0_24] : memref<1x38x64xf32, #tpu.memory_space<vmem>>, vector<1x12x64xf32>
    %25 = vector.shape_cast %24 : vector<1x12x64xf32> to vector<12x64xf32>
    %26 = arith.truncf %25 : vector<12x64xf32> to vector<12x64xbf16>
    %c3 = arith.constant 3 : index
    %c0_25 = arith.constant 0 : index
    %c0_26 = arith.constant 0 : index
    %27 = vector.load %arg2[%c3, %c0_25, %c0_26] : memref<9x64x128xbf16, #tpu.memory_space<vmem>>, vector<1x64x128xbf16>
    %28 = vector.shape_cast %27 : vector<1x64x128xbf16> to vector<64x128xbf16>
    %cst_27 = arith.constant dense<0.000000e+00> : vector<12x128xf32>
    %29 = tpu.matmul %26, %28, %cst_27 {dimension_numbers = #tpu.dot_dimension_numbers<[1], [0], [0], [1], [0, 0, 1, 1], [], []>} : vector<12x64xbf16>, vector<64x128xbf16>, vector<12x128xf32> -> vector<12x128xf32>
    %30 = arith.addf %23, %29 : vector<12x128xf32>
    %c0_28 = arith.constant 0 : index
    %c7 = arith.constant 7 : index
    %c0_29 = arith.constant 0 : index
    %31 = vector.load %arg1[%c0_28, %c7, %c0_29] : memref<1x38x64xf32, #tpu.memory_space<vmem>>, vector<1x12x64xf32>
    %32 = vector.shape_cast %31 : vector<1x12x64xf32> to vector<12x64xf32>
    %33 = arith.truncf %32 : vector<12x64xf32> to vector<12x64xbf16>
    %c4 = arith.constant 4 : index
    %c0_30 = arith.constant 0 : index
    %c0_31 = arith.constant 0 : index
    %34 = vector.load %arg2[%c4, %c0_30, %c0_31] : memref<9x64x128xbf16, #tpu.memory_space<vmem>>, vector<1x64x128xbf16>
    %35 = vector.shape_cast %34 : vector<1x64x128xbf16> to vector<64x128xbf16>
    %cst_32 = arith.constant dense<0.000000e+00> : vector<12x128xf32>
    %36 = tpu.matmul %33, %35, %cst_32 {dimension_numbers = #tpu.dot_dimension_numbers<[1], [0], [0], [1], [0, 0, 1, 1], [], []>} : vector<12x64xbf16>, vector<64x128xbf16>, vector<12x128xf32> -> vector<12x128xf32>
    %37 = arith.addf %30, %36 : vector<12x128xf32>
    %c0_33 = arith.constant 0 : index
    %c8 = arith.constant 8 : index
    %c0_34 = arith.constant 0 : index
    %38 = vector.load %arg1[%c0_33, %c8, %c0_34] : memref<1x38x64xf32, #tpu.memory_space<vmem>>, vector<1x12x64xf32>
    %39 = vector.shape_cast %38 : vector<1x12x64xf32> to vector<12x64xf32>
    %40 = arith.truncf %39 : vector<12x64xf32> to vector<12x64xbf16>
    %c5 = arith.constant 5 : index
    %c0_35 = arith.constant 0 : index
    %c0_36 = arith.constant 0 : index
    %41 = vector.load %arg2[%c5, %c0_35, %c0_36] : memref<9x64x128xbf16, #tpu.memory_space<vmem>>, vector<1x64x128xbf16>
    %42 = vector.shape_cast %41 : vector<1x64x128xbf16> to vector<64x128xbf16>
    %cst_37 = arith.constant dense<0.000000e+00> : vector<12x128xf32>
    %43 = tpu.matmul %40, %42, %cst_37 {dimension_numbers = #tpu.dot_dimension_numbers<[1], [0], [0], [1], [0, 0, 1, 1], [], []>} : vector<12x64xbf16>, vector<64x128xbf16>, vector<12x128xf32> -> vector<12x128xf32>
    %44 = arith.addf %37, %43 : vector<12x128xf32>
    %c0_38 = arith.constant 0 : index
    %c12 = arith.constant 12 : index
    %c0_39 = arith.constant 0 : index
    %45 = vector.load %arg1[%c0_38, %c12, %c0_39] : memref<1x38x64xf32, #tpu.memory_space<vmem>>, vector<1x12x64xf32>
    %46 = vector.shape_cast %45 : vector<1x12x64xf32> to vector<12x64xf32>
    %47 = arith.truncf %46 : vector<12x64xf32> to vector<12x64xbf16>
    %c6_40 = arith.constant 6 : index
    %c0_41 = arith.constant 0 : index
    %c0_42 = arith.constant 0 : index
    %48 = vector.load %arg2[%c6_40, %c0_41, %c0_42] : memref<9x64x128xbf16, #tpu.memory_space<vmem>>, vector<1x64x128xbf16>
    %49 = vector.shape_cast %48 : vector<1x64x128xbf16> to vector<64x128xbf16>
    %cst_43 = arith.constant dense<0.000000e+00> : vector<12x128xf32>
    %50 = tpu.matmul %47, %49, %cst_43 {dimension_numbers = #tpu.dot_dimension_numbers<[1], [0], [0], [1], [0, 0, 1, 1], [], []>} : vector<12x64xbf16>, vector<64x128xbf16>, vector<12x128xf32> -> vector<12x128xf32>
    %51 = arith.addf %44, %50 : vector<12x128xf32>
    %c0_44 = arith.constant 0 : index
    %c13 = arith.constant 13 : index
    %c0_45 = arith.constant 0 : index
    %52 = vector.load %arg1[%c0_44, %c13, %c0_45] : memref<1x38x64xf32, #tpu.memory_space<vmem>>, vector<1x12x64xf32>
    %53 = vector.shape_cast %52 : vector<1x12x64xf32> to vector<12x64xf32>
    %54 = arith.truncf %53 : vector<12x64xf32> to vector<12x64xbf16>
    %c7_46 = arith.constant 7 : index
    %c0_47 = arith.constant 0 : index
    %c0_48 = arith.constant 0 : index
    %55 = vector.load %arg2[%c7_46, %c0_47, %c0_48] : memref<9x64x128xbf16, #tpu.memory_space<vmem>>, vector<1x64x128xbf16>
    %56 = vector.shape_cast %55 : vector<1x64x128xbf16> to vector<64x128xbf16>
    %cst_49 = arith.constant dense<0.000000e+00> : vector<12x128xf32>
    %57 = tpu.matmul %54, %56, %cst_49 {dimension_numbers = #tpu.dot_dimension_numbers<[1], [0], [0], [1], [0, 0, 1, 1], [], []>} : vector<12x64xbf16>, vector<64x128xbf16>, vector<12x128xf32> -> vector<12x128xf32>
    %58 = arith.addf %51, %57 : vector<12x128xf32>
    %c0_50 = arith.constant 0 : index
    %c14 = arith.constant 14 : index
    %c0_51 = arith.constant 0 : index
    %59 = vector.load %arg1[%c0_50, %c14, %c0_51] : memref<1x38x64xf32, #tpu.memory_space<vmem>>, vector<1x12x64xf32>
    %60 = vector.shape_cast %59 : vector<1x12x64xf32> to vector<12x64xf32>
    %61 = arith.truncf %60 : vector<12x64xf32> to vector<12x64xbf16>
    %c8_52 = arith.constant 8 : index
    %c0_53 = arith.constant 0 : index
    %c0_54 = arith.constant 0 : index
    %62 = vector.load %arg2[%c8_52, %c0_53, %c0_54] : memref<9x64x128xbf16, #tpu.memory_space<vmem>>, vector<1x64x128xbf16>
    %63 = vector.shape_cast %62 : vector<1x64x128xbf16> to vector<64x128xbf16>
    %cst_55 = arith.constant dense<0.000000e+00> : vector<12x128xf32>
    %64 = tpu.matmul %61, %63, %cst_55 {dimension_numbers = #tpu.dot_dimension_numbers<[1], [0], [0], [1], [0, 0, 1, 1], [], []>} : vector<12x64xbf16>, vector<64x128xbf16>, vector<12x128xf32> -> vector<12x128xf32>
    %65 = arith.addf %58, %64 : vector<12x128xf32>
    %c0_56 = arith.constant 0 : index
    %c0_57 = arith.constant 0 : index
    %66 = vector.load %arg3[%c0_56, %c0_57] : memref<1x128xf32, #tpu.memory_space<vmem>>, vector<1x128xf32>
    %67 = vector.broadcast %66 : vector<1x128xf32> to vector<12x128xf32>
    %68 = arith.addf %65, %67 : vector<12x128xf32>
    %cst_58 = arith.constant 0.000000e+00 : f32
    %69 = vector.broadcast %cst_58 : f32 to vector<12x128xf32>
    %70 = arith.maximumf %68, %69 : vector<12x128xf32>
    %71 = vector.extract_strided_slice %70 {offsets = [0, 0], sizes = [6, 128], strides = [1, 1]} : vector<12x128xf32> to vector<6x128xf32>
    %72 = vector.extract_strided_slice %70 {offsets = [6, 0], sizes = [6, 128], strides = [1, 1]} : vector<12x128xf32> to vector<6x128xf32>
    %73 = arith.maximumf %71, %72 : vector<6x128xf32>
    %74 = arith.truncf %73 : vector<6x128xf32> to vector<6x128xbf16>
    %cst_59 = arith.constant dense<0.000000e+00> : vector<2x128xf32>
    %75 = tpu.matmul %1, %74, %cst_59 {dimension_numbers = #tpu.dot_dimension_numbers<[1], [0], [0], [1], [0, 0, 1, 1], [], []>} : vector<2x6xbf16>, vector<6x128xbf16>, vector<2x128xf32> -> vector<2x128xf32>
    %cst_60 = arith.constant dense<0.000000e+00> : vector<2x128xf32>
    %76 = tpu.matmul %3, %74, %cst_60 {dimension_numbers = #tpu.dot_dimension_numbers<[1], [0], [0], [1], [0, 0, 1, 1], [], []>} : vector<2x6xbf16>, vector<6x128xbf16>, vector<2x128xf32> -> vector<2x128xf32>
    %77 = arith.maximumf %75, %76 : vector<2x128xf32>
    %c0_61 = arith.constant 0 : index
    %c0_62 = arith.constant 0 : index
    %c0_63 = arith.constant 0 : index
    %c0_64 = arith.constant 0 : index
    %78 = vector.load %arg5[%c0_61, %c0_62, %c0_63, %c0_64] : memref<1x2x2x128xf32, #tpu.memory_space<vmem>>, vector<1x1x2x128xf32>
    %79 = vector.shape_cast %78 : vector<1x1x2x128xf32> to vector<2x128xf32>
    %80 = vector.shape_cast %77 : vector<2x128xf32> to vector<1x1x2x128xf32>
    tpu.vector_store %arg5[%c0_61, %c0_62, %c0_63, %c0_64], %80 {strides = array<i32>} : memref<1x2x2x128xf32, #tpu.memory_space<vmem>>, vector<1x1x2x128xf32>,
    %c0_65 = arith.constant 0 : index
    %c12_66 = arith.constant 12 : index
    %c0_67 = arith.constant 0 : index
    %81 = vector.load %arg1[%c0_65, %c12_66, %c0_67] : memref<1x38x64xf32, #tpu.memory_space<vmem>>, vector<1x12x64xf32>
    %82 = vector.shape_cast %81 : vector<1x12x64xf32> to vector<12x64xf32>
    %83 = arith.truncf %82 : vector<12x64xf32> to vector<12x64xbf16>
    %c0_68 = arith.constant 0 : index
    %c0_69 = arith.constant 0 : index
    %c0_70 = arith.constant 0 : index
    %84 = vector.load %arg2[%c0_68, %c0_69, %c0_70] : memref<9x64x128xbf16, #tpu.memory_space<vmem>>, vector<1x64x128xbf16>
    %85 = vector.shape_cast %84 : vector<1x64x128xbf16> to vector<64x128xbf16>
    %cst_71 = arith.constant dense<0.000000e+00> : vector<12x128xf32>
    %86 = tpu.matmul %83, %85, %cst_71 {dimension_numbers = #tpu.dot_dimension_numbers<[1], [0], [0], [1], [0, 0, 1, 1], [], []>} : vector<12x64xbf16>, vector<64x128xbf16>, vector<12x128xf32> -> vector<12x128xf32>
    %c0_72 = arith.constant 0 : index
    %c13_73 = arith.constant 13 : index
    %c0_74 = arith.constant 0 : index
    %87 = vector.load %arg1[%c0_72, %c13_73, %c0_74] : memref<1x38x64xf32, #tpu.memory_space<vmem>>, vector<1x12x64xf32>
    %88 = vector.shape_cast %87 : vector<1x12x64xf32> to vector<12x64xf32>
    %89 = arith.truncf %88 : vector<12x64xf32> to vector<12x64xbf16>
    %c1_75 = arith.constant 1 : index
    %c0_76 = arith.constant 0 : index
    %c0_77 = arith.constant 0 : index
    %90 = vector.load %arg2[%c1_75, %c0_76, %c0_77] : memref<9x64x128xbf16, #tpu.memory_space<vmem>>, vector<1x64x128xbf16>
    %91 = vector.shape_cast %90 : vector<1x64x128xbf16> to vector<64x128xbf16>
    %cst_78 = arith.constant dense<0.000000e+00> : vector<12x128xf32>
    %92 = tpu.matmul %89, %91, %cst_78 {dimension_numbers = #tpu.dot_dimension_numbers<[1], [0], [0], [1], [0, 0, 1, 1], [], []>} : vector<12x64xbf16>, vector<64x128xbf16>, vector<12x128xf32> -> vector<12x128xf32>
    %93 = arith.addf %86, %92 : vector<12x128xf32>
    %c0_79 = arith.constant 0 : index
    %c14_80 = arith.constant 14 : index
    %c0_81 = arith.constant 0 : index
    %94 = vector.load %arg1[%c0_79, %c14_80, %c0_81] : memref<1x38x64xf32, #tpu.memory_space<vmem>>, vector<1x12x64xf32>
    %95 = vector.shape_cast %94 : vector<1x12x64xf32> to vector<12x64xf32>
    %96 = arith.truncf %95 : vector<12x64xf32> to vector<12x64xbf16>
    %c2_82 = arith.constant 2 : index
    %c0_83 = arith.constant 0 : index
    %c0_84 = arith.constant 0 : index
    %97 = vector.load %arg2[%c2_82, %c0_83, %c0_84] : memref<9x64x128xbf16, #tpu.memory_space<vmem>>, vector<1x64x128xbf16>
    %98 = vector.shape_cast %97 : vector<1x64x128xbf16> to vector<64x128xbf16>
    %cst_85 = arith.constant dense<0.000000e+00> : vector<12x128xf32>
    %99 = tpu.matmul %96, %98, %cst_85 {dimension_numbers = #tpu.dot_dimension_numbers<[1], [0], [0], [1], [0, 0, 1, 1], [], []>} : vector<12x64xbf16>, vector<64x128xbf16>, vector<12x128xf32> -> vector<12x128xf32>
    %100 = arith.addf %93, %99 : vector<12x128xf32>
    %c0_86 = arith.constant 0 : index
    %c18 = arith.constant 18 : index
    %c0_87 = arith.constant 0 : index
    %101 = vector.load %arg1[%c0_86, %c18, %c0_87] : memref<1x38x64xf32, #tpu.memory_space<vmem>>, vector<1x12x64xf32>
    %102 = vector.shape_cast %101 : vector<1x12x64xf32> to vector<12x64xf32>
    %103 = arith.truncf %102 : vector<12x64xf32> to vector<12x64xbf16>
    %c3_88 = arith.constant 3 : index
    %c0_89 = arith.constant 0 : index
    %c0_90 = arith.constant 0 : index
    %104 = vector.load %arg2[%c3_88, %c0_89, %c0_90] : memref<9x64x128xbf16, #tpu.memory_space<vmem>>, vector<1x64x128xbf16>
    %105 = vector.shape_cast %104 : vector<1x64x128xbf16> to vector<64x128xbf16>
    %cst_91 = arith.constant dense<0.000000e+00> : vector<12x128xf32>
    %106 = tpu.matmul %103, %105, %cst_91 {dimension_numbers = #tpu.dot_dimension_numbers<[1], [0], [0], [1], [0, 0, 1, 1], [], []>} : vector<12x64xbf16>, vector<64x128xbf16>, vector<12x128xf32> -> vector<12x128xf32>
    %107 = arith.addf %100, %106 : vector<12x128xf32>
    %c0_92 = arith.constant 0 : index
    %c19 = arith.constant 19 : index
    %c0_93 = arith.constant 0 : index
    %108 = vector.load %arg1[%c0_92, %c19, %c0_93] : memref<1x38x64xf32, #tpu.memory_space<vmem>>, vector<1x12x64xf32>
    %109 = vector.shape_cast %108 : vector<1x12x64xf32> to vector<12x64xf32>
    %110 = arith.truncf %109 : vector<12x64xf32> to vector<12x64xbf16>
    %c4_94 = arith.constant 4 : index
    %c0_95 = arith.constant 0 : index
    %c0_96 = arith.constant 0 : index
    %111 = vector.load %arg2[%c4_94, %c0_95, %c0_96] : memref<9x64x128xbf16, #tpu.memory_space<vmem>>, vector<1x64x128xbf16>
    %112 = vector.shape_cast %111 : vector<1x64x128xbf16> to vector<64x128xbf16>
    %cst_97 = arith.constant dense<0.000000e+00> : vector<12x128xf32>
    %113 = tpu.matmul %110, %112, %cst_97 {dimension_numbers = #tpu.dot_dimension_numbers<[1], [0], [0], [1], [0, 0, 1, 1], [], []>} : vector<12x64xbf16>, vector<64x128xbf16>, vector<12x128xf32> -> vector<12x128xf32>
    %114 = arith.addf %107, %113 : vector<12x128xf32>
    %c0_98 = arith.constant 0 : index
    %c20 = arith.constant 20 : index
    %c0_99 = arith.constant 0 : index
    %115 = vector.load %arg1[%c0_98, %c20, %c0_99] : memref<1x38x64xf32, #tpu.memory_space<vmem>>, vector<1x12x64xf32>
    %116 = vector.shape_cast %115 : vector<1x12x64xf32> to vector<12x64xf32>
    %117 = arith.truncf %116 : vector<12x64xf32> to vector<12x64xbf16>
    %c5_100 = arith.constant 5 : index
    %c0_101 = arith.constant 0 : index
    %c0_102 = arith.constant 0 : index
    %118 = vector.load %arg2[%c5_100, %c0_101, %c0_102] : memref<9x64x128xbf16, #tpu.memory_space<vmem>>, vector<1x64x128xbf16>
    %119 = vector.shape_cast %118 : vector<1x64x128xbf16> to vector<64x128xbf16>
    %cst_103 = arith.constant dense<0.000000e+00> : vector<12x128xf32>
    %120 = tpu.matmul %117, %119, %cst_103 {dimension_numbers = #tpu.dot_dimension_numbers<[1], [0], [0], [1], [0, 0, 1, 1], [], []>} : vector<12x64xbf16>, vector<64x128xbf16>, vector<12x128xf32> -> vector<12x128xf32>
    %121 = arith.addf %114, %120 : vector<12x128xf32>
    %c0_104 = arith.constant 0 : index
    %c24 = arith.constant 24 : index
    %c0_105 = arith.constant 0 : index
    %122 = vector.load %arg1[%c0_104, %c24, %c0_105] : memref<1x38x64xf32, #tpu.memory_space<vmem>>, vector<1x12x64xf32>
    %123 = vector.shape_cast %122 : vector<1x12x64xf32> to vector<12x64xf32>
    %124 = arith.truncf %123 : vector<12x64xf32> to vector<12x64xbf16>
    %c6_106 = arith.constant 6 : index
    %c0_107 = arith.constant 0 : index
    %c0_108 = arith.constant 0 : index
    %125 = vector.load %arg2[%c6_106, %c0_107, %c0_108] : memref<9x64x128xbf16, #tpu.memory_space<vmem>>, vector<1x64x128xbf16>
    %126 = vector.shape_cast %125 : vector<1x64x128xbf16> to vector<64x128xbf16>
    %cst_109 = arith.constant dense<0.000000e+00> : vector<12x128xf32>
    %127 = tpu.matmul %124, %126, %cst_109 {dimension_numbers = #tpu.dot_dimension_numbers<[1], [0], [0], [1], [0, 0, 1, 1], [], []>} : vector<12x64xbf16>, vector<64x128xbf16>, vector<12x128xf32> -> vector<12x128xf32>
    %128 = arith.addf %121, %127 : vector<12x128xf32>
    %c0_110 = arith.constant 0 : index
    %c25 = arith.constant 25 : index
    %c0_111 = arith.constant 0 : index
    %129 = vector.load %arg1[%c0_110, %c25, %c0_111] : memref<1x38x64xf32, #tpu.memory_space<vmem>>, vector<1x12x64xf32>
    %130 = vector.shape_cast %129 : vector<1x12x64xf32> to vector<12x64xf32>
    %131 = arith.truncf %130 : vector<12x64xf32> to vector<12x64xbf16>
    %c7_112 = arith.constant 7 : index
    %c0_113 = arith.constant 0 : index
    %c0_114 = arith.constant 0 : index
    %132 = vector.load %arg2[%c7_112, %c0_113, %c0_114] : memref<9x64x128xbf16, #tpu.memory_space<vmem>>, vector<1x64x128xbf16>
    %133 = vector.shape_cast %132 : vector<1x64x128xbf16> to vector<64x128xbf16>
    %cst_115 = arith.constant dense<0.000000e+00> : vector<12x128xf32>
    %134 = tpu.matmul %131, %133, %cst_115 {dimension_numbers = #tpu.dot_dimension_numbers<[1], [0], [0], [1], [0, 0, 1, 1], [], []>} : vector<12x64xbf16>, vector<64x128xbf16>, vector<12x128xf32> -> vector<12x128xf32>
    %135 = arith.addf %128, %134 : vector<12x128xf32>
    %c0_116 = arith.constant 0 : index
    %c26 = arith.constant 26 : index
    %c0_117 = arith.constant 0 : index
    %136 = vector.load %arg1[%c0_116, %c26, %c0_117] : memref<1x38x64xf32, #tpu.memory_space<vmem>>, vector<1x12x64xf32>
    %137 = vector.shape_cast %136 : vector<1x12x64xf32> to vector<12x64xf32>
    %138 = arith.truncf %137 : vector<12x64xf32> to vector<12x64xbf16>
    %c8_118 = arith.constant 8 : index
    %c0_119 = arith.constant 0 : index
    %c0_120 = arith.constant 0 : index
    %139 = vector.load %arg2[%c8_118, %c0_119, %c0_120] : memref<9x64x128xbf16, #tpu.memory_space<vmem>>, vector<1x64x128xbf16>
    %140 = vector.shape_cast %139 : vector<1x64x128xbf16> to vector<64x128xbf16>
    %cst_121 = arith.constant dense<0.000000e+00> : vector<12x128xf32>
    %141 = tpu.matmul %138, %140, %cst_121 {dimension_numbers = #tpu.dot_dimension_numbers<[1], [0], [0], [1], [0, 0, 1, 1], [], []>} : vector<12x64xbf16>, vector<64x128xbf16>, vector<12x128xf32> -> vector<12x128xf32>
    %142 = arith.addf %135, %141 : vector<12x128xf32>
    %c0_122 = arith.constant 0 : index
    %c0_123 = arith.constant 0 : index
    %143 = vector.load %arg3[%c0_122, %c0_123] : memref<1x128xf32, #tpu.memory_space<vmem>>, vector<1x128xf32>
    %144 = vector.broadcast %143 : vector<1x128xf32> to vector<12x128xf32>
    %145 = arith.addf %142, %144 : vector<12x128xf32>
    %cst_124 = arith.constant 0.000000e+00 : f32
    %146 = vector.broadcast %cst_124 : f32 to vector<12x128xf32>
    %147 = arith.maximumf %145, %146 : vector<12x128xf32>
    %148 = vector.extract_strided_slice %147 {offsets = [0, 0], sizes = [6, 128], strides = [1, 1]} : vector<12x128xf32> to vector<6x128xf32>
    %149 = vector.extract_strided_slice %147 {offsets = [6, 0], sizes = [6, 128], strides = [1, 1]} : vector<12x128xf32> to vector<6x128xf32>
    %150 = arith.maximumf %148, %149 : vector<6x128xf32>
    %151 = arith.truncf %150 : vector<6x128xf32> to vector<6x128xbf16>
    %cst_125 = arith.constant dense<0.000000e+00> : vector<2x128xf32>
    %152 = tpu.matmul %1, %151, %cst_125 {dimension_numbers = #tpu.dot_dimension_numbers<[1], [0], [0], [1], [0, 0, 1, 1], [], []>} : vector<2x6xbf16>, vector<6x128xbf16>, vector<2x128xf32> -> vector<2x128xf32>
    %cst_126 = arith.constant dense<0.000000e+00> : vector<2x128xf32>
    %153 = tpu.matmul %3, %151, %cst_126 {dimension_numbers = #tpu.dot_dimension_numbers<[1], [0], [0], [1], [0, 0, 1, 1], [], []>} : vector<2x6xbf16>, vector<6x128xbf16>, vector<2x128xf32> -> vector<2x128xf32>
    %154 = arith.maximumf %152, %153 : vector<2x128xf32>
    %c0_127 = arith.constant 0 : index
    %c1_128 = arith.constant 1 : index
    %c0_129 = arith.constant 0 : index
    %c0_130 = arith.constant 0 : index
    %155 = vector.load %arg5[%c0_127, %c1_128, %c0_129, %c0_130] : memref<1x2x2x128xf32, #tpu.memory_space<vmem>>, vector<1x1x2x128xf32>
    %156 = vector.shape_cast %155 : vector<1x1x2x128xf32> to vector<2x128xf32>
    %157 = vector.shape_cast %154 : vector<2x128xf32> to vector<1x1x2x128xf32>
    tpu.vector_store %arg5[%c0_127, %c1_128, %c0_129, %c0_130], %157 {strides = array<i32>} : memref<1x2x2x128xf32, #tpu.memory_space<vmem>>, vector<1x1x2x128xf32>,
    return
  }
  func.func @transform_0(%arg0: i32) -> (i32, i32, i32) {
    %c0_i32 = arith.constant 0 : i32
    %c0_i32_0 = arith.constant 0 : i32
    %c0_i32_1 = arith.constant 0 : i32
    return %arg0, %c0_i32, %c0_i32_0 : i32, i32, i32
  }
  func.func @transform_1(%arg0: i32) -> (i32, i32, i32) {
    %c0_i32 = arith.constant 0 : i32
    %c0_i32_0 = arith.constant 0 : i32
    %c0_i32_1 = arith.constant 0 : i32
    %c0_i32_2 = arith.constant 0 : i32
    return %c0_i32, %c0_i32_0, %c0_i32_1 : i32, i32, i32
  }
  func.func @transform_2(%arg0: i32) -> (i32, i32) {
    %c0_i32 = arith.constant 0 : i32
    %c0_i32_0 = arith.constant 0 : i32
    %c0_i32_1 = arith.constant 0 : i32
    return %c0_i32, %c0_i32_0 : i32, i32
  }
  func.func @transform_3(%arg0: i32) -> (i32, i32, i32) {
    %c0_i32 = arith.constant 0 : i32
    %c0_i32_0 = arith.constant 0 : i32
    %c0_i32_1 = arith.constant 0 : i32
    %c0_i32_2 = arith.constant 0 : i32
    return %c0_i32, %c0_i32_0, %c0_i32_1 : i32, i32, i32
  }
  func.func @transform_4(%arg0: i32) -> (i32, i32, i32, i32) {
    %c0_i32 = arith.constant 0 : i32
    %c0_i32_0 = arith.constant 0 : i32
    %c0_i32_1 = arith.constant 0 : i32
    %c0_i32_2 = arith.constant 0 : i32
    return %arg0, %c0_i32, %c0_i32_0, %c0_i32_1 : i32, i32, i32, i32
  }
}

module attributes {stable_mosaic.version = 11 : i64} {
  func.func @_matmul_bias_kernel(%arg0: i32, %arg1: i32, %arg2: i32, %arg3: memref<2x512xbf16, #tpu.memory_space<vmem>>, %arg4: memref<512x512xbf16, #tpu.memory_space<vmem>>, %arg5: memref<1x512xf32, #tpu.memory_space<vmem>>, %arg6: memref<2x512xf32, #tpu.memory_space<vmem>>) attributes {dimension_semantics = [#tpu.dimension_semantics<parallel>, #tpu.dimension_semantics<parallel>, #tpu.dimension_semantics<arbitrary>], iteration_bounds = array<i64: 1, 1, 1>, scalar_prefetch = 0 : i64, scratch_operands = 0 : i64, tpu.core_type = #tpu.core_type<tc>, window_params = [{transform_indices = @transform_0, window_bounds = array<i64: 2, 512>}, {transform_indices = @transform_1, window_bounds = array<i64: 512, 512>}, {transform_indices = @transform_2, window_bounds = array<i64: 1, 512>}, {transform_indices = @transform_3, window_bounds = array<i64: 2, 512>}]} {
    %c0 = arith.constant 0 : index
    %c0_0 = arith.constant 0 : index
    %0 = vector.load %arg3[%c0, %c0_0] : memref<2x512xbf16, #tpu.memory_space<vmem>>, vector<2x512xbf16>
    %c0_1 = arith.constant 0 : index
    %c0_2 = arith.constant 0 : index
    %1 = vector.load %arg4[%c0_1, %c0_2] : memref<512x512xbf16, #tpu.memory_space<vmem>>, vector<512x512xbf16>
    %cst = arith.constant dense<0.000000e+00> : vector<2x512xf32>
    %2 = tpu.matmul %0, %1, %cst {dimension_numbers = #tpu.dot_dimension_numbers<[1], [0], [0], [1], [0, 0, 1, 1], [], []>} : vector<2x512xbf16>, vector<512x512xbf16>, vector<2x512xf32> -> vector<2x512xf32>
    %c0_3 = arith.constant 0 : index
    %c0_4 = arith.constant 0 : index
    %3 = vector.load %arg5[%c0_3, %c0_4] : memref<1x512xf32, #tpu.memory_space<vmem>>, vector<1x512xf32>
    %4 = vector.broadcast %3 : vector<1x512xf32> to vector<2x512xf32>
    %5 = arith.addf %2, %4 : vector<2x512xf32>
    %cst_5 = arith.constant 0.000000e+00 : f32
    %6 = vector.broadcast %cst_5 : f32 to vector<2x512xf32>
    %7 = arith.maximumf %5, %6 : vector<2x512xf32>
    %c0_6 = arith.constant 0 : index
    %c0_7 = arith.constant 0 : index
    %8 = vector.load %arg6[%c0_6, %c0_7] : memref<2x512xf32, #tpu.memory_space<vmem>>, vector<2x512xf32>
    tpu.vector_store %arg6[%c0_6, %c0_7], %7 {strides = array<i32>} : memref<2x512xf32, #tpu.memory_space<vmem>>, vector<2x512xf32>,
    return
  }
  func.func @transform_0(%arg0: i32, %arg1: i32, %arg2: i32) -> (i32, i32) {
    %c0_i32 = arith.constant 0 : i32
    return %arg0, %arg2 : i32, i32
  }
  func.func @transform_1(%arg0: i32, %arg1: i32, %arg2: i32) -> (i32, i32) {
    %c0_i32 = arith.constant 0 : i32
    return %arg2, %arg1 : i32, i32
  }
  func.func @transform_2(%arg0: i32, %arg1: i32, %arg2: i32) -> (i32, i32) {
    %c0_i32 = arith.constant 0 : i32
    %c0_i32_0 = arith.constant 0 : i32
    return %c0_i32, %arg1 : i32, i32
  }
  func.func @transform_3(%arg0: i32, %arg1: i32, %arg2: i32) -> (i32, i32) {
    %c0_i32 = arith.constant 0 : i32
    return %arg0, %arg1 : i32, i32
  }
}

module attributes {stable_mosaic.version = 11 : i64} {
  func.func @_matmul_bias_kernel(%arg0: i32, %arg1: i32, %arg2: i32, %arg3: memref<2x512xbf16, #tpu.memory_space<vmem>>, %arg4: memref<512x29xbf16, #tpu.memory_space<vmem>>, %arg5: memref<1x29xf32, #tpu.memory_space<vmem>>, %arg6: memref<2x29xf32, #tpu.memory_space<vmem>>) attributes {dimension_semantics = [#tpu.dimension_semantics<parallel>, #tpu.dimension_semantics<parallel>, #tpu.dimension_semantics<arbitrary>], iteration_bounds = array<i64: 1, 1, 1>, scalar_prefetch = 0 : i64, scratch_operands = 0 : i64, tpu.core_type = #tpu.core_type<tc>, window_params = [{transform_indices = @transform_0, window_bounds = array<i64: 2, 512>}, {transform_indices = @transform_1, window_bounds = array<i64: 512, 29>}, {transform_indices = @transform_2, window_bounds = array<i64: 1, 29>}, {transform_indices = @transform_3, window_bounds = array<i64: 2, 29>}]} {
    %c0 = arith.constant 0 : index
    %c0_0 = arith.constant 0 : index
    %0 = vector.load %arg3[%c0, %c0_0] : memref<2x512xbf16, #tpu.memory_space<vmem>>, vector<2x512xbf16>
    %c0_1 = arith.constant 0 : index
    %c0_2 = arith.constant 0 : index
    %1 = vector.load %arg4[%c0_1, %c0_2] : memref<512x29xbf16, #tpu.memory_space<vmem>>, vector<512x29xbf16>
    %cst = arith.constant dense<0.000000e+00> : vector<2x29xf32>
    %2 = tpu.matmul %0, %1, %cst {dimension_numbers = #tpu.dot_dimension_numbers<[1], [0], [0], [1], [0, 0, 1, 1], [], []>} : vector<2x512xbf16>, vector<512x29xbf16>, vector<2x29xf32> -> vector<2x29xf32>
    %c0_3 = arith.constant 0 : index
    %c0_4 = arith.constant 0 : index
    %3 = vector.load %arg5[%c0_3, %c0_4] : memref<1x29xf32, #tpu.memory_space<vmem>>, vector<1x29xf32>
    %4 = vector.broadcast %3 : vector<1x29xf32> to vector<2x29xf32>
    %5 = arith.addf %2, %4 : vector<2x29xf32>
    %c0_5 = arith.constant 0 : index
    %c0_6 = arith.constant 0 : index
    %6 = vector.load %arg6[%c0_5, %c0_6] : memref<2x29xf32, #tpu.memory_space<vmem>>, vector<2x29xf32>
    tpu.vector_store %arg6[%c0_5, %c0_6], %5 {strides = array<i32>} : memref<2x29xf32, #tpu.memory_space<vmem>>, vector<2x29xf32>,
    return
  }
  func.func @transform_0(%arg0: i32, %arg1: i32, %arg2: i32) -> (i32, i32) {
    %c0_i32 = arith.constant 0 : i32
    return %arg0, %arg2 : i32, i32
  }
  func.func @transform_1(%arg0: i32, %arg1: i32, %arg2: i32) -> (i32, i32) {
    %c0_i32 = arith.constant 0 : i32
    return %arg2, %arg1 : i32, i32
  }
  func.func @transform_2(%arg0: i32, %arg1: i32, %arg2: i32) -> (i32, i32) {
    %c0_i32 = arith.constant 0 : i32
    %c0_i32_0 = arith.constant 0 : i32
    return %c0_i32, %arg1 : i32, i32
  }
  func.func @transform_3(%arg0: i32, %arg1: i32, %arg2: i32) -> (i32, i32) {
    %c0_i32 = arith.constant 0 : i32
    return %arg0, %arg1 : i32, i32
  }
}

</mosaic_0001>

<llo_original>
// kernel: simple_cnn_forward.8
$region0: #{simple_cnn_forward.8}
  #allocation0 [shape = 'u32[]', space=smem, size = 0x4, offset = 0x4, fixed_abs, tag = 'smem constant byte address 0x4 - core index']
  #allocation1 [shape = 'u32[72,128]{1,0:T(1,128)}', space=vmem, size = 0x9000, scoped, tag = 'internal scratch']
  %s0 = inlined_call_operand.vmem [shape: bf16[2,512], index: 0, kind: input, shape index: {}]
  %s1 = inlined_call_operand.vmem [shape: bf16[512,512], index: 1, kind: input, shape index: {}]
  %s2 = inlined_call_operand.vmem [shape: f32[1,512], index: 2, kind: input, shape index: {}]
  %s3 = inlined_call_operand.vmem [shape: f32[2,512], index: 3, kind: output, shape index: {}]
  %s4 = sld [smem:[#allocation0]]
  $region22: #{simple_cnn_forward.8} parent=0
    _
  %s6 = ssub.s32 1, %s4
  %s7 = scalar_select 0, %s6, %s4
  // Predicated region
  $region2: #{simple_cnn_forward.8} parent=0 // pred_check
    _
  $region3: #{simple_cnn_forward.8} parent=0 // pred_check_branch
    %9 = sbr.rel (0) target = $region5
  $region4: #{simple_cnn_forward.8} parent=0 // pred_region
    _
  $region5: #{simple_cnn_forward.8} parent=0 // pred_fallthru
    _
  // Predicated region
  $region6: #{simple_cnn_forward.8} parent=0 // pred_check
    _
  $region7: #{simple_cnn_forward.8} parent=0 // pred_check_branch
    %11 = sbr.rel (0) target = $region9
  $region8: #{simple_cnn_forward.8} parent=0 // pred_region
    _
  $region9: #{simple_cnn_forward.8} parent=0 // pred_fallthru
    _
  // Predicated region
  $region10: #{simple_cnn_forward.8} parent=0 // pred_check
    _
  $region11: #{simple_cnn_forward.8} parent=0 // pred_check_branch
    %13 = sbr.rel (0) target = $region13
  $region12: #{simple_cnn_forward.8} parent=0 // pred_region
    _
  $region13: #{simple_cnn_forward.8} parent=0 // pred_fallthru
    _
  %v14 = vld [vmem:[%s0] sm:$0xf]
  %v15 = vld [vmem:[%s1] sm:$0xff]
  %v16 = vld [vmem:[%s1 + $0x8] sm:$0xff]
  %v17 = vld [vmem:[%s1 + $0x10] sm:$0xff]
  %v18 = vld [vmem:[%s1 + $0x18] sm:$0xff]
  %v19 = vld [vmem:[%s1 + $0x20] sm:$0xff]
  %v20 = vld [vmem:[%s1 + $0x28] sm:$0xff]
  %v21 = vld [vmem:[%s1 + $0x30] sm:$0xff]
  %v22 = vld [vmem:[%s1 + $0x38] sm:$0xff]
  %v23 = vld [vmem:[%s1 + $0x40] sm:$0xff]
  %v24 = vld [vmem:[%s1 + $0x48] sm:$0xff]
  %v25 = vld [vmem:[%s1 + $0x50] sm:$0xff]
  %v26 = vld [vmem:[%s1 + $0x58] sm:$0xff]
  %v27 = vld [vmem:[%s1 + $0x60] sm:$0xff]
  %v28 = vld [vmem:[%s1 + $0x68] sm:$0xff]
  %v29 = vld [vmem:[%s1 + $0x70] sm:$0xff]
  %v30 = vld [vmem:[%s1 + $0x78] sm:$0xff]
  %v31 = vld [vmem:[%s1 + $0x80] sm:$0xff]
  %v32 = vld [vmem:[%s1 + $0x88] sm:$0xff]
  %v33 = vld [vmem:[%s1 + $0x90] sm:$0xff]
  %v34 = vld [vmem:[%s1 + $0x98] sm:$0xff]
  %v35 = vld [vmem:[%s1 + $0xa0] sm:$0xff]
  %v36 = vld [vmem:[%s1 + $0xa8] sm:$0xff]
  %v37 = vld [vmem:[%s1 + $0xb0] sm:$0xff]
  %v38 = vld [vmem:[%s1 + $0xb8] sm:$0xff]
  %v39 = vld [vmem:[%s1 + $0xc0] sm:$0xff]
  %v40 = vld [vmem:[%s1 + $0xc8] sm:$0xff]
  %v41 = vld [vmem:[%s1 + $0xd0] sm:$0xff]
  %v42 = vld [vmem:[%s1 + $0xd8] sm:$0xff]
  %v43 = vld [vmem:[%s1 + $0xe0] sm:$0xff]
  %v44 = vld [vmem:[%s1 + $0xe8] sm:$0xff]
  %v45 = vld [vmem:[%s1 + $0xf0] sm:$0xff]
  %v46 = vld [vmem:[%s1 + $0xf8] sm:$0xff]
  %v47 = vld [vmem:[%s1 + $0x100] sm:$0xff]
  %v48 = vld [vmem:[%s1 + $0x108] sm:$0xff]
  %v49 = vld [vmem:[%s1 + $0x110] sm:$0xff]
  %v50 = vld [vmem:[%s1 + $0x118] sm:$0xff]
  %v51 = vld [vmem:[%s1 + $0x120] sm:$0xff]
  %v52 = vld [vmem:[%s1 + $0x128] sm:$0xff]
  %v53 = vld [vmem:[%s1 + $0x130] sm:$0xff]
  %v54 = vld [vmem:[%s1 + $0x138] sm:$0xff]
  %v55 = vld [vmem:[%s1 + $0x140] sm:$0xff]
  %v56 = vld [vmem:[%s1 + $0x148] sm:$0xff]
  %v57 = vld [vmem:[%s1 + $0x150] sm:$0xff]
  %v58 = vld [vmem:[%s1 + $0x158] sm:$0xff]
  %v59 = vld [vmem:[%s1 + $0x160] sm:$0xff]
  %v60 = vld [vmem:[%s1 + $0x168] sm:$0xff]
  %v61 = vld [vmem:[%s1 + $0x170] sm:$0xff]
  %v62 = vld [vmem:[%s1 + $0x178] sm:$0xff]
  %v63 = vld [vmem:[%s1 + $0x180] sm:$0xff]
  %v64 = vld [vmem:[%s1 + $0x188] sm:$0xff]
  %v65 = vld [vmem:[%s1 + $0x190] sm:$0xff]
  %v66 = vld [vmem:[%s1 + $0x198] sm:$0xff]
  %v67 = vld [vmem:[%s1 + $0x1a0] sm:$0xff]
  %v68 = vld [vmem:[%s1 + $0x1a8] sm:$0xff]
  %v69 = vld [vmem:[%s1 + $0x1b0] sm:$0xff]
  %v70 = vld [vmem:[%s1 + $0x1b8] sm:$0xff]
  %v71 = vld [vmem:[%s1 + $0x1c0] sm:$0xff]
  %v72 = vld [vmem:[%s1 + $0x1c8] sm:$0xff]
  %v73 = vld [vmem:[%s1 + $0x1d0] sm:$0xff]
  %v74 = vld [vmem:[%s1 + $0x1d8] sm:$0xff]
  %v75 = vld [vmem:[%s1 + $0x1e0] sm:$0xff]
  %v76 = vld [vmem:[%s1 + $0x1e8] sm:$0xff]
  %v77 = vld [vmem:[%s1 + $0x1f0] sm:$0xff]
  %v78 = vld [vmem:[%s1 + $0x1f8] sm:$0xff]
  %v79 = vld [vmem:[%s1 + $0x200] sm:$0xff]
  %v80 = vld [vmem:[%s1 + $0x208] sm:$0xff]
  %v81 = vld [vmem:[%s1 + $0x210] sm:$0xff]
  %v82 = vld [vmem:[%s1 + $0x218] sm:$0xff]
  %v83 = vld [vmem:[%s1 + $0x220] sm:$0xff]
  %v84 = vld [vmem:[%s1 + $0x228] sm:$0xff]
  %v85 = vld [vmem:[%s1 + $0x230] sm:$0xff]
  %v86 = vld [vmem:[%s1 + $0x238] sm:$0xff]
  %v87 = vld [vmem:[%s1 + $0x240] sm:$0xff]
  %v88 = vld [vmem:[%s1 + $0x248] sm:$0xff]
  %v89 = vld [vmem:[%s1 + $0x250] sm:$0xff]
  %v90 = vld [vmem:[%s1 + $0x258] sm:$0xff]
  %v91 = vld [vmem:[%s1 + $0x260] sm:$0xff]
  %v92 = vld [vmem:[%s1 + $0x268] sm:$0xff]
  %v93 = vld [vmem:[%s1 + $0x270] sm:$0xff]
  %v94 = vld [vmem:[%s1 + $0x278] sm:$0xff]
  %v95 = vld [vmem:[%s1 + $0x280] sm:$0xff]
  %v96 = vld [vmem:[%s1 + $0x288] sm:$0xff]
  %v97 = vld [vmem:[%s1 + $0x290] sm:$0xff]
  %v98 = vld [vmem:[%s1 + $0x298] sm:$0xff]
  %v99 = vld [vmem:[%s1 + $0x2a0] sm:$0xff]
  %v100 = vld [vmem:[%s1 + $0x2a8] sm:$0xff]
  %v101 = vld [vmem:[%s1 + $0x2b0] sm:$0xff]
  %v102 = vld [vmem:[%s1 + $0x2b8] sm:$0xff]
  %v103 = vld [vmem:[%s1 + $0x2c0] sm:$0xff]
  %v104 = vld [vmem:[%s1 + $0x2c8] sm:$0xff]
  %v105 = vld [vmem:[%s1 + $0x2d0] sm:$0xff]
  %v106 = vld [vmem:[%s1 + $0x2d8] sm:$0xff]
  %v107 = vld [vmem:[%s1 + $0x2e0] sm:$0xff]
  %v108 = vld [vmem:[%s1 + $0x2e8] sm:$0xff]
  %v109 = vld [vmem:[%s1 + $0x2f0] sm:$0xff]
  %v110 = vld [vmem:[%s1 + $0x2f8] sm:$0xff]
  %v111 = vld [vmem:[%s1 + $0x300] sm:$0xff]
  %v112 = vld [vmem:[%s1 + $0x308] sm:$0xff]
  %v113 = vld [vmem:[%s1 + $0x310] sm:$0xff]
  %v114 = vld [vmem:[%s1 + $0x318] sm:$0xff]
  %v115 = vld [vmem:[%s1 + $0x320] sm:$0xff]
  %v116 = vld [vmem:[%s1 + $0x328] sm:$0xff]
  %v117 = vld [vmem:[%s1 + $0x330] sm:$0xff]
  %v118 = vld [vmem:[%s1 + $0x338] sm:$0xff]
  %v119 = vld [vmem:[%s1 + $0x340] sm:$0xff]
  %v120 = vld [vmem:[%s1 + $0x348] sm:$0xff]
  %v121 = vld [vmem:[%s1 + $0x350] sm:$0xff]
  %v122 = vld [vmem:[%s1 + $0x358] sm:$0xff]
  %v123 = vld [vmem:[%s1 + $0x360] sm:$0xff]
  %v124 = vld [vmem:[%s1 + $0x368] sm:$0xff]
  %v125 = vld [vmem:[%s1 + $0x370] sm:$0xff]
  %v126 = vld [vmem:[%s1 + $0x378] sm:$0xff]
  %v127 = vld [vmem:[%s1 + $0x380] sm:$0xff]
  %v128 = vld [vmem:[%s1 + $0x388] sm:$0xff]
  %v129 = vld [vmem:[%s1 + $0x390] sm:$0xff]
  %v130 = vld [vmem:[%s1 + $0x398] sm:$0xff]
  %v131 = vld [vmem:[%s1 + $0x3a0] sm:$0xff]
  %v132 = vld [vmem:[%s1 + $0x3a8] sm:$0xff]
  %v133 = vld [vmem:[%s1 + $0x3b0] sm:$0xff]
  %v134 = vld [vmem:[%s1 + $0x3b8] sm:$0xff]
  %v135 = vld [vmem:[%s1 + $0x3c0] sm:$0xff]
  %v136 = vld [vmem:[%s1 + $0x3c8] sm:$0xff]
  %v137 = vld [vmem:[%s1 + $0x3d0] sm:$0xff]
  %v138 = vld [vmem:[%s1 + $0x3d8] sm:$0xff]
  %v139 = vld [vmem:[%s1 + $0x3e0] sm:$0xff]
  %v140 = vld [vmem:[%s1 + $0x3e8] sm:$0xff]
  %v141 = vld [vmem:[%s1 + $0x3f0] sm:$0xff]
  %v142 = vld [vmem:[%s1 + $0x3f8] sm:$0xff]
  %v143 = vld [vmem:[%s2] sm:$0xf]
  %v145 = vperm.slane %v143, 0
  %v146 = vperm.slane %v143, 1
  %v147 = vperm.slane %v143, 2
  %v148 = vperm.slane %v143, 3
  %154 = vst [vmem:[#allocation1] ss:$9 sm:$0xff] %v14
  %v155 = vld [vmem:[#allocation1] sm:$0xff]
  %v156 = vld [vmem:[#allocation1 + $0x9] sm:$0xff]
  %v157 = vld [vmem:[#allocation1 + $0x12] sm:$0xff]
  %v158 = vld [vmem:[#allocation1 + $0x1b] sm:$0xff]
  %v291 = vunpack.c.l.b16 %v15
  %v292 = vunpack.c.h.b16 %v15
  %v293 = vunpack.c.l.b16 %v16
  %v294 = vunpack.c.h.b16 %v16
  %v295 = vunpack.c.l.b16 %v17
  %v296 = vunpack.c.h.b16 %v17
  %v297 = vunpack.c.l.b16 %v18
  %v298 = vunpack.c.h.b16 %v18
  %v299 = vunpack.c.l.b16 %v19
  %v300 = vunpack.c.h.b16 %v19
  %v301 = vunpack.c.l.b16 %v20
  %v302 = vunpack.c.h.b16 %v20
  %v303 = vunpack.c.l.b16 %v21
  %v304 = vunpack.c.h.b16 %v21
  %v305 = vunpack.c.l.b16 %v22
  %v306 = vunpack.c.h.b16 %v22
  %v307 = vunpack.c.l.b16 %v23
  %v308 = vunpack.c.h.b16 %v23
  %v309 = vunpack.c.l.b16 %v24
  %v310 = vunpack.c.h.b16 %v24
  %v311 = vunpack.c.l.b16 %v25
  %v312 = vunpack.c.h.b16 %v25
  %v313 = vunpack.c.l.b16 %v26
  %v314 = vunpack.c.h.b16 %v26
  %v315 = vunpack.c.l.b16 %v27
  %v316 = vunpack.c.h.b16 %v27
  %v317 = vunpack.c.l.b16 %v28
  %v318 = vunpack.c.h.b16 %v28
  %v319 = vunpack.c.l.b16 %v29
  %v320 = vunpack.c.h.b16 %v29
  %v321 = vunpack.c.l.b16 %v30
  %v322 = vunpack.c.h.b16 %v30
  %v323 = vunpack.c.l.b16 %v31
  %v324 = vunpack.c.h.b16 %v31
  %v325 = vunpack.c.l.b16 %v32
  %v326 = vunpack.c.h.b16 %v32
  %v327 = vunpack.c.l.b16 %v33
  %v328 = vunpack.c.h.b16 %v33
  %v329 = vunpack.c.l.b16 %v34
  %v330 = vunpack.c.h.b16 %v34
  %v331 = vunpack.c.l.b16 %v35
  %v332 = vunpack.c.h.b16 %v35
  %v333 = vunpack.c.l.b16 %v36
  %v334 = vunpack.c.h.b16 %v36
  %v335 = vunpack.c.l.b16 %v37
  %v336 = vunpack.c.h.b16 %v37
  %v337 = vunpack.c.l.b16 %v38
  %v338 = vunpack.c.h.b16 %v38
  %v339 = vunpack.c.l.b16 %v39
  %v340 = vunpack.c.h.b16 %v39
  %v341 = vunpack.c.l.b16 %v40
  %v342 = vunpack.c.h.b16 %v40
  %v343 = vunpack.c.l.b16 %v41
  %v344 = vunpack.c.h.b16 %v41
  %v345 = vunpack.c.l.b16 %v42
  %v346 = vunpack.c.h.b16 %v42
  %v347 = vunpack.c.l.b16 %v43
  %v348 = vunpack.c.h.b16 %v43
  %v349 = vunpack.c.l.b16 %v44
  %v350 = vunpack.c.h.b16 %v44
  %v351 = vunpack.c.l.b16 %v45
  %v352 = vunpack.c.h.b16 %v45
  %v353 = vunpack.c.l.b16 %v46
  %v354 = vunpack.c.h.b16 %v46
  %v355 = vunpack.c.l.b16 %v47
  %v356 = vunpack.c.h.b16 %v47
  %v357 = vunpack.c.l.b16 %v48
  %v358 = vunpack.c.h.b16 %v48
  %v359 = vunpack.c.l.b16 %v49
  %v360 = vunpack.c.h.b16 %v49
  %v361 = vunpack.c.l.b16 %v50
  %v362 = vunpack.c.h.b16 %v50
  %v363 = vunpack.c.l.b16 %v51
  %v364 = vunpack.c.h.b16 %v51
  %v365 = vunpack.c.l.b16 %v52
  %v366 = vunpack.c.h.b16 %v52
  %v367 = vunpack.c.l.b16 %v53
  %v368 = vunpack.c.h.b16 %v53
  %v369 = vunpack.c.l.b16 %v54
  %v370 = vunpack.c.h.b16 %v54
  %v371 = vunpack.c.l.b16 %v55
  %v372 = vunpack.c.h.b16 %v55
  %v373 = vunpack.c.l.b16 %v56
  %v374 = vunpack.c.h.b16 %v56
  %v375 = vunpack.c.l.b16 %v57
  %v376 = vunpack.c.h.b16 %v57
  %v377 = vunpack.c.l.b16 %v58
  %v378 = vunpack.c.h.b16 %v58
  %v379 = vunpack.c.l.b16 %v59
  %v380 = vunpack.c.h.b16 %v59
  %v381 = vunpack.c.l.b16 %v60
  %v382 = vunpack.c.h.b16 %v60
  %v383 = vunpack.c.l.b16 %v61
  %v384 = vunpack.c.h.b16 %v61
  %v385 = vunpack.c.l.b16 %v62
  %v386 = vunpack.c.h.b16 %v62
  %v387 = vunpack.c.l.b16 %v63
  %v388 = vunpack.c.h.b16 %v63
  %v389 = vunpack.c.l.b16 %v64
  %v390 = vunpack.c.h.b16 %v64
  %v391 = vunpack.c.l.b16 %v65
  %v392 = vunpack.c.h.b16 %v65
  %v393 = vunpack.c.l.b16 %v66
  %v394 = vunpack.c.h.b16 %v66
  %v395 = vunpack.c.l.b16 %v67
  %v396 = vunpack.c.h.b16 %v67
  %v397 = vunpack.c.l.b16 %v68
  %v398 = vunpack.c.h.b16 %v68
  %v399 = vunpack.c.l.b16 %v69
  %v400 = vunpack.c.h.b16 %v69
  %v401 = vunpack.c.l.b16 %v70
  %v402 = vunpack.c.h.b16 %v70
  %v403 = vunpack.c.l.b16 %v71
  %v404 = vunpack.c.h.b16 %v71
  %v405 = vunpack.c.l.b16 %v72
  %v406 = vunpack.c.h.b16 %v72
  %v407 = vunpack.c.l.b16 %v73
  %v408 = vunpack.c.h.b16 %v73
  %v409 = vunpack.c.l.b16 %v74
  %v410 = vunpack.c.h.b16 %v74
  %v411 = vunpack.c.l.b16 %v75
  %v412 = vunpack.c.h.b16 %v75
  %v413 = vunpack.c.l.b16 %v76
  %v414 = vunpack.c.h.b16 %v76
  %v415 = vunpack.c.l.b16 %v77
  %v416 = vunpack.c.h.b16 %v77
  %v417 = vunpack.c.l.b16 %v78
  %v418 = vunpack.c.h.b16 %v78
  %v419 = vunpack.c.l.b16 %v79
  %v420 = vunpack.c.h.b16 %v79
  %v421 = vunpack.c.l.b16 %v80
  %v422 = vunpack.c.h.b16 %v80
  %v423 = vunpack.c.l.b16 %v81
  %v424 = vunpack.c.h.b16 %v81
  %v425 = vunpack.c.l.b16 %v82
  %v426 = vunpack.c.h.b16 %v82
  %v427 = vunpack.c.l.b16 %v83
  %v428 = vunpack.c.h.b16 %v83
  %v429 = vunpack.c.l.b16 %v84
  %v430 = vunpack.c.h.b16 %v84
  %v431 = vunpack.c.l.b16 %v85
  %v432 = vunpack.c.h.b16 %v85
  %v433 = vunpack.c.l.b16 %v86
  %v434 = vunpack.c.h.b16 %v86
  %v435 = vunpack.c.l.b16 %v87
  %v436 = vunpack.c.h.b16 %v87
  %v437 = vunpack.c.l.b16 %v88
  %v438 = vunpack.c.h.b16 %v88
  %v439 = vunpack.c.l.b16 %v89
  %v440 = vunpack.c.h.b16 %v89
  %v441 = vunpack.c.l.b16 %v90
  %v442 = vunpack.c.h.b16 %v90
  %v443 = vunpack.c.l.b16 %v91
  %v444 = vunpack.c.h.b16 %v91
  %v445 = vunpack.c.l.b16 %v92
  %v446 = vunpack.c.h.b16 %v92
  %v447 = vunpack.c.l.b16 %v93
  %v448 = vunpack.c.h.b16 %v93
  %v449 = vunpack.c.l.b16 %v94
  %v450 = vunpack.c.h.b16 %v94
  %v451 = vunpack.c.l.b16 %v95
  %v452 = vunpack.c.h.b16 %v95
  %v453 = vunpack.c.l.b16 %v96
  %v454 = vunpack.c.h.b16 %v96
  %v455 = vunpack.c.l.b16 %v97
  %v456 = vunpack.c.h.b16 %v97
  %v457 = vunpack.c.l.b16 %v98
  %v458 = vunpack.c.h.b16 %v98
  %v459 = vunpack.c.l.b16 %v99
  %v460 = vunpack.c.h.b16 %v99
  %v461 = vunpack.c.l.b16 %v100
  %v462 = vunpack.c.h.b16 %v100
  %v463 = vunpack.c.l.b16 %v101
  %v464 = vunpack.c.h.b16 %v101
  %v465 = vunpack.c.l.b16 %v102
  %v466 = vunpack.c.h.b16 %v102
  %v467 = vunpack.c.l.b16 %v103
  %v468 = vunpack.c.h.b16 %v103
  %v469 = vunpack.c.l.b16 %v104
  %v470 = vunpack.c.h.b16 %v104
  %v471 = vunpack.c.l.b16 %v105
  %v472 = vunpack.c.h.b16 %v105
  %v473 = vunpack.c.l.b16 %v106
  %v474 = vunpack.c.h.b16 %v106
  %v475 = vunpack.c.l.b16 %v107
  %v476 = vunpack.c.h.b16 %v107
  %v477 = vunpack.c.l.b16 %v108
  %v478 = vunpack.c.h.b16 %v108
  %v479 = vunpack.c.l.b16 %v109
  %v480 = vunpack.c.h.b16 %v109
  %v481 = vunpack.c.l.b16 %v110
  %v482 = vunpack.c.h.b16 %v110
  %v483 = vunpack.c.l.b16 %v111
  %v484 = vunpack.c.h.b16 %v111
  %v485 = vunpack.c.l.b16 %v112
  %v486 = vunpack.c.h.b16 %v112
  %v487 = vunpack.c.l.b16 %v113
  %v488 = vunpack.c.h.b16 %v113
  %v489 = vunpack.c.l.b16 %v114
  %v490 = vunpack.c.h.b16 %v114
  %v491 = vunpack.c.l.b16 %v115
  %v492 = vunpack.c.h.b16 %v115
  %v493 = vunpack.c.l.b16 %v116
  %v494 = vunpack.c.h.b16 %v116
  %v495 = vunpack.c.l.b16 %v117
  %v496 = vunpack.c.h.b16 %v117
  %v497 = vunpack.c.l.b16 %v118
  %v498 = vunpack.c.h.b16 %v118
  %v499 = vunpack.c.l.b16 %v119
  %v500 = vunpack.c.h.b16 %v119
  %v501 = vunpack.c.l.b16 %v120
  %v502 = vunpack.c.h.b16 %v120
  %v503 = vunpack.c.l.b16 %v121
  %v504 = vunpack.c.h.b16 %v121
  %v505 = vunpack.c.l.b16 %v122
  %v506 = vunpack.c.h.b16 %v122
  %v507 = vunpack.c.l.b16 %v123
  %v508 = vunpack.c.h.b16 %v123
  %v509 = vunpack.c.l.b16 %v124
  %v510 = vunpack.c.h.b16 %v124
  %v511 = vunpack.c.l.b16 %v125
  %v512 = vunpack.c.h.b16 %v125
  %v513 = vunpack.c.l.b16 %v126
  %v514 = vunpack.c.h.b16 %v126
  %v515 = vunpack.c.l.b16 %v127
  %v516 = vunpack.c.h.b16 %v127
  %v517 = vunpack.c.l.b16 %v128
  %v518 = vunpack.c.h.b16 %v128
  %v519 = vunpack.c.l.b16 %v129
  %v520 = vunpack.c.h.b16 %v129
  %v521 = vunpack.c.l.b16 %v130
  %v522 = vunpack.c.h.b16 %v130
  %v523 = vunpack.c.l.b16 %v131
  %v524 = vunpack.c.h.b16 %v131
  %v525 = vunpack.c.l.b16 %v132
  %v526 = vunpack.c.h.b16 %v132
  %v527 = vunpack.c.l.b16 %v133
  %v528 = vunpack.c.h.b16 %v133
  %v529 = vunpack.c.l.b16 %v134
  %v530 = vunpack.c.h.b16 %v134
  %v531 = vunpack.c.l.b16 %v135
  %v532 = vunpack.c.h.b16 %v135
  %v533 = vunpack.c.l.b16 %v136
  %v534 = vunpack.c.h.b16 %v136
  %v535 = vunpack.c.l.b16 %v137
  %v536 = vunpack.c.h.b16 %v137
  %v537 = vunpack.c.l.b16 %v138
  %v538 = vunpack.c.h.b16 %v138
  %v539 = vunpack.c.l.b16 %v139
  %v540 = vunpack.c.h.b16 %v139
  %v541 = vunpack.c.l.b16 %v140
  %v542 = vunpack.c.h.b16 %v140
  %v543 = vunpack.c.l.b16 %v141
  %v544 = vunpack.c.h.b16 %v141
  %v545 = vunpack.c.l.b16 %v142
  %v546 = vunpack.c.h.b16 %v142
  %v547 = vpack.c.b16 %v295, %v291
  %v548 = vpack.c.b16 %v296, %v292
  %v549 = vpack.c.b16 %v297, %v293
  %v550 = vpack.c.b16 %v298, %v294
  %v551 = vpack.c.b16 %v303, %v299
  %v552 = vpack.c.b16 %v304, %v300
  %v553 = vpack.c.b16 %v305, %v301
  %v554 = vpack.c.b16 %v306, %v302
  %v555 = vpack.c.b16 %v311, %v307
  %v556 = vpack.c.b16 %v312, %v308
  %v557 = vpack.c.b16 %v313, %v309
  %v558 = vpack.c.b16 %v314, %v310
  %v559 = vpack.c.b16 %v319, %v315
  %v560 = vpack.c.b16 %v320, %v316
  %v561 = vpack.c.b16 %v321, %v317
  %v562 = vpack.c.b16 %v322, %v318
  %v563 = vpack.c.b16 %v327, %v323
  %v564 = vpack.c.b16 %v328, %v324
  %v565 = vpack.c.b16 %v329, %v325
  %v566 = vpack.c.b16 %v330, %v326
  %v567 = vpack.c.b16 %v335, %v331
  %v568 = vpack.c.b16 %v336, %v332
  %v569 = vpack.c.b16 %v337, %v333
  %v570 = vpack.c.b16 %v338, %v334
  %v571 = vpack.c.b16 %v343, %v339
  %v572 = vpack.c.b16 %v344, %v340
  %v573 = vpack.c.b16 %v345, %v341
  %v574 = vpack.c.b16 %v346, %v342
  %v575 = vpack.c.b16 %v351, %v347
  %v576 = vpack.c.b16 %v352, %v348
  %v577 = vpack.c.b16 %v353, %v349
  %v578 = vpack.c.b16 %v354, %v350
  %v579 = vpack.c.b16 %v359, %v355
  %v580 = vpack.c.b16 %v360, %v356
  %v581 = vpack.c.b16 %v361, %v357
  %v582 = vpack.c.b16 %v362, %v358
  %v583 = vpack.c.b16 %v367, %v363
  %v584 = vpack.c.b16 %v368, %v364
  %v585 = vpack.c.b16 %v369, %v365
  %v586 = vpack.c.b16 %v370, %v366
  %v587 = vpack.c.b16 %v375, %v371
  %v588 = vpack.c.b16 %v376, %v372
  %v589 = vpack.c.b16 %v377, %v373
  %v590 = vpack.c.b16 %v378, %v374
  %v591 = vpack.c.b16 %v383, %v379
  %v592 = vpack.c.b16 %v384, %v380
  %v593 = vpack.c.b16 %v385, %v381
  %v594 = vpack.c.b16 %v386, %v382
  %v595 = vpack.c.b16 %v391, %v387
  %v596 = vpack.c.b16 %v392, %v388
  %v597 = vpack.c.b16 %v393, %v389
  %v598 = vpack.c.b16 %v394, %v390
  %v599 = vpack.c.b16 %v399, %v395
  %v600 = vpack.c.b16 %v400, %v396
  %v601 = vpack.c.b16 %v401, %v397
  %v602 = vpack.c.b16 %v402, %v398
  %v603 = vpack.c.b16 %v407, %v403
  %v604 = vpack.c.b16 %v408, %v404
  %v605 = vpack.c.b16 %v409, %v405
  %v606 = vpack.c.b16 %v410, %v406
  %v607 = vpack.c.b16 %v415, %v411
  %v608 = vpack.c.b16 %v416, %v412
  %v609 = vpack.c.b16 %v417, %v413
  %v610 = vpack.c.b16 %v418, %v414
  %v611 = vpack.c.b16 %v423, %v419
  %v612 = vpack.c.b16 %v424, %v420
  %v613 = vpack.c.b16 %v425, %v421
  %v614 = vpack.c.b16 %v426, %v422
  %v615 = vpack.c.b16 %v431, %v427
  %v616 = vpack.c.b16 %v432, %v428
  %v617 = vpack.c.b16 %v433, %v429
  %v618 = vpack.c.b16 %v434, %v430
  %v619 = vpack.c.b16 %v439, %v435
  %v620 = vpack.c.b16 %v440, %v436
  %v621 = vpack.c.b16 %v441, %v437
  %v622 = vpack.c.b16 %v442, %v438
  %v623 = vpack.c.b16 %v447, %v443
  %v624 = vpack.c.b16 %v448, %v444
  %v625 = vpack.c.b16 %v449, %v445
  %v626 = vpack.c.b16 %v450, %v446
  %v627 = vpack.c.b16 %v455, %v451
  %v628 = vpack.c.b16 %v456, %v452
  %v629 = vpack.c.b16 %v457, %v453
  %v630 = vpack.c.b16 %v458, %v454
  %v631 = vpack.c.b16 %v463, %v459
  %v632 = vpack.c.b16 %v464, %v460
  %v633 = vpack.c.b16 %v465, %v461
  %v634 = vpack.c.b16 %v466, %v462
  %v635 = vpack.c.b16 %v471, %v467
  %v636 = vpack.c.b16 %v472, %v468
  %v637 = vpack.c.b16 %v473, %v469
  %v638 = vpack.c.b16 %v474, %v470
  %v639 = vpack.c.b16 %v479, %v475
  %v640 = vpack.c.b16 %v480, %v476
  %v641 = vpack.c.b16 %v481, %v477
  %v642 = vpack.c.b16 %v482, %v478
  %v643 = vpack.c.b16 %v487, %v483
  %v644 = vpack.c.b16 %v488, %v484
  %v645 = vpack.c.b16 %v489, %v485
  %v646 = vpack.c.b16 %v490, %v486
  %v647 = vpack.c.b16 %v495, %v491
  %v648 = vpack.c.b16 %v496, %v492
  %v649 = vpack.c.b16 %v497, %v493
  %v650 = vpack.c.b16 %v498, %v494
  %v651 = vpack.c.b16 %v503, %v499
  %v652 = vpack.c.b16 %v504, %v500
  %v653 = vpack.c.b16 %v505, %v501
  %v654 = vpack.c.b16 %v506, %v502
  %v655 = vpack.c.b16 %v511, %v507
  %v656 = vpack.c.b16 %v512, %v508
  %v657 = vpack.c.b16 %v513, %v509
  %v658 = vpack.c.b16 %v514, %v510
  %v659 = vpack.c.b16 %v519, %v515
  %v660 = vpack.c.b16 %v520, %v516
  %v661 = vpack.c.b16 %v521, %v517
  %v662 = vpack.c.b16 %v522, %v518
  %v663 = vpack.c.b16 %v527, %v523
  %v664 = vpack.c.b16 %v528, %v524
  %v665 = vpack.c.b16 %v529, %v525
  %v666 = vpack.c.b16 %v530, %v526
  %v667 = vpack.c.b16 %v535, %v531
  %v668 = vpack.c.b16 %v536, %v532
  %v669 = vpack.c.b16 %v537, %v533
  %v670 = vpack.c.b16 %v538, %v534
  %v671 = vpack.c.b16 %v543, %v539
  %v672 = vpack.c.b16 %v544, %v540
  %v673 = vpack.c.b16 %v545, %v541
  %v674 = vpack.c.b16 %v546, %v542
  %803 = vmatpush.bf16.msra.mxu0 %v575
  %804 = vmatpush.bf16.msra.mxu0 %v571
  %805 = vmatpush.bf16.msra.mxu0 %v567
  %806 = vmatpush.bf16.msra.mxu0 %v563
  %807 = vmatpush.bf16.msra.mxu0 %v559
  %808 = vmatpush.bf16.msra.mxu0 %v555
  %809 = vmatpush.bf16.msra.mxu0 %v551
  %810 = vmatpush.bf16.msra.mxu0 %v547
  %811 = vmatmul.bf16.gmra.mxu0 %v155
  %v812 = vpop.f32.mrf.mxu0
  %v813 = vadd.f32 %v145, %v812
  %v814 = vpop.f32.mrf.mxu0
  %815 = vdwg.mxu0
  %816 = vmatpush.bf16.msra.mxu0 %v607
  %817 = vmatpush.bf16.msra.mxu0 %v603
  %818 = vmatpush.bf16.msra.mxu0 %v599
  %819 = vmatpush.bf16.msra.mxu0 %v595
  %820 = vmatpush.bf16.msra.mxu0 %v591
  %821 = vmatpush.bf16.msra.mxu0 %v587
  %822 = vmatpush.bf16.msra.mxu0 %v583
  %823 = vmatpush.bf16.msra.mxu0 %v579
  %824 = vmatmul.bf16.gmra.mxu0 %v156
  %v825 = vpop.f32.mrf.mxu0
  %v826 = vadd.f32 %v813, %v825
  %v827 = vpop.f32.mrf.mxu0
  %828 = vdwg.mxu0
  %829 = vmatpush.bf16.msra.mxu0 %v639
  %830 = vmatpush.bf16.msra.mxu0 %v635
  %831 = vmatpush.bf16.msra.mxu0 %v631
  %832 = vmatpush.bf16.msra.mxu0 %v627
  %833 = vmatpush.bf16.msra.mxu0 %v623
  %834 = vmatpush.bf16.msra.mxu0 %v619
  %835 = vmatpush.bf16.msra.mxu0 %v615
  %836 = vmatpush.bf16.msra.mxu0 %v611
  %837 = vmatmul.bf16.gmra.mxu0 %v157
  %v838 = vpop.f32.mrf.mxu0
  %v839 = vadd.f32 %v826, %v838
  %v840 = vpop.f32.mrf.mxu0
  %841 = vdwg.mxu0
  %842 = vmatpush.bf16.msra.mxu0 %v671
  %843 = vmatpush.bf16.msra.mxu0 %v667
  %844 = vmatpush.bf16.msra.mxu0 %v663
  %845 = vmatpush.bf16.msra.mxu0 %v659
  %846 = vmatpush.bf16.msra.mxu0 %v655
  %847 = vmatpush.bf16.msra.mxu0 %v651
  %848 = vmatpush.bf16.msra.mxu0 %v647
  %849 = vmatpush.bf16.msra.mxu0 %v643
  %850 = vmatmul.bf16.gmra.mxu0 %v158
  %v851 = vpop.f32.mrf.mxu0
  %v852 = vadd.f32 %v839, %v851
  %v853 = vpop.f32.mrf.mxu0
  %854 = vdwg.mxu0
  %855 = vmatpush.bf16.msra.mxu0 %v576
  %856 = vmatpush.bf16.msra.mxu0 %v572
  %857 = vmatpush.bf16.msra.mxu0 %v568
  %858 = vmatpush.bf16.msra.mxu0 %v564
  %859 = vmatpush.bf16.msra.mxu0 %v560
  %860 = vmatpush.bf16.msra.mxu0 %v556
  %861 = vmatpush.bf16.msra.mxu0 %v552
  %862 = vmatpush.bf16.msra.mxu0 %v548
  %863 = vmatmul.bf16.gmra.mxu0 %v155
  %v864 = vpop.f32.mrf.mxu0
  %v865 = vadd.f32 %v146, %v864
  %v866 = vpop.f32.mrf.mxu0
  %867 = vdwg.mxu0
  %868 = vmatpush.bf16.msra.mxu0 %v608
  %869 = vmatpush.bf16.msra.mxu0 %v604
  %870 = vmatpush.bf16.msra.mxu0 %v600
  %871 = vmatpush.bf16.msra.mxu0 %v596
  %872 = vmatpush.bf16.msra.mxu0 %v592
  %873 = vmatpush.bf16.msra.mxu0 %v588
  %874 = vmatpush.bf16.msra.mxu0 %v584
  %875 = vmatpush.bf16.msra.mxu0 %v580
  %876 = vmatmul.bf16.gmra.mxu0 %v156
  %v877 = vpop.f32.mrf.mxu0
  %v878 = vadd.f32 %v865, %v877
  %v879 = vpop.f32.mrf.mxu0
  %880 = vdwg.mxu0
  %881 = vmatpush.bf16.msra.mxu0 %v640
  %882 = vmatpush.bf16.msra.mxu0 %v636
  %883 = vmatpush.bf16.msra.mxu0 %v632
  %884 = vmatpush.bf16.msra.mxu0 %v628
  %885 = vmatpush.bf16.msra.mxu0 %v624
  %886 = vmatpush.bf16.msra.mxu0 %v620
  %887 = vmatpush.bf16.msra.mxu0 %v616
  %888 = vmatpush.bf16.msra.mxu0 %v612
  %889 = vmatmul.bf16.gmra.mxu0 %v157
  %v890 = vpop.f32.mrf.mxu0
  %v891 = vadd.f32 %v878, %v890
  %v892 = vpop.f32.mrf.mxu0
  %893 = vdwg.mxu0
  %894 = vmatpush.bf16.msra.mxu0 %v672
  %895 = vmatpush.bf16.msra.mxu0 %v668
  %896 = vmatpush.bf16.msra.mxu0 %v664
  %897 = vmatpush.bf16.msra.mxu0 %v660
  %898 = vmatpush.bf16.msra.mxu0 %v656
  %899 = vmatpush.bf16.msra.mxu0 %v652
  %900 = vmatpush.bf16.msra.mxu0 %v648
  %901 = vmatpush.bf16.msra.mxu0 %v644
  %902 = vmatmul.bf16.gmra.mxu0 %v158
  %v903 = vpop.f32.mrf.mxu0
  %v904 = vadd.f32 %v891, %v903
  %v905 = vpop.f32.mrf.mxu0
  %906 = vdwg.mxu0
  %907 = vmatpush.bf16.msra.mxu0 %v577
  %908 = vmatpush.bf16.msra.mxu0 %v573
  %909 = vmatpush.bf16.msra.mxu0 %v569
  %910 = vmatpush.bf16.msra.mxu0 %v565
  %911 = vmatpush.bf16.msra.mxu0 %v561
  %912 = vmatpush.bf16.msra.mxu0 %v557
  %913 = vmatpush.bf16.msra.mxu0 %v553
  %914 = vmatpush.bf16.msra.mxu0 %v549
  %915 = vmatmul.bf16.gmra.mxu0 %v155
  %v916 = vpop.f32.mrf.mxu0
  %v917 = vadd.f32 %v147, %v916
  %v918 = vpop.f32.mrf.mxu0
  %919 = vdwg.mxu0
  %920 = vmatpush.bf16.msra.mxu0 %v609
  %921 = vmatpush.bf16.msra.mxu0 %v605
  %922 = vmatpush.bf16.msra.mxu0 %v601
  %923 = vmatpush.bf16.msra.mxu0 %v597
  %924 = vmatpush.bf16.msra.mxu0 %v593
  %925 = vmatpush.bf16.msra.mxu0 %v589
  %926 = vmatpush.bf16.msra.mxu0 %v585
  %927 = vmatpush.bf16.msra.mxu0 %v581
  %928 = vmatmul.bf16.gmra.mxu0 %v156
  %v929 = vpop.f32.mrf.mxu0
  %v930 = vadd.f32 %v917, %v929
  %v931 = vpop.f32.mrf.mxu0
  %932 = vdwg.mxu0
  %933 = vmatpush.bf16.msra.mxu0 %v641
  %934 = vmatpush.bf16.msra.mxu0 %v637
  %935 = vmatpush.bf16.msra.mxu0 %v633
  %936 = vmatpush.bf16.msra.mxu0 %v629
  %937 = vmatpush.bf16.msra.mxu0 %v625
  %938 = vmatpush.bf16.msra.mxu0 %v621
  %939 = vmatpush.bf16.msra.mxu0 %v617
  %940 = vmatpush.bf16.msra.mxu0 %v613
  %941 = vmatmul.bf16.gmra.mxu0 %v157
  %v942 = vpop.f32.mrf.mxu0
  %v943 = vadd.f32 %v930, %v942
  %v944 = vpop.f32.mrf.mxu0
  %945 = vdwg.mxu0
  %946 = vmatpush.bf16.msra.mxu0 %v673
  %947 = vmatpush.bf16.msra.mxu0 %v669
  %948 = vmatpush.bf16.msra.mxu0 %v665
  %949 = vmatpush.bf16.msra.mxu0 %v661
  %950 = vmatpush.bf16.msra.mxu0 %v657
  %951 = vmatpush.bf16.msra.mxu0 %v653
  %952 = vmatpush.bf16.msra.mxu0 %v649
  %953 = vmatpush.bf16.msra.mxu0 %v645
  %954 = vmatmul.bf16.gmra.mxu0 %v158
  %v955 = vpop.f32.mrf.mxu0
  %v956 = vadd.f32 %v943, %v955
  %v957 = vpop.f32.mrf.mxu0
  %958 = vdwg.mxu0
  %959 = vmatpush.bf16.msra.mxu0 %v578
  %960 = vmatpush.bf16.msra.mxu0 %v574
  %961 = vmatpush.bf16.msra.mxu0 %v570
  %962 = vmatpush.bf16.msra.mxu0 %v566
  %963 = vmatpush.bf16.msra.mxu0 %v562
  %964 = vmatpush.bf16.msra.mxu0 %v558
  %965 = vmatpush.bf16.msra.mxu0 %v554
  %966 = vmatpush.bf16.msra.mxu0 %v550
  %967 = vmatmul.bf16.gmra.mxu0 %v155
  %v968 = vpop.f32.mrf.mxu0
  %v969 = vadd.f32 %v148, %v968
  %v970 = vpop.f32.mrf.mxu0
  %971 = vdwg.mxu0
  %972 = vmatpush.bf16.msra.mxu0 %v610
  %973 = vmatpush.bf16.msra.mxu0 %v606
  %974 = vmatpush.bf16.msra.mxu0 %v602
  %975 = vmatpush.bf16.msra.mxu0 %v598
  %976 = vmatpush.bf16.msra.mxu0 %v594
  %977 = vmatpush.bf16.msra.mxu0 %v590
  %978 = vmatpush.bf16.msra.mxu0 %v586
  %979 = vmatpush.bf16.msra.mxu0 %v582
  %980 = vmatmul.bf16.gmra.mxu0 %v156
  %v981 = vpop.f32.mrf.mxu0
  %v982 = vadd.f32 %v969, %v981
  %v983 = vpop.f32.mrf.mxu0
  %984 = vdwg.mxu0
  %985 = vmatpush.bf16.msra.mxu0 %v642
  %986 = vmatpush.bf16.msra.mxu0 %v638
  %987 = vmatpush.bf16.msra.mxu0 %v634
  %988 = vmatpush.bf16.msra.mxu0 %v630
  %989 = vmatpush.bf16.msra.mxu0 %v626
  %990 = vmatpush.bf16.msra.mxu0 %v622
  %991 = vmatpush.bf16.msra.mxu0 %v618
  %992 = vmatpush.bf16.msra.mxu0 %v614
  %993 = vmatmul.bf16.gmra.mxu0 %v157
  %v994 = vpop.f32.mrf.mxu0
  %v995 = vadd.f32 %v982, %v994
  %v996 = vpop.f32.mrf.mxu0
  %997 = vdwg.mxu0
  %998 = vmatpush.bf16.msra.mxu0 %v674
  %999 = vmatpush.bf16.msra.mxu0 %v670
  %1000 = vmatpush.bf16.msra.mxu0 %v666
  %1001 = vmatpush.bf16.msra.mxu0 %v662
  %1002 = vmatpush.bf16.msra.mxu0 %v658
  %1003 = vmatpush.bf16.msra.mxu0 %v654
  %1004 = vmatpush.bf16.msra.mxu0 %v650
  %1005 = vmatpush.bf16.msra.mxu0 %v646
  %1006 = vmatmul.bf16.gmra.mxu0 %v158
  %v1007 = vpop.f32.mrf.mxu0
  %v1008 = vadd.f32 %v995, %v1007
  %v1009 = vpop.f32.mrf.mxu0
  %1010 = vdwg.mxu0
  %v1011 = vmax.f32 %v852, 0.0
  %v1012 = vmax.f32 %v904, 0.0
  %v1013 = vmax.f32 %v956, 0.0
  %v1014 = vmax.f32 %v1008, 0.0
  %v1019 = vrot.slane %v1012, 6
  %v1020 = vrot.slane %v1013, 4
  %v1021 = vrot.slane %v1014, 2
  %vm1022 = vcmask 1041408
  %v1023 = vsel %vm1022, %v1011, %v1019
  %vm1024 = vcmask 1045508
  %v1025 = vsel %vm1024, %v1020, %v1021
  %vm1026 = vcmask 1043456
  %v1027 = vsel %vm1026, %v1023, %v1025
  %1029 = vst [vmem:[%s3] sm:$0xff] %v1027
  // Predicated region
  $region14: #{simple_cnn_forward.8} parent=0 // pred_check
    _
  $region15: #{simple_cnn_forward.8} parent=0 // pred_check_branch
    %1031 = sbr.rel (0) target = $region17
  $region16: #{simple_cnn_forward.8} parent=0 // pred_region
    _
  $region17: #{simple_cnn_forward.8} parent=0 // pred_fallthru
    _
  // Predicated region
  $region18: #{simple_cnn_forward.8} parent=0 // pred_check
    _
  $region19: #{simple_cnn_forward.8} parent=0 // pred_check_branch
    %1033 = sbr.rel (0) target = $region21
  $region20: #{simple_cnn_forward.8} parent=0 // pred_region
    _
  $region21: #{simple_cnn_forward.8} parent=0 // pred_fallthru
    _

// kernel: simple_cnn_forward.5
$region0: #{simple_cnn_forward.5}
  #allocation0 [shape = 'u32[]', space=smem, size = 0x4, offset = 0x4, fixed_abs, tag = 'smem constant byte address 0x4 - core index']
  #allocation1 [shape = 'u32[72,128]{1,0:T(1,128)}', space=vmem, size = 0x9000, scoped, tag = 'internal scratch']
  %s0 = inlined_call_operand.vmem [shape: f32[2,1024,27], index: 0, kind: input, shape index: {}]
  %s1 = inlined_call_operand.vmem [shape: bf16[1,27,32], index: 1, kind: input, shape index: {}]
  %s2 = inlined_call_operand.vmem [shape: f32[1,32], index: 2, kind: input, shape index: {}]
  %s3 = inlined_call_operand.vmem [shape: bf16[2,15,32], index: 3, kind: input, shape index: {}]
  %s4 = inlined_call_operand.vmem [shape: f32[2,15,15,32], index: 4, kind: output, shape index: {}]
  %s5 = sld [smem:[#allocation0]]
  $region49: #{simple_cnn_forward.5} parent=0
    _
  %s7 = ssub.s32 1, %s5
  %s8 = scalar_select 0, %s7, %s5
  loop: start=0, step=1, limit=4
  $region2: #{simple_cnn_forward.5} parent=0 // loop_pre_header
    _
  $region3: #{simple_cnn_forward.5} parent=0 // loop_header
    %s10 = sphi 0, %s14
    %p11 = scmp.ge.s32.totalorder %s10, 4
    %s20 = sphi 0, %s22
    %s23 = sphi 0, %s20
    %s24 = sphi 0, %s23
    %s40 = sphi 0, %s24
    %s44 = sphi 0, %s44
    %s46 = sphi 0, %s44
    %s47 = sphi 0, %s46
    %s61 = sphi 0, %s47
    %s65 = sphi 0, %s65
    %s67 = sphi 0, %s65
    %s68 = sphi 0, %s67
    %s82 = sphi 0, %s68
    %s86 = sphi 0, %s86
    %s88 = sphi 0, %s86
    %s89 = sphi 0, %s88
    %s103 = sphi 0, %s89
    %s109 = sphi 0, %s111
    %s112 = sphi 0, %s109
    %s113 = sphi 0, %s112
    %s129 = sphi 0, %s113
  $region4: #{simple_cnn_forward.5} parent=0 // loop_header_branch
    %13 = sbr.rel (%p11) target = $region8
  $region5: #{simple_cnn_forward.5} parent=0 // loop_body
    %s15 = ssub.s32 %s10, 1
    %s16 = ssub.s32 %s10, 2
    %s17 = sadd.s32 %s10, 1
    %s18 = ssub.s32 %s10, %s17
    %p19 = scmp.eq.s32.totalorder %s18, 0
    %s21 = sadd.s32 %s20, 1
    %s22 = scalar_select %p19, %s20, %s21
    %p25 = pneg %p19
    %p26 = scmp.eq.s32.totalorder %s10, 1
    %p27 = por %p25, %p26
    %p28 = scmp.ne.s32.totalorder %s20, %s23
    %p29 = scmp.eq.s32.totalorder %s10, 0
    %p30 = por %p28, %p29
    %p31 = scmp.ne.s32.totalorder %s20, %s23
    %p32 = scmp.eq.s32.totalorder %s15, 1
    %p33 = por %p31, %p32
    %p34 = scmp.ne.s32.totalorder %s23, %s24
    %p35 = scmp.eq.s32.totalorder %s15, 0
    %p36 = por %p34, %p35
    %p37 = scmp.ne.s32.totalorder %s23, %s24
    %p38 = scmp.eq.s32.totalorder %s16, 1
    %p39 = por %p37, %p38
    %p41 = scmp.ne.s32.totalorder %s24, %s40
    %p42 = scmp.eq.s32.totalorder %s16, 0
    %p43 = por %p41, %p42
    %s45 = sadd.s32 %s44, 1
    %p48 = scmp.eq.s32.totalorder %s10, 1
    %p49 = scmp.ne.s32.totalorder %s44, %s46
    %p50 = scmp.eq.s32.totalorder %s10, 0
    %p51 = por %p49, %p50
    %p52 = scmp.ne.s32.totalorder %s44, %s46
    %p53 = scmp.eq.s32.totalorder %s15, 1
    %p54 = por %p52, %p53
    %p55 = scmp.ne.s32.totalorder %s46, %s47
    %p56 = scmp.eq.s32.totalorder %s15, 0
    %p57 = por %p55, %p56
    %p58 = scmp.ne.s32.totalorder %s46, %s47
    %p59 = scmp.eq.s32.totalorder %s16, 1
    %p60 = por %p58, %p59
    %p62 = scmp.ne.s32.totalorder %s47, %s61
    %p63 = scmp.eq.s32.totalorder %s16, 0
    %p64 = por %p62, %p63
    %s66 = sadd.s32 %s65, 1
    %p69 = scmp.eq.s32.totalorder %s10, 1
    %p70 = scmp.ne.s32.totalorder %s65, %s67
    %p71 = scmp.eq.s32.totalorder %s10, 0
    %p72 = por %p70, %p71
    %p73 = scmp.ne.s32.totalorder %s65, %s67
    %p74 = scmp.eq.s32.totalorder %s15, 1
    %p75 = por %p73, %p74
    %p76 = scmp.ne.s32.totalorder %s67, %s68
    %p77 = scmp.eq.s32.totalorder %s15, 0
    %p78 = por %p76, %p77
    %p79 = scmp.ne.s32.totalorder %s67, %s68
    %p80 = scmp.eq.s32.totalorder %s16, 1
    %p81 = por %p79, %p80
    %p83 = scmp.ne.s32.totalorder %s68, %s82
    %p84 = scmp.eq.s32.totalorder %s16, 0
    %p85 = por %p83, %p84
    %s87 = sadd.s32 %s86, 1
    %p90 = scmp.eq.s32.totalorder %s10, 1
    %p91 = scmp.ne.s32.totalorder %s86, %s88
    %p92 = scmp.eq.s32.totalorder %s10, 0
    %p93 = por %p91, %p92
    %p94 = scmp.ne.s32.totalorder %s86, %s88
    %p95 = scmp.eq.s32.totalorder %s15, 1
    %p96 = por %p94, %p95
    %p97 = scmp.ne.s32.totalorder %s88, %s89
    %p98 = scmp.eq.s32.totalorder %s15, 0
    %p99 = por %p97, %p98
    %p100 = scmp.ne.s32.totalorder %s88, %s89
    %p101 = scmp.eq.s32.totalorder %s16, 1
    %p102 = por %p100, %p101
    %p104 = scmp.ne.s32.totalorder %s89, %s103
    %p105 = scmp.eq.s32.totalorder %s16, 0
    %p106 = por %p104, %p105
    %s107 = ssub.s32 %s10, %s17
    %p108 = scmp.eq.s32.totalorder %s107, 0
    %s110 = sadd.s32 %s109, 1
    %s111 = scalar_select %p108, %s109, %s110
    %p114 = pneg %p108
    %p115 = scmp.eq.s32.totalorder %s10, 1
    %p116 = por %p114, %p115
    %p117 = scmp.ne.s32.totalorder %s109, %s112
    %p118 = scmp.eq.s32.totalorder %s10, 0
    %p119 = por %p117, %p118
    %p120 = scmp.ne.s32.totalorder %s109, %s112
    %p121 = scmp.eq.s32.totalorder %s15, 1
    %p122 = por %p120, %p121
    %p123 = scmp.ne.s32.totalorder %s112, %s113
    %p124 = scmp.eq.s32.totalorder %s15, 0
    %p125 = por %p123, %p124
    %p126 = scmp.ne.s32.totalorder %s112, %s113
    %p127 = scmp.eq.s32.totalorder %s16, 1
    %p128 = por %p126, %p127
    %p130 = scmp.ne.s32.totalorder %s113, %s129
    %p131 = scmp.eq.s32.totalorder %s16, 0
    %p132 = por %p130, %p131
    %p133 = scmp.le.s32.totalorder 1, %s10
    %p134 = scmp.lt.s32.totalorder %s10, 3
    %p135 = pnand %p133, %p134
    %p136 = pneg %p135
    // Predicated region
    $region9: #{simple_cnn_forward.5} parent=5 // pred_check
      _
    $region10: #{simple_cnn_forward.5} parent=5 // pred_check_branch
      %138 = sbr.rel (%p135) target = $region12
    $region11: #{simple_cnn_forward.5} parent=5 // pred_region
      %s139 = ssub.s32 %s10, 1
      // Predicated region
      $region13: #{simple_cnn_forward.5} parent=11 // pred_check
        %p140 = pneg %p57
      $region14: #{simple_cnn_forward.5} parent=11 // pred_check_branch
        %142 = sbr.rel (%p140) target = $region16
      $region15: #{simple_cnn_forward.5} parent=11 // pred_region
        _
      $region16: #{simple_cnn_forward.5} parent=11 // pred_fallthru
        _
      // Predicated region
      $region17: #{simple_cnn_forward.5} parent=11 // pred_check
        %p143 = pneg %p78
      $region18: #{simple_cnn_forward.5} parent=11 // pred_check_branch
        %145 = sbr.rel (%p143) target = $region20
      $region19: #{simple_cnn_forward.5} parent=11 // pred_region
        _
      $region20: #{simple_cnn_forward.5} parent=11 // pred_fallthru
        _
      // Predicated region
      $region21: #{simple_cnn_forward.5} parent=11 // pred_check
        %p146 = pneg %p99
      $region22: #{simple_cnn_forward.5} parent=11 // pred_check_branch
        %148 = sbr.rel (%p146) target = $region24
      $region23: #{simple_cnn_forward.5} parent=11 // pred_region
        _
      $region24: #{simple_cnn_forward.5} parent=11 // pred_fallthru
        _
    $region12: #{simple_cnn_forward.5} parent=5 // pred_fallthru
      _
    %p149 = scmp.lt.s32.totalorder %s10, 2
    // Predicated region
    $region25: #{simple_cnn_forward.5} parent=5 // pred_check
      %p150 = pneg %p149
    $region26: #{simple_cnn_forward.5} parent=5 // pred_check_branch
      %152 = sbr.rel (%p150) target = $region28
    $region27: #{simple_cnn_forward.5} parent=5 // pred_region
      // Predicated region
      $region29: #{simple_cnn_forward.5} parent=27 // pred_check
        %p153 = pneg %p30
      $region30: #{simple_cnn_forward.5} parent=27 // pred_check_branch
        %155 = sbr.rel (%p153) target = $region32
      $region31: #{simple_cnn_forward.5} parent=27 // pred_region
        %p156 = scmp.lt.s32.totalorder %s10, 1
        %s157 = scalar_select %p156, %s10, 1
        %s158 = smul.addr %s157, 128
        %s159 = smul.addr %s158, 8
        %s160 = scalar_lea.vmem %s0, %s159
      $region32: #{simple_cnn_forward.5} parent=27 // pred_fallthru
        _
    $region28: #{simple_cnn_forward.5} parent=5 // pred_fallthru
      _
    %p161 = scmp.le.s32.totalorder 1, %s10
    %p162 = scmp.lt.s32.totalorder %s10, 3
    %p163 = pnand %p161, %p162
    %p164 = pneg %p163
    // Predicated region
    $region33: #{simple_cnn_forward.5} parent=5 // pred_check
      _
    $region34: #{simple_cnn_forward.5} parent=5 // pred_check_branch
      %166 = sbr.rel (%p163) target = $region36
    $region35: #{simple_cnn_forward.5} parent=5 // pred_region
      %s167 = ssub.s32 %s10, 1
      %p168 = scmp.lt.s32.totalorder %s15, 1
      %s169 = scalar_select %p168, %s15, 1
      %s170 = smul.addr %s169, 128
      %s171 = smul.addr %s170, 8
      %s172 = scalar_lea.vmem %s0, %s171
      %p173 = pneg %p36
      %p174 = pneg %p33
      %p175 = pneg %p57
      %p176 = pneg %p54
      %p177 = pneg %p78
      %p178 = pneg %p75
      %p179 = pneg %p99
      %p180 = pneg %p96
      %p181 = pneg %p125
      %p182 = pneg %p122
      %p183 = scmp.lt.s32.totalorder %s15, 1
      %s184 = scalar_select %p183, %s15, 1
      %s185 = smul.addr %s184, 30
      %s186 = smul.addr %s185, 8
      %s187 = scalar_lea.vmem %s4, %s186
      %p188 = scmp.lt.s32.totalorder %s15, 1
      %s189 = scalar_select %p188, %s15, 1
      %s190 = smul.addr %s189, 128
      %s191 = smul.addr %s190, 8
      %s192 = scalar_lea.vmem %s0, %s191
      %p193 = scmp.lt.s32.totalorder %s15, 1
      %s194 = scalar_select %p193, %s15, 1
      %s195 = smul.addr %s194, 30
      %s196 = smul.addr %s195, 8
      %s197 = scalar_lea.vmem %s4, %s196
      %v199 = vld [vmem:[%s3] sm:$0xf]
      %v200 = vld [vmem:[%s3 + $0x4] sm:$0xf]
      %s201 = scalar_lea.vmem %s3, 8
      %v202 = vld [vmem:[%s201] sm:$0xf]
      %v203 = vld [vmem:[%s201 + $0x4] sm:$0xf]
      %v204 = vld [vmem:[%s192] sm:$0xff]
      %v205 = vld [vmem:[%s192 + $0x8] sm:$0xff]
      %v206 = vld [vmem:[%s192 + $0x10] sm:$0xff]
      %v207 = vld [vmem:[%s192 + $0x18] sm:$0xff]
      %v208 = vld [vmem:[%s192 + $0x20] sm:$0xff]
      %v209 = vld [vmem:[%s192 + $0x28] sm:$0xff]
      %v210 = vld [vmem:[%s192 + $0x30] sm:$0xff]
      %v211 = vld [vmem:[%s192 + $0x38] sm:$0xff]
      %v212 = vpack.c.bf16 %v205, %v204
      %v213 = vpack.c.bf16 %v207, %v206
      %v214 = vpack.c.bf16 %v209, %v208
      %v215 = vpack.c.bf16 %v211, %v210
      %v216 = vld [vmem:[%s1] sm:$0xf]
      %v217 = vld [vmem:[%s1 + $0x4] sm:$0xf]
      %v218 = vld [vmem:[%s1 + $0x8] sm:$0xf]
      %v219 = vld [vmem:[%s1 + $0xc] sm:$0x3]
      %v220 = vld [vmem:[%s2] sm:$0x1]
      %v222 = vperm.slane %v220, 0
      %v228 = vunpack.c.l.b16 %v216
      %v229 = vunpack.c.l.b16 %v217
      %v230 = vunpack.c.l.b16 %v218
      %v231 = vunpack.c.l.b16 %v219
      %v232 = vpack.c.b16 %v229, %v228
      %v233 = vpack.c.b16 %v231, %v230
      %vm235 = vcmask 220160
      %v237 = vsel %vm235, %v212, 0
      %v240 = vsel %vm235, %v213, 0
      %v243 = vsel %vm235, %v214, 0
      %v246 = vsel %vm235, %v215, 0
      %vm248 = vcmask 1044480
      %vm249 = vcmask 1045504
      %v250 = vsel %vm248, 4294967295, 65535
      %v251 = vsel %vm249, %v250, 0
      %v253 = vand.u32 %v233, %v251
      %255 = vmatpush.bf16.msra.mxu0 0
      %256 = vmatpush.bf16.msra.mxu0 0
      %257 = vmatpush.bf16.msra.mxu0 0
      %258 = vmatpush.bf16.msra.mxu0 0
      %259 = vmatpush.bf16.msra.mxu0 0
      %260 = vmatpush.bf16.msra.mxu0 0
      %261 = vmatpush.bf16.msra.mxu0 %v253
      %262 = vmatpush.bf16.msra.mxu0 %v232
      %263 = vmatmul.bf16.gmra.mxu0 %v237
      %v264 = vpop.f32.mrf.mxu0
      %v265 = vadd.f32 %v222, %v264
      %v266 = vpop.f32.mrf.mxu0
      %v267 = vadd.f32 %v222, %v266
      %268 = vmatmul.bf16.gmra.mxu0 %v240
      %v269 = vpop.f32.mrf.mxu0
      %v270 = vadd.f32 %v222, %v269
      %v271 = vpop.f32.mrf.mxu0
      %v272 = vadd.f32 %v222, %v271
      %273 = vmatmul.bf16.gmra.mxu0 %v243
      %v274 = vpop.f32.mrf.mxu0
      %v275 = vadd.f32 %v222, %v274
      %v276 = vpop.f32.mrf.mxu0
      %v277 = vadd.f32 %v222, %v276
      %278 = vmatmul.bf16.gmra.mxu0 %v246
      %v279 = vpop.f32.mrf.mxu0
      %v280 = vadd.f32 %v222, %v279
      %v281 = vpop.f32.mrf.mxu0
      %v282 = vadd.f32 %v222, %v281
      %283 = vdwg.mxu0
      %v284 = vmax.f32 %v265, 0.0
      %v285 = vmax.f32 %v267, 0.0
      %v286 = vmax.f32 %v270, 0.0
      %v287 = vmax.f32 %v272, 0.0
      %v288 = vmax.f32 %v275, 0.0
      %v289 = vmax.f32 %v277, 0.0
      %v290 = vmax.f32 %v280, 0.0
      %v291 = vmax.f32 %v282, 0.0
      %v292 = vmax.f32 %v284, %v288
      %v293 = vmax.f32 %v285, %v289
      %v294 = vmax.f32 %v286, %v290
      %v295 = vmax.f32 %v287, %v291
      %v296 = vpack.c.bf16 %v293, %v292
      %v297 = vpack.c.bf16 %v295, %v294
      %v300 = vunpack.c.l.b16 %v199
      %v301 = vunpack.c.l.b16 %v200
      %v302 = vpack.c.b16 %v301, %v300
      %vm303 = vcmask 261120
      %v305 = vsel %vm303, %v302, 0
      %307 = vmatpush.bf16.msra.mxu0 0
      %308 = vmatpush.bf16.msra.mxu0 0
      %309 = vmatpush.bf16.msra.mxu0 0
      %310 = vmatpush.bf16.msra.mxu0 0
      %311 = vmatpush.bf16.msra.mxu0 0
      %312 = vmatpush.bf16.msra.mxu0 0
      %313 = vmatpush.bf16.msra.mxu0 %v297
      %314 = vmatpush.bf16.msra.mxu0 %v296
      %315 = vmatmul.bf16.gmra.mxu0 %v305
      %v316 = vpop.f32.mrf.mxu0
      %v317 = vadd.f32 0.0, %v316
      %v318 = vpop.f32.mrf.mxu0
      %v319 = vadd.f32 0.0, %v318
      %320 = vdwg.mxu0
      %v323 = vunpack.c.l.b16 %v202
      %v324 = vunpack.c.l.b16 %v203
      %v325 = vpack.c.b16 %v324, %v323
      %v327 = vsel %vm303, %v325, 0
      %329 = vmatpush.bf16.msra.mxu0 0
      %330 = vmatpush.bf16.msra.mxu0 0
      %331 = vmatpush.bf16.msra.mxu0 0
      %332 = vmatpush.bf16.msra.mxu0 0
      %333 = vmatpush.bf16.msra.mxu0 0
      %334 = vmatpush.bf16.msra.mxu0 0
      %335 = vmatpush.bf16.msra.mxu0 %v297
      %336 = vmatpush.bf16.msra.mxu0 %v296
      %337 = vmatmul.bf16.gmra.mxu0 %v327
      %v338 = vpop.f32.mrf.mxu0
      %v339 = vadd.f32 0.0, %v338
      %v340 = vpop.f32.mrf.mxu0
      %v341 = vadd.f32 0.0, %v340
      %342 = vdwg.mxu0
      %v343 = vmax.f32 %v317, %v339
      %v344 = vmax.f32 %v319, %v341
      %345 = vst.msk [vmem:[%s197] sm:$0xff] %vm303, %v343
      %vm346 = vcmask 260096
      %347 = vst.msk [vmem:[%s197 + $0x8] sm:$0x7f] %vm346, %v344
      %v348 = vld [vmem:[%s192 + $0x40] sm:$0xff]
      %v349 = vld [vmem:[%s192 + $0x48] sm:$0xff]
      %v350 = vld [vmem:[%s192 + $0x50] sm:$0xff]
      %v351 = vld [vmem:[%s192 + $0x58] sm:$0xff]
      %v352 = vld [vmem:[%s192 + $0x60] sm:$0xff]
      %v353 = vld [vmem:[%s192 + $0x68] sm:$0xff]
      %v354 = vld [vmem:[%s192 + $0x70] sm:$0xff]
      %v355 = vld [vmem:[%s192 + $0x78] sm:$0xff]
      %v356 = vpack.c.bf16 %v349, %v348
      %v357 = vpack.c.bf16 %v351, %v350
      %v358 = vpack.c.bf16 %v353, %v352
      %v359 = vpack.c.bf16 %v355, %v354
      %v360 = vld [vmem:[%s1] sm:$0xf]
      %v361 = vld [vmem:[%s1 + $0x4] sm:$0xf]
      %v362 = vld [vmem:[%s1 + $0x8] sm:$0xf]
      %v363 = vld [vmem:[%s1 + $0xc] sm:$0x3]
      %v364 = vld [vmem:[%s2] sm:$0x1]
      %v366 = vperm.slane %v364, 0
      %v372 = vunpack.c.l.b16 %v360
      %v373 = vunpack.c.l.b16 %v361
      %v374 = vunpack.c.l.b16 %v362
      %v375 = vunpack.c.l.b16 %v363
      %v376 = vpack.c.b16 %v373, %v372
      %v377 = vpack.c.b16 %v375, %v374
      %v380 = vsel %vm235, %v356, 0
      %v383 = vsel %vm235, %v357, 0
      %v386 = vsel %vm235, %v358, 0
      %v389 = vsel %vm235, %v359, 0
      %v392 = vand.u32 %v377, %v251
      %394 = vmatpush.bf16.msra.mxu0 0
      %395 = vmatpush.bf16.msra.mxu0 0
      %396 = vmatpush.bf16.msra.mxu0 0
      %397 = vmatpush.bf16.msra.mxu0 0
      %398 = vmatpush.bf16.msra.mxu0 0
      %399 = vmatpush.bf16.msra.mxu0 0
      %400 = vmatpush.bf16.msra.mxu0 %v392
      %401 = vmatpush.bf16.msra.mxu0 %v376
      %402 = vmatmul.bf16.gmra.mxu0 %v380
      %v403 = vpop.f32.mrf.mxu0
      %v404 = vadd.f32 %v366, %v403
      %v405 = vpop.f32.mrf.mxu0
      %v406 = vadd.f32 %v366, %v405
      %407 = vmatmul.bf16.gmra.mxu0 %v383
      %v408 = vpop.f32.mrf.mxu0
      %v409 = vadd.f32 %v366, %v408
      %v410 = vpop.f32.mrf.mxu0
      %v411 = vadd.f32 %v366, %v410
      %412 = vmatmul.bf16.gmra.mxu0 %v386
      %v413 = vpop.f32.mrf.mxu0
      %v414 = vadd.f32 %v366, %v413
      %v415 = vpop.f32.mrf.mxu0
      %v416 = vadd.f32 %v366, %v415
      %417 = vmatmul.bf16.gmra.mxu0 %v389
      %v418 = vpop.f32.mrf.mxu0
      %v419 = vadd.f32 %v366, %v418
      %v420 = vpop.f32.mrf.mxu0
      %v421 = vadd.f32 %v366, %v420
      %422 = vdwg.mxu0
      %v423 = vmax.f32 %v404, 0.0
      %v424 = vmax.f32 %v406, 0.0
      %v425 = vmax.f32 %v409, 0.0
      %v426 = vmax.f32 %v411, 0.0
      %v427 = vmax.f32 %v414, 0.0
      %v428 = vmax.f32 %v416, 0.0
      %v429 = vmax.f32 %v419, 0.0
      %v430 = vmax.f32 %v421, 0.0
      %v431 = vmax.f32 %v423, %v427
      %v432 = vmax.f32 %v424, %v428
      %v433 = vmax.f32 %v425, %v429
      %v434 = vmax.f32 %v426, %v430
      %v435 = vpack.c.bf16 %v432, %v431
      %v436 = vpack.c.bf16 %v434, %v433
      %437 = vmatpush.bf16.msra.mxu0 0
      %438 = vmatpush.bf16.msra.mxu0 0
      %439 = vmatpush.bf16.msra.mxu0 0
      %440 = vmatpush.bf16.msra.mxu0 0
      %441 = vmatpush.bf16.msra.mxu0 0
      %442 = vmatpush.bf16.msra.mxu0 0
      %443 = vmatpush.bf16.msra.mxu0 %v436
      %444 = vmatpush.bf16.msra.mxu0 %v435
      %445 = vmatmul.bf16.gmra.mxu0 %v305
      %v446 = vpop.f32.mrf.mxu0
      %v447 = vadd.f32 0.0, %v446
      %v448 = vpop.f32.mrf.mxu0
      %v449 = vadd.f32 0.0, %v448
      %450 = vdwg.mxu0
      %451 = vmatpush.bf16.msra.mxu0 0
      %452 = vmatpush.bf16.msra.mxu0 0
      %453 = vmatpush.bf16.msra.mxu0 0
      %454 = vmatpush.bf16.msra.mxu0 0
      %455 = vmatpush.bf16.msra.mxu0 0
      %456 = vmatpush.bf16.msra.mxu0 0
      %457 = vmatpush.bf16.msra.mxu0 %v436
      %458 = vmatpush.bf16.msra.mxu0 %v435
      %459 = vmatmul.bf16.gmra.mxu0 %v327
      %v460 = vpop.f32.mrf.mxu0
      %v461 = vadd.f32 0.0, %v460
      %v462 = vpop.f32.mrf.mxu0
      %v463 = vadd.f32 0.0, %v462
      %464 = vdwg.mxu0
      %v465 = vmax.f32 %v447, %v461
      %v466 = vmax.f32 %v449, %v463
      %s467 = scalar_lea.vmem %s197, 16
      %468 = vst.msk [vmem:[%s467] sm:$0xff] %vm303, %v465
      %469 = vst.msk [vmem:[%s467 + $0x8] sm:$0x7f] %vm346, %v466
      %v470 = vld [vmem:[%s192 + $0x80] sm:$0xff]
      %v471 = vld [vmem:[%s192 + $0x88] sm:$0xff]
      %v472 = vld [vmem:[%s192 + $0x90] sm:$0xff]
      %v473 = vld [vmem:[%s192 + $0x98] sm:$0xff]
      %v474 = vld [vmem:[%s192 + $0xa0] sm:$0xff]
      %v475 = vld [vmem:[%s192 + $0xa8] sm:$0xff]
      %v476 = vld [vmem:[%s192 + $0xb0] sm:$0xff]
      %v477 = vld [vmem:[%s192 + $0xb8] sm:$0xff]
      %v478 = vpack.c.bf16 %v471, %v470
      %v479 = vpack.c.bf16 %v473, %v472
      %v480 = vpack.c.bf16 %v475, %v474
      %v481 = vpack.c.bf16 %v477, %v476
      %v482 = vld [vmem:[%s1] sm:$0xf]
      %v483 = vld [vmem:[%s1 + $0x4] sm:$0xf]
      %v484 = vld [vmem:[%s1 + $0x8] sm:$0xf]
      %v485 = vld [vmem:[%s1 + $0xc] sm:$0x3]
      %v486 = vld [vmem:[%s2] sm:$0x1]
      %v488 = vperm.slane %v486, 0
      %v494 = vunpack.c.l.b16 %v482
      %v495 = vunpack.c.l.b16 %v483
      %v496 = vunpack.c.l.b16 %v484
      %v497 = vunpack.c.l.b16 %v485
      %v498 = vpack.c.b16 %v495, %v494
      %v499 = vpack.c.b16 %v497, %v496
      %v502 = vsel %vm235, %v478, 0
      %v505 = vsel %vm235, %v479, 0
      %v508 = vsel %vm235, %v480, 0
      %v511 = vsel %vm235, %v481, 0
      %v514 = vand.u32 %v499, %v251
      %516 = vmatpush.bf16.msra.mxu0 0
      %517 = vmatpush.bf16.msra.mxu0 0
      %518 = vmatpush.bf16.msra.mxu0 0
      %519 = vmatpush.bf16.msra.mxu0 0
      %520 = vmatpush.bf16.msra.mxu0 0
      %521 = vmatpush.bf16.msra.mxu0 0
      %522 = vmatpush.bf16.msra.mxu0 %v514
      %523 = vmatpush.bf16.msra.mxu0 %v498
      %524 = vmatmul.bf16.gmra.mxu0 %v502
      %v525 = vpop.f32.mrf.mxu0
      %v526 = vadd.f32 %v488, %v525
      %v527 = vpop.f32.mrf.mxu0
      %v528 = vadd.f32 %v488, %v527
      %529 = vmatmul.bf16.gmra.mxu0 %v505
      %v530 = vpop.f32.mrf.mxu0
      %v531 = vadd.f32 %v488, %v530
      %v532 = vpop.f32.mrf.mxu0
      %v533 = vadd.f32 %v488, %v532
      %534 = vmatmul.bf16.gmra.mxu0 %v508
      %v535 = vpop.f32.mrf.mxu0
      %v536 = vadd.f32 %v488, %v535
      %v537 = vpop.f32.mrf.mxu0
      %v538 = vadd.f32 %v488, %v537
      %539 = vmatmul.bf16.gmra.mxu0 %v511
      %v540 = vpop.f32.mrf.mxu0
      %v541 = vadd.f32 %v488, %v540
      %v542 = vpop.f32.mrf.mxu0
      %v543 = vadd.f32 %v488, %v542
      %544 = vdwg.mxu0
      %v545 = vmax.f32 %v526, 0.0
      %v546 = vmax.f32 %v528, 0.0
      %v547 = vmax.f32 %v531, 0.0
      %v548 = vmax.f32 %v533, 0.0
      %v549 = vmax.f32 %v536, 0.0
      %v550 = vmax.f32 %v538, 0.0
      %v551 = vmax.f32 %v541, 0.0
      %v552 = vmax.f32 %v543, 0.0
      %v553 = vmax.f32 %v545, %v549
      %v554 = vmax.f32 %v546, %v550
      %v555 = vmax.f32 %v547, %v551
      %v556 = vmax.f32 %v548, %v552
      %v557 = vpack.c.bf16 %v554, %v553
      %v558 = vpack.c.bf16 %v556, %v555
      %559 = vmatpush.bf16.msra.mxu0 0
      %560 = vmatpush.bf16.msra.mxu0 0
      %561 = vmatpush.bf16.msra.mxu0 0
      %562 = vmatpush.bf16.msra.mxu0 0
      %563 = vmatpush.bf16.msra.mxu0 0
      %564 = vmatpush.bf16.msra.mxu0 0
      %565 = vmatpush.bf16.msra.mxu0 %v558
      %566 = vmatpush.bf16.msra.mxu0 %v557
      %567 = vmatmul.bf16.gmra.mxu0 %v305
      %v568 = vpop.f32.mrf.mxu0
      %v569 = vadd.f32 0.0, %v568
      %v570 = vpop.f32.mrf.mxu0
      %v571 = vadd.f32 0.0, %v570
      %572 = vdwg.mxu0
      %573 = vmatpush.bf16.msra.mxu0 0
      %574 = vmatpush.bf16.msra.mxu0 0
      %575 = vmatpush.bf16.msra.mxu0 0
      %576 = vmatpush.bf16.msra.mxu0 0
      %577 = vmatpush.bf16.msra.mxu0 0
      %578 = vmatpush.bf16.msra.mxu0 0
      %579 = vmatpush.bf16.msra.mxu0 %v558
      %580 = vmatpush.bf16.msra.mxu0 %v557
      %581 = vmatmul.bf16.gmra.mxu0 %v327
      %v582 = vpop.f32.mrf.mxu0
      %v583 = vadd.f32 0.0, %v582
      %v584 = vpop.f32.mrf.mxu0
      %v585 = vadd.f32 0.0, %v584
      %586 = vdwg.mxu0
      %v587 = vmax.f32 %v569, %v583
      %v588 = vmax.f32 %v571, %v585
      %s589 = scalar_lea.vmem %s197, 32
      %590 = vst.msk [vmem:[%s589] sm:$0xff] %vm303, %v587
      %591 = vst.msk [vmem:[%s589 + $0x8] sm:$0x7f] %vm346, %v588
      %v592 = vld [vmem:[%s192 + $0xc0] sm:$0xff]
      %v593 = vld [vmem:[%s192 + $0xc8] sm:$0xff]
      %v594 = vld [vmem:[%s192 + $0xd0] sm:$0xff]
      %v595 = vld [vmem:[%s192 + $0xd8] sm:$0xff]
      %v596 = vld [vmem:[%s192 + $0xe0] sm:$0xff]
      %v597 = vld [vmem:[%s192 + $0xe8] sm:$0xff]
      %v598 = vld [vmem:[%s192 + $0xf0] sm:$0xff]
      %v599 = vld [vmem:[%s192 + $0xf8] sm:$0xff]
      %v600 = vpack.c.bf16 %v593, %v592
      %v601 = vpack.c.bf16 %v595, %v594
      %v602 = vpack.c.bf16 %v597, %v596
      %v603 = vpack.c.bf16 %v599, %v598
      %v604 = vld [vmem:[%s1] sm:$0xf]
      %v605 = vld [vmem:[%s1 + $0x4] sm:$0xf]
      %v606 = vld [vmem:[%s1 + $0x8] sm:$0xf]
      %v607 = vld [vmem:[%s1 + $0xc] sm:$0x3]
      %v608 = vld [vmem:[%s2] sm:$0x1]
      %v610 = vperm.slane %v608, 0
      %v616 = vunpack.c.l.b16 %v604
      %v617 = vunpack.c.l.b16 %v605
      %v618 = vunpack.c.l.b16 %v606
      %v619 = vunpack.c.l.b16 %v607
      %v620 = vpack.c.b16 %v617, %v616
      %v621 = vpack.c.b16 %v619, %v618
      %v624 = vsel %vm235, %v600, 0
      %v627 = vsel %vm235, %v601, 0
      %v630 = vsel %vm235, %v602, 0
      %v633 = vsel %vm235, %v603, 0
      %v636 = vand.u32 %v621, %v251
      %638 = vmatpush.bf16.msra.mxu0 0
      %639 = vmatpush.bf16.msra.mxu0 0
      %640 = vmatpush.bf16.msra.mxu0 0
      %641 = vmatpush.bf16.msra.mxu0 0
      %642 = vmatpush.bf16.msra.mxu0 0
      %643 = vmatpush.bf16.msra.mxu0 0
      %644 = vmatpush.bf16.msra.mxu0 %v636
      %645 = vmatpush.bf16.msra.mxu0 %v620
      %646 = vmatmul.bf16.gmra.mxu0 %v624
      %v647 = vpop.f32.mrf.mxu0
      %v648 = vadd.f32 %v610, %v647
      %v649 = vpop.f32.mrf.mxu0
      %v650 = vadd.f32 %v610, %v649
      %651 = vmatmul.bf16.gmra.mxu0 %v627
      %v652 = vpop.f32.mrf.mxu0
      %v653 = vadd.f32 %v610, %v652
      %v654 = vpop.f32.mrf.mxu0
      %v655 = vadd.f32 %v610, %v654
      %656 = vmatmul.bf16.gmra.mxu0 %v630
      %v657 = vpop.f32.mrf.mxu0
      %v658 = vadd.f32 %v610, %v657
      %v659 = vpop.f32.mrf.mxu0
      %v660 = vadd.f32 %v610, %v659
      %661 = vmatmul.bf16.gmra.mxu0 %v633
      %v662 = vpop.f32.mrf.mxu0
      %v663 = vadd.f32 %v610, %v662
      %v664 = vpop.f32.mrf.mxu0
      %v665 = vadd.f32 %v610, %v664
      %666 = vdwg.mxu0
      %v667 = vmax.f32 %v648, 0.0
      %v668 = vmax.f32 %v650, 0.0
      %v669 = vmax.f32 %v653, 0.0
      %v670 = vmax.f32 %v655, 0.0
      %v671 = vmax.f32 %v658, 0.0
      %v672 = vmax.f32 %v660, 0.0
      %v673 = vmax.f32 %v663, 0.0
      %v674 = vmax.f32 %v665, 0.0
      %v675 = vmax.f32 %v667, %v671
      %v676 = vmax.f32 %v668, %v672
      %v677 = vmax.f32 %v669, %v673
      %v678 = vmax.f32 %v670, %v674
      %v679 = vpack.c.bf16 %v676, %v675
      %v680 = vpack.c.bf16 %v678, %v677
      %681 = vmatpush.bf16.msra.mxu0 0
      %682 = vmatpush.bf16.msra.mxu0 0
      %683 = vmatpush.bf16.msra.mxu0 0
      %684 = vmatpush.bf16.msra.mxu0 0
      %685 = vmatpush.bf16.msra.mxu0 0
      %686 = vmatpush.bf16.msra.mxu0 0
      %687 = vmatpush.bf16.msra.mxu0 %v680
      %688 = vmatpush.bf16.msra.mxu0 %v679
      %689 = vmatmul.bf16.gmra.mxu0 %v305
      %v690 = vpop.f32.mrf.mxu0
      %v691 = vadd.f32 0.0, %v690
      %v692 = vpop.f32.mrf.mxu0
      %v693 = vadd.f32 0.0, %v692
      %694 = vdwg.mxu0
      %695 = vmatpush.bf16.msra.mxu0 0
      %696 = vmatpush.bf16.msra.mxu0 0
      %697 = vmatpush.bf16.msra.mxu0 0
      %698 = vmatpush.bf16.msra.mxu0 0
      %699 = vmatpush.bf16.msra.mxu0 0
      %700 = vmatpush.bf16.msra.mxu0 0
      %701 = vmatpush.bf16.msra.mxu0 %v680
      %702 = vmatpush.bf16.msra.mxu0 %v679
      %703 = vmatmul.bf16.gmra.mxu0 %v327
      %v704 = vpop.f32.mrf.mxu0
      %v705 = vadd.f32 0.0, %v704
      %v706 = vpop.f32.mrf.mxu0
      %v707 = vadd.f32 0.0, %v706
      %708 = vdwg.mxu0
      %v709 = vmax.f32 %v691, %v705
      %v710 = vmax.f32 %v693, %v707
      %s711 = scalar_lea.vmem %s197, 48
      %712 = vst.msk [vmem:[%s711] sm:$0xff] %vm303, %v709
      %713 = vst.msk [vmem:[%s711 + $0x8] sm:$0x7f] %vm346, %v710
      %v714 = vld [vmem:[%s192 + $0x100] sm:$0xff]
      %v715 = vld [vmem:[%s192 + $0x108] sm:$0xff]
      %v716 = vld [vmem:[%s192 + $0x110] sm:$0xff]
      %v717 = vld [vmem:[%s192 + $0x118] sm:$0xff]
      %v718 = vld [vmem:[%s192 + $0x120] sm:$0xff]
      %v719 = vld [vmem:[%s192 + $0x128] sm:$0xff]
      %v720 = vld [vmem:[%s192 + $0x130] sm:$0xff]
      %v721 = vld [vmem:[%s192 + $0x138] sm:$0xff]
      %v722 = vpack.c.bf16 %v715, %v714
      %v723 = vpack.c.bf16 %v717, %v716
      %v724 = vpack.c.bf16 %v719, %v718
      %v725 = vpack.c.bf16 %v721, %v720
      %v726 = vld [vmem:[%s1] sm:$0xf]
      %v727 = vld [vmem:[%s1 + $0x4] sm:$0xf]
      %v728 = vld [vmem:[%s1 + $0x8] sm:$0xf]
      %v729 = vld [vmem:[%s1 + $0xc] sm:$0x3]
      %v730 = vld [vmem:[%s2] sm:$0x1]
      %v732 = vperm.slane %v730, 0
      %v738 = vunpack.c.l.b16 %v726
      %v739 = vunpack.c.l.b16 %v727
      %v740 = vunpack.c.l.b16 %v728
      %v741 = vunpack.c.l.b16 %v729
      %v742 = vpack.c.b16 %v739, %v738
      %v743 = vpack.c.b16 %v741, %v740
      %v746 = vsel %vm235, %v722, 0
      %v749 = vsel %vm235, %v723, 0
      %v752 = vsel %vm235, %v724, 0
      %v755 = vsel %vm235, %v725, 0
      %v758 = vand.u32 %v743, %v251
      %760 = vmatpush.bf16.msra.mxu0 0
      %761 = vmatpush.bf16.msra.mxu0 0
      %762 = vmatpush.bf16.msra.mxu0 0
      %763 = vmatpush.bf16.msra.mxu0 0
      %764 = vmatpush.bf16.msra.mxu0 0
      %765 = vmatpush.bf16.msra.mxu0 0
      %766 = vmatpush.bf16.msra.mxu0 %v758
      %767 = vmatpush.bf16.msra.mxu0 %v742
      %768 = vmatmul.bf16.gmra.mxu0 %v746
      %v769 = vpop.f32.mrf.mxu0
      %v770 = vadd.f32 %v732, %v769
      %v771 = vpop.f32.mrf.mxu0
      %v772 = vadd.f32 %v732, %v771
      %773 = vmatmul.bf16.gmra.mxu0 %v749
      %v774 = vpop.f32.mrf.mxu0
      %v775 = vadd.f32 %v732, %v774
      %v776 = vpop.f32.mrf.mxu0
      %v777 = vadd.f32 %v732, %v776
      %778 = vmatmul.bf16.gmra.mxu0 %v752
      %v779 = vpop.f32.mrf.mxu0
      %v780 = vadd.f32 %v732, %v779
      %v781 = vpop.f32.mrf.mxu0
      %v782 = vadd.f32 %v732, %v781
      %783 = vmatmul.bf16.gmra.mxu0 %v755
      %v784 = vpop.f32.mrf.mxu0
      %v785 = vadd.f32 %v732, %v784
      %v786 = vpop.f32.mrf.mxu0
      %v787 = vadd.f32 %v732, %v786
      %788 = vdwg.mxu0
      %v789 = vmax.f32 %v770, 0.0
      %v790 = vmax.f32 %v772, 0.0
      %v791 = vmax.f32 %v775, 0.0
      %v792 = vmax.f32 %v777, 0.0
      %v793 = vmax.f32 %v780, 0.0
      %v794 = vmax.f32 %v782, 0.0
      %v795 = vmax.f32 %v785, 0.0
      %v796 = vmax.f32 %v787, 0.0
      %v797 = vmax.f32 %v789, %v793
      %v798 = vmax.f32 %v790, %v794
      %v799 = vmax.f32 %v791, %v795
      %v800 = vmax.f32 %v792, %v796
      %v801 = vpack.c.bf16 %v798, %v797
      %v802 = vpack.c.bf16 %v800, %v799
      %803 = vmatpush.bf16.msra.mxu0 0
      %804 = vmatpush.bf16.msra.mxu0 0
      %805 = vmatpush.bf16.msra.mxu0 0
      %806 = vmatpush.bf16.msra.mxu0 0
      %807 = vmatpush.bf16.msra.mxu0 0
      %808 = vmatpush.bf16.msra.mxu0 0
      %809 = vmatpush.bf16.msra.mxu0 %v802
      %810 = vmatpush.bf16.msra.mxu0 %v801
      %811 = vmatmul.bf16.gmra.mxu0 %v305
      %v812 = vpop.f32.mrf.mxu0
      %v813 = vadd.f32 0.0, %v812
      %v814 = vpop.f32.mrf.mxu0
      %v815 = vadd.f32 0.0, %v814
      %816 = vdwg.mxu0
      %817 = vmatpush.bf16.msra.mxu0 0
      %818 = vmatpush.bf16.msra.mxu0 0
      %819 = vmatpush.bf16.msra.mxu0 0
      %820 = vmatpush.bf16.msra.mxu0 0
      %821 = vmatpush.bf16.msra.mxu0 0
      %822 = vmatpush.bf16.msra.mxu0 0
      %823 = vmatpush.bf16.msra.mxu0 %v802
      %824 = vmatpush.bf16.msra.mxu0 %v801
      %825 = vmatmul.bf16.gmra.mxu0 %v327
      %v826 = vpop.f32.mrf.mxu0
      %v827 = vadd.f32 0.0, %v826
      %v828 = vpop.f32.mrf.mxu0
      %v829 = vadd.f32 0.0, %v828
      %830 = vdwg.mxu0
      %v831 = vmax.f32 %v813, %v827
      %v832 = vmax.f32 %v815, %v829
      %s833 = scalar_lea.vmem %s197, 64
      %834 = vst.msk [vmem:[%s833] sm:$0xff] %vm303, %v831
      %835 = vst.msk [vmem:[%s833 + $0x8] sm:$0x7f] %vm346, %v832
      %v836 = vld [vmem:[%s192 + $0x140] sm:$0xff]
      %v837 = vld [vmem:[%s192 + $0x148] sm:$0xff]
      %v838 = vld [vmem:[%s192 + $0x150] sm:$0xff]
      %v839 = vld [vmem:[%s192 + $0x158] sm:$0xff]
      %v840 = vld [vmem:[%s192 + $0x160] sm:$0xff]
      %v841 = vld [vmem:[%s192 + $0x168] sm:$0xff]
      %v842 = vld [vmem:[%s192 + $0x170] sm:$0xff]
      %v843 = vld [vmem:[%s192 + $0x178] sm:$0xff]
      %v844 = vpack.c.bf16 %v837, %v836
      %v845 = vpack.c.bf16 %v839, %v838
      %v846 = vpack.c.bf16 %v841, %v840
      %v847 = vpack.c.bf16 %v843, %v842
      %v848 = vld [vmem:[%s1] sm:$0xf]
      %v849 = vld [vmem:[%s1 + $0x4] sm:$0xf]
      %v850 = vld [vmem:[%s1 + $0x8] sm:$0xf]
      %v851 = vld [vmem:[%s1 + $0xc] sm:$0x3]
      %v852 = vld [vmem:[%s2] sm:$0x1]
      %v854 = vperm.slane %v852, 0
      %v860 = vunpack.c.l.b16 %v848
      %v861 = vunpack.c.l.b16 %v849
      %v862 = vunpack.c.l.b16 %v850
      %v863 = vunpack.c.l.b16 %v851
      %v864 = vpack.c.b16 %v861, %v860
      %v865 = vpack.c.b16 %v863, %v862
      %v868 = vsel %vm235, %v844, 0
      %v871 = vsel %vm235, %v845, 0
      %v874 = vsel %vm235, %v846, 0
      %v877 = vsel %vm235, %v847, 0
      %v880 = vand.u32 %v865, %v251
      %882 = vmatpush.bf16.msra.mxu0 0
      %883 = vmatpush.bf16.msra.mxu0 0
      %884 = vmatpush.bf16.msra.mxu0 0
      %885 = vmatpush.bf16.msra.mxu0 0
      %886 = vmatpush.bf16.msra.mxu0 0
      %887 = vmatpush.bf16.msra.mxu0 0
      %888 = vmatpush.bf16.msra.mxu0 %v880
      %889 = vmatpush.bf16.msra.mxu0 %v864
      %890 = vmatmul.bf16.gmra.mxu0 %v868
      %v891 = vpop.f32.mrf.mxu0
      %v892 = vadd.f32 %v854, %v891
      %v893 = vpop.f32.mrf.mxu0
      %v894 = vadd.f32 %v854, %v893
      %895 = vmatmul.bf16.gmra.mxu0 %v871
      %v896 = vpop.f32.mrf.mxu0
      %v897 = vadd.f32 %v854, %v896
      %v898 = vpop.f32.mrf.mxu0
      %v899 = vadd.f32 %v854, %v898
      %900 = vmatmul.bf16.gmra.mxu0 %v874
      %v901 = vpop.f32.mrf.mxu0
      %v902 = vadd.f32 %v854, %v901
      %v903 = vpop.f32.mrf.mxu0
      %v904 = vadd.f32 %v854, %v903
      %905 = vmatmul.bf16.gmra.mxu0 %v877
      %v906 = vpop.f32.mrf.mxu0
      %v907 = vadd.f32 %v854, %v906
      %v908 = vpop.f32.mrf.mxu0
      %v909 = vadd.f32 %v854, %v908
      %910 = vdwg.mxu0
      %v911 = vmax.f32 %v892, 0.0
      %v912 = vmax.f32 %v894, 0.0
      %v913 = vmax.f32 %v897, 0.0
      %v914 = vmax.f32 %v899, 0.0
      %v915 = vmax.f32 %v902, 0.0
      %v916 = vmax.f32 %v904, 0.0
      %v917 = vmax.f32 %v907, 0.0
      %v918 = vmax.f32 %v909, 0.0
      %v919 = vmax.f32 %v911, %v915
      %v920 = vmax.f32 %v912, %v916
      %v921 = vmax.f32 %v913, %v917
      %v922 = vmax.f32 %v914, %v918
      %v923 = vpack.c.bf16 %v920, %v919
      %v924 = vpack.c.bf16 %v922, %v921
      %925 = vmatpush.bf16.msra.mxu0 0
      %926 = vmatpush.bf16.msra.mxu0 0
      %927 = vmatpush.bf16.msra.mxu0 0
      %928 = vmatpush.bf16.msra.mxu0 0
      %929 = vmatpush.bf16.msra.mxu0 0
      %930 = vmatpush.bf16.msra.mxu0 0
      %931 = vmatpush.bf16.msra.mxu0 %v924
      %932 = vmatpush.bf16.msra.mxu0 %v923
      %933 = vmatmul.bf16.gmra.mxu0 %v305
      %v934 = vpop.f32.mrf.mxu0
      %v935 = vadd.f32 0.0, %v934
      %v936 = vpop.f32.mrf.mxu0
      %v937 = vadd.f32 0.0, %v936
      %938 = vdwg.mxu0
      %939 = vmatpush.bf16.msra.mxu0 0
      %940 = vmatpush.bf16.msra.mxu0 0
      %941 = vmatpush.bf16.msra.mxu0 0
      %942 = vmatpush.bf16.msra.mxu0 0
      %943 = vmatpush.bf16.msra.mxu0 0
      %944 = vmatpush.bf16.msra.mxu0 0
      %945 = vmatpush.bf16.msra.mxu0 %v924
      %946 = vmatpush.bf16.msra.mxu0 %v923
      %947 = vmatmul.bf16.gmra.mxu0 %v327
      %v948 = vpop.f32.mrf.mxu0
      %v949 = vadd.f32 0.0, %v948
      %v950 = vpop.f32.mrf.mxu0
      %v951 = vadd.f32 0.0, %v950
      %952 = vdwg.mxu0
      %v953 = vmax.f32 %v935, %v949
      %v954 = vmax.f32 %v937, %v951
      %s955 = scalar_lea.vmem %s197, 80
      %956 = vst.msk [vmem:[%s955] sm:$0xff] %vm303, %v953
      %957 = vst.msk [vmem:[%s955 + $0x8] sm:$0x7f] %vm346, %v954
      %v958 = vld [vmem:[%s192 + $0x180] sm:$0xff]
      %v959 = vld [vmem:[%s192 + $0x188] sm:$0xff]
      %v960 = vld [vmem:[%s192 + $0x190] sm:$0xff]
      %v961 = vld [vmem:[%s192 + $0x198] sm:$0xff]
      %v962 = vld [vmem:[%s192 + $0x1a0] sm:$0xff]
      %v963 = vld [vmem:[%s192 + $0x1a8] sm:$0xff]
      %v964 = vld [vmem:[%s192 + $0x1b0] sm:$0xff]
      %v965 = vld [vmem:[%s192 + $0x1b8] sm:$0xff]
      %v966 = vpack.c.bf16 %v959, %v958
      %v967 = vpack.c.bf16 %v961, %v960
      %v968 = vpack.c.bf16 %v963, %v962
      %v969 = vpack.c.bf16 %v965, %v964
      %v970 = vld [vmem:[%s1] sm:$0xf]
      %v971 = vld [vmem:[%s1 + $0x4] sm:$0xf]
      %v972 = vld [vmem:[%s1 + $0x8] sm:$0xf]
      %v973 = vld [vmem:[%s1 + $0xc] sm:$0x3]
      %v974 = vld [vmem:[%s2] sm:$0x1]
      %v976 = vperm.slane %v974, 0
      %v982 = vunpack.c.l.b16 %v970
      %v983 = vunpack.c.l.b16 %v971
      %v984 = vunpack.c.l.b16 %v972
      %v985 = vunpack.c.l.b16 %v973
      %v986 = vpack.c.b16 %v983, %v982
      %v987 = vpack.c.b16 %v985, %v984
      %v990 = vsel %vm235, %v966, 0
      %v993 = vsel %vm235, %v967, 0
      %v996 = vsel %vm235, %v968, 0
      %v999 = vsel %vm235, %v969, 0
      %v1002 = vand.u32 %v987, %v251
      %1004 = vmatpush.bf16.msra.mxu0 0
      %1005 = vmatpush.bf16.msra.mxu0 0
      %1006 = vmatpush.bf16.msra.mxu0 0
      %1007 = vmatpush.bf16.msra.mxu0 0
      %1008 = vmatpush.bf16.msra.mxu0 0
      %1009 = vmatpush.bf16.msra.mxu0 0
      %1010 = vmatpush.bf16.msra.mxu0 %v1002
      %1011 = vmatpush.bf16.msra.mxu0 %v986
      %1012 = vmatmul.bf16.gmra.mxu0 %v990
      %v1013 = vpop.f32.mrf.mxu0
      %v1014 = vadd.f32 %v976, %v1013
      %v1015 = vpop.f32.mrf.mxu0
      %v1016 = vadd.f32 %v976, %v1015
      %1017 = vmatmul.bf16.gmra.mxu0 %v993
      %v1018 = vpop.f32.mrf.mxu0
      %v1019 = vadd.f32 %v976, %v1018
      %v1020 = vpop.f32.mrf.mxu0
      %v1021 = vadd.f32 %v976, %v1020
      %1022 = vmatmul.bf16.gmra.mxu0 %v996
      %v1023 = vpop.f32.mrf.mxu0
      %v1024 = vadd.f32 %v976, %v1023
      %v1025 = vpop.f32.mrf.mxu0
      %v1026 = vadd.f32 %v976, %v1025
      %1027 = vmatmul.bf16.gmra.mxu0 %v999
      %v1028 = vpop.f32.mrf.mxu0
      %v1029 = vadd.f32 %v976, %v1028
      %v1030 = vpop.f32.mrf.mxu0
      %v1031 = vadd.f32 %v976, %v1030
      %1032 = vdwg.mxu0
      %v1033 = vmax.f32 %v1014, 0.0
      %v1034 = vmax.f32 %v1016, 0.0
      %v1035 = vmax.f32 %v1019, 0.0
      %v1036 = vmax.f32 %v1021, 0.0
      %v1037 = vmax.f32 %v1024, 0.0
      %v1038 = vmax.f32 %v1026, 0.0
      %v1039 = vmax.f32 %v1029, 0.0
      %v1040 = vmax.f32 %v1031, 0.0
      %v1041 = vmax.f32 %v1033, %v1037
      %v1042 = vmax.f32 %v1034, %v1038
      %v1043 = vmax.f32 %v1035, %v1039
      %v1044 = vmax.f32 %v1036, %v1040
      %v1045 = vpack.c.bf16 %v1042, %v1041
      %v1046 = vpack.c.bf16 %v1044, %v1043
      %1047 = vmatpush.bf16.msra.mxu0 0
      %1048 = vmatpush.bf16.msra.mxu0 0
      %1049 = vmatpush.bf16.msra.mxu0 0
      %1050 = vmatpush.bf16.msra.mxu0 0
      %1051 = vmatpush.bf16.msra.mxu0 0
      %1052 = vmatpush.bf16.msra.mxu0 0
      %1053 = vmatpush.bf16.msra.mxu0 %v1046
      %1054 = vmatpush.bf16.msra.mxu0 %v1045
      %1055 = vmatmul.bf16.gmra.mxu0 %v305
      %v1056 = vpop.f32.mrf.mxu0
      %v1057 = vadd.f32 0.0, %v1056
      %v1058 = vpop.f32.mrf.mxu0
      %v1059 = vadd.f32 0.0, %v1058
      %1060 = vdwg.mxu0
      %1061 = vmatpush.bf16.msra.mxu0 0
      %1062 = vmatpush.bf16.msra.mxu0 0
      %1063 = vmatpush.bf16.msra.mxu0 0
      %1064 = vmatpush.bf16.msra.mxu0 0
      %1065 = vmatpush.bf16.msra.mxu0 0
      %1066 = vmatpush.bf16.msra.mxu0 0
      %1067 = vmatpush.bf16.msra.mxu0 %v1046
      %1068 = vmatpush.bf16.msra.mxu0 %v1045
      %1069 = vmatmul.bf16.gmra.mxu0 %v327
      %v1070 = vpop.f32.mrf.mxu0
      %v1071 = vadd.f32 0.0, %v1070
      %v1072 = vpop.f32.mrf.mxu0
      %v1073 = vadd.f32 0.0, %v1072
      %1074 = vdwg.mxu0
      %v1075 = vmax.f32 %v1057, %v1071
      %v1076 = vmax.f32 %v1059, %v1073
      %s1077 = scalar_lea.vmem %s197, 96
      %1078 = vst.msk [vmem:[%s1077] sm:$0xff] %vm303, %v1075
      %1079 = vst.msk [vmem:[%s1077 + $0x8] sm:$0x7f] %vm346, %v1076
      %v1080 = vld [vmem:[%s192 + $0x1c0] sm:$0xff]
      %v1081 = vld [vmem:[%s192 + $0x1c8] sm:$0xff]
      %v1082 = vld [vmem:[%s192 + $0x1d0] sm:$0xff]
      %v1083 = vld [vmem:[%s192 + $0x1d8] sm:$0xff]
      %v1084 = vld [vmem:[%s192 + $0x1e0] sm:$0xff]
      %v1085 = vld [vmem:[%s192 + $0x1e8] sm:$0xff]
      %v1086 = vld [vmem:[%s192 + $0x1f0] sm:$0xff]
      %v1087 = vld [vmem:[%s192 + $0x1f8] sm:$0xff]
      %v1088 = vpack.c.bf16 %v1081, %v1080
      %v1089 = vpack.c.bf16 %v1083, %v1082
      %v1090 = vpack.c.bf16 %v1085, %v1084
      %v1091 = vpack.c.bf16 %v1087, %v1086
      %v1092 = vld [vmem:[%s1] sm:$0xf]
      %v1093 = vld [vmem:[%s1 + $0x4] sm:$0xf]
      %v1094 = vld [vmem:[%s1 + $0x8] sm:$0xf]
      %v1095 = vld [vmem:[%s1 + $0xc] sm:$0x3]
      %v1096 = vld [vmem:[%s2] sm:$0x1]
      %v1098 = vperm.slane %v1096, 0
      %v1104 = vunpack.c.l.b16 %v1092
      %v1105 = vunpack.c.l.b16 %v1093
      %v1106 = vunpack.c.l.b16 %v1094
      %v1107 = vunpack.c.l.b16 %v1095
      %v1108 = vpack.c.b16 %v1105, %v1104
      %v1109 = vpack.c.b16 %v1107, %v1106
      %v1112 = vsel %vm235, %v1088, 0
      %v1115 = vsel %vm235, %v1089, 0
      %v1118 = vsel %vm235, %v1090, 0
      %v1121 = vsel %vm235, %v1091, 0
      %v1124 = vand.u32 %v1109, %v251
      %1126 = vmatpush.bf16.msra.mxu0 0
      %1127 = vmatpush.bf16.msra.mxu0 0
      %1128 = vmatpush.bf16.msra.mxu0 0
      %1129 = vmatpush.bf16.msra.mxu0 0
      %1130 = vmatpush.bf16.msra.mxu0 0
      %1131 = vmatpush.bf16.msra.mxu0 0
      %1132 = vmatpush.bf16.msra.mxu0 %v1124
      %1133 = vmatpush.bf16.msra.mxu0 %v1108
      %1134 = vmatmul.bf16.gmra.mxu0 %v1112
      %v1135 = vpop.f32.mrf.mxu0
      %v1136 = vadd.f32 %v1098, %v1135
      %v1137 = vpop.f32.mrf.mxu0
      %v1138 = vadd.f32 %v1098, %v1137
      %1139 = vmatmul.bf16.gmra.mxu0 %v1115
      %v1140 = vpop.f32.mrf.mxu0
      %v1141 = vadd.f32 %v1098, %v1140
      %v1142 = vpop.f32.mrf.mxu0
      %v1143 = vadd.f32 %v1098, %v1142
      %1144 = vmatmul.bf16.gmra.mxu0 %v1118
      %v1145 = vpop.f32.mrf.mxu0
      %v1146 = vadd.f32 %v1098, %v1145
      %v1147 = vpop.f32.mrf.mxu0
      %v1148 = vadd.f32 %v1098, %v1147
      %1149 = vmatmul.bf16.gmra.mxu0 %v1121
      %v1150 = vpop.f32.mrf.mxu0
      %v1151 = vadd.f32 %v1098, %v1150
      %v1152 = vpop.f32.mrf.mxu0
      %v1153 = vadd.f32 %v1098, %v1152
      %1154 = vdwg.mxu0
      %v1155 = vmax.f32 %v1136, 0.0
      %v1156 = vmax.f32 %v1138, 0.0
      %v1157 = vmax.f32 %v1141, 0.0
      %v1158 = vmax.f32 %v1143, 0.0
      %v1159 = vmax.f32 %v1146, 0.0
      %v1160 = vmax.f32 %v1148, 0.0
      %v1161 = vmax.f32 %v1151, 0.0
      %v1162 = vmax.f32 %v1153, 0.0
      %v1163 = vmax.f32 %v1155, %v1159
      %v1164 = vmax.f32 %v1156, %v1160
      %v1165 = vmax.f32 %v1157, %v1161
      %v1166 = vmax.f32 %v1158, %v1162
      %v1167 = vpack.c.bf16 %v1164, %v1163
      %v1168 = vpack.c.bf16 %v1166, %v1165
      %1169 = vmatpush.bf16.msra.mxu0 0
      %1170 = vmatpush.bf16.msra.mxu0 0
      %1171 = vmatpush.bf16.msra.mxu0 0
      %1172 = vmatpush.bf16.msra.mxu0 0
      %1173 = vmatpush.bf16.msra.mxu0 0
      %1174 = vmatpush.bf16.msra.mxu0 0
      %1175 = vmatpush.bf16.msra.mxu0 %v1168
      %1176 = vmatpush.bf16.msra.mxu0 %v1167
      %1177 = vmatmul.bf16.gmra.mxu0 %v305
      %v1178 = vpop.f32.mrf.mxu0
      %v1179 = vadd.f32 0.0, %v1178
      %v1180 = vpop.f32.mrf.mxu0
      %v1181 = vadd.f32 0.0, %v1180
      %1182 = vdwg.mxu0
      %1183 = vmatpush.bf16.msra.mxu0 0
      %1184 = vmatpush.bf16.msra.mxu0 0
      %1185 = vmatpush.bf16.msra.mxu0 0
      %1186 = vmatpush.bf16.msra.mxu0 0
      %1187 = vmatpush.bf16.msra.mxu0 0
      %1188 = vmatpush.bf16.msra.mxu0 0
      %1189 = vmatpush.bf16.msra.mxu0 %v1168
      %1190 = vmatpush.bf16.msra.mxu0 %v1167
      %1191 = vmatmul.bf16.gmra.mxu0 %v327
      %v1192 = vpop.f32.mrf.mxu0
      %v1193 = vadd.f32 0.0, %v1192
      %v1194 = vpop.f32.mrf.mxu0
      %v1195 = vadd.f32 0.0, %v1194
      %1196 = vdwg.mxu0
      %v1197 = vmax.f32 %v1179, %v1193
      %v1198 = vmax.f32 %v1181, %v1195
      %s1199 = scalar_lea.vmem %s197, 112
      %1200 = vst.msk [vmem:[%s1199] sm:$0xff] %vm303, %v1197
      %1201 = vst.msk [vmem:[%s1199 + $0x8] sm:$0x7f] %vm346, %v1198
      %v1202 = vld [vmem:[%s192 + $0x200] sm:$0xff]
      %v1203 = vld [vmem:[%s192 + $0x208] sm:$0xff]
      %v1204 = vld [vmem:[%s192 + $0x210] sm:$0xff]
      %v1205 = vld [vmem:[%s192 + $0x218] sm:$0xff]
      %v1206 = vld [vmem:[%s192 + $0x220] sm:$0xff]
      %v1207 = vld [vmem:[%s192 + $0x228] sm:$0xff]
      %v1208 = vld [vmem:[%s192 + $0x230] sm:$0xff]
      %v1209 = vld [vmem:[%s192 + $0x238] sm:$0xff]
      %v1210 = vpack.c.bf16 %v1203, %v1202
      %v1211 = vpack.c.bf16 %v1205, %v1204
      %v1212 = vpack.c.bf16 %v1207, %v1206
      %v1213 = vpack.c.bf16 %v1209, %v1208
      %v1214 = vld [vmem:[%s1] sm:$0xf]
      %v1215 = vld [vmem:[%s1 + $0x4] sm:$0xf]
      %v1216 = vld [vmem:[%s1 + $0x8] sm:$0xf]
      %v1217 = vld [vmem:[%s1 + $0xc] sm:$0x3]
      %v1218 = vld [vmem:[%s2] sm:$0x1]
      %v1220 = vperm.slane %v1218, 0
      %v1226 = vunpack.c.l.b16 %v1214
      %v1227 = vunpack.c.l.b16 %v1215
      %v1228 = vunpack.c.l.b16 %v1216
      %v1229 = vunpack.c.l.b16 %v1217
      %v1230 = vpack.c.b16 %v1227, %v1226
      %v1231 = vpack.c.b16 %v1229, %v1228
      %v1234 = vsel %vm235, %v1210, 0
      %v1237 = vsel %vm235, %v1211, 0
      %v1240 = vsel %vm235, %v1212, 0
      %v1243 = vsel %vm235, %v1213, 0
      %v1246 = vand.u32 %v1231, %v251
      %1248 = vmatpush.bf16.msra.mxu0 0
      %1249 = vmatpush.bf16.msra.mxu0 0
      %1250 = vmatpush.bf16.msra.mxu0 0
      %1251 = vmatpush.bf16.msra.mxu0 0
      %1252 = vmatpush.bf16.msra.mxu0 0
      %1253 = vmatpush.bf16.msra.mxu0 0
      %1254 = vmatpush.bf16.msra.mxu0 %v1246
      %1255 = vmatpush.bf16.msra.mxu0 %v1230
      %1256 = vmatmul.bf16.gmra.mxu0 %v1234
      %v1257 = vpop.f32.mrf.mxu0
      %v1258 = vadd.f32 %v1220, %v1257
      %v1259 = vpop.f32.mrf.mxu0
      %v1260 = vadd.f32 %v1220, %v1259
      %1261 = vmatmul.bf16.gmra.mxu0 %v1237
      %v1262 = vpop.f32.mrf.mxu0
      %v1263 = vadd.f32 %v1220, %v1262
      %v1264 = vpop.f32.mrf.mxu0
      %v1265 = vadd.f32 %v1220, %v1264
      %1266 = vmatmul.bf16.gmra.mxu0 %v1240
      %v1267 = vpop.f32.mrf.mxu0
      %v1268 = vadd.f32 %v1220, %v1267
      %v1269 = vpop.f32.mrf.mxu0
      %v1270 = vadd.f32 %v1220, %v1269
      %1271 = vmatmul.bf16.gmra.mxu0 %v1243
      %v1272 = vpop.f32.mrf.mxu0
      %v1273 = vadd.f32 %v1220, %v1272
      %v1274 = vpop.f32.mrf.mxu0
      %v1275 = vadd.f32 %v1220, %v1274
      %1276 = vdwg.mxu0
      %v1277 = vmax.f32 %v1258, 0.0
      %v1278 = vmax.f32 %v1260, 0.0
      %v1279 = vmax.f32 %v1263, 0.0
      %v1280 = vmax.f32 %v1265, 0.0
      %v1281 = vmax.f32 %v1268, 0.0
      %v1282 = vmax.f32 %v1270, 0.0
      %v1283 = vmax.f32 %v1273, 0.0
      %v1284 = vmax.f32 %v1275, 0.0
      %v1285 = vmax.f32 %v1277, %v1281
      %v1286 = vmax.f32 %v1278, %v1282
      %v1287 = vmax.f32 %v1279, %v1283
      %v1288 = vmax.f32 %v1280, %v1284
      %v1289 = vpack.c.bf16 %v1286, %v1285
      %v1290 = vpack.c.bf16 %v1288, %v1287
      %1291 = vmatpush.bf16.msra.mxu0 0
      %1292 = vmatpush.bf16.msra.mxu0 0
      %1293 = vmatpush.bf16.msra.mxu0 0
      %1294 = vmatpush.bf16.msra.mxu0 0
      %1295 = vmatpush.bf16.msra.mxu0 0
      %1296 = vmatpush.bf16.msra.mxu0 0
      %1297 = vmatpush.bf16.msra.mxu0 %v1290
      %1298 = vmatpush.bf16.msra.mxu0 %v1289
      %1299 = vmatmul.bf16.gmra.mxu0 %v305
      %v1300 = vpop.f32.mrf.mxu0
      %v1301 = vadd.f32 0.0, %v1300
      %v1302 = vpop.f32.mrf.mxu0
      %v1303 = vadd.f32 0.0, %v1302
      %1304 = vdwg.mxu0
      %1305 = vmatpush.bf16.msra.mxu0 0
      %1306 = vmatpush.bf16.msra.mxu0 0
      %1307 = vmatpush.bf16.msra.mxu0 0
      %1308 = vmatpush.bf16.msra.mxu0 0
      %1309 = vmatpush.bf16.msra.mxu0 0
      %1310 = vmatpush.bf16.msra.mxu0 0
      %1311 = vmatpush.bf16.msra.mxu0 %v1290
      %1312 = vmatpush.bf16.msra.mxu0 %v1289
      %1313 = vmatmul.bf16.gmra.mxu0 %v327
      %v1314 = vpop.f32.mrf.mxu0
      %v1315 = vadd.f32 0.0, %v1314
      %v1316 = vpop.f32.mrf.mxu0
      %v1317 = vadd.f32 0.0, %v1316
      %1318 = vdwg.mxu0
      %v1319 = vmax.f32 %v1301, %v1315
      %v1320 = vmax.f32 %v1303, %v1317
      %s1321 = scalar_lea.vmem %s197, 128
      %1322 = vst.msk [vmem:[%s1321] sm:$0xff] %vm303, %v1319
      %1323 = vst.msk [vmem:[%s1321 + $0x8] sm:$0x7f] %vm346, %v1320
      %v1324 = vld [vmem:[%s192 + $0x240] sm:$0xff]
      %v1325 = vld [vmem:[%s192 + $0x248] sm:$0xff]
      %v1326 = vld [vmem:[%s192 + $0x250] sm:$0xff]
      %v1327 = vld [vmem:[%s192 + $0x258] sm:$0xff]
      %v1328 = vld [vmem:[%s192 + $0x260] sm:$0xff]
      %v1329 = vld [vmem:[%s192 + $0x268] sm:$0xff]
      %v1330 = vld [vmem:[%s192 + $0x270] sm:$0xff]
      %v1331 = vld [vmem:[%s192 + $0x278] sm:$0xff]
      %v1332 = vpack.c.bf16 %v1325, %v1324
      %v1333 = vpack.c.bf16 %v1327, %v1326
      %v1334 = vpack.c.bf16 %v1329, %v1328
      %v1335 = vpack.c.bf16 %v1331, %v1330
      %v1336 = vld [vmem:[%s1] sm:$0xf]
      %v1337 = vld [vmem:[%s1 + $0x4] sm:$0xf]
      %v1338 = vld [vmem:[%s1 + $0x8] sm:$0xf]
      %v1339 = vld [vmem:[%s1 + $0xc] sm:$0x3]
      %v1340 = vld [vmem:[%s2] sm:$0x1]
      %v1342 = vperm.slane %v1340, 0
      %v1348 = vunpack.c.l.b16 %v1336
      %v1349 = vunpack.c.l.b16 %v1337
      %v1350 = vunpack.c.l.b16 %v1338
      %v1351 = vunpack.c.l.b16 %v1339
      %v1352 = vpack.c.b16 %v1349, %v1348
      %v1353 = vpack.c.b16 %v1351, %v1350
      %v1356 = vsel %vm235, %v1332, 0
      %v1359 = vsel %vm235, %v1333, 0
      %v1362 = vsel %vm235, %v1334, 0
      %v1365 = vsel %vm235, %v1335, 0
      %v1368 = vand.u32 %v1353, %v251
      %1370 = vmatpush.bf16.msra.mxu0 0
      %1371 = vmatpush.bf16.msra.mxu0 0
      %1372 = vmatpush.bf16.msra.mxu0 0
      %1373 = vmatpush.bf16.msra.mxu0 0
      %1374 = vmatpush.bf16.msra.mxu0 0
      %1375 = vmatpush.bf16.msra.mxu0 0
      %1376 = vmatpush.bf16.msra.mxu0 %v1368
      %1377 = vmatpush.bf16.msra.mxu0 %v1352
      %1378 = vmatmul.bf16.gmra.mxu0 %v1356
      %v1379 = vpop.f32.mrf.mxu0
      %v1380 = vadd.f32 %v1342, %v1379
      %v1381 = vpop.f32.mrf.mxu0
      %v1382 = vadd.f32 %v1342, %v1381
      %1383 = vmatmul.bf16.gmra.mxu0 %v1359
      %v1384 = vpop.f32.mrf.mxu0
      %v1385 = vadd.f32 %v1342, %v1384
      %v1386 = vpop.f32.mrf.mxu0
      %v1387 = vadd.f32 %v1342, %v1386
      %1388 = vmatmul.bf16.gmra.mxu0 %v1362
      %v1389 = vpop.f32.mrf.mxu0
      %v1390 = vadd.f32 %v1342, %v1389
      %v1391 = vpop.f32.mrf.mxu0
      %v1392 = vadd.f32 %v1342, %v1391
      %1393 = vmatmul.bf16.gmra.mxu0 %v1365
      %v1394 = vpop.f32.mrf.mxu0
      %v1395 = vadd.f32 %v1342, %v1394
      %v1396 = vpop.f32.mrf.mxu0
      %v1397 = vadd.f32 %v1342, %v1396
      %1398 = vdwg.mxu0
      %v1399 = vmax.f32 %v1380, 0.0
      %v1400 = vmax.f32 %v1382, 0.0
      %v1401 = vmax.f32 %v1385, 0.0
      %v1402 = vmax.f32 %v1387, 0.0
      %v1403 = vmax.f32 %v1390, 0.0
      %v1404 = vmax.f32 %v1392, 0.0
      %v1405 = vmax.f32 %v1395, 0.0
      %v1406 = vmax.f32 %v1397, 0.0
      %v1407 = vmax.f32 %v1399, %v1403
      %v1408 = vmax.f32 %v1400, %v1404
      %v1409 = vmax.f32 %v1401, %v1405
      %v1410 = vmax.f32 %v1402, %v1406
      %v1411 = vpack.c.bf16 %v1408, %v1407
      %v1412 = vpack.c.bf16 %v1410, %v1409
      %1413 = vmatpush.bf16.msra.mxu0 0
      %1414 = vmatpush.bf16.msra.mxu0 0
      %1415 = vmatpush.bf16.msra.mxu0 0
      %1416 = vmatpush.bf16.msra.mxu0 0
      %1417 = vmatpush.bf16.msra.mxu0 0
      %1418 = vmatpush.bf16.msra.mxu0 0
      %1419 = vmatpush.bf16.msra.mxu0 %v1412
      %1420 = vmatpush.bf16.msra.mxu0 %v1411
      %1421 = vmatmul.bf16.gmra.mxu0 %v305
      %v1422 = vpop.f32.mrf.mxu0
      %v1423 = vadd.f32 0.0, %v1422
      %v1424 = vpop.f32.mrf.mxu0
      %v1425 = vadd.f32 0.0, %v1424
      %1426 = vdwg.mxu0
      %1427 = vmatpush.bf16.msra.mxu0 0
      %1428 = vmatpush.bf16.msra.mxu0 0
      %1429 = vmatpush.bf16.msra.mxu0 0
      %1430 = vmatpush.bf16.msra.mxu0 0
      %1431 = vmatpush.bf16.msra.mxu0 0
      %1432 = vmatpush.bf16.msra.mxu0 0
      %1433 = vmatpush.bf16.msra.mxu0 %v1412
      %1434 = vmatpush.bf16.msra.mxu0 %v1411
      %1435 = vmatmul.bf16.gmra.mxu0 %v327
      %v1436 = vpop.f32.mrf.mxu0
      %v1437 = vadd.f32 0.0, %v1436
      %v1438 = vpop.f32.mrf.mxu0
      %v1439 = vadd.f32 0.0, %v1438
      %1440 = vdwg.mxu0
      %v1441 = vmax.f32 %v1423, %v1437
      %v1442 = vmax.f32 %v1425, %v1439
      %s1443 = scalar_lea.vmem %s197, 144
      %1444 = vst.msk [vmem:[%s1443] sm:$0xff] %vm303, %v1441
      %1445 = vst.msk [vmem:[%s1443 + $0x8] sm:$0x7f] %vm346, %v1442
      %v1446 = vld [vmem:[%s192 + $0x280] sm:$0xff]
      %v1447 = vld [vmem:[%s192 + $0x288] sm:$0xff]
      %v1448 = vld [vmem:[%s192 + $0x290] sm:$0xff]
      %v1449 = vld [vmem:[%s192 + $0x298] sm:$0xff]
      %v1450 = vld [vmem:[%s192 + $0x2a0] sm:$0xff]
      %v1451 = vld [vmem:[%s192 + $0x2a8] sm:$0xff]
      %v1452 = vld [vmem:[%s192 + $0x2b0] sm:$0xff]
      %v1453 = vld [vmem:[%s192 + $0x2b8] sm:$0xff]
      %v1454 = vpack.c.bf16 %v1447, %v1446
      %v1455 = vpack.c.bf16 %v1449, %v1448
      %v1456 = vpack.c.bf16 %v1451, %v1450
      %v1457 = vpack.c.bf16 %v1453, %v1452
      %v1458 = vld [vmem:[%s1] sm:$0xf]
      %v1459 = vld [vmem:[%s1 + $0x4] sm:$0xf]
      %v1460 = vld [vmem:[%s1 + $0x8] sm:$0xf]
      %v1461 = vld [vmem:[%s1 + $0xc] sm:$0x3]
      %v1462 = vld [vmem:[%s2] sm:$0x1]
      %v1464 = vperm.slane %v1462, 0
      %v1470 = vunpack.c.l.b16 %v1458
      %v1471 = vunpack.c.l.b16 %v1459
      %v1472 = vunpack.c.l.b16 %v1460
      %v1473 = vunpack.c.l.b16 %v1461
      %v1474 = vpack.c.b16 %v1471, %v1470
      %v1475 = vpack.c.b16 %v1473, %v1472
      %v1478 = vsel %vm235, %v1454, 0
      %v1481 = vsel %vm235, %v1455, 0
      %v1484 = vsel %vm235, %v1456, 0
      %v1487 = vsel %vm235, %v1457, 0
      %v1490 = vand.u32 %v1475, %v251
      %1492 = vmatpush.bf16.msra.mxu0 0
      %1493 = vmatpush.bf16.msra.mxu0 0
      %1494 = vmatpush.bf16.msra.mxu0 0
      %1495 = vmatpush.bf16.msra.mxu0 0
      %1496 = vmatpush.bf16.msra.mxu0 0
      %1497 = vmatpush.bf16.msra.mxu0 0
      %1498 = vmatpush.bf16.msra.mxu0 %v1490
      %1499 = vmatpush.bf16.msra.mxu0 %v1474
      %1500 = vmatmul.bf16.gmra.mxu0 %v1478
      %v1501 = vpop.f32.mrf.mxu0
      %v1502 = vadd.f32 %v1464, %v1501
      %v1503 = vpop.f32.mrf.mxu0
      %v1504 = vadd.f32 %v1464, %v1503
      %1505 = vmatmul.bf16.gmra.mxu0 %v1481
      %v1506 = vpop.f32.mrf.mxu0
      %v1507 = vadd.f32 %v1464, %v1506
      %v1508 = vpop.f32.mrf.mxu0
      %v1509 = vadd.f32 %v1464, %v1508
      %1510 = vmatmul.bf16.gmra.mxu0 %v1484
      %v1511 = vpop.f32.mrf.mxu0
      %v1512 = vadd.f32 %v1464, %v1511
      %v1513 = vpop.f32.mrf.mxu0
      %v1514 = vadd.f32 %v1464, %v1513
      %1515 = vmatmul.bf16.gmra.mxu0 %v1487
      %v1516 = vpop.f32.mrf.mxu0
      %v1517 = vadd.f32 %v1464, %v1516
      %v1518 = vpop.f32.mrf.mxu0
      %v1519 = vadd.f32 %v1464, %v1518
      %1520 = vdwg.mxu0
      %v1521 = vmax.f32 %v1502, 0.0
      %v1522 = vmax.f32 %v1504, 0.0
      %v1523 = vmax.f32 %v1507, 0.0
      %v1524 = vmax.f32 %v1509, 0.0
      %v1525 = vmax.f32 %v1512, 0.0
      %v1526 = vmax.f32 %v1514, 0.0
      %v1527 = vmax.f32 %v1517, 0.0
      %v1528 = vmax.f32 %v1519, 0.0
      %v1529 = vmax.f32 %v1521, %v1525
      %v1530 = vmax.f32 %v1522, %v1526
      %v1531 = vmax.f32 %v1523, %v1527
      %v1532 = vmax.f32 %v1524, %v1528
      %v1533 = vpack.c.bf16 %v1530, %v1529
      %v1534 = vpack.c.bf16 %v1532, %v1531
      %1535 = vmatpush.bf16.msra.mxu0 0
      %1536 = vmatpush.bf16.msra.mxu0 0
      %1537 = vmatpush.bf16.msra.mxu0 0
      %1538 = vmatpush.bf16.msra.mxu0 0
      %1539 = vmatpush.bf16.msra.mxu0 0
      %1540 = vmatpush.bf16.msra.mxu0 0
      %1541 = vmatpush.bf16.msra.mxu0 %v1534
      %1542 = vmatpush.bf16.msra.mxu0 %v1533
      %1543 = vmatmul.bf16.gmra.mxu0 %v305
      %v1544 = vpop.f32.mrf.mxu0
      %v1545 = vadd.f32 0.0, %v1544
      %v1546 = vpop.f32.mrf.mxu0
      %v1547 = vadd.f32 0.0, %v1546
      %1548 = vdwg.mxu0
      %1549 = vmatpush.bf16.msra.mxu0 0
      %1550 = vmatpush.bf16.msra.mxu0 0
      %1551 = vmatpush.bf16.msra.mxu0 0
      %1552 = vmatpush.bf16.msra.mxu0 0
      %1553 = vmatpush.bf16.msra.mxu0 0
      %1554 = vmatpush.bf16.msra.mxu0 0
      %1555 = vmatpush.bf16.msra.mxu0 %v1534
      %1556 = vmatpush.bf16.msra.mxu0 %v1533
      %1557 = vmatmul.bf16.gmra.mxu0 %v327
      %v1558 = vpop.f32.mrf.mxu0
      %v1559 = vadd.f32 0.0, %v1558
      %v1560 = vpop.f32.mrf.mxu0
      %v1561 = vadd.f32 0.0, %v1560
      %1562 = vdwg.mxu0
      %v1563 = vmax.f32 %v1545, %v1559
      %v1564 = vmax.f32 %v1547, %v1561
      %s1565 = scalar_lea.vmem %s197, 160
      %1566 = vst.msk [vmem:[%s1565] sm:$0xff] %vm303, %v1563
      %1567 = vst.msk [vmem:[%s1565 + $0x8] sm:$0x7f] %vm346, %v1564
      %v1568 = vld [vmem:[%s192 + $0x2c0] sm:$0xff]
      %v1569 = vld [vmem:[%s192 + $0x2c8] sm:$0xff]
      %v1570 = vld [vmem:[%s192 + $0x2d0] sm:$0xff]
      %v1571 = vld [vmem:[%s192 + $0x2d8] sm:$0xff]
      %v1572 = vld [vmem:[%s192 + $0x2e0] sm:$0xff]
      %v1573 = vld [vmem:[%s192 + $0x2e8] sm:$0xff]
      %v1574 = vld [vmem:[%s192 + $0x2f0] sm:$0xff]
      %v1575 = vld [vmem:[%s192 + $0x2f8] sm:$0xff]
      %v1576 = vpack.c.bf16 %v1569, %v1568
      %v1577 = vpack.c.bf16 %v1571, %v1570
      %v1578 = vpack.c.bf16 %v1573, %v1572
      %v1579 = vpack.c.bf16 %v1575, %v1574
      %v1580 = vld [vmem:[%s1] sm:$0xf]
      %v1581 = vld [vmem:[%s1 + $0x4] sm:$0xf]
      %v1582 = vld [vmem:[%s1 + $0x8] sm:$0xf]
      %v1583 = vld [vmem:[%s1 + $0xc] sm:$0x3]
      %v1584 = vld [vmem:[%s2] sm:$0x1]
      %v1586 = vperm.slane %v1584, 0
      %v1592 = vunpack.c.l.b16 %v1580
      %v1593 = vunpack.c.l.b16 %v1581
      %v1594 = vunpack.c.l.b16 %v1582
      %v1595 = vunpack.c.l.b16 %v1583
      %v1596 = vpack.c.b16 %v1593, %v1592
      %v1597 = vpack.c.b16 %v1595, %v1594
      %v1600 = vsel %vm235, %v1576, 0
      %v1603 = vsel %vm235, %v1577, 0
      %v1606 = vsel %vm235, %v1578, 0
      %v1609 = vsel %vm235, %v1579, 0
      %v1612 = vand.u32 %v1597, %v251
      %1614 = vmatpush.bf16.msra.mxu0 0
      %1615 = vmatpush.bf16.msra.mxu0 0
      %1616 = vmatpush.bf16.msra.mxu0 0
      %1617 = vmatpush.bf16.msra.mxu0 0
      %1618 = vmatpush.bf16.msra.mxu0 0
      %1619 = vmatpush.bf16.msra.mxu0 0
      %1620 = vmatpush.bf16.msra.mxu0 %v1612
      %1621 = vmatpush.bf16.msra.mxu0 %v1596
      %1622 = vmatmul.bf16.gmra.mxu0 %v1600
      %v1623 = vpop.f32.mrf.mxu0
      %v1624 = vadd.f32 %v1586, %v1623
      %v1625 = vpop.f32.mrf.mxu0
      %v1626 = vadd.f32 %v1586, %v1625
      %1627 = vmatmul.bf16.gmra.mxu0 %v1603
      %v1628 = vpop.f32.mrf.mxu0
      %v1629 = vadd.f32 %v1586, %v1628
      %v1630 = vpop.f32.mrf.mxu0
      %v1631 = vadd.f32 %v1586, %v1630
      %1632 = vmatmul.bf16.gmra.mxu0 %v1606
      %v1633 = vpop.f32.mrf.mxu0
      %v1634 = vadd.f32 %v1586, %v1633
      %v1635 = vpop.f32.mrf.mxu0
      %v1636 = vadd.f32 %v1586, %v1635
      %1637 = vmatmul.bf16.gmra.mxu0 %v1609
      %v1638 = vpop.f32.mrf.mxu0
      %v1639 = vadd.f32 %v1586, %v1638
      %v1640 = vpop.f32.mrf.mxu0
      %v1641 = vadd.f32 %v1586, %v1640
      %1642 = vdwg.mxu0
      %v1643 = vmax.f32 %v1624, 0.0
      %v1644 = vmax.f32 %v1626, 0.0
      %v1645 = vmax.f32 %v1629, 0.0
      %v1646 = vmax.f32 %v1631, 0.0
      %v1647 = vmax.f32 %v1634, 0.0
      %v1648 = vmax.f32 %v1636, 0.0
      %v1649 = vmax.f32 %v1639, 0.0
      %v1650 = vmax.f32 %v1641, 0.0
      %v1651 = vmax.f32 %v1643, %v1647
      %v1652 = vmax.f32 %v1644, %v1648
      %v1653 = vmax.f32 %v1645, %v1649
      %v1654 = vmax.f32 %v1646, %v1650
      %v1655 = vpack.c.bf16 %v1652, %v1651
      %v1656 = vpack.c.bf16 %v1654, %v1653
      %1657 = vmatpush.bf16.msra.mxu0 0
      %1658 = vmatpush.bf16.msra.mxu0 0
      %1659 = vmatpush.bf16.msra.mxu0 0
      %1660 = vmatpush.bf16.msra.mxu0 0
      %1661 = vmatpush.bf16.msra.mxu0 0
      %1662 = vmatpush.bf16.msra.mxu0 0
      %1663 = vmatpush.bf16.msra.mxu0 %v1656
      %1664 = vmatpush.bf16.msra.mxu0 %v1655
      %1665 = vmatmul.bf16.gmra.mxu0 %v305
      %v1666 = vpop.f32.mrf.mxu0
      %v1667 = vadd.f32 0.0, %v1666
      %v1668 = vpop.f32.mrf.mxu0
      %v1669 = vadd.f32 0.0, %v1668
      %1670 = vdwg.mxu0
      %1671 = vmatpush.bf16.msra.mxu0 0
      %1672 = vmatpush.bf16.msra.mxu0 0
      %1673 = vmatpush.bf16.msra.mxu0 0
      %1674 = vmatpush.bf16.msra.mxu0 0
      %1675 = vmatpush.bf16.msra.mxu0 0
      %1676 = vmatpush.bf16.msra.mxu0 0
      %1677 = vmatpush.bf16.msra.mxu0 %v1656
      %1678 = vmatpush.bf16.msra.mxu0 %v1655
      %1679 = vmatmul.bf16.gmra.mxu0 %v327
      %v1680 = vpop.f32.mrf.mxu0
      %v1681 = vadd.f32 0.0, %v1680
      %v1682 = vpop.f32.mrf.mxu0
      %v1683 = vadd.f32 0.0, %v1682
      %1684 = vdwg.mxu0
      %v1685 = vmax.f32 %v1667, %v1681
      %v1686 = vmax.f32 %v1669, %v1683
      %s1687 = scalar_lea.vmem %s197, 176
      %1688 = vst.msk [vmem:[%s1687] sm:$0xff] %vm303, %v1685
      %1689 = vst.msk [vmem:[%s1687 + $0x8] sm:$0x7f] %vm346, %v1686
      %v1690 = vld [vmem:[%s192 + $0x300] sm:$0xff]
      %v1691 = vld [vmem:[%s192 + $0x308] sm:$0xff]
      %v1692 = vld [vmem:[%s192 + $0x310] sm:$0xff]
      %v1693 = vld [vmem:[%s192 + $0x318] sm:$0xff]
      %v1694 = vld [vmem:[%s192 + $0x320] sm:$0xff]
      %v1695 = vld [vmem:[%s192 + $0x328] sm:$0xff]
      %v1696 = vld [vmem:[%s192 + $0x330] sm:$0xff]
      %v1697 = vld [vmem:[%s192 + $0x338] sm:$0xff]
      %v1698 = vpack.c.bf16 %v1691, %v1690
      %v1699 = vpack.c.bf16 %v1693, %v1692
      %v1700 = vpack.c.bf16 %v1695, %v1694
      %v1701 = vpack.c.bf16 %v1697, %v1696
      %v1702 = vld [vmem:[%s1] sm:$0xf]
      %v1703 = vld [vmem:[%s1 + $0x4] sm:$0xf]
      %v1704 = vld [vmem:[%s1 + $0x8] sm:$0xf]
      %v1705 = vld [vmem:[%s1 + $0xc] sm:$0x3]
      %v1706 = vld [vmem:[%s2] sm:$0x1]
      %v1708 = vperm.slane %v1706, 0
      %v1714 = vunpack.c.l.b16 %v1702
      %v1715 = vunpack.c.l.b16 %v1703
      %v1716 = vunpack.c.l.b16 %v1704
      %v1717 = vunpack.c.l.b16 %v1705
      %v1718 = vpack.c.b16 %v1715, %v1714
      %v1719 = vpack.c.b16 %v1717, %v1716
      %v1722 = vsel %vm235, %v1698, 0
      %v1725 = vsel %vm235, %v1699, 0
      %v1728 = vsel %vm235, %v1700, 0
      %v1731 = vsel %vm235, %v1701, 0
      %v1734 = vand.u32 %v1719, %v251
      %1736 = vmatpush.bf16.msra.mxu0 0
      %1737 = vmatpush.bf16.msra.mxu0 0
      %1738 = vmatpush.bf16.msra.mxu0 0
      %1739 = vmatpush.bf16.msra.mxu0 0
      %1740 = vmatpush.bf16.msra.mxu0 0
      %1741 = vmatpush.bf16.msra.mxu0 0
      %1742 = vmatpush.bf16.msra.mxu0 %v1734
      %1743 = vmatpush.bf16.msra.mxu0 %v1718
      %1744 = vmatmul.bf16.gmra.mxu0 %v1722
      %v1745 = vpop.f32.mrf.mxu0
      %v1746 = vadd.f32 %v1708, %v1745
      %v1747 = vpop.f32.mrf.mxu0
      %v1748 = vadd.f32 %v1708, %v1747
      %1749 = vmatmul.bf16.gmra.mxu0 %v1725
      %v1750 = vpop.f32.mrf.mxu0
      %v1751 = vadd.f32 %v1708, %v1750
      %v1752 = vpop.f32.mrf.mxu0
      %v1753 = vadd.f32 %v1708, %v1752
      %1754 = vmatmul.bf16.gmra.mxu0 %v1728
      %v1755 = vpop.f32.mrf.mxu0
      %v1756 = vadd.f32 %v1708, %v1755
      %v1757 = vpop.f32.mrf.mxu0
      %v1758 = vadd.f32 %v1708, %v1757
      %1759 = vmatmul.bf16.gmra.mxu0 %v1731
      %v1760 = vpop.f32.mrf.mxu0
      %v1761 = vadd.f32 %v1708, %v1760
      %v1762 = vpop.f32.mrf.mxu0
      %v1763 = vadd.f32 %v1708, %v1762
      %1764 = vdwg.mxu0
      %v1765 = vmax.f32 %v1746, 0.0
      %v1766 = vmax.f32 %v1748, 0.0
      %v1767 = vmax.f32 %v1751, 0.0
      %v1768 = vmax.f32 %v1753, 0.0
      %v1769 = vmax.f32 %v1756, 0.0
      %v1770 = vmax.f32 %v1758, 0.0
      %v1771 = vmax.f32 %v1761, 0.0
      %v1772 = vmax.f32 %v1763, 0.0
      %v1773 = vmax.f32 %v1765, %v1769
      %v1774 = vmax.f32 %v1766, %v1770
      %v1775 = vmax.f32 %v1767, %v1771
      %v1776 = vmax.f32 %v1768, %v1772
      %v1777 = vpack.c.bf16 %v1774, %v1773
      %v1778 = vpack.c.bf16 %v1776, %v1775
      %1779 = vmatpush.bf16.msra.mxu0 0
      %1780 = vmatpush.bf16.msra.mxu0 0
      %1781 = vmatpush.bf16.msra.mxu0 0
      %1782 = vmatpush.bf16.msra.mxu0 0
      %1783 = vmatpush.bf16.msra.mxu0 0
      %1784 = vmatpush.bf16.msra.mxu0 0
      %1785 = vmatpush.bf16.msra.mxu0 %v1778
      %1786 = vmatpush.bf16.msra.mxu0 %v1777
      %1787 = vmatmul.bf16.gmra.mxu0 %v305
      %v1788 = vpop.f32.mrf.mxu0
      %v1789 = vadd.f32 0.0, %v1788
      %v1790 = vpop.f32.mrf.mxu0
      %v1791 = vadd.f32 0.0, %v1790
      %1792 = vdwg.mxu0
      %1793 = vmatpush.bf16.msra.mxu0 0
      %1794 = vmatpush.bf16.msra.mxu0 0
      %1795 = vmatpush.bf16.msra.mxu0 0
      %1796 = vmatpush.bf16.msra.mxu0 0
      %1797 = vmatpush.bf16.msra.mxu0 0
      %1798 = vmatpush.bf16.msra.mxu0 0
      %1799 = vmatpush.bf16.msra.mxu0 %v1778
      %1800 = vmatpush.bf16.msra.mxu0 %v1777
      %1801 = vmatmul.bf16.gmra.mxu0 %v327
      %v1802 = vpop.f32.mrf.mxu0
      %v1803 = vadd.f32 0.0, %v1802
      %v1804 = vpop.f32.mrf.mxu0
      %v1805 = vadd.f32 0.0, %v1804
      %1806 = vdwg.mxu0
      %v1807 = vmax.f32 %v1789, %v1803
      %v1808 = vmax.f32 %v1791, %v1805
      %s1809 = scalar_lea.vmem %s197, 192
      %1810 = vst.msk [vmem:[%s1809] sm:$0xff] %vm303, %v1807
      %1811 = vst.msk [vmem:[%s1809 + $0x8] sm:$0x7f] %vm346, %v1808
      %v1812 = vld [vmem:[%s192 + $0x340] sm:$0xff]
      %v1813 = vld [vmem:[%s192 + $0x348] sm:$0xff]
      %v1814 = vld [vmem:[%s192 + $0x350] sm:$0xff]
      %v1815 = vld [vmem:[%s192 + $0x358] sm:$0xff]
      %v1816 = vld [vmem:[%s192 + $0x360] sm:$0xff]
      %v1817 = vld [vmem:[%s192 + $0x368] sm:$0xff]
      %v1818 = vld [vmem:[%s192 + $0x370] sm:$0xff]
      %v1819 = vld [vmem:[%s192 + $0x378] sm:$0xff]
      %v1820 = vpack.c.bf16 %v1813, %v1812
      %v1821 = vpack.c.bf16 %v1815, %v1814
      %v1822 = vpack.c.bf16 %v1817, %v1816
      %v1823 = vpack.c.bf16 %v1819, %v1818
      %v1824 = vld [vmem:[%s1] sm:$0xf]
      %v1825 = vld [vmem:[%s1 + $0x4] sm:$0xf]
      %v1826 = vld [vmem:[%s1 + $0x8] sm:$0xf]
      %v1827 = vld [vmem:[%s1 + $0xc] sm:$0x3]
      %v1828 = vld [vmem:[%s2] sm:$0x1]
      %v1830 = vperm.slane %v1828, 0
      %v1836 = vunpack.c.l.b16 %v1824
      %v1837 = vunpack.c.l.b16 %v1825
      %v1838 = vunpack.c.l.b16 %v1826
      %v1839 = vunpack.c.l.b16 %v1827
      %v1840 = vpack.c.b16 %v1837, %v1836
      %v1841 = vpack.c.b16 %v1839, %v1838
      %v1844 = vsel %vm235, %v1820, 0
      %v1847 = vsel %vm235, %v1821, 0
      %v1850 = vsel %vm235, %v1822, 0
      %v1853 = vsel %vm235, %v1823, 0
      %v1856 = vand.u32 %v1841, %v251
      %1858 = vmatpush.bf16.msra.mxu0 0
      %1859 = vmatpush.bf16.msra.mxu0 0
      %1860 = vmatpush.bf16.msra.mxu0 0
      %1861 = vmatpush.bf16.msra.mxu0 0
      %1862 = vmatpush.bf16.msra.mxu0 0
      %1863 = vmatpush.bf16.msra.mxu0 0
      %1864 = vmatpush.bf16.msra.mxu0 %v1856
      %1865 = vmatpush.bf16.msra.mxu0 %v1840
      %1866 = vmatmul.bf16.gmra.mxu0 %v1844
      %v1867 = vpop.f32.mrf.mxu0
      %v1868 = vadd.f32 %v1830, %v1867
      %v1869 = vpop.f32.mrf.mxu0
      %v1870 = vadd.f32 %v1830, %v1869
      %1871 = vmatmul.bf16.gmra.mxu0 %v1847
      %v1872 = vpop.f32.mrf.mxu0
      %v1873 = vadd.f32 %v1830, %v1872
      %v1874 = vpop.f32.mrf.mxu0
      %v1875 = vadd.f32 %v1830, %v1874
      %1876 = vmatmul.bf16.gmra.mxu0 %v1850
      %v1877 = vpop.f32.mrf.mxu0
      %v1878 = vadd.f32 %v1830, %v1877
      %v1879 = vpop.f32.mrf.mxu0
      %v1880 = vadd.f32 %v1830, %v1879
      %1881 = vmatmul.bf16.gmra.mxu0 %v1853
      %v1882 = vpop.f32.mrf.mxu0
      %v1883 = vadd.f32 %v1830, %v1882
      %v1884 = vpop.f32.mrf.mxu0
      %v1885 = vadd.f32 %v1830, %v1884
      %1886 = vdwg.mxu0
      %v1887 = vmax.f32 %v1868, 0.0
      %v1888 = vmax.f32 %v1870, 0.0
      %v1889 = vmax.f32 %v1873, 0.0
      %v1890 = vmax.f32 %v1875, 0.0
      %v1891 = vmax.f32 %v1878, 0.0
      %v1892 = vmax.f32 %v1880, 0.0
      %v1893 = vmax.f32 %v1883, 0.0
      %v1894 = vmax.f32 %v1885, 0.0
      %v1895 = vmax.f32 %v1887, %v1891
      %v1896 = vmax.f32 %v1888, %v1892
      %v1897 = vmax.f32 %v1889, %v1893
      %v1898 = vmax.f32 %v1890, %v1894
      %v1899 = vpack.c.bf16 %v1896, %v1895
      %v1900 = vpack.c.bf16 %v1898, %v1897
      %1901 = vmatpush.bf16.msra.mxu0 0
      %1902 = vmatpush.bf16.msra.mxu0 0
      %1903 = vmatpush.bf16.msra.mxu0 0
      %1904 = vmatpush.bf16.msra.mxu0 0
      %1905 = vmatpush.bf16.msra.mxu0 0
      %1906 = vmatpush.bf16.msra.mxu0 0
      %1907 = vmatpush.bf16.msra.mxu0 %v1900
      %1908 = vmatpush.bf16.msra.mxu0 %v1899
      %1909 = vmatmul.bf16.gmra.mxu0 %v305
      %v1910 = vpop.f32.mrf.mxu0
      %v1911 = vadd.f32 0.0, %v1910
      %v1912 = vpop.f32.mrf.mxu0
      %v1913 = vadd.f32 0.0, %v1912
      %1914 = vdwg.mxu0
      %1915 = vmatpush.bf16.msra.mxu0 0
      %1916 = vmatpush.bf16.msra.mxu0 0
      %1917 = vmatpush.bf16.msra.mxu0 0
      %1918 = vmatpush.bf16.msra.mxu0 0
      %1919 = vmatpush.bf16.msra.mxu0 0
      %1920 = vmatpush.bf16.msra.mxu0 0
      %1921 = vmatpush.bf16.msra.mxu0 %v1900
      %1922 = vmatpush.bf16.msra.mxu0 %v1899
      %1923 = vmatmul.bf16.gmra.mxu0 %v327
      %v1924 = vpop.f32.mrf.mxu0
      %v1925 = vadd.f32 0.0, %v1924
      %v1926 = vpop.f32.mrf.mxu0
      %v1927 = vadd.f32 0.0, %v1926
      %1928 = vdwg.mxu0
      %v1929 = vmax.f32 %v1911, %v1925
      %v1930 = vmax.f32 %v1913, %v1927
      %s1931 = scalar_lea.vmem %s197, 208
      %1932 = vst.msk [vmem:[%s1931] sm:$0xff] %vm303, %v1929
      %1933 = vst.msk [vmem:[%s1931 + $0x8] sm:$0x7f] %vm346, %v1930
      %v1934 = vld [vmem:[%s192 + $0x380] sm:$0xff]
      %v1935 = vld [vmem:[%s192 + $0x388] sm:$0xff]
      %v1936 = vld [vmem:[%s192 + $0x390] sm:$0xff]
      %v1937 = vld [vmem:[%s192 + $0x398] sm:$0xff]
      %v1938 = vld [vmem:[%s192 + $0x3a0] sm:$0xff]
      %v1939 = vld [vmem:[%s192 + $0x3a8] sm:$0xff]
      %v1940 = vld [vmem:[%s192 + $0x3b0] sm:$0xff]
      %v1941 = vld [vmem:[%s192 + $0x3b8] sm:$0xff]
      %v1942 = vpack.c.bf16 %v1935, %v1934
      %v1943 = vpack.c.bf16 %v1937, %v1936
      %v1944 = vpack.c.bf16 %v1939, %v1938
      %v1945 = vpack.c.bf16 %v1941, %v1940
      %v1946 = vld [vmem:[%s1] sm:$0xf]
      %v1947 = vld [vmem:[%s1 + $0x4] sm:$0xf]
      %v1948 = vld [vmem:[%s1 + $0x8] sm:$0xf]
      %v1949 = vld [vmem:[%s1 + $0xc] sm:$0x3]
      %v1950 = vld [vmem:[%s2] sm:$0x1]
      %v1952 = vperm.slane %v1950, 0
      %v1958 = vunpack.c.l.b16 %v1946
      %v1959 = vunpack.c.l.b16 %v1947
      %v1960 = vunpack.c.l.b16 %v1948
      %v1961 = vunpack.c.l.b16 %v1949
      %v1962 = vpack.c.b16 %v1959, %v1958
      %v1963 = vpack.c.b16 %v1961, %v1960
      %v1966 = vsel %vm235, %v1942, 0
      %v1969 = vsel %vm235, %v1943, 0
      %v1972 = vsel %vm235, %v1944, 0
      %v1975 = vsel %vm235, %v1945, 0
      %v1978 = vand.u32 %v1963, %v251
      %1980 = vmatpush.bf16.msra.mxu0 0
      %1981 = vmatpush.bf16.msra.mxu0 0
      %1982 = vmatpush.bf16.msra.mxu0 0
      %1983 = vmatpush.bf16.msra.mxu0 0
      %1984 = vmatpush.bf16.msra.mxu0 0
      %1985 = vmatpush.bf16.msra.mxu0 0
      %1986 = vmatpush.bf16.msra.mxu0 %v1978
      %1987 = vmatpush.bf16.msra.mxu0 %v1962
      %1988 = vmatmul.bf16.gmra.mxu0 %v1966
      %v1989 = vpop.f32.mrf.mxu0
      %v1990 = vadd.f32 %v1952, %v1989
      %v1991 = vpop.f32.mrf.mxu0
      %v1992 = vadd.f32 %v1952, %v1991
      %1993 = vmatmul.bf16.gmra.mxu0 %v1969
      %v1994 = vpop.f32.mrf.mxu0
      %v1995 = vadd.f32 %v1952, %v1994
      %v1996 = vpop.f32.mrf.mxu0
      %v1997 = vadd.f32 %v1952, %v1996
      %1998 = vmatmul.bf16.gmra.mxu0 %v1972
      %v1999 = vpop.f32.mrf.mxu0
      %v2000 = vadd.f32 %v1952, %v1999
      %v2001 = vpop.f32.mrf.mxu0
      %v2002 = vadd.f32 %v1952, %v2001
      %2003 = vmatmul.bf16.gmra.mxu0 %v1975
      %v2004 = vpop.f32.mrf.mxu0
      %v2005 = vadd.f32 %v1952, %v2004
      %v2006 = vpop.f32.mrf.mxu0
      %v2007 = vadd.f32 %v1952, %v2006
      %2008 = vdwg.mxu0
      %v2009 = vmax.f32 %v1990, 0.0
      %v2010 = vmax.f32 %v1992, 0.0
      %v2011 = vmax.f32 %v1995, 0.0
      %v2012 = vmax.f32 %v1997, 0.0
      %v2013 = vmax.f32 %v2000, 0.0
      %v2014 = vmax.f32 %v2002, 0.0
      %v2015 = vmax.f32 %v2005, 0.0
      %v2016 = vmax.f32 %v2007, 0.0
      %v2017 = vmax.f32 %v2009, %v2013
      %v2018 = vmax.f32 %v2010, %v2014
      %v2019 = vmax.f32 %v2011, %v2015
      %v2020 = vmax.f32 %v2012, %v2016
      %v2021 = vpack.c.bf16 %v2018, %v2017
      %v2022 = vpack.c.bf16 %v2020, %v2019
      %2023 = vmatpush.bf16.msra.mxu0 0
      %2024 = vmatpush.bf16.msra.mxu0 0
      %2025 = vmatpush.bf16.msra.mxu0 0
      %2026 = vmatpush.bf16.msra.mxu0 0
      %2027 = vmatpush.bf16.msra.mxu0 0
      %2028 = vmatpush.bf16.msra.mxu0 0
      %2029 = vmatpush.bf16.msra.mxu0 %v2022
      %2030 = vmatpush.bf16.msra.mxu0 %v2021
      %2031 = vmatmul.bf16.gmra.mxu0 %v305
      %v2032 = vpop.f32.mrf.mxu0
      %v2033 = vadd.f32 0.0, %v2032
      %v2034 = vpop.f32.mrf.mxu0
      %v2035 = vadd.f32 0.0, %v2034
      %2036 = vdwg.mxu0
      %2037 = vmatpush.bf16.msra.mxu0 0
      %2038 = vmatpush.bf16.msra.mxu0 0
      %2039 = vmatpush.bf16.msra.mxu0 0
      %2040 = vmatpush.bf16.msra.mxu0 0
      %2041 = vmatpush.bf16.msra.mxu0 0
      %2042 = vmatpush.bf16.msra.mxu0 0
      %2043 = vmatpush.bf16.msra.mxu0 %v2022
      %2044 = vmatpush.bf16.msra.mxu0 %v2021
      %2045 = vmatmul.bf16.gmra.mxu0 %v327
      %v2046 = vpop.f32.mrf.mxu0
      %v2047 = vadd.f32 0.0, %v2046
      %v2048 = vpop.f32.mrf.mxu0
      %v2049 = vadd.f32 0.0, %v2048
      %2050 = vdwg.mxu0
      %v2051 = vmax.f32 %v2033, %v2047
      %v2052 = vmax.f32 %v2035, %v2049
      %s2053 = scalar_lea.vmem %s197, 224
      %2054 = vst.msk [vmem:[%s2053] sm:$0xff] %vm303, %v2051
      %2055 = vst.msk [vmem:[%s2053 + $0x8] sm:$0x7f] %vm346, %v2052
      %p2056 = scmp.lt.s32.totalorder %s15, 1
      %s2057 = scalar_select %p2056, %s15, 1
      %s2058 = smul.addr %s2057, 30
      %s2059 = smul.addr %s2058, 8
      %s2060 = scalar_lea.vmem %s4, %s2059
      // Predicated region
      $region37: #{simple_cnn_forward.5} parent=35 // pred_check
        %p2061 = pneg %p122
      $region38: #{simple_cnn_forward.5} parent=35 // pred_check_branch
        %2063 = sbr.rel (%p2061) target = $region40
      $region39: #{simple_cnn_forward.5} parent=35 // pred_region
        _
      $region40: #{simple_cnn_forward.5} parent=35 // pred_fallthru
        _
    $region36: #{simple_cnn_forward.5} parent=5 // pred_fallthru
      _
    %p2064 = scmp.le.s32.totalorder 2, %s10
    // Predicated region
    $region41: #{simple_cnn_forward.5} parent=5 // pred_check
      %p2065 = pneg %p2064
    $region42: #{simple_cnn_forward.5} parent=5 // pred_check_branch
      %2067 = sbr.rel (%p2065) target = $region44
    $region43: #{simple_cnn_forward.5} parent=5 // pred_region
      %s2068 = ssub.s32 %s10, 2
      // Predicated region
      $region45: #{simple_cnn_forward.5} parent=43 // pred_check
        %p2069 = pneg %p128
      $region46: #{simple_cnn_forward.5} parent=43 // pred_check_branch
        %2071 = sbr.rel (%p2069) target = $region48
      $region47: #{simple_cnn_forward.5} parent=43 // pred_region
        %p2072 = scmp.lt.s32.totalorder %s16, 1
        %s2073 = scalar_select %p2072, %s16, 1
        %s2074 = smul.addr %s2073, 30
        %s2075 = smul.addr %s2074, 8
        %s2076 = scalar_lea.vmem %s4, %s2075
      $region48: #{simple_cnn_forward.5} parent=43 // pred_fallthru
        _
    $region44: #{simple_cnn_forward.5} parent=5 // pred_fallthru
      _
  $region6: #{simple_cnn_forward.5} parent=0 // loop_footer
    %s14 = sadd.s32 1, %s10
  $region7: #{simple_cnn_forward.5} parent=0 // loop_footer_branch
    %9 = sbr.rel target = $region3
  $region8: #{simple_cnn_forward.5} parent=0 // loop_exit
    _

// kernel: simple_cnn_forward.7
$region0: #{simple_cnn_forward.7}
  #allocation0 [shape = 'u32[]', space=smem, size = 0x4, offset = 0x4, fixed_abs, tag = 'smem constant byte address 0x4 - core index']
  #allocation1 [shape = 'u32[72,128]{1,0:T(1,128)}', space=vmem, size = 0x9000, scoped, tag = 'internal scratch']
  %s0 = inlined_call_operand.vmem [shape: f32[2,38,64], index: 0, kind: input, shape index: {}]
  %s1 = inlined_call_operand.vmem [shape: bf16[9,64,128], index: 1, kind: input, shape index: {}]
  %s2 = inlined_call_operand.vmem [shape: f32[1,128], index: 2, kind: input, shape index: {}]
  %s3 = inlined_call_operand.vmem [shape: bf16[2,2,6], index: 3, kind: input, shape index: {}]
  %s4 = inlined_call_operand.vmem [shape: f32[2,2,2,128], index: 4, kind: output, shape index: {}]
  %s5 = sld [smem:[#allocation0]]
  $region49: #{simple_cnn_forward.7} parent=0
    _
  %s7 = ssub.s32 1, %s5
  %s8 = scalar_select 0, %s7, %s5
  loop: start=0, step=1, limit=4
  $region2: #{simple_cnn_forward.7} parent=0 // loop_pre_header
    _
  $region3: #{simple_cnn_forward.7} parent=0 // loop_header
    %s10 = sphi 0, %s14
    %p11 = scmp.ge.s32.totalorder %s10, 4
    %s20 = sphi 0, %s22
    %s23 = sphi 0, %s20
    %s24 = sphi 0, %s23
    %s40 = sphi 0, %s24
    %s44 = sphi 0, %s44
    %s46 = sphi 0, %s44
    %s47 = sphi 0, %s46
    %s61 = sphi 0, %s47
    %s65 = sphi 0, %s65
    %s67 = sphi 0, %s65
    %s68 = sphi 0, %s67
    %s82 = sphi 0, %s68
    %s86 = sphi 0, %s86
    %s88 = sphi 0, %s86
    %s89 = sphi 0, %s88
    %s103 = sphi 0, %s89
    %s109 = sphi 0, %s111
    %s112 = sphi 0, %s109
    %s113 = sphi 0, %s112
    %s129 = sphi 0, %s113
  $region4: #{simple_cnn_forward.7} parent=0 // loop_header_branch
    %13 = sbr.rel (%p11) target = $region8
  $region5: #{simple_cnn_forward.7} parent=0 // loop_body
    %s15 = ssub.s32 %s10, 1
    %s16 = ssub.s32 %s10, 2
    %s17 = sadd.s32 %s10, 1
    %s18 = ssub.s32 %s10, %s17
    %p19 = scmp.eq.s32.totalorder %s18, 0
    %s21 = sadd.s32 %s20, 1
    %s22 = scalar_select %p19, %s20, %s21
    %p25 = pneg %p19
    %p26 = scmp.eq.s32.totalorder %s10, 1
    %p27 = por %p25, %p26
    %p28 = scmp.ne.s32.totalorder %s20, %s23
    %p29 = scmp.eq.s32.totalorder %s10, 0
    %p30 = por %p28, %p29
    %p31 = scmp.ne.s32.totalorder %s20, %s23
    %p32 = scmp.eq.s32.totalorder %s15, 1
    %p33 = por %p31, %p32
    %p34 = scmp.ne.s32.totalorder %s23, %s24
    %p35 = scmp.eq.s32.totalorder %s15, 0
    %p36 = por %p34, %p35
    %p37 = scmp.ne.s32.totalorder %s23, %s24
    %p38 = scmp.eq.s32.totalorder %s16, 1
    %p39 = por %p37, %p38
    %p41 = scmp.ne.s32.totalorder %s24, %s40
    %p42 = scmp.eq.s32.totalorder %s16, 0
    %p43 = por %p41, %p42
    %s45 = sadd.s32 %s44, 1
    %p48 = scmp.eq.s32.totalorder %s10, 1
    %p49 = scmp.ne.s32.totalorder %s44, %s46
    %p50 = scmp.eq.s32.totalorder %s10, 0
    %p51 = por %p49, %p50
    %p52 = scmp.ne.s32.totalorder %s44, %s46
    %p53 = scmp.eq.s32.totalorder %s15, 1
    %p54 = por %p52, %p53
    %p55 = scmp.ne.s32.totalorder %s46, %s47
    %p56 = scmp.eq.s32.totalorder %s15, 0
    %p57 = por %p55, %p56
    %p58 = scmp.ne.s32.totalorder %s46, %s47
    %p59 = scmp.eq.s32.totalorder %s16, 1
    %p60 = por %p58, %p59
    %p62 = scmp.ne.s32.totalorder %s47, %s61
    %p63 = scmp.eq.s32.totalorder %s16, 0
    %p64 = por %p62, %p63
    %s66 = sadd.s32 %s65, 1
    %p69 = scmp.eq.s32.totalorder %s10, 1
    %p70 = scmp.ne.s32.totalorder %s65, %s67
    %p71 = scmp.eq.s32.totalorder %s10, 0
    %p72 = por %p70, %p71
    %p73 = scmp.ne.s32.totalorder %s65, %s67
    %p74 = scmp.eq.s32.totalorder %s15, 1
    %p75 = por %p73, %p74
    %p76 = scmp.ne.s32.totalorder %s67, %s68
    %p77 = scmp.eq.s32.totalorder %s15, 0
    %p78 = por %p76, %p77
    %p79 = scmp.ne.s32.totalorder %s67, %s68
    %p80 = scmp.eq.s32.totalorder %s16, 1
    %p81 = por %p79, %p80
    %p83 = scmp.ne.s32.totalorder %s68, %s82
    %p84 = scmp.eq.s32.totalorder %s16, 0
    %p85 = por %p83, %p84
    %s87 = sadd.s32 %s86, 1
    %p90 = scmp.eq.s32.totalorder %s10, 1
    %p91 = scmp.ne.s32.totalorder %s86, %s88
    %p92 = scmp.eq.s32.totalorder %s10, 0
    %p93 = por %p91, %p92
    %p94 = scmp.ne.s32.totalorder %s86, %s88
    %p95 = scmp.eq.s32.totalorder %s15, 1
    %p96 = por %p94, %p95
    %p97 = scmp.ne.s32.totalorder %s88, %s89
    %p98 = scmp.eq.s32.totalorder %s15, 0
    %p99 = por %p97, %p98
    %p100 = scmp.ne.s32.totalorder %s88, %s89
    %p101 = scmp.eq.s32.totalorder %s16, 1
    %p102 = por %p100, %p101
    %p104 = scmp.ne.s32.totalorder %s89, %s103
    %p105 = scmp.eq.s32.totalorder %s16, 0
    %p106 = por %p104, %p105
    %s107 = ssub.s32 %s10, %s17
    %p108 = scmp.eq.s32.totalorder %s107, 0
    %s110 = sadd.s32 %s109, 1
    %s111 = scalar_select %p108, %s109, %s110
    %p114 = pneg %p108
    %p115 = scmp.eq.s32.totalorder %s10, 1
    %p116 = por %p114, %p115
    %p117 = scmp.ne.s32.totalorder %s109, %s112
    %p118 = scmp.eq.s32.totalorder %s10, 0
    %p119 = por %p117, %p118
    %p120 = scmp.ne.s32.totalorder %s109, %s112
    %p121 = scmp.eq.s32.totalorder %s15, 1
    %p122 = por %p120, %p121
    %p123 = scmp.ne.s32.totalorder %s112, %s113
    %p124 = scmp.eq.s32.totalorder %s15, 0
    %p125 = por %p123, %p124
    %p126 = scmp.ne.s32.totalorder %s112, %s113
    %p127 = scmp.eq.s32.totalorder %s16, 1
    %p128 = por %p126, %p127
    %p130 = scmp.ne.s32.totalorder %s113, %s129
    %p131 = scmp.eq.s32.totalorder %s16, 0
    %p132 = por %p130, %p131
    %p133 = scmp.le.s32.totalorder 1, %s10
    %p134 = scmp.lt.s32.totalorder %s10, 3
    %p135 = pnand %p133, %p134
    %p136 = pneg %p135
    // Predicated region
    $region9: #{simple_cnn_forward.7} parent=5 // pred_check
      _
    $region10: #{simple_cnn_forward.7} parent=5 // pred_check_branch
      %138 = sbr.rel (%p135) target = $region12
    $region11: #{simple_cnn_forward.7} parent=5 // pred_region
      %s139 = ssub.s32 %s10, 1
      // Predicated region
      $region13: #{simple_cnn_forward.7} parent=11 // pred_check
        %p140 = pneg %p57
      $region14: #{simple_cnn_forward.7} parent=11 // pred_check_branch
        %142 = sbr.rel (%p140) target = $region16
      $region15: #{simple_cnn_forward.7} parent=11 // pred_region
        _
      $region16: #{simple_cnn_forward.7} parent=11 // pred_fallthru
        _
      // Predicated region
      $region17: #{simple_cnn_forward.7} parent=11 // pred_check
        %p143 = pneg %p78
      $region18: #{simple_cnn_forward.7} parent=11 // pred_check_branch
        %145 = sbr.rel (%p143) target = $region20
      $region19: #{simple_cnn_forward.7} parent=11 // pred_region
        _
      $region20: #{simple_cnn_forward.7} parent=11 // pred_fallthru
        _
      // Predicated region
      $region21: #{simple_cnn_forward.7} parent=11 // pred_check
        %p146 = pneg %p99
      $region22: #{simple_cnn_forward.7} parent=11 // pred_check_branch
        %148 = sbr.rel (%p146) target = $region24
      $region23: #{simple_cnn_forward.7} parent=11 // pred_region
        _
      $region24: #{simple_cnn_forward.7} parent=11 // pred_fallthru
        _
    $region12: #{simple_cnn_forward.7} parent=5 // pred_fallthru
      _
    %p149 = scmp.lt.s32.totalorder %s10, 2
    // Predicated region
    $region25: #{simple_cnn_forward.7} parent=5 // pred_check
      %p150 = pneg %p149
    $region26: #{simple_cnn_forward.7} parent=5 // pred_check_branch
      %152 = sbr.rel (%p150) target = $region28
    $region27: #{simple_cnn_forward.7} parent=5 // pred_region
      // Predicated region
      $region29: #{simple_cnn_forward.7} parent=27 // pred_check
        %p153 = pneg %p30
      $region30: #{simple_cnn_forward.7} parent=27 // pred_check_branch
        %155 = sbr.rel (%p153) target = $region32
      $region31: #{simple_cnn_forward.7} parent=27 // pred_region
        %p156 = scmp.lt.s32.totalorder %s10, 1
        %s157 = scalar_select %p156, %s10, 1
        %s158 = smul.addr %s157, 5
        %s159 = smul.addr %s158, 8
        %s160 = scalar_lea.vmem %s0, %s159
      $region32: #{simple_cnn_forward.7} parent=27 // pred_fallthru
        _
    $region28: #{simple_cnn_forward.7} parent=5 // pred_fallthru
      _
    %p161 = scmp.le.s32.totalorder 1, %s10
    %p162 = scmp.lt.s32.totalorder %s10, 3
    %p163 = pnand %p161, %p162
    %p164 = pneg %p163
    // Predicated region
    $region33: #{simple_cnn_forward.7} parent=5 // pred_check
      _
    $region34: #{simple_cnn_forward.7} parent=5 // pred_check_branch
      %166 = sbr.rel (%p163) target = $region36
    $region35: #{simple_cnn_forward.7} parent=5 // pred_region
      %s167 = ssub.s32 %s10, 1
      %p168 = scmp.lt.s32.totalorder %s15, 1
      %s169 = scalar_select %p168, %s15, 1
      %s170 = smul.addr %s169, 5
      %s171 = smul.addr %s170, 8
      %s172 = scalar_lea.vmem %s0, %s171
      %p173 = pneg %p36
      %p174 = pneg %p33
      %p175 = pneg %p57
      %p176 = pneg %p54
      %p177 = pneg %p78
      %p178 = pneg %p75
      %p179 = pneg %p99
      %p180 = pneg %p96
      %p181 = pneg %p125
      %p182 = pneg %p122
      %p183 = scmp.lt.s32.totalorder %s15, 1
      %s184 = scalar_select %p183, %s15, 1
      %s185 = smul.addr %s184, 2
      %s186 = smul.addr %s185, 2
      %s187 = scalar_lea.vmem %s4, %s186
      %p188 = scmp.lt.s32.totalorder %s15, 1
      %s189 = scalar_select %p188, %s15, 1
      %s190 = smul.addr %s189, 5
      %s191 = smul.addr %s190, 8
      %s192 = scalar_lea.vmem %s0, %s191
      %p193 = scmp.lt.s32.totalorder %s15, 1
      %s194 = scalar_select %p193, %s15, 1
      %s195 = smul.addr %s194, 2
      %s196 = smul.addr %s195, 2
      %s197 = scalar_lea.vmem %s4, %s196
      %v199 = vld [vmem:[%s3] sm:$0x1]
      %s200 = scalar_lea.vmem %s3, 1
      %v201 = vld [vmem:[%s200] sm:$0x1]
      %v202 = vld [vmem:[%s192] sm:$0xff]
      %v203 = vld [vmem:[%s192 + $0x8] sm:$0xf]
      %v204 = vpack.c.bf16 %v203, %v202
      %v205 = vld [vmem:[%s1] sm:$0xf]
      %v206 = vld [vmem:[%s1 + $0x4] sm:$0xf]
      %v207 = vld [vmem:[%s1 + $0x8] sm:$0xf]
      %v208 = vld [vmem:[%s1 + $0xc] sm:$0xf]
      %v209 = vld [vmem:[%s1 + $0x10] sm:$0xf]
      %v210 = vld [vmem:[%s1 + $0x14] sm:$0xf]
      %v211 = vld [vmem:[%s1 + $0x18] sm:$0xf]
      %v212 = vld [vmem:[%s1 + $0x1c] sm:$0xf]
      %v213 = vld [vmem:[%s192 + $0x1] sm:$0xff]
      %v214 = vld [vmem:[%s192 + $0x9] sm:$0xf]
      %v215 = vpack.c.bf16 %v214, %v213
      %s216 = scalar_lea.vmem %s1, 32
      %v217 = vld [vmem:[%s216] sm:$0xf]
      %v218 = vld [vmem:[%s216 + $0x4] sm:$0xf]
      %v219 = vld [vmem:[%s216 + $0x8] sm:$0xf]
      %v220 = vld [vmem:[%s216 + $0xc] sm:$0xf]
      %v221 = vld [vmem:[%s216 + $0x10] sm:$0xf]
      %v222 = vld [vmem:[%s216 + $0x14] sm:$0xf]
      %v223 = vld [vmem:[%s216 + $0x18] sm:$0xf]
      %v224 = vld [vmem:[%s216 + $0x1c] sm:$0xf]
      %v233 = vunpack.c.l.b16 %v217
      %v234 = vunpack.c.l.b16 %v218
      %v235 = vunpack.c.l.b16 %v219
      %v236 = vunpack.c.l.b16 %v220
      %v237 = vunpack.c.l.b16 %v221
      %v238 = vunpack.c.l.b16 %v222
      %v239 = vunpack.c.l.b16 %v223
      %v240 = vunpack.c.l.b16 %v224
      %v241 = vpack.c.b16 %v234, %v233
      %v242 = vpack.c.b16 %v236, %v235
      %v243 = vpack.c.b16 %v238, %v237
      %v244 = vpack.c.b16 %v240, %v239
      %vm249 = vcmask 523264
      %v251 = vsel %vm249, %v215, 0
      %253 = vmatpush.bf16.msra.mxu0 0
      %254 = vmatpush.bf16.msra.mxu0 0
      %255 = vmatpush.bf16.msra.mxu0 0
      %256 = vmatpush.bf16.msra.mxu0 0
      %257 = vmatpush.bf16.msra.mxu0 %v244
      %258 = vmatpush.bf16.msra.mxu0 %v243
      %259 = vmatpush.bf16.msra.mxu0 %v242
      %260 = vmatpush.bf16.msra.mxu0 %v241
      %261 = vmatmul.bf16.gmra.mxu0 %v251
      %v262 = vpop.f32.mrf.mxu0
      %v263 = vadd.f32 0.0, %v262
      %v264 = vpop.f32.mrf.mxu0
      %v265 = vadd.f32 0.0, %v264
      %266 = vdwg.mxu0
      %v275 = vunpack.c.l.b16 %v205
      %v276 = vunpack.c.l.b16 %v206
      %v277 = vunpack.c.l.b16 %v207
      %v278 = vunpack.c.l.b16 %v208
      %v279 = vunpack.c.l.b16 %v209
      %v280 = vunpack.c.l.b16 %v210
      %v281 = vunpack.c.l.b16 %v211
      %v282 = vunpack.c.l.b16 %v212
      %v283 = vpack.c.b16 %v276, %v275
      %v284 = vpack.c.b16 %v278, %v277
      %v285 = vpack.c.b16 %v280, %v279
      %v286 = vpack.c.b16 %v282, %v281
      %v292 = vsel %vm249, %v204, 0
      %294 = vmatpush.bf16.msra.mxu0 0
      %295 = vmatpush.bf16.msra.mxu0 0
      %296 = vmatpush.bf16.msra.mxu0 0
      %297 = vmatpush.bf16.msra.mxu0 0
      %298 = vmatpush.bf16.msra.mxu0 %v286
      %299 = vmatpush.bf16.msra.mxu0 %v285
      %300 = vmatpush.bf16.msra.mxu0 %v284
      %301 = vmatpush.bf16.msra.mxu0 %v283
      %302 = vmatmul.bf16.gmra.mxu0 %v292
      %v303 = vpop.f32.mrf.mxu0
      %v304 = vadd.f32 %v263, %v303
      %v305 = vpop.f32.mrf.mxu0
      %v306 = vadd.f32 %v265, %v305
      %307 = vdwg.mxu0
      %v308 = vld [vmem:[%s192 + $0x2] sm:$0xff]
      %v309 = vld [vmem:[%s192 + $0xa] sm:$0xf]
      %v310 = vpack.c.bf16 %v309, %v308
      %s311 = scalar_lea.vmem %s1, 64
      %v312 = vld [vmem:[%s311] sm:$0xf]
      %v313 = vld [vmem:[%s311 + $0x4] sm:$0xf]
      %v314 = vld [vmem:[%s311 + $0x8] sm:$0xf]
      %v315 = vld [vmem:[%s311 + $0xc] sm:$0xf]
      %v316 = vld [vmem:[%s311 + $0x10] sm:$0xf]
      %v317 = vld [vmem:[%s311 + $0x14] sm:$0xf]
      %v318 = vld [vmem:[%s311 + $0x18] sm:$0xf]
      %v319 = vld [vmem:[%s311 + $0x1c] sm:$0xf]
      %v328 = vunpack.c.l.b16 %v312
      %v329 = vunpack.c.l.b16 %v313
      %v330 = vunpack.c.l.b16 %v314
      %v331 = vunpack.c.l.b16 %v315
      %v332 = vunpack.c.l.b16 %v316
      %v333 = vunpack.c.l.b16 %v317
      %v334 = vunpack.c.l.b16 %v318
      %v335 = vunpack.c.l.b16 %v319
      %v336 = vpack.c.b16 %v329, %v328
      %v337 = vpack.c.b16 %v331, %v330
      %v338 = vpack.c.b16 %v333, %v332
      %v339 = vpack.c.b16 %v335, %v334
      %v345 = vsel %vm249, %v310, 0
      %347 = vmatpush.bf16.msra.mxu0 0
      %348 = vmatpush.bf16.msra.mxu0 0
      %349 = vmatpush.bf16.msra.mxu0 0
      %350 = vmatpush.bf16.msra.mxu0 0
      %351 = vmatpush.bf16.msra.mxu0 %v339
      %352 = vmatpush.bf16.msra.mxu0 %v338
      %353 = vmatpush.bf16.msra.mxu0 %v337
      %354 = vmatpush.bf16.msra.mxu0 %v336
      %355 = vmatmul.bf16.gmra.mxu0 %v345
      %v356 = vpop.f32.mrf.mxu0
      %v357 = vadd.f32 0.0, %v356
      %v358 = vpop.f32.mrf.mxu0
      %v359 = vadd.f32 0.0, %v358
      %360 = vdwg.mxu0
      %v361 = vadd.f32 %v304, %v357
      %v362 = vadd.f32 %v306, %v359
      %v363 = vld [vmem:[%s192 + $0x6] sm:$0xff]
      %v364 = vld [vmem:[%s192 + $0xe] sm:$0xf]
      %v365 = vpack.c.bf16 %v364, %v363
      %s366 = scalar_lea.vmem %s1, 96
      %v367 = vld [vmem:[%s366] sm:$0xf]
      %v368 = vld [vmem:[%s366 + $0x4] sm:$0xf]
      %v369 = vld [vmem:[%s366 + $0x8] sm:$0xf]
      %v370 = vld [vmem:[%s366 + $0xc] sm:$0xf]
      %v371 = vld [vmem:[%s366 + $0x10] sm:$0xf]
      %v372 = vld [vmem:[%s366 + $0x14] sm:$0xf]
      %v373 = vld [vmem:[%s366 + $0x18] sm:$0xf]
      %v374 = vld [vmem:[%s366 + $0x1c] sm:$0xf]
      %v383 = vunpack.c.l.b16 %v367
      %v384 = vunpack.c.l.b16 %v368
      %v385 = vunpack.c.l.b16 %v369
      %v386 = vunpack.c.l.b16 %v370
      %v387 = vunpack.c.l.b16 %v371
      %v388 = vunpack.c.l.b16 %v372
      %v389 = vunpack.c.l.b16 %v373
      %v390 = vunpack.c.l.b16 %v374
      %v391 = vpack.c.b16 %v384, %v383
      %v392 = vpack.c.b16 %v386, %v385
      %v393 = vpack.c.b16 %v388, %v387
      %v394 = vpack.c.b16 %v390, %v389
      %v400 = vsel %vm249, %v365, 0
      %402 = vmatpush.bf16.msra.mxu0 0
      %403 = vmatpush.bf16.msra.mxu0 0
      %404 = vmatpush.bf16.msra.mxu0 0
      %405 = vmatpush.bf16.msra.mxu0 0
      %406 = vmatpush.bf16.msra.mxu0 %v394
      %407 = vmatpush.bf16.msra.mxu0 %v393
      %408 = vmatpush.bf16.msra.mxu0 %v392
      %409 = vmatpush.bf16.msra.mxu0 %v391
      %410 = vmatmul.bf16.gmra.mxu0 %v400
      %v411 = vpop.f32.mrf.mxu0
      %v412 = vadd.f32 0.0, %v411
      %v413 = vpop.f32.mrf.mxu0
      %v414 = vadd.f32 0.0, %v413
      %415 = vdwg.mxu0
      %v416 = vadd.f32 %v361, %v412
      %v417 = vadd.f32 %v362, %v414
      %v418 = vld [vmem:[%s192 + $0x7] sm:$0xff]
      %v419 = vld [vmem:[%s192 + $0xf] sm:$0xf]
      %v420 = vpack.c.bf16 %v419, %v418
      %s421 = scalar_lea.vmem %s1, 128
      %v422 = vld [vmem:[%s421] sm:$0xf]
      %v423 = vld [vmem:[%s421 + $0x4] sm:$0xf]
      %v424 = vld [vmem:[%s421 + $0x8] sm:$0xf]
      %v425 = vld [vmem:[%s421 + $0xc] sm:$0xf]
      %v426 = vld [vmem:[%s421 + $0x10] sm:$0xf]
      %v427 = vld [vmem:[%s421 + $0x14] sm:$0xf]
      %v428 = vld [vmem:[%s421 + $0x18] sm:$0xf]
      %v429 = vld [vmem:[%s421 + $0x1c] sm:$0xf]
      %v438 = vunpack.c.l.b16 %v422
      %v439 = vunpack.c.l.b16 %v423
      %v440 = vunpack.c.l.b16 %v424
      %v441 = vunpack.c.l.b16 %v425
      %v442 = vunpack.c.l.b16 %v426
      %v443 = vunpack.c.l.b16 %v427
      %v444 = vunpack.c.l.b16 %v428
      %v445 = vunpack.c.l.b16 %v429
      %v446 = vpack.c.b16 %v439, %v438
      %v447 = vpack.c.b16 %v441, %v440
      %v448 = vpack.c.b16 %v443, %v442
      %v449 = vpack.c.b16 %v445, %v444
      %v455 = vsel %vm249, %v420, 0
      %457 = vmatpush.bf16.msra.mxu0 0
      %458 = vmatpush.bf16.msra.mxu0 0
      %459 = vmatpush.bf16.msra.mxu0 0
      %460 = vmatpush.bf16.msra.mxu0 0
      %461 = vmatpush.bf16.msra.mxu0 %v449
      %462 = vmatpush.bf16.msra.mxu0 %v448
      %463 = vmatpush.bf16.msra.mxu0 %v447
      %464 = vmatpush.bf16.msra.mxu0 %v446
      %465 = vmatmul.bf16.gmra.mxu0 %v455
      %v466 = vpop.f32.mrf.mxu0
      %v467 = vadd.f32 0.0, %v466
      %v468 = vpop.f32.mrf.mxu0
      %v469 = vadd.f32 0.0, %v468
      %470 = vdwg.mxu0
      %v471 = vadd.f32 %v416, %v467
      %v472 = vadd.f32 %v417, %v469
      %v473 = vld [vmem:[%s192 + $0x8] sm:$0xff]
      %v474 = vld [vmem:[%s192 + $0x10] sm:$0xf]
      %v475 = vpack.c.bf16 %v474, %v473
      %s476 = scalar_lea.vmem %s1, 160
      %v477 = vld [vmem:[%s476] sm:$0xf]
      %v478 = vld [vmem:[%s476 + $0x4] sm:$0xf]
      %v479 = vld [vmem:[%s476 + $0x8] sm:$0xf]
      %v480 = vld [vmem:[%s476 + $0xc] sm:$0xf]
      %v481 = vld [vmem:[%s476 + $0x10] sm:$0xf]
      %v482 = vld [vmem:[%s476 + $0x14] sm:$0xf]
      %v483 = vld [vmem:[%s476 + $0x18] sm:$0xf]
      %v484 = vld [vmem:[%s476 + $0x1c] sm:$0xf]
      %v493 = vunpack.c.l.b16 %v477
      %v494 = vunpack.c.l.b16 %v478
      %v495 = vunpack.c.l.b16 %v479
      %v496 = vunpack.c.l.b16 %v480
      %v497 = vunpack.c.l.b16 %v481
      %v498 = vunpack.c.l.b16 %v482
      %v499 = vunpack.c.l.b16 %v483
      %v500 = vunpack.c.l.b16 %v484
      %v501 = vpack.c.b16 %v494, %v493
      %v502 = vpack.c.b16 %v496, %v495
      %v503 = vpack.c.b16 %v498, %v497
      %v504 = vpack.c.b16 %v500, %v499
      %v510 = vsel %vm249, %v475, 0
      %512 = vmatpush.bf16.msra.mxu0 0
      %513 = vmatpush.bf16.msra.mxu0 0
      %514 = vmatpush.bf16.msra.mxu0 0
      %515 = vmatpush.bf16.msra.mxu0 0
      %516 = vmatpush.bf16.msra.mxu0 %v504
      %517 = vmatpush.bf16.msra.mxu0 %v503
      %518 = vmatpush.bf16.msra.mxu0 %v502
      %519 = vmatpush.bf16.msra.mxu0 %v501
      %520 = vmatmul.bf16.gmra.mxu0 %v510
      %v521 = vpop.f32.mrf.mxu0
      %v522 = vadd.f32 0.0, %v521
      %v523 = vpop.f32.mrf.mxu0
      %v524 = vadd.f32 0.0, %v523
      %525 = vdwg.mxu0
      %v526 = vadd.f32 %v471, %v522
      %v527 = vadd.f32 %v472, %v524
      %v528 = vld [vmem:[%s192 + $0xc] sm:$0xff]
      %v529 = vld [vmem:[%s192 + $0x14] sm:$0xf]
      %v530 = vpack.c.bf16 %v529, %v528
      %s531 = scalar_lea.vmem %s1, 192
      %v532 = vld [vmem:[%s531] sm:$0xf]
      %v533 = vld [vmem:[%s531 + $0x4] sm:$0xf]
      %v534 = vld [vmem:[%s531 + $0x8] sm:$0xf]
      %v535 = vld [vmem:[%s531 + $0xc] sm:$0xf]
      %v536 = vld [vmem:[%s531 + $0x10] sm:$0xf]
      %v537 = vld [vmem:[%s531 + $0x14] sm:$0xf]
      %v538 = vld [vmem:[%s531 + $0x18] sm:$0xf]
      %v539 = vld [vmem:[%s531 + $0x1c] sm:$0xf]
      %v548 = vunpack.c.l.b16 %v532
      %v549 = vunpack.c.l.b16 %v533
      %v550 = vunpack.c.l.b16 %v534
      %v551 = vunpack.c.l.b16 %v535
      %v552 = vunpack.c.l.b16 %v536
      %v553 = vunpack.c.l.b16 %v537
      %v554 = vunpack.c.l.b16 %v538
      %v555 = vunpack.c.l.b16 %v539
      %v556 = vpack.c.b16 %v549, %v548
      %v557 = vpack.c.b16 %v551, %v550
      %v558 = vpack.c.b16 %v553, %v552
      %v559 = vpack.c.b16 %v555, %v554
      %v565 = vsel %vm249, %v530, 0
      %567 = vmatpush.bf16.msra.mxu0 0
      %568 = vmatpush.bf16.msra.mxu0 0
      %569 = vmatpush.bf16.msra.mxu0 0
      %570 = vmatpush.bf16.msra.mxu0 0
      %571 = vmatpush.bf16.msra.mxu0 %v559
      %572 = vmatpush.bf16.msra.mxu0 %v558
      %573 = vmatpush.bf16.msra.mxu0 %v557
      %574 = vmatpush.bf16.msra.mxu0 %v556
      %575 = vmatmul.bf16.gmra.mxu0 %v565
      %v576 = vpop.f32.mrf.mxu0
      %v577 = vadd.f32 0.0, %v576
      %v578 = vpop.f32.mrf.mxu0
      %v579 = vadd.f32 0.0, %v578
      %580 = vdwg.mxu0
      %v581 = vadd.f32 %v526, %v577
      %v582 = vadd.f32 %v527, %v579
      %v583 = vld [vmem:[%s192 + $0xd] sm:$0xff]
      %v584 = vld [vmem:[%s192 + $0x15] sm:$0xf]
      %v585 = vpack.c.bf16 %v584, %v583
      %s586 = scalar_lea.vmem %s1, 224
      %v587 = vld [vmem:[%s586] sm:$0xf]
      %v588 = vld [vmem:[%s586 + $0x4] sm:$0xf]
      %v589 = vld [vmem:[%s586 + $0x8] sm:$0xf]
      %v590 = vld [vmem:[%s586 + $0xc] sm:$0xf]
      %v591 = vld [vmem:[%s586 + $0x10] sm:$0xf]
      %v592 = vld [vmem:[%s586 + $0x14] sm:$0xf]
      %v593 = vld [vmem:[%s586 + $0x18] sm:$0xf]
      %v594 = vld [vmem:[%s586 + $0x1c] sm:$0xf]
      %v603 = vunpack.c.l.b16 %v587
      %v604 = vunpack.c.l.b16 %v588
      %v605 = vunpack.c.l.b16 %v589
      %v606 = vunpack.c.l.b16 %v590
      %v607 = vunpack.c.l.b16 %v591
      %v608 = vunpack.c.l.b16 %v592
      %v609 = vunpack.c.l.b16 %v593
      %v610 = vunpack.c.l.b16 %v594
      %v611 = vpack.c.b16 %v604, %v603
      %v612 = vpack.c.b16 %v606, %v605
      %v613 = vpack.c.b16 %v608, %v607
      %v614 = vpack.c.b16 %v610, %v609
      %v620 = vsel %vm249, %v585, 0
      %622 = vmatpush.bf16.msra.mxu0 0
      %623 = vmatpush.bf16.msra.mxu0 0
      %624 = vmatpush.bf16.msra.mxu0 0
      %625 = vmatpush.bf16.msra.mxu0 0
      %626 = vmatpush.bf16.msra.mxu0 %v614
      %627 = vmatpush.bf16.msra.mxu0 %v613
      %628 = vmatpush.bf16.msra.mxu0 %v612
      %629 = vmatpush.bf16.msra.mxu0 %v611
      %630 = vmatmul.bf16.gmra.mxu0 %v620
      %v631 = vpop.f32.mrf.mxu0
      %v632 = vadd.f32 0.0, %v631
      %v633 = vpop.f32.mrf.mxu0
      %v634 = vadd.f32 0.0, %v633
      %635 = vdwg.mxu0
      %v636 = vadd.f32 %v581, %v632
      %v637 = vadd.f32 %v582, %v634
      %v638 = vld [vmem:[%s192 + $0xe] sm:$0xff]
      %v639 = vld [vmem:[%s192 + $0x16] sm:$0xf]
      %v640 = vpack.c.bf16 %v639, %v638
      %s641 = scalar_lea.vmem %s1, 256
      %v642 = vld [vmem:[%s641] sm:$0xf]
      %v643 = vld [vmem:[%s641 + $0x4] sm:$0xf]
      %v644 = vld [vmem:[%s641 + $0x8] sm:$0xf]
      %v645 = vld [vmem:[%s641 + $0xc] sm:$0xf]
      %v646 = vld [vmem:[%s641 + $0x10] sm:$0xf]
      %v647 = vld [vmem:[%s641 + $0x14] sm:$0xf]
      %v648 = vld [vmem:[%s641 + $0x18] sm:$0xf]
      %v649 = vld [vmem:[%s641 + $0x1c] sm:$0xf]
      %v658 = vunpack.c.l.b16 %v642
      %v659 = vunpack.c.l.b16 %v643
      %v660 = vunpack.c.l.b16 %v644
      %v661 = vunpack.c.l.b16 %v645
      %v662 = vunpack.c.l.b16 %v646
      %v663 = vunpack.c.l.b16 %v647
      %v664 = vunpack.c.l.b16 %v648
      %v665 = vunpack.c.l.b16 %v649
      %v666 = vpack.c.b16 %v659, %v658
      %v667 = vpack.c.b16 %v661, %v660
      %v668 = vpack.c.b16 %v663, %v662
      %v669 = vpack.c.b16 %v665, %v664
      %v675 = vsel %vm249, %v640, 0
      %677 = vmatpush.bf16.msra.mxu0 0
      %678 = vmatpush.bf16.msra.mxu0 0
      %679 = vmatpush.bf16.msra.mxu0 0
      %680 = vmatpush.bf16.msra.mxu0 0
      %681 = vmatpush.bf16.msra.mxu0 %v669
      %682 = vmatpush.bf16.msra.mxu0 %v668
      %683 = vmatpush.bf16.msra.mxu0 %v667
      %684 = vmatpush.bf16.msra.mxu0 %v666
      %685 = vmatmul.bf16.gmra.mxu0 %v675
      %v686 = vpop.f32.mrf.mxu0
      %v687 = vadd.f32 0.0, %v686
      %v688 = vpop.f32.mrf.mxu0
      %v689 = vadd.f32 0.0, %v688
      %690 = vdwg.mxu0
      %v691 = vadd.f32 %v636, %v687
      %v692 = vadd.f32 %v637, %v689
      %v693 = vld [vmem:[%s2] sm:$0x1]
      %v695 = vperm.slane %v693, 0
      %v697 = vadd.f32 %v691, %v695
      %v698 = vadd.f32 %v692, %v695
      %v699 = vmax.f32 %v697, 0.0
      %v700 = vmax.f32 %v698, 0.0
      %vm703 = vcmask 1041408
      %v704 = vrot.slane %v699, 6
      %v705 = vrot.slane %v700, 6
      %v706 = vsel %vm703, %v704, %v705
      %v708 = vmax.f32 %v699, %v706
      %v709 = vpack.c.bf16 %v708, %v708
      %vm710 = vcmask 48128
      %v712 = vsel %vm710, %v199, 0
      %vm714 = vcmask 1042432
      %v716 = vsel %vm714, %v709, 0
      %718 = vmatpush.bf16.msra.mxu0 0
      %719 = vmatpush.bf16.msra.mxu0 0
      %720 = vmatpush.bf16.msra.mxu0 0
      %721 = vmatpush.bf16.msra.mxu0 0
      %722 = vmatpush.bf16.msra.mxu0 0
      %723 = vmatpush.bf16.msra.mxu0 0
      %724 = vmatpush.bf16.msra.mxu0 0
      %725 = vmatpush.bf16.msra.mxu0 %v716
      %726 = vmatmul.bf16.gmra.mxu0 %v712
      %v727 = vpop.f32.mrf.mxu0
      %v728 = vadd.f32 0.0, %v727
      %v729 = vpop.f32.mrf.mxu0
      %730 = vdwg.mxu0
      %v732 = vsel %vm710, %v201, 0
      %734 = vmatpush.bf16.msra.mxu0 0
      %735 = vmatpush.bf16.msra.mxu0 0
      %736 = vmatpush.bf16.msra.mxu0 0
      %737 = vmatpush.bf16.msra.mxu0 0
      %738 = vmatpush.bf16.msra.mxu0 0
      %739 = vmatpush.bf16.msra.mxu0 0
      %740 = vmatpush.bf16.msra.mxu0 0
      %741 = vmatpush.bf16.msra.mxu0 %v716
      %742 = vmatmul.bf16.gmra.mxu0 %v732
      %v743 = vpop.f32.mrf.mxu0
      %v744 = vadd.f32 0.0, %v743
      %v745 = vpop.f32.mrf.mxu0
      %746 = vdwg.mxu0
      %v747 = vmax.f32 %v728, %v744
      %748 = vst [vmem:[%s197] sm:$0x3] %v747
      %v749 = vld [vmem:[%s192 + $0xc] sm:$0xff]
      %v750 = vld [vmem:[%s192 + $0x14] sm:$0xf]
      %v751 = vpack.c.bf16 %v750, %v749
      %v752 = vld [vmem:[%s1] sm:$0xf]
      %v753 = vld [vmem:[%s1 + $0x4] sm:$0xf]
      %v754 = vld [vmem:[%s1 + $0x8] sm:$0xf]
      %v755 = vld [vmem:[%s1 + $0xc] sm:$0xf]
      %v756 = vld [vmem:[%s1 + $0x10] sm:$0xf]
      %v757 = vld [vmem:[%s1 + $0x14] sm:$0xf]
      %v758 = vld [vmem:[%s1 + $0x18] sm:$0xf]
      %v759 = vld [vmem:[%s1 + $0x1c] sm:$0xf]
      %v760 = vld [vmem:[%s192 + $0xd] sm:$0xff]
      %v761 = vld [vmem:[%s192 + $0x15] sm:$0xf]
      %v762 = vpack.c.bf16 %v761, %v760
      %v763 = vld [vmem:[%s216] sm:$0xf]
      %v764 = vld [vmem:[%s216 + $0x4] sm:$0xf]
      %v765 = vld [vmem:[%s216 + $0x8] sm:$0xf]
      %v766 = vld [vmem:[%s216 + $0xc] sm:$0xf]
      %v767 = vld [vmem:[%s216 + $0x10] sm:$0xf]
      %v768 = vld [vmem:[%s216 + $0x14] sm:$0xf]
      %v769 = vld [vmem:[%s216 + $0x18] sm:$0xf]
      %v770 = vld [vmem:[%s216 + $0x1c] sm:$0xf]
      %v779 = vunpack.c.l.b16 %v763
      %v780 = vunpack.c.l.b16 %v764
      %v781 = vunpack.c.l.b16 %v765
      %v782 = vunpack.c.l.b16 %v766
      %v783 = vunpack.c.l.b16 %v767
      %v784 = vunpack.c.l.b16 %v768
      %v785 = vunpack.c.l.b16 %v769
      %v786 = vunpack.c.l.b16 %v770
      %v787 = vpack.c.b16 %v780, %v779
      %v788 = vpack.c.b16 %v782, %v781
      %v789 = vpack.c.b16 %v784, %v783
      %v790 = vpack.c.b16 %v786, %v785
      %v796 = vsel %vm249, %v762, 0
      %798 = vmatpush.bf16.msra.mxu0 0
      %799 = vmatpush.bf16.msra.mxu0 0
      %800 = vmatpush.bf16.msra.mxu0 0
      %801 = vmatpush.bf16.msra.mxu0 0
      %802 = vmatpush.bf16.msra.mxu0 %v790
      %803 = vmatpush.bf16.msra.mxu0 %v789
      %804 = vmatpush.bf16.msra.mxu0 %v788
      %805 = vmatpush.bf16.msra.mxu0 %v787
      %806 = vmatmul.bf16.gmra.mxu0 %v796
      %v807 = vpop.f32.mrf.mxu0
      %v808 = vadd.f32 0.0, %v807
      %v809 = vpop.f32.mrf.mxu0
      %v810 = vadd.f32 0.0, %v809
      %811 = vdwg.mxu0
      %v820 = vunpack.c.l.b16 %v752
      %v821 = vunpack.c.l.b16 %v753
      %v822 = vunpack.c.l.b16 %v754
      %v823 = vunpack.c.l.b16 %v755
      %v824 = vunpack.c.l.b16 %v756
      %v825 = vunpack.c.l.b16 %v757
      %v826 = vunpack.c.l.b16 %v758
      %v827 = vunpack.c.l.b16 %v759
      %v828 = vpack.c.b16 %v821, %v820
      %v829 = vpack.c.b16 %v823, %v822
      %v830 = vpack.c.b16 %v825, %v824
      %v831 = vpack.c.b16 %v827, %v826
      %v837 = vsel %vm249, %v751, 0
      %839 = vmatpush.bf16.msra.mxu0 0
      %840 = vmatpush.bf16.msra.mxu0 0
      %841 = vmatpush.bf16.msra.mxu0 0
      %842 = vmatpush.bf16.msra.mxu0 0
      %843 = vmatpush.bf16.msra.mxu0 %v831
      %844 = vmatpush.bf16.msra.mxu0 %v830
      %845 = vmatpush.bf16.msra.mxu0 %v829
      %846 = vmatpush.bf16.msra.mxu0 %v828
      %847 = vmatmul.bf16.gmra.mxu0 %v837
      %v848 = vpop.f32.mrf.mxu0
      %v849 = vadd.f32 %v808, %v848
      %v850 = vpop.f32.mrf.mxu0
      %v851 = vadd.f32 %v810, %v850
      %852 = vdwg.mxu0
      %v853 = vld [vmem:[%s192 + $0xe] sm:$0xff]
      %v854 = vld [vmem:[%s192 + $0x16] sm:$0xf]
      %v855 = vpack.c.bf16 %v854, %v853
      %v856 = vld [vmem:[%s311] sm:$0xf]
      %v857 = vld [vmem:[%s311 + $0x4] sm:$0xf]
      %v858 = vld [vmem:[%s311 + $0x8] sm:$0xf]
      %v859 = vld [vmem:[%s311 + $0xc] sm:$0xf]
      %v860 = vld [vmem:[%s311 + $0x10] sm:$0xf]
      %v861 = vld [vmem:[%s311 + $0x14] sm:$0xf]
      %v862 = vld [vmem:[%s311 + $0x18] sm:$0xf]
      %v863 = vld [vmem:[%s311 + $0x1c] sm:$0xf]
      %v872 = vunpack.c.l.b16 %v856
      %v873 = vunpack.c.l.b16 %v857
      %v874 = vunpack.c.l.b16 %v858
      %v875 = vunpack.c.l.b16 %v859
      %v876 = vunpack.c.l.b16 %v860
      %v877 = vunpack.c.l.b16 %v861
      %v878 = vunpack.c.l.b16 %v862
      %v879 = vunpack.c.l.b16 %v863
      %v880 = vpack.c.b16 %v873, %v872
      %v881 = vpack.c.b16 %v875, %v874
      %v882 = vpack.c.b16 %v877, %v876
      %v883 = vpack.c.b16 %v879, %v878
      %v889 = vsel %vm249, %v855, 0
      %891 = vmatpush.bf16.msra.mxu0 0
      %892 = vmatpush.bf16.msra.mxu0 0
      %893 = vmatpush.bf16.msra.mxu0 0
      %894 = vmatpush.bf16.msra.mxu0 0
      %895 = vmatpush.bf16.msra.mxu0 %v883
      %896 = vmatpush.bf16.msra.mxu0 %v882
      %897 = vmatpush.bf16.msra.mxu0 %v881
      %898 = vmatpush.bf16.msra.mxu0 %v880
      %899 = vmatmul.bf16.gmra.mxu0 %v889
      %v900 = vpop.f32.mrf.mxu0
      %v901 = vadd.f32 0.0, %v900
      %v902 = vpop.f32.mrf.mxu0
      %v903 = vadd.f32 0.0, %v902
      %904 = vdwg.mxu0
      %v905 = vadd.f32 %v849, %v901
      %v906 = vadd.f32 %v851, %v903
      %v907 = vld [vmem:[%s192 + $0x12] sm:$0xff]
      %v908 = vld [vmem:[%s192 + $0x1a] sm:$0xf]
      %v909 = vpack.c.bf16 %v908, %v907
      %v910 = vld [vmem:[%s366] sm:$0xf]
      %v911 = vld [vmem:[%s366 + $0x4] sm:$0xf]
      %v912 = vld [vmem:[%s366 + $0x8] sm:$0xf]
      %v913 = vld [vmem:[%s366 + $0xc] sm:$0xf]
      %v914 = vld [vmem:[%s366 + $0x10] sm:$0xf]
      %v915 = vld [vmem:[%s366 + $0x14] sm:$0xf]
      %v916 = vld [vmem:[%s366 + $0x18] sm:$0xf]
      %v917 = vld [vmem:[%s366 + $0x1c] sm:$0xf]
      %v926 = vunpack.c.l.b16 %v910
      %v927 = vunpack.c.l.b16 %v911
      %v928 = vunpack.c.l.b16 %v912
      %v929 = vunpack.c.l.b16 %v913
      %v930 = vunpack.c.l.b16 %v914
      %v931 = vunpack.c.l.b16 %v915
      %v932 = vunpack.c.l.b16 %v916
      %v933 = vunpack.c.l.b16 %v917
      %v934 = vpack.c.b16 %v927, %v926
      %v935 = vpack.c.b16 %v929, %v928
      %v936 = vpack.c.b16 %v931, %v930
      %v937 = vpack.c.b16 %v933, %v932
      %v943 = vsel %vm249, %v909, 0
      %945 = vmatpush.bf16.msra.mxu0 0
      %946 = vmatpush.bf16.msra.mxu0 0
      %947 = vmatpush.bf16.msra.mxu0 0
      %948 = vmatpush.bf16.msra.mxu0 0
      %949 = vmatpush.bf16.msra.mxu0 %v937
      %950 = vmatpush.bf16.msra.mxu0 %v936
      %951 = vmatpush.bf16.msra.mxu0 %v935
      %952 = vmatpush.bf16.msra.mxu0 %v934
      %953 = vmatmul.bf16.gmra.mxu0 %v943
      %v954 = vpop.f32.mrf.mxu0
      %v955 = vadd.f32 0.0, %v954
      %v956 = vpop.f32.mrf.mxu0
      %v957 = vadd.f32 0.0, %v956
      %958 = vdwg.mxu0
      %v959 = vadd.f32 %v905, %v955
      %v960 = vadd.f32 %v906, %v957
      %v961 = vld [vmem:[%s192 + $0x13] sm:$0xff]
      %v962 = vld [vmem:[%s192 + $0x1b] sm:$0xf]
      %v963 = vpack.c.bf16 %v962, %v961
      %v964 = vld [vmem:[%s421] sm:$0xf]
      %v965 = vld [vmem:[%s421 + $0x4] sm:$0xf]
      %v966 = vld [vmem:[%s421 + $0x8] sm:$0xf]
      %v967 = vld [vmem:[%s421 + $0xc] sm:$0xf]
      %v968 = vld [vmem:[%s421 + $0x10] sm:$0xf]
      %v969 = vld [vmem:[%s421 + $0x14] sm:$0xf]
      %v970 = vld [vmem:[%s421 + $0x18] sm:$0xf]
      %v971 = vld [vmem:[%s421 + $0x1c] sm:$0xf]
      %v980 = vunpack.c.l.b16 %v964
      %v981 = vunpack.c.l.b16 %v965
      %v982 = vunpack.c.l.b16 %v966
      %v983 = vunpack.c.l.b16 %v967
      %v984 = vunpack.c.l.b16 %v968
      %v985 = vunpack.c.l.b16 %v969
      %v986 = vunpack.c.l.b16 %v970
      %v987 = vunpack.c.l.b16 %v971
      %v988 = vpack.c.b16 %v981, %v980
      %v989 = vpack.c.b16 %v983, %v982
      %v990 = vpack.c.b16 %v985, %v984
      %v991 = vpack.c.b16 %v987, %v986
      %v997 = vsel %vm249, %v963, 0
      %999 = vmatpush.bf16.msra.mxu0 0
      %1000 = vmatpush.bf16.msra.mxu0 0
      %1001 = vmatpush.bf16.msra.mxu0 0
      %1002 = vmatpush.bf16.msra.mxu0 0
      %1003 = vmatpush.bf16.msra.mxu0 %v991
      %1004 = vmatpush.bf16.msra.mxu0 %v990
      %1005 = vmatpush.bf16.msra.mxu0 %v989
      %1006 = vmatpush.bf16.msra.mxu0 %v988
      %1007 = vmatmul.bf16.gmra.mxu0 %v997
      %v1008 = vpop.f32.mrf.mxu0
      %v1009 = vadd.f32 0.0, %v1008
      %v1010 = vpop.f32.mrf.mxu0
      %v1011 = vadd.f32 0.0, %v1010
      %1012 = vdwg.mxu0
      %v1013 = vadd.f32 %v959, %v1009
      %v1014 = vadd.f32 %v960, %v1011
      %v1015 = vld [vmem:[%s192 + $0x14] sm:$0xff]
      %v1016 = vld [vmem:[%s192 + $0x1c] sm:$0xf]
      %v1017 = vpack.c.bf16 %v1016, %v1015
      %v1018 = vld [vmem:[%s476] sm:$0xf]
      %v1019 = vld [vmem:[%s476 + $0x4] sm:$0xf]
      %v1020 = vld [vmem:[%s476 + $0x8] sm:$0xf]
      %v1021 = vld [vmem:[%s476 + $0xc] sm:$0xf]
      %v1022 = vld [vmem:[%s476 + $0x10] sm:$0xf]
      %v1023 = vld [vmem:[%s476 + $0x14] sm:$0xf]
      %v1024 = vld [vmem:[%s476 + $0x18] sm:$0xf]
      %v1025 = vld [vmem:[%s476 + $0x1c] sm:$0xf]
      %v1034 = vunpack.c.l.b16 %v1018
      %v1035 = vunpack.c.l.b16 %v1019
      %v1036 = vunpack.c.l.b16 %v1020
      %v1037 = vunpack.c.l.b16 %v1021
      %v1038 = vunpack.c.l.b16 %v1022
      %v1039 = vunpack.c.l.b16 %v1023
      %v1040 = vunpack.c.l.b16 %v1024
      %v1041 = vunpack.c.l.b16 %v1025
      %v1042 = vpack.c.b16 %v1035, %v1034
      %v1043 = vpack.c.b16 %v1037, %v1036
      %v1044 = vpack.c.b16 %v1039, %v1038
      %v1045 = vpack.c.b16 %v1041, %v1040
      %v1051 = vsel %vm249, %v1017, 0
      %1053 = vmatpush.bf16.msra.mxu0 0
      %1054 = vmatpush.bf16.msra.mxu0 0
      %1055 = vmatpush.bf16.msra.mxu0 0
      %1056 = vmatpush.bf16.msra.mxu0 0
      %1057 = vmatpush.bf16.msra.mxu0 %v1045
      %1058 = vmatpush.bf16.msra.mxu0 %v1044
      %1059 = vmatpush.bf16.msra.mxu0 %v1043
      %1060 = vmatpush.bf16.msra.mxu0 %v1042
      %1061 = vmatmul.bf16.gmra.mxu0 %v1051
      %v1062 = vpop.f32.mrf.mxu0
      %v1063 = vadd.f32 0.0, %v1062
      %v1064 = vpop.f32.mrf.mxu0
      %v1065 = vadd.f32 0.0, %v1064
      %1066 = vdwg.mxu0
      %v1067 = vadd.f32 %v1013, %v1063
      %v1068 = vadd.f32 %v1014, %v1065
      %v1069 = vld [vmem:[%s192 + $0x18] sm:$0xff]
      %v1070 = vld [vmem:[%s192 + $0x20] sm:$0xf]
      %v1071 = vpack.c.bf16 %v1070, %v1069
      %v1072 = vld [vmem:[%s531] sm:$0xf]
      %v1073 = vld [vmem:[%s531 + $0x4] sm:$0xf]
      %v1074 = vld [vmem:[%s531 + $0x8] sm:$0xf]
      %v1075 = vld [vmem:[%s531 + $0xc] sm:$0xf]
      %v1076 = vld [vmem:[%s531 + $0x10] sm:$0xf]
      %v1077 = vld [vmem:[%s531 + $0x14] sm:$0xf]
      %v1078 = vld [vmem:[%s531 + $0x18] sm:$0xf]
      %v1079 = vld [vmem:[%s531 + $0x1c] sm:$0xf]
      %v1088 = vunpack.c.l.b16 %v1072
      %v1089 = vunpack.c.l.b16 %v1073
      %v1090 = vunpack.c.l.b16 %v1074
      %v1091 = vunpack.c.l.b16 %v1075
      %v1092 = vunpack.c.l.b16 %v1076
      %v1093 = vunpack.c.l.b16 %v1077
      %v1094 = vunpack.c.l.b16 %v1078
      %v1095 = vunpack.c.l.b16 %v1079
      %v1096 = vpack.c.b16 %v1089, %v1088
      %v1097 = vpack.c.b16 %v1091, %v1090
      %v1098 = vpack.c.b16 %v1093, %v1092
      %v1099 = vpack.c.b16 %v1095, %v1094
      %v1105 = vsel %vm249, %v1071, 0
      %1107 = vmatpush.bf16.msra.mxu0 0
      %1108 = vmatpush.bf16.msra.mxu0 0
      %1109 = vmatpush.bf16.msra.mxu0 0
      %1110 = vmatpush.bf16.msra.mxu0 0
      %1111 = vmatpush.bf16.msra.mxu0 %v1099
      %1112 = vmatpush.bf16.msra.mxu0 %v1098
      %1113 = vmatpush.bf16.msra.mxu0 %v1097
      %1114 = vmatpush.bf16.msra.mxu0 %v1096
      %1115 = vmatmul.bf16.gmra.mxu0 %v1105
      %v1116 = vpop.f32.mrf.mxu0
      %v1117 = vadd.f32 0.0, %v1116
      %v1118 = vpop.f32.mrf.mxu0
      %v1119 = vadd.f32 0.0, %v1118
      %1120 = vdwg.mxu0
      %v1121 = vadd.f32 %v1067, %v1117
      %v1122 = vadd.f32 %v1068, %v1119
      %v1123 = vld [vmem:[%s192 + $0x19] sm:$0xff]
      %v1124 = vld [vmem:[%s192 + $0x21] sm:$0xf]
      %v1125 = vpack.c.bf16 %v1124, %v1123
      %v1126 = vld [vmem:[%s586] sm:$0xf]
      %v1127 = vld [vmem:[%s586 + $0x4] sm:$0xf]
      %v1128 = vld [vmem:[%s586 + $0x8] sm:$0xf]
      %v1129 = vld [vmem:[%s586 + $0xc] sm:$0xf]
      %v1130 = vld [vmem:[%s586 + $0x10] sm:$0xf]
      %v1131 = vld [vmem:[%s586 + $0x14] sm:$0xf]
      %v1132 = vld [vmem:[%s586 + $0x18] sm:$0xf]
      %v1133 = vld [vmem:[%s586 + $0x1c] sm:$0xf]
      %v1142 = vunpack.c.l.b16 %v1126
      %v1143 = vunpack.c.l.b16 %v1127
      %v1144 = vunpack.c.l.b16 %v1128
      %v1145 = vunpack.c.l.b16 %v1129
      %v1146 = vunpack.c.l.b16 %v1130
      %v1147 = vunpack.c.l.b16 %v1131
      %v1148 = vunpack.c.l.b16 %v1132
      %v1149 = vunpack.c.l.b16 %v1133
      %v1150 = vpack.c.b16 %v1143, %v1142
      %v1151 = vpack.c.b16 %v1145, %v1144
      %v1152 = vpack.c.b16 %v1147, %v1146
      %v1153 = vpack.c.b16 %v1149, %v1148
      %v1159 = vsel %vm249, %v1125, 0
      %1161 = vmatpush.bf16.msra.mxu0 0
      %1162 = vmatpush.bf16.msra.mxu0 0
      %1163 = vmatpush.bf16.msra.mxu0 0
      %1164 = vmatpush.bf16.msra.mxu0 0
      %1165 = vmatpush.bf16.msra.mxu0 %v1153
      %1166 = vmatpush.bf16.msra.mxu0 %v1152
      %1167 = vmatpush.bf16.msra.mxu0 %v1151
      %1168 = vmatpush.bf16.msra.mxu0 %v1150
      %1169 = vmatmul.bf16.gmra.mxu0 %v1159
      %v1170 = vpop.f32.mrf.mxu0
      %v1171 = vadd.f32 0.0, %v1170
      %v1172 = vpop.f32.mrf.mxu0
      %v1173 = vadd.f32 0.0, %v1172
      %1174 = vdwg.mxu0
      %v1175 = vadd.f32 %v1121, %v1171
      %v1176 = vadd.f32 %v1122, %v1173
      %v1177 = vld [vmem:[%s192 + $0x1a] sm:$0xff]
      %v1178 = vld [vmem:[%s192 + $0x22] sm:$0xf]
      %v1179 = vpack.c.bf16 %v1178, %v1177
      %v1180 = vld [vmem:[%s641] sm:$0xf]
      %v1181 = vld [vmem:[%s641 + $0x4] sm:$0xf]
      %v1182 = vld [vmem:[%s641 + $0x8] sm:$0xf]
      %v1183 = vld [vmem:[%s641 + $0xc] sm:$0xf]
      %v1184 = vld [vmem:[%s641 + $0x10] sm:$0xf]
      %v1185 = vld [vmem:[%s641 + $0x14] sm:$0xf]
      %v1186 = vld [vmem:[%s641 + $0x18] sm:$0xf]
      %v1187 = vld [vmem:[%s641 + $0x1c] sm:$0xf]
      %v1196 = vunpack.c.l.b16 %v1180
      %v1197 = vunpack.c.l.b16 %v1181
      %v1198 = vunpack.c.l.b16 %v1182
      %v1199 = vunpack.c.l.b16 %v1183
      %v1200 = vunpack.c.l.b16 %v1184
      %v1201 = vunpack.c.l.b16 %v1185
      %v1202 = vunpack.c.l.b16 %v1186
      %v1203 = vunpack.c.l.b16 %v1187
      %v1204 = vpack.c.b16 %v1197, %v1196
      %v1205 = vpack.c.b16 %v1199, %v1198
      %v1206 = vpack.c.b16 %v1201, %v1200
      %v1207 = vpack.c.b16 %v1203, %v1202
      %v1213 = vsel %vm249, %v1179, 0
      %1215 = vmatpush.bf16.msra.mxu0 0
      %1216 = vmatpush.bf16.msra.mxu0 0
      %1217 = vmatpush.bf16.msra.mxu0 0
      %1218 = vmatpush.bf16.msra.mxu0 0
      %1219 = vmatpush.bf16.msra.mxu0 %v1207
      %1220 = vmatpush.bf16.msra.mxu0 %v1206
      %1221 = vmatpush.bf16.msra.mxu0 %v1205
      %1222 = vmatpush.bf16.msra.mxu0 %v1204
      %1223 = vmatmul.bf16.gmra.mxu0 %v1213
      %v1224 = vpop.f32.mrf.mxu0
      %v1225 = vadd.f32 0.0, %v1224
      %v1226 = vpop.f32.mrf.mxu0
      %v1227 = vadd.f32 0.0, %v1226
      %1228 = vdwg.mxu0
      %v1229 = vadd.f32 %v1175, %v1225
      %v1230 = vadd.f32 %v1176, %v1227
      %v1231 = vld [vmem:[%s2] sm:$0x1]
      %v1233 = vperm.slane %v1231, 0
      %v1235 = vadd.f32 %v1229, %v1233
      %v1236 = vadd.f32 %v1230, %v1233
      %v1237 = vmax.f32 %v1235, 0.0
      %v1238 = vmax.f32 %v1236, 0.0
      %v1241 = vrot.slane %v1237, 6
      %v1242 = vrot.slane %v1238, 6
      %v1243 = vsel %vm703, %v1241, %v1242
      %v1245 = vmax.f32 %v1237, %v1243
      %v1246 = vpack.c.bf16 %v1245, %v1245
      %v1248 = vsel %vm714, %v1246, 0
      %1250 = vmatpush.bf16.msra.mxu0 0
      %1251 = vmatpush.bf16.msra.mxu0 0
      %1252 = vmatpush.bf16.msra.mxu0 0
      %1253 = vmatpush.bf16.msra.mxu0 0
      %1254 = vmatpush.bf16.msra.mxu0 0
      %1255 = vmatpush.bf16.msra.mxu0 0
      %1256 = vmatpush.bf16.msra.mxu0 0
      %1257 = vmatpush.bf16.msra.mxu0 %v1248
      %1258 = vmatmul.bf16.gmra.mxu0 %v712
      %v1259 = vpop.f32.mrf.mxu0
      %v1260 = vadd.f32 0.0, %v1259
      %v1261 = vpop.f32.mrf.mxu0
      %1262 = vdwg.mxu0
      %1263 = vmatpush.bf16.msra.mxu0 0
      %1264 = vmatpush.bf16.msra.mxu0 0
      %1265 = vmatpush.bf16.msra.mxu0 0
      %1266 = vmatpush.bf16.msra.mxu0 0
      %1267 = vmatpush.bf16.msra.mxu0 0
      %1268 = vmatpush.bf16.msra.mxu0 0
      %1269 = vmatpush.bf16.msra.mxu0 0
      %1270 = vmatpush.bf16.msra.mxu0 %v1248
      %1271 = vmatmul.bf16.gmra.mxu0 %v732
      %v1272 = vpop.f32.mrf.mxu0
      %v1273 = vadd.f32 0.0, %v1272
      %v1274 = vpop.f32.mrf.mxu0
      %1275 = vdwg.mxu0
      %v1276 = vmax.f32 %v1260, %v1273
      %s1277 = scalar_lea.vmem %s197, 2
      %1278 = vst [vmem:[%s1277] sm:$0x3] %v1276
      %p1279 = scmp.lt.s32.totalorder %s15, 1
      %s1280 = scalar_select %p1279, %s15, 1
      %s1281 = smul.addr %s1280, 2
      %s1282 = smul.addr %s1281, 2
      %s1283 = scalar_lea.vmem %s4, %s1282
      // Predicated region
      $region37: #{simple_cnn_forward.7} parent=35 // pred_check
        %p1284 = pneg %p122
      $region38: #{simple_cnn_forward.7} parent=35 // pred_check_branch
        %1286 = sbr.rel (%p1284) target = $region40
      $region39: #{simple_cnn_forward.7} parent=35 // pred_region
        _
      $region40: #{simple_cnn_forward.7} parent=35 // pred_fallthru
        _
    $region36: #{simple_cnn_forward.7} parent=5 // pred_fallthru
      _
    %p1287 = scmp.le.s32.totalorder 2, %s10
    // Predicated region
    $region41: #{simple_cnn_forward.7} parent=5 // pred_check
      %p1288 = pneg %p1287
    $region42: #{simple_cnn_forward.7} parent=5 // pred_check_branch
      %1290 = sbr.rel (%p1288) target = $region44
    $region43: #{simple_cnn_forward.7} parent=5 // pred_region
      %s1291 = ssub.s32 %s10, 2
      // Predicated region
      $region45: #{simple_cnn_forward.7} parent=43 // pred_check
        %p1292 = pneg %p128
      $region46: #{simple_cnn_forward.7} parent=43 // pred_check_branch
        %1294 = sbr.rel (%p1292) target = $region48
      $region47: #{simple_cnn_forward.7} parent=43 // pred_region
        %p1295 = scmp.lt.s32.totalorder %s16, 1
        %s1296 = scalar_select %p1295, %s16, 1
        %s1297 = smul.addr %s1296, 2
        %s1298 = smul.addr %s1297, 2
        %s1299 = scalar_lea.vmem %s4, %s1298
      $region48: #{simple_cnn_forward.7} parent=43 // pred_fallthru
        _
    $region44: #{simple_cnn_forward.7} parent=5 // pred_fallthru
      _
  $region6: #{simple_cnn_forward.7} parent=0 // loop_footer
    %s14 = sadd.s32 1, %s10
  $region7: #{simple_cnn_forward.7} parent=0 // loop_footer_branch
    %9 = sbr.rel target = $region3
  $region8: #{simple_cnn_forward.7} parent=0 // loop_exit
    _

// kernel: simple_cnn_forward.9
$region0: #{simple_cnn_forward.9}
  #allocation0 [shape = 'u32[]', space=smem, size = 0x4, offset = 0x4, fixed_abs, tag = 'smem constant byte address 0x4 - core index']
  #allocation1 [shape = 'u32[72,128]{1,0:T(1,128)}', space=vmem, size = 0x9000, scoped, tag = 'internal scratch']
  %s0 = inlined_call_operand.vmem [shape: bf16[2,512], index: 0, kind: input, shape index: {}]
  %s1 = inlined_call_operand.vmem [shape: bf16[512,29], index: 1, kind: input, shape index: {}]
  %s2 = inlined_call_operand.vmem [shape: f32[1,29], index: 2, kind: input, shape index: {}]
  %s3 = inlined_call_operand.hbm [shape: f32[2,29], index: 3, kind: output, shape index: {}]
  %s4 = sld [smem:[#allocation0]]
  $region22: #{simple_cnn_forward.9} parent=0
    _
  %s6 = ssub.s32 1, %s4
  %s7 = scalar_select 0, %s6, %s4
  $region1: #{simple_cnn_forward.9} parent=0
    #allocation2 [shape = 'u8[1024]{0}', space=vmem, size = 0x400, scoped, tag = 'output window, operand 0, single buffered']
    #allocation3 [shape = 's32[1]{0}', space=sflag, size = 0x4, scoped, tag = 'scoped memory for simple_cnn_forward.9']
    %8 = vsyncpa [#allocation3], 0
    // Predicated region
    $region2: #{simple_cnn_forward.9} parent=1 // pred_check
      _
    $region3: #{simple_cnn_forward.9} parent=1 // pred_check_branch
      %10 = sbr.rel (0) target = $region5
    $region4: #{simple_cnn_forward.9} parent=1 // pred_region
      _
    $region5: #{simple_cnn_forward.9} parent=1 // pred_fallthru
      _
    // Predicated region
    $region6: #{simple_cnn_forward.9} parent=1 // pred_check
      _
    $region7: #{simple_cnn_forward.9} parent=1 // pred_check_branch
      %12 = sbr.rel (0) target = $region9
    $region8: #{simple_cnn_forward.9} parent=1 // pred_region
      _
    $region9: #{simple_cnn_forward.9} parent=1 // pred_fallthru
      _
    // Predicated region
    $region10: #{simple_cnn_forward.9} parent=1 // pred_check
      _
    $region11: #{simple_cnn_forward.9} parent=1 // pred_check_branch
      %14 = sbr.rel (0) target = $region13
    $region12: #{simple_cnn_forward.9} parent=1 // pred_region
      _
    $region13: #{simple_cnn_forward.9} parent=1 // pred_fallthru
      _
    %v15 = vld [vmem:[%s0] sm:$0xf]
    %v16 = vld [vmem:[%s1] sm:$0xf]
    %v17 = vld [vmem:[%s1 + $0x4] sm:$0xf]
    %v18 = vld [vmem:[%s1 + $0x8] sm:$0xf]
    %v19 = vld [vmem:[%s1 + $0xc] sm:$0xf]
    %v20 = vld [vmem:[%s1 + $0x10] sm:$0xf]
    %v21 = vld [vmem:[%s1 + $0x14] sm:$0xf]
    %v22 = vld [vmem:[%s1 + $0x18] sm:$0xf]
    %v23 = vld [vmem:[%s1 + $0x1c] sm:$0xf]
    %v24 = vld [vmem:[%s1 + $0x20] sm:$0xf]
    %v25 = vld [vmem:[%s1 + $0x24] sm:$0xf]
    %v26 = vld [vmem:[%s1 + $0x28] sm:$0xf]
    %v27 = vld [vmem:[%s1 + $0x2c] sm:$0xf]
    %v28 = vld [vmem:[%s1 + $0x30] sm:$0xf]
    %v29 = vld [vmem:[%s1 + $0x34] sm:$0xf]
    %v30 = vld [vmem:[%s1 + $0x38] sm:$0xf]
    %v31 = vld [vmem:[%s1 + $0x3c] sm:$0xf]
    %v32 = vld [vmem:[%s1 + $0x40] sm:$0xf]
    %v33 = vld [vmem:[%s1 + $0x44] sm:$0xf]
    %v34 = vld [vmem:[%s1 + $0x48] sm:$0xf]
    %v35 = vld [vmem:[%s1 + $0x4c] sm:$0xf]
    %v36 = vld [vmem:[%s1 + $0x50] sm:$0xf]
    %v37 = vld [vmem:[%s1 + $0x54] sm:$0xf]
    %v38 = vld [vmem:[%s1 + $0x58] sm:$0xf]
    %v39 = vld [vmem:[%s1 + $0x5c] sm:$0xf]
    %v40 = vld [vmem:[%s1 + $0x60] sm:$0xf]
    %v41 = vld [vmem:[%s1 + $0x64] sm:$0xf]
    %v42 = vld [vmem:[%s1 + $0x68] sm:$0xf]
    %v43 = vld [vmem:[%s1 + $0x6c] sm:$0xf]
    %v44 = vld [vmem:[%s1 + $0x70] sm:$0xf]
    %v45 = vld [vmem:[%s1 + $0x74] sm:$0xf]
    %v46 = vld [vmem:[%s1 + $0x78] sm:$0xf]
    %v47 = vld [vmem:[%s1 + $0x7c] sm:$0xf]
    %v48 = vld [vmem:[%s1 + $0x80] sm:$0xf]
    %v49 = vld [vmem:[%s1 + $0x84] sm:$0xf]
    %v50 = vld [vmem:[%s1 + $0x88] sm:$0xf]
    %v51 = vld [vmem:[%s1 + $0x8c] sm:$0xf]
    %v52 = vld [vmem:[%s1 + $0x90] sm:$0xf]
    %v53 = vld [vmem:[%s1 + $0x94] sm:$0xf]
    %v54 = vld [vmem:[%s1 + $0x98] sm:$0xf]
    %v55 = vld [vmem:[%s1 + $0x9c] sm:$0xf]
    %v56 = vld [vmem:[%s1 + $0xa0] sm:$0xf]
    %v57 = vld [vmem:[%s1 + $0xa4] sm:$0xf]
    %v58 = vld [vmem:[%s1 + $0xa8] sm:$0xf]
    %v59 = vld [vmem:[%s1 + $0xac] sm:$0xf]
    %v60 = vld [vmem:[%s1 + $0xb0] sm:$0xf]
    %v61 = vld [vmem:[%s1 + $0xb4] sm:$0xf]
    %v62 = vld [vmem:[%s1 + $0xb8] sm:$0xf]
    %v63 = vld [vmem:[%s1 + $0xbc] sm:$0xf]
    %v64 = vld [vmem:[%s1 + $0xc0] sm:$0xf]
    %v65 = vld [vmem:[%s1 + $0xc4] sm:$0xf]
    %v66 = vld [vmem:[%s1 + $0xc8] sm:$0xf]
    %v67 = vld [vmem:[%s1 + $0xcc] sm:$0xf]
    %v68 = vld [vmem:[%s1 + $0xd0] sm:$0xf]
    %v69 = vld [vmem:[%s1 + $0xd4] sm:$0xf]
    %v70 = vld [vmem:[%s1 + $0xd8] sm:$0xf]
    %v71 = vld [vmem:[%s1 + $0xdc] sm:$0xf]
    %v72 = vld [vmem:[%s1 + $0xe0] sm:$0xf]
    %v73 = vld [vmem:[%s1 + $0xe4] sm:$0xf]
    %v74 = vld [vmem:[%s1 + $0xe8] sm:$0xf]
    %v75 = vld [vmem:[%s1 + $0xec] sm:$0xf]
    %v76 = vld [vmem:[%s1 + $0xf0] sm:$0xf]
    %v77 = vld [vmem:[%s1 + $0xf4] sm:$0xf]
    %v78 = vld [vmem:[%s1 + $0xf8] sm:$0xf]
    %v79 = vld [vmem:[%s1 + $0xfc] sm:$0xf]
    %v80 = vld [vmem:[%s2] sm:$0x1]
    %v82 = vperm.slane %v80, 0
    %85 = vst [vmem:[#allocation1] ss:$9 sm:$0xff] %v15
    %v86 = vld [vmem:[#allocation1] sm:$0xff]
    %v87 = vld [vmem:[#allocation1 + $0x9] sm:$0xff]
    %v88 = vld [vmem:[#allocation1 + $0x12] sm:$0xff]
    %v89 = vld [vmem:[#allocation1 + $0x1b] sm:$0xff]
    %v158 = vunpack.c.l.b16 %v16
    %v159 = vunpack.c.l.b16 %v17
    %v160 = vunpack.c.l.b16 %v18
    %v161 = vunpack.c.l.b16 %v19
    %v162 = vunpack.c.l.b16 %v20
    %v163 = vunpack.c.l.b16 %v21
    %v164 = vunpack.c.l.b16 %v22
    %v165 = vunpack.c.l.b16 %v23
    %v166 = vunpack.c.l.b16 %v24
    %v167 = vunpack.c.l.b16 %v25
    %v168 = vunpack.c.l.b16 %v26
    %v169 = vunpack.c.l.b16 %v27
    %v170 = vunpack.c.l.b16 %v28
    %v171 = vunpack.c.l.b16 %v29
    %v172 = vunpack.c.l.b16 %v30
    %v173 = vunpack.c.l.b16 %v31
    %v174 = vunpack.c.l.b16 %v32
    %v175 = vunpack.c.l.b16 %v33
    %v176 = vunpack.c.l.b16 %v34
    %v177 = vunpack.c.l.b16 %v35
    %v178 = vunpack.c.l.b16 %v36
    %v179 = vunpack.c.l.b16 %v37
    %v180 = vunpack.c.l.b16 %v38
    %v181 = vunpack.c.l.b16 %v39
    %v182 = vunpack.c.l.b16 %v40
    %v183 = vunpack.c.l.b16 %v41
    %v184 = vunpack.c.l.b16 %v42
    %v185 = vunpack.c.l.b16 %v43
    %v186 = vunpack.c.l.b16 %v44
    %v187 = vunpack.c.l.b16 %v45
    %v188 = vunpack.c.l.b16 %v46
    %v189 = vunpack.c.l.b16 %v47
    %v190 = vunpack.c.l.b16 %v48
    %v191 = vunpack.c.l.b16 %v49
    %v192 = vunpack.c.l.b16 %v50
    %v193 = vunpack.c.l.b16 %v51
    %v194 = vunpack.c.l.b16 %v52
    %v195 = vunpack.c.l.b16 %v53
    %v196 = vunpack.c.l.b16 %v54
    %v197 = vunpack.c.l.b16 %v55
    %v198 = vunpack.c.l.b16 %v56
    %v199 = vunpack.c.l.b16 %v57
    %v200 = vunpack.c.l.b16 %v58
    %v201 = vunpack.c.l.b16 %v59
    %v202 = vunpack.c.l.b16 %v60
    %v203 = vunpack.c.l.b16 %v61
    %v204 = vunpack.c.l.b16 %v62
    %v205 = vunpack.c.l.b16 %v63
    %v206 = vunpack.c.l.b16 %v64
    %v207 = vunpack.c.l.b16 %v65
    %v208 = vunpack.c.l.b16 %v66
    %v209 = vunpack.c.l.b16 %v67
    %v210 = vunpack.c.l.b16 %v68
    %v211 = vunpack.c.l.b16 %v69
    %v212 = vunpack.c.l.b16 %v70
    %v213 = vunpack.c.l.b16 %v71
    %v214 = vunpack.c.l.b16 %v72
    %v215 = vunpack.c.l.b16 %v73
    %v216 = vunpack.c.l.b16 %v74
    %v217 = vunpack.c.l.b16 %v75
    %v218 = vunpack.c.l.b16 %v76
    %v219 = vunpack.c.l.b16 %v77
    %v220 = vunpack.c.l.b16 %v78
    %v221 = vunpack.c.l.b16 %v79
    %v222 = vpack.c.b16 %v159, %v158
    %v223 = vpack.c.b16 %v161, %v160
    %v224 = vpack.c.b16 %v163, %v162
    %v225 = vpack.c.b16 %v165, %v164
    %v226 = vpack.c.b16 %v167, %v166
    %v227 = vpack.c.b16 %v169, %v168
    %v228 = vpack.c.b16 %v171, %v170
    %v229 = vpack.c.b16 %v173, %v172
    %v230 = vpack.c.b16 %v175, %v174
    %v231 = vpack.c.b16 %v177, %v176
    %v232 = vpack.c.b16 %v179, %v178
    %v233 = vpack.c.b16 %v181, %v180
    %v234 = vpack.c.b16 %v183, %v182
    %v235 = vpack.c.b16 %v185, %v184
    %v236 = vpack.c.b16 %v187, %v186
    %v237 = vpack.c.b16 %v189, %v188
    %v238 = vpack.c.b16 %v191, %v190
    %v239 = vpack.c.b16 %v193, %v192
    %v240 = vpack.c.b16 %v195, %v194
    %v241 = vpack.c.b16 %v197, %v196
    %v242 = vpack.c.b16 %v199, %v198
    %v243 = vpack.c.b16 %v201, %v200
    %v244 = vpack.c.b16 %v203, %v202
    %v245 = vpack.c.b16 %v205, %v204
    %v246 = vpack.c.b16 %v207, %v206
    %v247 = vpack.c.b16 %v209, %v208
    %v248 = vpack.c.b16 %v211, %v210
    %v249 = vpack.c.b16 %v213, %v212
    %v250 = vpack.c.b16 %v215, %v214
    %v251 = vpack.c.b16 %v217, %v216
    %v252 = vpack.c.b16 %v219, %v218
    %v253 = vpack.c.b16 %v221, %v220
    %286 = vmatpush.bf16.msra.mxu0 %v229
    %287 = vmatpush.bf16.msra.mxu0 %v228
    %288 = vmatpush.bf16.msra.mxu0 %v227
    %289 = vmatpush.bf16.msra.mxu0 %v226
    %290 = vmatpush.bf16.msra.mxu0 %v225
    %291 = vmatpush.bf16.msra.mxu0 %v224
    %292 = vmatpush.bf16.msra.mxu0 %v223
    %293 = vmatpush.bf16.msra.mxu0 %v222
    %294 = vmatmul.bf16.gmra.mxu0 %v86
    %v295 = vpop.f32.mrf.mxu0
    %v296 = vadd.f32 %v82, %v295
    %v297 = vpop.f32.mrf.mxu0
    %298 = vdwg.mxu0
    %299 = vmatpush.bf16.msra.mxu0 %v237
    %300 = vmatpush.bf16.msra.mxu0 %v236
    %301 = vmatpush.bf16.msra.mxu0 %v235
    %302 = vmatpush.bf16.msra.mxu0 %v234
    %303 = vmatpush.bf16.msra.mxu0 %v233
    %304 = vmatpush.bf16.msra.mxu0 %v232
    %305 = vmatpush.bf16.msra.mxu0 %v231
    %306 = vmatpush.bf16.msra.mxu0 %v230
    %307 = vmatmul.bf16.gmra.mxu0 %v87
    %v308 = vpop.f32.mrf.mxu0
    %v309 = vadd.f32 %v296, %v308
    %v310 = vpop.f32.mrf.mxu0
    %311 = vdwg.mxu0
    %312 = vmatpush.bf16.msra.mxu0 %v245
    %313 = vmatpush.bf16.msra.mxu0 %v244
    %314 = vmatpush.bf16.msra.mxu0 %v243
    %315 = vmatpush.bf16.msra.mxu0 %v242
    %316 = vmatpush.bf16.msra.mxu0 %v241
    %317 = vmatpush.bf16.msra.mxu0 %v240
    %318 = vmatpush.bf16.msra.mxu0 %v239
    %319 = vmatpush.bf16.msra.mxu0 %v238
    %320 = vmatmul.bf16.gmra.mxu0 %v88
    %v321 = vpop.f32.mrf.mxu0
    %v322 = vadd.f32 %v309, %v321
    %v323 = vpop.f32.mrf.mxu0
    %324 = vdwg.mxu0
    %325 = vmatpush.bf16.msra.mxu0 %v253
    %326 = vmatpush.bf16.msra.mxu0 %v252
    %327 = vmatpush.bf16.msra.mxu0 %v251
    %328 = vmatpush.bf16.msra.mxu0 %v250
    %329 = vmatpush.bf16.msra.mxu0 %v249
    %330 = vmatpush.bf16.msra.mxu0 %v248
    %331 = vmatpush.bf16.msra.mxu0 %v247
    %332 = vmatpush.bf16.msra.mxu0 %v246
    %333 = vmatmul.bf16.gmra.mxu0 %v89
    %v334 = vpop.f32.mrf.mxu0
    %v335 = vadd.f32 %v322, %v334
    %v336 = vpop.f32.mrf.mxu0
    %337 = vdwg.mxu0
    %vm338 = vcmask 230400
    %339 = vst.msk [vmem:[#allocation2] sm:$0x3] %vm338, %v335
    // Predicated region
    $region14: #{simple_cnn_forward.9} parent=1 // pred_check
      _
    $region15: #{simple_cnn_forward.9} parent=1 // pred_check_branch
      %341 = sbr.rel (0) target = $region17
    $region16: #{simple_cnn_forward.9} parent=1 // pred_region
      %343 = vsyncadd [#allocation3], 0
      %s345 = sshll.u32 [#allocation2], 4
      %s346 = int_to_ptr.vmem [resolvable:$true] %s345
      %s347 = sshll.u32 %s3, 4
      %s348 = int_to_ptr.hbm [resolvable:$true] %s347
      %350 = dma.vmem_to_hbm [thread:$0]  %s346, 32, %s348, [#allocation3]
    $region17: #{simple_cnn_forward.9} parent=1 // pred_fallthru
      _
    // Predicated region
    $region18: #{simple_cnn_forward.9} parent=1 // pred_check
      _
    $region19: #{simple_cnn_forward.9} parent=1 // pred_check_branch
      %352 = sbr.rel (0) target = $region21
    $region20: #{simple_cnn_forward.9} parent=1 // pred_region
      %354 = dma.done [#allocation3], 32
    $region21: #{simple_cnn_forward.9} parent=1 // pred_fallthru
      _
    %355 = vsyncpa [#allocation3], 1

// kernel: simple_cnn_forward.6
$region0: #{simple_cnn_forward.6}
  #allocation0 [shape = 'u32[]', space=smem, size = 0x4, offset = 0x4, fixed_abs, tag = 'smem constant byte address 0x4 - core index']
  #allocation1 [shape = 'u32[72,128]{1,0:T(1,128)}', space=vmem, size = 0x9000, scoped, tag = 'internal scratch']
  %s0 = inlined_call_operand.vmem [shape: f32[2,227,32], index: 0, kind: input, shape index: {}]
  %s1 = inlined_call_operand.vmem [shape: bf16[9,32,64], index: 1, kind: input, shape index: {}]
  %s2 = inlined_call_operand.vmem [shape: f32[1,64], index: 2, kind: input, shape index: {}]
  %s3 = inlined_call_operand.vmem [shape: bf16[2,6,15], index: 3, kind: input, shape index: {}]
  %s4 = inlined_call_operand.vmem [shape: f32[2,6,6,64], index: 4, kind: output, shape index: {}]
  %s5 = sld [smem:[#allocation0]]
  $region49: #{simple_cnn_forward.6} parent=0
    _
  %s7 = ssub.s32 1, %s5
  %s8 = scalar_select 0, %s7, %s5
  loop: start=0, step=1, limit=4
  $region2: #{simple_cnn_forward.6} parent=0 // loop_pre_header
    _
  $region3: #{simple_cnn_forward.6} parent=0 // loop_header
    %s10 = sphi 0, %s14
    %p11 = scmp.ge.s32.totalorder %s10, 4
    %s20 = sphi 0, %s22
    %s23 = sphi 0, %s20
    %s24 = sphi 0, %s23
    %s40 = sphi 0, %s24
    %s44 = sphi 0, %s44
    %s46 = sphi 0, %s44
    %s47 = sphi 0, %s46
    %s61 = sphi 0, %s47
    %s65 = sphi 0, %s65
    %s67 = sphi 0, %s65
    %s68 = sphi 0, %s67
    %s82 = sphi 0, %s68
    %s86 = sphi 0, %s86
    %s88 = sphi 0, %s86
    %s89 = sphi 0, %s88
    %s103 = sphi 0, %s89
    %s109 = sphi 0, %s111
    %s112 = sphi 0, %s109
    %s113 = sphi 0, %s112
    %s129 = sphi 0, %s113
  $region4: #{simple_cnn_forward.6} parent=0 // loop_header_branch
    %13 = sbr.rel (%p11) target = $region8
  $region5: #{simple_cnn_forward.6} parent=0 // loop_body
    %s15 = ssub.s32 %s10, 1
    %s16 = ssub.s32 %s10, 2
    %s17 = sadd.s32 %s10, 1
    %s18 = ssub.s32 %s10, %s17
    %p19 = scmp.eq.s32.totalorder %s18, 0
    %s21 = sadd.s32 %s20, 1
    %s22 = scalar_select %p19, %s20, %s21
    %p25 = pneg %p19
    %p26 = scmp.eq.s32.totalorder %s10, 1
    %p27 = por %p25, %p26
    %p28 = scmp.ne.s32.totalorder %s20, %s23
    %p29 = scmp.eq.s32.totalorder %s10, 0
    %p30 = por %p28, %p29
    %p31 = scmp.ne.s32.totalorder %s20, %s23
    %p32 = scmp.eq.s32.totalorder %s15, 1
    %p33 = por %p31, %p32
    %p34 = scmp.ne.s32.totalorder %s23, %s24
    %p35 = scmp.eq.s32.totalorder %s15, 0
    %p36 = por %p34, %p35
    %p37 = scmp.ne.s32.totalorder %s23, %s24
    %p38 = scmp.eq.s32.totalorder %s16, 1
    %p39 = por %p37, %p38
    %p41 = scmp.ne.s32.totalorder %s24, %s40
    %p42 = scmp.eq.s32.totalorder %s16, 0
    %p43 = por %p41, %p42
    %s45 = sadd.s32 %s44, 1
    %p48 = scmp.eq.s32.totalorder %s10, 1
    %p49 = scmp.ne.s32.totalorder %s44, %s46
    %p50 = scmp.eq.s32.totalorder %s10, 0
    %p51 = por %p49, %p50
    %p52 = scmp.ne.s32.totalorder %s44, %s46
    %p53 = scmp.eq.s32.totalorder %s15, 1
    %p54 = por %p52, %p53
    %p55 = scmp.ne.s32.totalorder %s46, %s47
    %p56 = scmp.eq.s32.totalorder %s15, 0
    %p57 = por %p55, %p56
    %p58 = scmp.ne.s32.totalorder %s46, %s47
    %p59 = scmp.eq.s32.totalorder %s16, 1
    %p60 = por %p58, %p59
    %p62 = scmp.ne.s32.totalorder %s47, %s61
    %p63 = scmp.eq.s32.totalorder %s16, 0
    %p64 = por %p62, %p63
    %s66 = sadd.s32 %s65, 1
    %p69 = scmp.eq.s32.totalorder %s10, 1
    %p70 = scmp.ne.s32.totalorder %s65, %s67
    %p71 = scmp.eq.s32.totalorder %s10, 0
    %p72 = por %p70, %p71
    %p73 = scmp.ne.s32.totalorder %s65, %s67
    %p74 = scmp.eq.s32.totalorder %s15, 1
    %p75 = por %p73, %p74
    %p76 = scmp.ne.s32.totalorder %s67, %s68
    %p77 = scmp.eq.s32.totalorder %s15, 0
    %p78 = por %p76, %p77
    %p79 = scmp.ne.s32.totalorder %s67, %s68
    %p80 = scmp.eq.s32.totalorder %s16, 1
    %p81 = por %p79, %p80
    %p83 = scmp.ne.s32.totalorder %s68, %s82
    %p84 = scmp.eq.s32.totalorder %s16, 0
    %p85 = por %p83, %p84
    %s87 = sadd.s32 %s86, 1
    %p90 = scmp.eq.s32.totalorder %s10, 1
    %p91 = scmp.ne.s32.totalorder %s86, %s88
    %p92 = scmp.eq.s32.totalorder %s10, 0
    %p93 = por %p91, %p92
    %p94 = scmp.ne.s32.totalorder %s86, %s88
    %p95 = scmp.eq.s32.totalorder %s15, 1
    %p96 = por %p94, %p95
    %p97 = scmp.ne.s32.totalorder %s88, %s89
    %p98 = scmp.eq.s32.totalorder %s15, 0
    %p99 = por %p97, %p98
    %p100 = scmp.ne.s32.totalorder %s88, %s89
    %p101 = scmp.eq.s32.totalorder %s16, 1
    %p102 = por %p100, %p101
    %p104 = scmp.ne.s32.totalorder %s89, %s103
    %p105 = scmp.eq.s32.totalorder %s16, 0
    %p106 = por %p104, %p105
    %s107 = ssub.s32 %s10, %s17
    %p108 = scmp.eq.s32.totalorder %s107, 0
    %s110 = sadd.s32 %s109, 1
    %s111 = scalar_select %p108, %s109, %s110
    %p114 = pneg %p108
    %p115 = scmp.eq.s32.totalorder %s10, 1
    %p116 = por %p114, %p115
    %p117 = scmp.ne.s32.totalorder %s109, %s112
    %p118 = scmp.eq.s32.totalorder %s10, 0
    %p119 = por %p117, %p118
    %p120 = scmp.ne.s32.totalorder %s109, %s112
    %p121 = scmp.eq.s32.totalorder %s15, 1
    %p122 = por %p120, %p121
    %p123 = scmp.ne.s32.totalorder %s112, %s113
    %p124 = scmp.eq.s32.totalorder %s15, 0
    %p125 = por %p123, %p124
    %p126 = scmp.ne.s32.totalorder %s112, %s113
    %p127 = scmp.eq.s32.totalorder %s16, 1
    %p128 = por %p126, %p127
    %p130 = scmp.ne.s32.totalorder %s113, %s129
    %p131 = scmp.eq.s32.totalorder %s16, 0
    %p132 = por %p130, %p131
    %p133 = scmp.le.s32.totalorder 1, %s10
    %p134 = scmp.lt.s32.totalorder %s10, 3
    %p135 = pnand %p133, %p134
    %p136 = pneg %p135
    // Predicated region
    $region9: #{simple_cnn_forward.6} parent=5 // pred_check
      _
    $region10: #{simple_cnn_forward.6} parent=5 // pred_check_branch
      %138 = sbr.rel (%p135) target = $region12
    $region11: #{simple_cnn_forward.6} parent=5 // pred_region
      %s139 = ssub.s32 %s10, 1
      // Predicated region
      $region13: #{simple_cnn_forward.6} parent=11 // pred_check
        %p140 = pneg %p57
      $region14: #{simple_cnn_forward.6} parent=11 // pred_check_branch
        %142 = sbr.rel (%p140) target = $region16
      $region15: #{simple_cnn_forward.6} parent=11 // pred_region
        _
      $region16: #{simple_cnn_forward.6} parent=11 // pred_fallthru
        _
      // Predicated region
      $region17: #{simple_cnn_forward.6} parent=11 // pred_check
        %p143 = pneg %p78
      $region18: #{simple_cnn_forward.6} parent=11 // pred_check_branch
        %145 = sbr.rel (%p143) target = $region20
      $region19: #{simple_cnn_forward.6} parent=11 // pred_region
        _
      $region20: #{simple_cnn_forward.6} parent=11 // pred_fallthru
        _
      // Predicated region
      $region21: #{simple_cnn_forward.6} parent=11 // pred_check
        %p146 = pneg %p99
      $region22: #{simple_cnn_forward.6} parent=11 // pred_check_branch
        %148 = sbr.rel (%p146) target = $region24
      $region23: #{simple_cnn_forward.6} parent=11 // pred_region
        _
      $region24: #{simple_cnn_forward.6} parent=11 // pred_fallthru
        _
    $region12: #{simple_cnn_forward.6} parent=5 // pred_fallthru
      _
    %p149 = scmp.lt.s32.totalorder %s10, 2
    // Predicated region
    $region25: #{simple_cnn_forward.6} parent=5 // pred_check
      %p150 = pneg %p149
    $region26: #{simple_cnn_forward.6} parent=5 // pred_check_branch
      %152 = sbr.rel (%p150) target = $region28
    $region27: #{simple_cnn_forward.6} parent=5 // pred_region
      // Predicated region
      $region29: #{simple_cnn_forward.6} parent=27 // pred_check
        %p153 = pneg %p30
      $region30: #{simple_cnn_forward.6} parent=27 // pred_check_branch
        %155 = sbr.rel (%p153) target = $region32
      $region31: #{simple_cnn_forward.6} parent=27 // pred_region
        %p156 = scmp.lt.s32.totalorder %s10, 1
        %s157 = scalar_select %p156, %s10, 1
        %s158 = smul.addr %s157, 29
        %s159 = smul.addr %s158, 8
        %s160 = scalar_lea.vmem %s0, %s159
      $region32: #{simple_cnn_forward.6} parent=27 // pred_fallthru
        _
    $region28: #{simple_cnn_forward.6} parent=5 // pred_fallthru
      _
    %p161 = scmp.le.s32.totalorder 1, %s10
    %p162 = scmp.lt.s32.totalorder %s10, 3
    %p163 = pnand %p161, %p162
    %p164 = pneg %p163
    // Predicated region
    $region33: #{simple_cnn_forward.6} parent=5 // pred_check
      _
    $region34: #{simple_cnn_forward.6} parent=5 // pred_check_branch
      %166 = sbr.rel (%p163) target = $region36
    $region35: #{simple_cnn_forward.6} parent=5 // pred_region
      %s167 = ssub.s32 %s10, 1
      %p168 = scmp.lt.s32.totalorder %s15, 1
      %s169 = scalar_select %p168, %s15, 1
      %s170 = smul.addr %s169, 29
      %s171 = smul.addr %s170, 8
      %s172 = scalar_lea.vmem %s0, %s171
      %p173 = pneg %p36
      %p174 = pneg %p33
      %p175 = pneg %p57
      %p176 = pneg %p54
      %p177 = pneg %p78
      %p178 = pneg %p75
      %p179 = pneg %p99
      %p180 = pneg %p96
      %p181 = pneg %p125
      %p182 = pneg %p122
      %p183 = scmp.lt.s32.totalorder %s15, 1
      %s184 = scalar_select %p183, %s15, 1
      %s185 = smul.addr %s184, 6
      %s186 = smul.addr %s185, 8
      %s187 = scalar_lea.vmem %s4, %s186
      %p188 = scmp.lt.s32.totalorder %s15, 1
      %s189 = scalar_select %p188, %s15, 1
      %s190 = smul.addr %s189, 29
      %s191 = smul.addr %s190, 8
      %s192 = scalar_lea.vmem %s0, %s191
      %p193 = scmp.lt.s32.totalorder %s15, 1
      %s194 = scalar_select %p193, %s15, 1
      %s195 = smul.addr %s194, 6
      %s196 = smul.addr %s195, 8
      %s197 = scalar_lea.vmem %s4, %s196
      %v199 = vld [vmem:[%s3] sm:$0x7]
      %s200 = scalar_lea.vmem %s3, 4
      %v201 = vld [vmem:[%s200] sm:$0x7]
      %v202 = vld [vmem:[%s192] sm:$0xff]
      %v203 = vld [vmem:[%s192 + $0x8] sm:$0xff]
      %v204 = vld [vmem:[%s192 + $0x10] sm:$0xff]
      %v205 = vld [vmem:[%s192 + $0x18] sm:$0x3f]
      %v206 = vpack.c.bf16 %v203, %v202
      %v207 = vpack.c.bf16 %v205, %v204
      %v208 = vld [vmem:[%s1] sm:$0xf]
      %v209 = vld [vmem:[%s1 + $0x4] sm:$0xf]
      %v210 = vld [vmem:[%s1 + $0x8] sm:$0xf]
      %v211 = vld [vmem:[%s1 + $0xc] sm:$0xf]
      %v212 = vld [vmem:[%s192 + $0x1] sm:$0xff]
      %v213 = vld [vmem:[%s192 + $0x9] sm:$0xff]
      %v214 = vld [vmem:[%s192 + $0x11] sm:$0xff]
      %v215 = vld [vmem:[%s192 + $0x19] sm:$0x3f]
      %v216 = vpack.c.bf16 %v213, %v212
      %v217 = vpack.c.bf16 %v215, %v214
      %s218 = scalar_lea.vmem %s1, 16
      %v219 = vld [vmem:[%s218] sm:$0xf]
      %v220 = vld [vmem:[%s218 + $0x4] sm:$0xf]
      %v221 = vld [vmem:[%s218 + $0x8] sm:$0xf]
      %v222 = vld [vmem:[%s218 + $0xc] sm:$0xf]
      %v227 = vunpack.c.l.b16 %v219
      %v228 = vunpack.c.l.b16 %v220
      %v229 = vunpack.c.l.b16 %v221
      %v230 = vunpack.c.l.b16 %v222
      %v231 = vpack.c.b16 %v228, %v227
      %v232 = vpack.c.b16 %v230, %v229
      %vm235 = vcmask 261120
      %v237 = vsel %vm235, %v216, 0
      %v240 = vsel %vm235, %v217, 0
      %242 = vmatpush.bf16.msra.mxu0 0
      %243 = vmatpush.bf16.msra.mxu0 0
      %244 = vmatpush.bf16.msra.mxu0 0
      %245 = vmatpush.bf16.msra.mxu0 0
      %246 = vmatpush.bf16.msra.mxu0 0
      %247 = vmatpush.bf16.msra.mxu0 0
      %248 = vmatpush.bf16.msra.mxu0 %v232
      %249 = vmatpush.bf16.msra.mxu0 %v231
      %250 = vmatmul.bf16.gmra.mxu0 %v237
      %v251 = vpop.f32.mrf.mxu0
      %v252 = vadd.f32 0.0, %v251
      %v253 = vpop.f32.mrf.mxu0
      %v254 = vadd.f32 0.0, %v253
      %255 = vmatmul.bf16.gmra.mxu0 %v240
      %v256 = vpop.f32.mrf.mxu0
      %v257 = vadd.f32 0.0, %v256
      %v258 = vpop.f32.mrf.mxu0
      %v259 = vadd.f32 0.0, %v258
      %260 = vdwg.mxu0
      %v265 = vunpack.c.l.b16 %v208
      %v266 = vunpack.c.l.b16 %v209
      %v267 = vunpack.c.l.b16 %v210
      %v268 = vunpack.c.l.b16 %v211
      %v269 = vpack.c.b16 %v266, %v265
      %v270 = vpack.c.b16 %v268, %v267
      %v274 = vsel %vm235, %v206, 0
      %v277 = vsel %vm235, %v207, 0
      %279 = vmatpush.bf16.msra.mxu0 0
      %280 = vmatpush.bf16.msra.mxu0 0
      %281 = vmatpush.bf16.msra.mxu0 0
      %282 = vmatpush.bf16.msra.mxu0 0
      %283 = vmatpush.bf16.msra.mxu0 0
      %284 = vmatpush.bf16.msra.mxu0 0
      %285 = vmatpush.bf16.msra.mxu0 %v270
      %286 = vmatpush.bf16.msra.mxu0 %v269
      %287 = vmatmul.bf16.gmra.mxu0 %v274
      %v288 = vpop.f32.mrf.mxu0
      %v289 = vadd.f32 %v252, %v288
      %v290 = vpop.f32.mrf.mxu0
      %v291 = vadd.f32 %v254, %v290
      %292 = vmatmul.bf16.gmra.mxu0 %v277
      %v293 = vpop.f32.mrf.mxu0
      %v294 = vadd.f32 %v257, %v293
      %v295 = vpop.f32.mrf.mxu0
      %v296 = vadd.f32 %v259, %v295
      %297 = vdwg.mxu0
      %v298 = vld [vmem:[%s192 + $0x2] sm:$0xff]
      %v299 = vld [vmem:[%s192 + $0xa] sm:$0xff]
      %v300 = vld [vmem:[%s192 + $0x12] sm:$0xff]
      %v301 = vld [vmem:[%s192 + $0x1a] sm:$0x3f]
      %v302 = vpack.c.bf16 %v299, %v298
      %v303 = vpack.c.bf16 %v301, %v300
      %s304 = scalar_lea.vmem %s1, 32
      %v305 = vld [vmem:[%s304] sm:$0xf]
      %v306 = vld [vmem:[%s304 + $0x4] sm:$0xf]
      %v307 = vld [vmem:[%s304 + $0x8] sm:$0xf]
      %v308 = vld [vmem:[%s304 + $0xc] sm:$0xf]
      %v313 = vunpack.c.l.b16 %v305
      %v314 = vunpack.c.l.b16 %v306
      %v315 = vunpack.c.l.b16 %v307
      %v316 = vunpack.c.l.b16 %v308
      %v317 = vpack.c.b16 %v314, %v313
      %v318 = vpack.c.b16 %v316, %v315
      %v322 = vsel %vm235, %v302, 0
      %v325 = vsel %vm235, %v303, 0
      %327 = vmatpush.bf16.msra.mxu0 0
      %328 = vmatpush.bf16.msra.mxu0 0
      %329 = vmatpush.bf16.msra.mxu0 0
      %330 = vmatpush.bf16.msra.mxu0 0
      %331 = vmatpush.bf16.msra.mxu0 0
      %332 = vmatpush.bf16.msra.mxu0 0
      %333 = vmatpush.bf16.msra.mxu0 %v318
      %334 = vmatpush.bf16.msra.mxu0 %v317
      %335 = vmatmul.bf16.gmra.mxu0 %v322
      %v336 = vpop.f32.mrf.mxu0
      %v337 = vadd.f32 0.0, %v336
      %v338 = vpop.f32.mrf.mxu0
      %v339 = vadd.f32 0.0, %v338
      %340 = vmatmul.bf16.gmra.mxu0 %v325
      %v341 = vpop.f32.mrf.mxu0
      %v342 = vadd.f32 0.0, %v341
      %v343 = vpop.f32.mrf.mxu0
      %v344 = vadd.f32 0.0, %v343
      %345 = vdwg.mxu0
      %v346 = vadd.f32 %v289, %v337
      %v347 = vadd.f32 %v291, %v339
      %v348 = vadd.f32 %v294, %v342
      %v349 = vadd.f32 %v296, %v344
      %v350 = vld [vmem:[%s192 + $0xf] sm:$0xff]
      %v351 = vld [vmem:[%s192 + $0x17] sm:$0xff]
      %v352 = vld [vmem:[%s192 + $0x1f] sm:$0xff]
      %v353 = vld [vmem:[%s192 + $0x27] sm:$0x3f]
      %v354 = vpack.c.bf16 %v351, %v350
      %v355 = vpack.c.bf16 %v353, %v352
      %s356 = scalar_lea.vmem %s1, 48
      %v357 = vld [vmem:[%s356] sm:$0xf]
      %v358 = vld [vmem:[%s356 + $0x4] sm:$0xf]
      %v359 = vld [vmem:[%s356 + $0x8] sm:$0xf]
      %v360 = vld [vmem:[%s356 + $0xc] sm:$0xf]
      %v365 = vunpack.c.l.b16 %v357
      %v366 = vunpack.c.l.b16 %v358
      %v367 = vunpack.c.l.b16 %v359
      %v368 = vunpack.c.l.b16 %v360
      %v369 = vpack.c.b16 %v366, %v365
      %v370 = vpack.c.b16 %v368, %v367
      %v374 = vsel %vm235, %v354, 0
      %v377 = vsel %vm235, %v355, 0
      %379 = vmatpush.bf16.msra.mxu0 0
      %380 = vmatpush.bf16.msra.mxu0 0
      %381 = vmatpush.bf16.msra.mxu0 0
      %382 = vmatpush.bf16.msra.mxu0 0
      %383 = vmatpush.bf16.msra.mxu0 0
      %384 = vmatpush.bf16.msra.mxu0 0
      %385 = vmatpush.bf16.msra.mxu0 %v370
      %386 = vmatpush.bf16.msra.mxu0 %v369
      %387 = vmatmul.bf16.gmra.mxu0 %v374
      %v388 = vpop.f32.mrf.mxu0
      %v389 = vadd.f32 0.0, %v388
      %v390 = vpop.f32.mrf.mxu0
      %v391 = vadd.f32 0.0, %v390
      %392 = vmatmul.bf16.gmra.mxu0 %v377
      %v393 = vpop.f32.mrf.mxu0
      %v394 = vadd.f32 0.0, %v393
      %v395 = vpop.f32.mrf.mxu0
      %v396 = vadd.f32 0.0, %v395
      %397 = vdwg.mxu0
      %v398 = vadd.f32 %v346, %v389
      %v399 = vadd.f32 %v347, %v391
      %v400 = vadd.f32 %v348, %v394
      %v401 = vadd.f32 %v349, %v396
      %v402 = vld [vmem:[%s192 + $0x10] sm:$0xff]
      %v403 = vld [vmem:[%s192 + $0x18] sm:$0xff]
      %v404 = vld [vmem:[%s192 + $0x20] sm:$0xff]
      %v405 = vld [vmem:[%s192 + $0x28] sm:$0x3f]
      %v406 = vpack.c.bf16 %v403, %v402
      %v407 = vpack.c.bf16 %v405, %v404
      %s408 = scalar_lea.vmem %s1, 64
      %v409 = vld [vmem:[%s408] sm:$0xf]
      %v410 = vld [vmem:[%s408 + $0x4] sm:$0xf]
      %v411 = vld [vmem:[%s408 + $0x8] sm:$0xf]
      %v412 = vld [vmem:[%s408 + $0xc] sm:$0xf]
      %v417 = vunpack.c.l.b16 %v409
      %v418 = vunpack.c.l.b16 %v410
      %v419 = vunpack.c.l.b16 %v411
      %v420 = vunpack.c.l.b16 %v412
      %v421 = vpack.c.b16 %v418, %v417
      %v422 = vpack.c.b16 %v420, %v419
      %v426 = vsel %vm235, %v406, 0
      %v429 = vsel %vm235, %v407, 0
      %431 = vmatpush.bf16.msra.mxu0 0
      %432 = vmatpush.bf16.msra.mxu0 0
      %433 = vmatpush.bf16.msra.mxu0 0
      %434 = vmatpush.bf16.msra.mxu0 0
      %435 = vmatpush.bf16.msra.mxu0 0
      %436 = vmatpush.bf16.msra.mxu0 0
      %437 = vmatpush.bf16.msra.mxu0 %v422
      %438 = vmatpush.bf16.msra.mxu0 %v421
      %439 = vmatmul.bf16.gmra.mxu0 %v426
      %v440 = vpop.f32.mrf.mxu0
      %v441 = vadd.f32 0.0, %v440
      %v442 = vpop.f32.mrf.mxu0
      %v443 = vadd.f32 0.0, %v442
      %444 = vmatmul.bf16.gmra.mxu0 %v429
      %v445 = vpop.f32.mrf.mxu0
      %v446 = vadd.f32 0.0, %v445
      %v447 = vpop.f32.mrf.mxu0
      %v448 = vadd.f32 0.0, %v447
      %449 = vdwg.mxu0
      %v450 = vadd.f32 %v398, %v441
      %v451 = vadd.f32 %v399, %v443
      %v452 = vadd.f32 %v400, %v446
      %v453 = vadd.f32 %v401, %v448
      %v454 = vld [vmem:[%s192 + $0x11] sm:$0xff]
      %v455 = vld [vmem:[%s192 + $0x19] sm:$0xff]
      %v456 = vld [vmem:[%s192 + $0x21] sm:$0xff]
      %v457 = vld [vmem:[%s192 + $0x29] sm:$0x3f]
      %v458 = vpack.c.bf16 %v455, %v454
      %v459 = vpack.c.bf16 %v457, %v456
      %s460 = scalar_lea.vmem %s1, 80
      %v461 = vld [vmem:[%s460] sm:$0xf]
      %v462 = vld [vmem:[%s460 + $0x4] sm:$0xf]
      %v463 = vld [vmem:[%s460 + $0x8] sm:$0xf]
      %v464 = vld [vmem:[%s460 + $0xc] sm:$0xf]
      %v469 = vunpack.c.l.b16 %v461
      %v470 = vunpack.c.l.b16 %v462
      %v471 = vunpack.c.l.b16 %v463
      %v472 = vunpack.c.l.b16 %v464
      %v473 = vpack.c.b16 %v470, %v469
      %v474 = vpack.c.b16 %v472, %v471
      %v478 = vsel %vm235, %v458, 0
      %v481 = vsel %vm235, %v459, 0
      %483 = vmatpush.bf16.msra.mxu0 0
      %484 = vmatpush.bf16.msra.mxu0 0
      %485 = vmatpush.bf16.msra.mxu0 0
      %486 = vmatpush.bf16.msra.mxu0 0
      %487 = vmatpush.bf16.msra.mxu0 0
      %488 = vmatpush.bf16.msra.mxu0 0
      %489 = vmatpush.bf16.msra.mxu0 %v474
      %490 = vmatpush.bf16.msra.mxu0 %v473
      %491 = vmatmul.bf16.gmra.mxu0 %v478
      %v492 = vpop.f32.mrf.mxu0
      %v493 = vadd.f32 0.0, %v492
      %v494 = vpop.f32.mrf.mxu0
      %v495 = vadd.f32 0.0, %v494
      %496 = vmatmul.bf16.gmra.mxu0 %v481
      %v497 = vpop.f32.mrf.mxu0
      %v498 = vadd.f32 0.0, %v497
      %v499 = vpop.f32.mrf.mxu0
      %v500 = vadd.f32 0.0, %v499
      %501 = vdwg.mxu0
      %v502 = vadd.f32 %v450, %v493
      %v503 = vadd.f32 %v451, %v495
      %v504 = vadd.f32 %v452, %v498
      %v505 = vadd.f32 %v453, %v500
      %v506 = vld [vmem:[%s192 + $0x1e] sm:$0xff]
      %v507 = vld [vmem:[%s192 + $0x26] sm:$0xff]
      %v508 = vld [vmem:[%s192 + $0x2e] sm:$0xff]
      %v509 = vld [vmem:[%s192 + $0x36] sm:$0x3f]
      %v510 = vpack.c.bf16 %v507, %v506
      %v511 = vpack.c.bf16 %v509, %v508
      %s512 = scalar_lea.vmem %s1, 96
      %v513 = vld [vmem:[%s512] sm:$0xf]
      %v514 = vld [vmem:[%s512 + $0x4] sm:$0xf]
      %v515 = vld [vmem:[%s512 + $0x8] sm:$0xf]
      %v516 = vld [vmem:[%s512 + $0xc] sm:$0xf]
      %v521 = vunpack.c.l.b16 %v513
      %v522 = vunpack.c.l.b16 %v514
      %v523 = vunpack.c.l.b16 %v515
      %v524 = vunpack.c.l.b16 %v516
      %v525 = vpack.c.b16 %v522, %v521
      %v526 = vpack.c.b16 %v524, %v523
      %v530 = vsel %vm235, %v510, 0
      %v533 = vsel %vm235, %v511, 0
      %535 = vmatpush.bf16.msra.mxu0 0
      %536 = vmatpush.bf16.msra.mxu0 0
      %537 = vmatpush.bf16.msra.mxu0 0
      %538 = vmatpush.bf16.msra.mxu0 0
      %539 = vmatpush.bf16.msra.mxu0 0
      %540 = vmatpush.bf16.msra.mxu0 0
      %541 = vmatpush.bf16.msra.mxu0 %v526
      %542 = vmatpush.bf16.msra.mxu0 %v525
      %543 = vmatmul.bf16.gmra.mxu0 %v530
      %v544 = vpop.f32.mrf.mxu0
      %v545 = vadd.f32 0.0, %v544
      %v546 = vpop.f32.mrf.mxu0
      %v547 = vadd.f32 0.0, %v546
      %548 = vmatmul.bf16.gmra.mxu0 %v533
      %v549 = vpop.f32.mrf.mxu0
      %v550 = vadd.f32 0.0, %v549
      %v551 = vpop.f32.mrf.mxu0
      %v552 = vadd.f32 0.0, %v551
      %553 = vdwg.mxu0
      %v554 = vadd.f32 %v502, %v545
      %v555 = vadd.f32 %v503, %v547
      %v556 = vadd.f32 %v504, %v550
      %v557 = vadd.f32 %v505, %v552
      %v558 = vld [vmem:[%s192 + $0x1f] sm:$0xff]
      %v559 = vld [vmem:[%s192 + $0x27] sm:$0xff]
      %v560 = vld [vmem:[%s192 + $0x2f] sm:$0xff]
      %v561 = vld [vmem:[%s192 + $0x37] sm:$0x3f]
      %v562 = vpack.c.bf16 %v559, %v558
      %v563 = vpack.c.bf16 %v561, %v560
      %s564 = scalar_lea.vmem %s1, 112
      %v565 = vld [vmem:[%s564] sm:$0xf]
      %v566 = vld [vmem:[%s564 + $0x4] sm:$0xf]
      %v567 = vld [vmem:[%s564 + $0x8] sm:$0xf]
      %v568 = vld [vmem:[%s564 + $0xc] sm:$0xf]
      %v573 = vunpack.c.l.b16 %v565
      %v574 = vunpack.c.l.b16 %v566
      %v575 = vunpack.c.l.b16 %v567
      %v576 = vunpack.c.l.b16 %v568
      %v577 = vpack.c.b16 %v574, %v573
      %v578 = vpack.c.b16 %v576, %v575
      %v582 = vsel %vm235, %v562, 0
      %v585 = vsel %vm235, %v563, 0
      %587 = vmatpush.bf16.msra.mxu0 0
      %588 = vmatpush.bf16.msra.mxu0 0
      %589 = vmatpush.bf16.msra.mxu0 0
      %590 = vmatpush.bf16.msra.mxu0 0
      %591 = vmatpush.bf16.msra.mxu0 0
      %592 = vmatpush.bf16.msra.mxu0 0
      %593 = vmatpush.bf16.msra.mxu0 %v578
      %594 = vmatpush.bf16.msra.mxu0 %v577
      %595 = vmatmul.bf16.gmra.mxu0 %v582
      %v596 = vpop.f32.mrf.mxu0
      %v597 = vadd.f32 0.0, %v596
      %v598 = vpop.f32.mrf.mxu0
      %v599 = vadd.f32 0.0, %v598
      %600 = vmatmul.bf16.gmra.mxu0 %v585
      %v601 = vpop.f32.mrf.mxu0
      %v602 = vadd.f32 0.0, %v601
      %v603 = vpop.f32.mrf.mxu0
      %v604 = vadd.f32 0.0, %v603
      %605 = vdwg.mxu0
      %v606 = vadd.f32 %v554, %v597
      %v607 = vadd.f32 %v555, %v599
      %v608 = vadd.f32 %v556, %v602
      %v609 = vadd.f32 %v557, %v604
      %v610 = vld [vmem:[%s192 + $0x20] sm:$0xff]
      %v611 = vld [vmem:[%s192 + $0x28] sm:$0xff]
      %v612 = vld [vmem:[%s192 + $0x30] sm:$0xff]
      %v613 = vld [vmem:[%s192 + $0x38] sm:$0x3f]
      %v614 = vpack.c.bf16 %v611, %v610
      %v615 = vpack.c.bf16 %v613, %v612
      %s616 = scalar_lea.vmem %s1, 128
      %v617 = vld [vmem:[%s616] sm:$0xf]
      %v618 = vld [vmem:[%s616 + $0x4] sm:$0xf]
      %v619 = vld [vmem:[%s616 + $0x8] sm:$0xf]
      %v620 = vld [vmem:[%s616 + $0xc] sm:$0xf]
      %v625 = vunpack.c.l.b16 %v617
      %v626 = vunpack.c.l.b16 %v618
      %v627 = vunpack.c.l.b16 %v619
      %v628 = vunpack.c.l.b16 %v620
      %v629 = vpack.c.b16 %v626, %v625
      %v630 = vpack.c.b16 %v628, %v627
      %v634 = vsel %vm235, %v614, 0
      %v637 = vsel %vm235, %v615, 0
      %639 = vmatpush.bf16.msra.mxu0 0
      %640 = vmatpush.bf16.msra.mxu0 0
      %641 = vmatpush.bf16.msra.mxu0 0
      %642 = vmatpush.bf16.msra.mxu0 0
      %643 = vmatpush.bf16.msra.mxu0 0
      %644 = vmatpush.bf16.msra.mxu0 0
      %645 = vmatpush.bf16.msra.mxu0 %v630
      %646 = vmatpush.bf16.msra.mxu0 %v629
      %647 = vmatmul.bf16.gmra.mxu0 %v634
      %v648 = vpop.f32.mrf.mxu0
      %v649 = vadd.f32 0.0, %v648
      %v650 = vpop.f32.mrf.mxu0
      %v651 = vadd.f32 0.0, %v650
      %652 = vmatmul.bf16.gmra.mxu0 %v637
      %v653 = vpop.f32.mrf.mxu0
      %v654 = vadd.f32 0.0, %v653
      %v655 = vpop.f32.mrf.mxu0
      %v656 = vadd.f32 0.0, %v655
      %657 = vdwg.mxu0
      %v658 = vadd.f32 %v606, %v649
      %v659 = vadd.f32 %v607, %v651
      %v660 = vadd.f32 %v608, %v654
      %v661 = vadd.f32 %v609, %v656
      %v662 = vld [vmem:[%s2] sm:$0x1]
      %v664 = vperm.slane %v662, 0
      %v666 = vadd.f32 %v658, %v664
      %v667 = vadd.f32 %v659, %v664
      %v668 = vadd.f32 %v660, %v664
      %v669 = vadd.f32 %v661, %v664
      %v670 = vmax.f32 %v666, 0.0
      %v671 = vmax.f32 %v667, 0.0
      %v672 = vmax.f32 %v668, 0.0
      %v673 = vmax.f32 %v669, 0.0
      %vm677 = vcmask 1040384
      %v678 = vrot.slane %v671, 7
      %v679 = vrot.slane %v672, 7
      %v680 = vsel %vm677, %v678, %v679
      %v681 = vrot.slane %v673, 7
      %v682 = vsel %vm677, %v679, %v681
      %v685 = vmax.f32 %v670, %v680
      %v686 = vmax.f32 %v671, %v682
      %v687 = vpack.c.bf16 %v686, %v685
      %vm688 = vcmask 121856
      %v690 = vsel %vm688, %v199, 0
      %vm692 = vcmask 1046528
      %vm693 = vcmask 1047552
      %v694 = vsel %vm692, 4294967295, 65535
      %v695 = vsel %vm693, %v694, 0
      %v697 = vand.u32 %v687, %v695
      %699 = vmatpush.bf16.msra.mxu0 0
      %700 = vmatpush.bf16.msra.mxu0 0
      %701 = vmatpush.bf16.msra.mxu0 0
      %702 = vmatpush.bf16.msra.mxu0 0
      %703 = vmatpush.bf16.msra.mxu0 0
      %704 = vmatpush.bf16.msra.mxu0 0
      %705 = vmatpush.bf16.msra.mxu0 0
      %706 = vmatpush.bf16.msra.mxu0 %v697
      %707 = vmatmul.bf16.gmra.mxu0 %v690
      %v708 = vpop.f32.mrf.mxu0
      %v709 = vadd.f32 0.0, %v708
      %v710 = vpop.f32.mrf.mxu0
      %711 = vdwg.mxu0
      %v713 = vsel %vm688, %v201, 0
      %715 = vmatpush.bf16.msra.mxu0 0
      %716 = vmatpush.bf16.msra.mxu0 0
      %717 = vmatpush.bf16.msra.mxu0 0
      %718 = vmatpush.bf16.msra.mxu0 0
      %719 = vmatpush.bf16.msra.mxu0 0
      %720 = vmatpush.bf16.msra.mxu0 0
      %721 = vmatpush.bf16.msra.mxu0 0
      %722 = vmatpush.bf16.msra.mxu0 %v697
      %723 = vmatmul.bf16.gmra.mxu0 %v713
      %v724 = vpop.f32.mrf.mxu0
      %v725 = vadd.f32 0.0, %v724
      %v726 = vpop.f32.mrf.mxu0
      %727 = vdwg.mxu0
      %v728 = vmax.f32 %v709, %v725
      %vm729 = vcmask 521216
      %730 = vst.msk [vmem:[%s197] sm:$0x3f] %vm729, %v728
      %v731 = vld [vmem:[%s192 + $0x1e] sm:$0xff]
      %v732 = vld [vmem:[%s192 + $0x26] sm:$0xff]
      %v733 = vld [vmem:[%s192 + $0x2e] sm:$0xff]
      %v734 = vld [vmem:[%s192 + $0x36] sm:$0x3f]
      %v735 = vpack.c.bf16 %v732, %v731
      %v736 = vpack.c.bf16 %v734, %v733
      %v737 = vld [vmem:[%s1] sm:$0xf]
      %v738 = vld [vmem:[%s1 + $0x4] sm:$0xf]
      %v739 = vld [vmem:[%s1 + $0x8] sm:$0xf]
      %v740 = vld [vmem:[%s1 + $0xc] sm:$0xf]
      %v741 = vld [vmem:[%s192 + $0x1f] sm:$0xff]
      %v742 = vld [vmem:[%s192 + $0x27] sm:$0xff]
      %v743 = vld [vmem:[%s192 + $0x2f] sm:$0xff]
      %v744 = vld [vmem:[%s192 + $0x37] sm:$0x3f]
      %v745 = vpack.c.bf16 %v742, %v741
      %v746 = vpack.c.bf16 %v744, %v743
      %v747 = vld [vmem:[%s218] sm:$0xf]
      %v748 = vld [vmem:[%s218 + $0x4] sm:$0xf]
      %v749 = vld [vmem:[%s218 + $0x8] sm:$0xf]
      %v750 = vld [vmem:[%s218 + $0xc] sm:$0xf]
      %v755 = vunpack.c.l.b16 %v747
      %v756 = vunpack.c.l.b16 %v748
      %v757 = vunpack.c.l.b16 %v749
      %v758 = vunpack.c.l.b16 %v750
      %v759 = vpack.c.b16 %v756, %v755
      %v760 = vpack.c.b16 %v758, %v757
      %v764 = vsel %vm235, %v745, 0
      %v767 = vsel %vm235, %v746, 0
      %769 = vmatpush.bf16.msra.mxu0 0
      %770 = vmatpush.bf16.msra.mxu0 0
      %771 = vmatpush.bf16.msra.mxu0 0
      %772 = vmatpush.bf16.msra.mxu0 0
      %773 = vmatpush.bf16.msra.mxu0 0
      %774 = vmatpush.bf16.msra.mxu0 0
      %775 = vmatpush.bf16.msra.mxu0 %v760
      %776 = vmatpush.bf16.msra.mxu0 %v759
      %777 = vmatmul.bf16.gmra.mxu0 %v764
      %v778 = vpop.f32.mrf.mxu0
      %v779 = vadd.f32 0.0, %v778
      %v780 = vpop.f32.mrf.mxu0
      %v781 = vadd.f32 0.0, %v780
      %782 = vmatmul.bf16.gmra.mxu0 %v767
      %v783 = vpop.f32.mrf.mxu0
      %v784 = vadd.f32 0.0, %v783
      %v785 = vpop.f32.mrf.mxu0
      %v786 = vadd.f32 0.0, %v785
      %787 = vdwg.mxu0
      %v792 = vunpack.c.l.b16 %v737
      %v793 = vunpack.c.l.b16 %v738
      %v794 = vunpack.c.l.b16 %v739
      %v795 = vunpack.c.l.b16 %v740
      %v796 = vpack.c.b16 %v793, %v792
      %v797 = vpack.c.b16 %v795, %v794
      %v801 = vsel %vm235, %v735, 0
      %v804 = vsel %vm235, %v736, 0
      %806 = vmatpush.bf16.msra.mxu0 0
      %807 = vmatpush.bf16.msra.mxu0 0
      %808 = vmatpush.bf16.msra.mxu0 0
      %809 = vmatpush.bf16.msra.mxu0 0
      %810 = vmatpush.bf16.msra.mxu0 0
      %811 = vmatpush.bf16.msra.mxu0 0
      %812 = vmatpush.bf16.msra.mxu0 %v797
      %813 = vmatpush.bf16.msra.mxu0 %v796
      %814 = vmatmul.bf16.gmra.mxu0 %v801
      %v815 = vpop.f32.mrf.mxu0
      %v816 = vadd.f32 %v779, %v815
      %v817 = vpop.f32.mrf.mxu0
      %v818 = vadd.f32 %v781, %v817
      %819 = vmatmul.bf16.gmra.mxu0 %v804
      %v820 = vpop.f32.mrf.mxu0
      %v821 = vadd.f32 %v784, %v820
      %v822 = vpop.f32.mrf.mxu0
      %v823 = vadd.f32 %v786, %v822
      %824 = vdwg.mxu0
      %v825 = vld [vmem:[%s192 + $0x20] sm:$0xff]
      %v826 = vld [vmem:[%s192 + $0x28] sm:$0xff]
      %v827 = vld [vmem:[%s192 + $0x30] sm:$0xff]
      %v828 = vld [vmem:[%s192 + $0x38] sm:$0x3f]
      %v829 = vpack.c.bf16 %v826, %v825
      %v830 = vpack.c.bf16 %v828, %v827
      %v831 = vld [vmem:[%s304] sm:$0xf]
      %v832 = vld [vmem:[%s304 + $0x4] sm:$0xf]
      %v833 = vld [vmem:[%s304 + $0x8] sm:$0xf]
      %v834 = vld [vmem:[%s304 + $0xc] sm:$0xf]
      %v839 = vunpack.c.l.b16 %v831
      %v840 = vunpack.c.l.b16 %v832
      %v841 = vunpack.c.l.b16 %v833
      %v842 = vunpack.c.l.b16 %v834
      %v843 = vpack.c.b16 %v840, %v839
      %v844 = vpack.c.b16 %v842, %v841
      %v848 = vsel %vm235, %v829, 0
      %v851 = vsel %vm235, %v830, 0
      %853 = vmatpush.bf16.msra.mxu0 0
      %854 = vmatpush.bf16.msra.mxu0 0
      %855 = vmatpush.bf16.msra.mxu0 0
      %856 = vmatpush.bf16.msra.mxu0 0
      %857 = vmatpush.bf16.msra.mxu0 0
      %858 = vmatpush.bf16.msra.mxu0 0
      %859 = vmatpush.bf16.msra.mxu0 %v844
      %860 = vmatpush.bf16.msra.mxu0 %v843
      %861 = vmatmul.bf16.gmra.mxu0 %v848
      %v862 = vpop.f32.mrf.mxu0
      %v863 = vadd.f32 0.0, %v862
      %v864 = vpop.f32.mrf.mxu0
      %v865 = vadd.f32 0.0, %v864
      %866 = vmatmul.bf16.gmra.mxu0 %v851
      %v867 = vpop.f32.mrf.mxu0
      %v868 = vadd.f32 0.0, %v867
      %v869 = vpop.f32.mrf.mxu0
      %v870 = vadd.f32 0.0, %v869
      %871 = vdwg.mxu0
      %v872 = vadd.f32 %v816, %v863
      %v873 = vadd.f32 %v818, %v865
      %v874 = vadd.f32 %v821, %v868
      %v875 = vadd.f32 %v823, %v870
      %v876 = vld [vmem:[%s192 + $0x2d] sm:$0xff]
      %v877 = vld [vmem:[%s192 + $0x35] sm:$0xff]
      %v878 = vld [vmem:[%s192 + $0x3d] sm:$0xff]
      %v879 = vld [vmem:[%s192 + $0x45] sm:$0x3f]
      %v880 = vpack.c.bf16 %v877, %v876
      %v881 = vpack.c.bf16 %v879, %v878
      %v882 = vld [vmem:[%s356] sm:$0xf]
      %v883 = vld [vmem:[%s356 + $0x4] sm:$0xf]
      %v884 = vld [vmem:[%s356 + $0x8] sm:$0xf]
      %v885 = vld [vmem:[%s356 + $0xc] sm:$0xf]
      %v890 = vunpack.c.l.b16 %v882
      %v891 = vunpack.c.l.b16 %v883
      %v892 = vunpack.c.l.b16 %v884
      %v893 = vunpack.c.l.b16 %v885
      %v894 = vpack.c.b16 %v891, %v890
      %v895 = vpack.c.b16 %v893, %v892
      %v899 = vsel %vm235, %v880, 0
      %v902 = vsel %vm235, %v881, 0
      %904 = vmatpush.bf16.msra.mxu0 0
      %905 = vmatpush.bf16.msra.mxu0 0
      %906 = vmatpush.bf16.msra.mxu0 0
      %907 = vmatpush.bf16.msra.mxu0 0
      %908 = vmatpush.bf16.msra.mxu0 0
      %909 = vmatpush.bf16.msra.mxu0 0
      %910 = vmatpush.bf16.msra.mxu0 %v895
      %911 = vmatpush.bf16.msra.mxu0 %v894
      %912 = vmatmul.bf16.gmra.mxu0 %v899
      %v913 = vpop.f32.mrf.mxu0
      %v914 = vadd.f32 0.0, %v913
      %v915 = vpop.f32.mrf.mxu0
      %v916 = vadd.f32 0.0, %v915
      %917 = vmatmul.bf16.gmra.mxu0 %v902
      %v918 = vpop.f32.mrf.mxu0
      %v919 = vadd.f32 0.0, %v918
      %v920 = vpop.f32.mrf.mxu0
      %v921 = vadd.f32 0.0, %v920
      %922 = vdwg.mxu0
      %v923 = vadd.f32 %v872, %v914
      %v924 = vadd.f32 %v873, %v916
      %v925 = vadd.f32 %v874, %v919
      %v926 = vadd.f32 %v875, %v921
      %v927 = vld [vmem:[%s192 + $0x2e] sm:$0xff]
      %v928 = vld [vmem:[%s192 + $0x36] sm:$0xff]
      %v929 = vld [vmem:[%s192 + $0x3e] sm:$0xff]
      %v930 = vld [vmem:[%s192 + $0x46] sm:$0x3f]
      %v931 = vpack.c.bf16 %v928, %v927
      %v932 = vpack.c.bf16 %v930, %v929
      %v933 = vld [vmem:[%s408] sm:$0xf]
      %v934 = vld [vmem:[%s408 + $0x4] sm:$0xf]
      %v935 = vld [vmem:[%s408 + $0x8] sm:$0xf]
      %v936 = vld [vmem:[%s408 + $0xc] sm:$0xf]
      %v941 = vunpack.c.l.b16 %v933
      %v942 = vunpack.c.l.b16 %v934
      %v943 = vunpack.c.l.b16 %v935
      %v944 = vunpack.c.l.b16 %v936
      %v945 = vpack.c.b16 %v942, %v941
      %v946 = vpack.c.b16 %v944, %v943
      %v950 = vsel %vm235, %v931, 0
      %v953 = vsel %vm235, %v932, 0
      %955 = vmatpush.bf16.msra.mxu0 0
      %956 = vmatpush.bf16.msra.mxu0 0
      %957 = vmatpush.bf16.msra.mxu0 0
      %958 = vmatpush.bf16.msra.mxu0 0
      %959 = vmatpush.bf16.msra.mxu0 0
      %960 = vmatpush.bf16.msra.mxu0 0
      %961 = vmatpush.bf16.msra.mxu0 %v946
      %962 = vmatpush.bf16.msra.mxu0 %v945
      %963 = vmatmul.bf16.gmra.mxu0 %v950
      %v964 = vpop.f32.mrf.mxu0
      %v965 = vadd.f32 0.0, %v964
      %v966 = vpop.f32.mrf.mxu0
      %v967 = vadd.f32 0.0, %v966
      %968 = vmatmul.bf16.gmra.mxu0 %v953
      %v969 = vpop.f32.mrf.mxu0
      %v970 = vadd.f32 0.0, %v969
      %v971 = vpop.f32.mrf.mxu0
      %v972 = vadd.f32 0.0, %v971
      %973 = vdwg.mxu0
      %v974 = vadd.f32 %v923, %v965
      %v975 = vadd.f32 %v924, %v967
      %v976 = vadd.f32 %v925, %v970
      %v977 = vadd.f32 %v926, %v972
      %v978 = vld [vmem:[%s192 + $0x2f] sm:$0xff]
      %v979 = vld [vmem:[%s192 + $0x37] sm:$0xff]
      %v980 = vld [vmem:[%s192 + $0x3f] sm:$0xff]
      %v981 = vld [vmem:[%s192 + $0x47] sm:$0x3f]
      %v982 = vpack.c.bf16 %v979, %v978
      %v983 = vpack.c.bf16 %v981, %v980
      %v984 = vld [vmem:[%s460] sm:$0xf]
      %v985 = vld [vmem:[%s460 + $0x4] sm:$0xf]
      %v986 = vld [vmem:[%s460 + $0x8] sm:$0xf]
      %v987 = vld [vmem:[%s460 + $0xc] sm:$0xf]
      %v992 = vunpack.c.l.b16 %v984
      %v993 = vunpack.c.l.b16 %v985
      %v994 = vunpack.c.l.b16 %v986
      %v995 = vunpack.c.l.b16 %v987
      %v996 = vpack.c.b16 %v993, %v992
      %v997 = vpack.c.b16 %v995, %v994
      %v1001 = vsel %vm235, %v982, 0
      %v1004 = vsel %vm235, %v983, 0
      %1006 = vmatpush.bf16.msra.mxu0 0
      %1007 = vmatpush.bf16.msra.mxu0 0
      %1008 = vmatpush.bf16.msra.mxu0 0
      %1009 = vmatpush.bf16.msra.mxu0 0
      %1010 = vmatpush.bf16.msra.mxu0 0
      %1011 = vmatpush.bf16.msra.mxu0 0
      %1012 = vmatpush.bf16.msra.mxu0 %v997
      %1013 = vmatpush.bf16.msra.mxu0 %v996
      %1014 = vmatmul.bf16.gmra.mxu0 %v1001
      %v1015 = vpop.f32.mrf.mxu0
      %v1016 = vadd.f32 0.0, %v1015
      %v1017 = vpop.f32.mrf.mxu0
      %v1018 = vadd.f32 0.0, %v1017
      %1019 = vmatmul.bf16.gmra.mxu0 %v1004
      %v1020 = vpop.f32.mrf.mxu0
      %v1021 = vadd.f32 0.0, %v1020
      %v1022 = vpop.f32.mrf.mxu0
      %v1023 = vadd.f32 0.0, %v1022
      %1024 = vdwg.mxu0
      %v1025 = vadd.f32 %v974, %v1016
      %v1026 = vadd.f32 %v975, %v1018
      %v1027 = vadd.f32 %v976, %v1021
      %v1028 = vadd.f32 %v977, %v1023
      %v1029 = vld [vmem:[%s192 + $0x3c] sm:$0xff]
      %v1030 = vld [vmem:[%s192 + $0x44] sm:$0xff]
      %v1031 = vld [vmem:[%s192 + $0x4c] sm:$0xff]
      %v1032 = vld [vmem:[%s192 + $0x54] sm:$0x3f]
      %v1033 = vpack.c.bf16 %v1030, %v1029
      %v1034 = vpack.c.bf16 %v1032, %v1031
      %v1035 = vld [vmem:[%s512] sm:$0xf]
      %v1036 = vld [vmem:[%s512 + $0x4] sm:$0xf]
      %v1037 = vld [vmem:[%s512 + $0x8] sm:$0xf]
      %v1038 = vld [vmem:[%s512 + $0xc] sm:$0xf]
      %v1043 = vunpack.c.l.b16 %v1035
      %v1044 = vunpack.c.l.b16 %v1036
      %v1045 = vunpack.c.l.b16 %v1037
      %v1046 = vunpack.c.l.b16 %v1038
      %v1047 = vpack.c.b16 %v1044, %v1043
      %v1048 = vpack.c.b16 %v1046, %v1045
      %v1052 = vsel %vm235, %v1033, 0
      %v1055 = vsel %vm235, %v1034, 0
      %1057 = vmatpush.bf16.msra.mxu0 0
      %1058 = vmatpush.bf16.msra.mxu0 0
      %1059 = vmatpush.bf16.msra.mxu0 0
      %1060 = vmatpush.bf16.msra.mxu0 0
      %1061 = vmatpush.bf16.msra.mxu0 0
      %1062 = vmatpush.bf16.msra.mxu0 0
      %1063 = vmatpush.bf16.msra.mxu0 %v1048
      %1064 = vmatpush.bf16.msra.mxu0 %v1047
      %1065 = vmatmul.bf16.gmra.mxu0 %v1052
      %v1066 = vpop.f32.mrf.mxu0
      %v1067 = vadd.f32 0.0, %v1066
      %v1068 = vpop.f32.mrf.mxu0
      %v1069 = vadd.f32 0.0, %v1068
      %1070 = vmatmul.bf16.gmra.mxu0 %v1055
      %v1071 = vpop.f32.mrf.mxu0
      %v1072 = vadd.f32 0.0, %v1071
      %v1073 = vpop.f32.mrf.mxu0
      %v1074 = vadd.f32 0.0, %v1073
      %1075 = vdwg.mxu0
      %v1076 = vadd.f32 %v1025, %v1067
      %v1077 = vadd.f32 %v1026, %v1069
      %v1078 = vadd.f32 %v1027, %v1072
      %v1079 = vadd.f32 %v1028, %v1074
      %v1080 = vld [vmem:[%s192 + $0x3d] sm:$0xff]
      %v1081 = vld [vmem:[%s192 + $0x45] sm:$0xff]
      %v1082 = vld [vmem:[%s192 + $0x4d] sm:$0xff]
      %v1083 = vld [vmem:[%s192 + $0x55] sm:$0x3f]
      %v1084 = vpack.c.bf16 %v1081, %v1080
      %v1085 = vpack.c.bf16 %v1083, %v1082
      %v1086 = vld [vmem:[%s564] sm:$0xf]
      %v1087 = vld [vmem:[%s564 + $0x4] sm:$0xf]
      %v1088 = vld [vmem:[%s564 + $0x8] sm:$0xf]
      %v1089 = vld [vmem:[%s564 + $0xc] sm:$0xf]
      %v1094 = vunpack.c.l.b16 %v1086
      %v1095 = vunpack.c.l.b16 %v1087
      %v1096 = vunpack.c.l.b16 %v1088
      %v1097 = vunpack.c.l.b16 %v1089
      %v1098 = vpack.c.b16 %v1095, %v1094
      %v1099 = vpack.c.b16 %v1097, %v1096
      %v1103 = vsel %vm235, %v1084, 0
      %v1106 = vsel %vm235, %v1085, 0
      %1108 = vmatpush.bf16.msra.mxu0 0
      %1109 = vmatpush.bf16.msra.mxu0 0
      %1110 = vmatpush.bf16.msra.mxu0 0
      %1111 = vmatpush.bf16.msra.mxu0 0
      %1112 = vmatpush.bf16.msra.mxu0 0
      %1113 = vmatpush.bf16.msra.mxu0 0
      %1114 = vmatpush.bf16.msra.mxu0 %v1099
      %1115 = vmatpush.bf16.msra.mxu0 %v1098
      %1116 = vmatmul.bf16.gmra.mxu0 %v1103
      %v1117 = vpop.f32.mrf.mxu0
      %v1118 = vadd.f32 0.0, %v1117
      %v1119 = vpop.f32.mrf.mxu0
      %v1120 = vadd.f32 0.0, %v1119
      %1121 = vmatmul.bf16.gmra.mxu0 %v1106
      %v1122 = vpop.f32.mrf.mxu0
      %v1123 = vadd.f32 0.0, %v1122
      %v1124 = vpop.f32.mrf.mxu0
      %v1125 = vadd.f32 0.0, %v1124
      %1126 = vdwg.mxu0
      %v1127 = vadd.f32 %v1076, %v1118
      %v1128 = vadd.f32 %v1077, %v1120
      %v1129 = vadd.f32 %v1078, %v1123
      %v1130 = vadd.f32 %v1079, %v1125
      %v1131 = vld [vmem:[%s192 + $0x3e] sm:$0xff]
      %v1132 = vld [vmem:[%s192 + $0x46] sm:$0xff]
      %v1133 = vld [vmem:[%s192 + $0x4e] sm:$0xff]
      %v1134 = vld [vmem:[%s192 + $0x56] sm:$0x3f]
      %v1135 = vpack.c.bf16 %v1132, %v1131
      %v1136 = vpack.c.bf16 %v1134, %v1133
      %v1137 = vld [vmem:[%s616] sm:$0xf]
      %v1138 = vld [vmem:[%s616 + $0x4] sm:$0xf]
      %v1139 = vld [vmem:[%s616 + $0x8] sm:$0xf]
      %v1140 = vld [vmem:[%s616 + $0xc] sm:$0xf]
      %v1145 = vunpack.c.l.b16 %v1137
      %v1146 = vunpack.c.l.b16 %v1138
      %v1147 = vunpack.c.l.b16 %v1139
      %v1148 = vunpack.c.l.b16 %v1140
      %v1149 = vpack.c.b16 %v1146, %v1145
      %v1150 = vpack.c.b16 %v1148, %v1147
      %v1154 = vsel %vm235, %v1135, 0
      %v1157 = vsel %vm235, %v1136, 0
      %1159 = vmatpush.bf16.msra.mxu0 0
      %1160 = vmatpush.bf16.msra.mxu0 0
      %1161 = vmatpush.bf16.msra.mxu0 0
      %1162 = vmatpush.bf16.msra.mxu0 0
      %1163 = vmatpush.bf16.msra.mxu0 0
      %1164 = vmatpush.bf16.msra.mxu0 0
      %1165 = vmatpush.bf16.msra.mxu0 %v1150
      %1166 = vmatpush.bf16.msra.mxu0 %v1149
      %1167 = vmatmul.bf16.gmra.mxu0 %v1154
      %v1168 = vpop.f32.mrf.mxu0
      %v1169 = vadd.f32 0.0, %v1168
      %v1170 = vpop.f32.mrf.mxu0
      %v1171 = vadd.f32 0.0, %v1170
      %1172 = vmatmul.bf16.gmra.mxu0 %v1157
      %v1173 = vpop.f32.mrf.mxu0
      %v1174 = vadd.f32 0.0, %v1173
      %v1175 = vpop.f32.mrf.mxu0
      %v1176 = vadd.f32 0.0, %v1175
      %1177 = vdwg.mxu0
      %v1178 = vadd.f32 %v1127, %v1169
      %v1179 = vadd.f32 %v1128, %v1171
      %v1180 = vadd.f32 %v1129, %v1174
      %v1181 = vadd.f32 %v1130, %v1176
      %v1182 = vld [vmem:[%s2] sm:$0x1]
      %v1184 = vperm.slane %v1182, 0
      %v1186 = vadd.f32 %v1178, %v1184
      %v1187 = vadd.f32 %v1179, %v1184
      %v1188 = vadd.f32 %v1180, %v1184
      %v1189 = vadd.f32 %v1181, %v1184
      %v1190 = vmax.f32 %v1186, 0.0
      %v1191 = vmax.f32 %v1187, 0.0
      %v1192 = vmax.f32 %v1188, 0.0
      %v1193 = vmax.f32 %v1189, 0.0
      %v1197 = vrot.slane %v1191, 7
      %v1198 = vrot.slane %v1192, 7
      %v1199 = vsel %vm677, %v1197, %v1198
      %v1200 = vrot.slane %v1193, 7
      %v1201 = vsel %vm677, %v1198, %v1200
      %v1204 = vmax.f32 %v1190, %v1199
      %v1205 = vmax.f32 %v1191, %v1201
      %v1206 = vpack.c.bf16 %v1205, %v1204
      %v1208 = vand.u32 %v1206, %v695
      %1210 = vmatpush.bf16.msra.mxu0 0
      %1211 = vmatpush.bf16.msra.mxu0 0
      %1212 = vmatpush.bf16.msra.mxu0 0
      %1213 = vmatpush.bf16.msra.mxu0 0
      %1214 = vmatpush.bf16.msra.mxu0 0
      %1215 = vmatpush.bf16.msra.mxu0 0
      %1216 = vmatpush.bf16.msra.mxu0 0
      %1217 = vmatpush.bf16.msra.mxu0 %v1208
      %1218 = vmatmul.bf16.gmra.mxu0 %v690
      %v1219 = vpop.f32.mrf.mxu0
      %v1220 = vadd.f32 0.0, %v1219
      %v1221 = vpop.f32.mrf.mxu0
      %1222 = vdwg.mxu0
      %1223 = vmatpush.bf16.msra.mxu0 0
      %1224 = vmatpush.bf16.msra.mxu0 0
      %1225 = vmatpush.bf16.msra.mxu0 0
      %1226 = vmatpush.bf16.msra.mxu0 0
      %1227 = vmatpush.bf16.msra.mxu0 0
      %1228 = vmatpush.bf16.msra.mxu0 0
      %1229 = vmatpush.bf16.msra.mxu0 0
      %1230 = vmatpush.bf16.msra.mxu0 %v1208
      %1231 = vmatmul.bf16.gmra.mxu0 %v713
      %v1232 = vpop.f32.mrf.mxu0
      %v1233 = vadd.f32 0.0, %v1232
      %v1234 = vpop.f32.mrf.mxu0
      %1235 = vdwg.mxu0
      %v1236 = vmax.f32 %v1220, %v1233
      %s1237 = scalar_lea.vmem %s197, 8
      %1238 = vst.msk [vmem:[%s1237] sm:$0x3f] %vm729, %v1236
      %v1239 = vld [vmem:[%s192 + $0x3c] sm:$0xff]
      %v1240 = vld [vmem:[%s192 + $0x44] sm:$0xff]
      %v1241 = vld [vmem:[%s192 + $0x4c] sm:$0xff]
      %v1242 = vld [vmem:[%s192 + $0x54] sm:$0x3f]
      %v1243 = vpack.c.bf16 %v1240, %v1239
      %v1244 = vpack.c.bf16 %v1242, %v1241
      %v1245 = vld [vmem:[%s1] sm:$0xf]
      %v1246 = vld [vmem:[%s1 + $0x4] sm:$0xf]
      %v1247 = vld [vmem:[%s1 + $0x8] sm:$0xf]
      %v1248 = vld [vmem:[%s1 + $0xc] sm:$0xf]
      %v1249 = vld [vmem:[%s192 + $0x3d] sm:$0xff]
      %v1250 = vld [vmem:[%s192 + $0x45] sm:$0xff]
      %v1251 = vld [vmem:[%s192 + $0x4d] sm:$0xff]
      %v1252 = vld [vmem:[%s192 + $0x55] sm:$0x3f]
      %v1253 = vpack.c.bf16 %v1250, %v1249
      %v1254 = vpack.c.bf16 %v1252, %v1251
      %v1255 = vld [vmem:[%s218] sm:$0xf]
      %v1256 = vld [vmem:[%s218 + $0x4] sm:$0xf]
      %v1257 = vld [vmem:[%s218 + $0x8] sm:$0xf]
      %v1258 = vld [vmem:[%s218 + $0xc] sm:$0xf]
      %v1263 = vunpack.c.l.b16 %v1255
      %v1264 = vunpack.c.l.b16 %v1256
      %v1265 = vunpack.c.l.b16 %v1257
      %v1266 = vunpack.c.l.b16 %v1258
      %v1267 = vpack.c.b16 %v1264, %v1263
      %v1268 = vpack.c.b16 %v1266, %v1265
      %v1272 = vsel %vm235, %v1253, 0
      %v1275 = vsel %vm235, %v1254, 0
      %1277 = vmatpush.bf16.msra.mxu0 0
      %1278 = vmatpush.bf16.msra.mxu0 0
      %1279 = vmatpush.bf16.msra.mxu0 0
      %1280 = vmatpush.bf16.msra.mxu0 0
      %1281 = vmatpush.bf16.msra.mxu0 0
      %1282 = vmatpush.bf16.msra.mxu0 0
      %1283 = vmatpush.bf16.msra.mxu0 %v1268
      %1284 = vmatpush.bf16.msra.mxu0 %v1267
      %1285 = vmatmul.bf16.gmra.mxu0 %v1272
      %v1286 = vpop.f32.mrf.mxu0
      %v1287 = vadd.f32 0.0, %v1286
      %v1288 = vpop.f32.mrf.mxu0
      %v1289 = vadd.f32 0.0, %v1288
      %1290 = vmatmul.bf16.gmra.mxu0 %v1275
      %v1291 = vpop.f32.mrf.mxu0
      %v1292 = vadd.f32 0.0, %v1291
      %v1293 = vpop.f32.mrf.mxu0
      %v1294 = vadd.f32 0.0, %v1293
      %1295 = vdwg.mxu0
      %v1300 = vunpack.c.l.b16 %v1245
      %v1301 = vunpack.c.l.b16 %v1246
      %v1302 = vunpack.c.l.b16 %v1247
      %v1303 = vunpack.c.l.b16 %v1248
      %v1304 = vpack.c.b16 %v1301, %v1300
      %v1305 = vpack.c.b16 %v1303, %v1302
      %v1309 = vsel %vm235, %v1243, 0
      %v1312 = vsel %vm235, %v1244, 0
      %1314 = vmatpush.bf16.msra.mxu0 0
      %1315 = vmatpush.bf16.msra.mxu0 0
      %1316 = vmatpush.bf16.msra.mxu0 0
      %1317 = vmatpush.bf16.msra.mxu0 0
      %1318 = vmatpush.bf16.msra.mxu0 0
      %1319 = vmatpush.bf16.msra.mxu0 0
      %1320 = vmatpush.bf16.msra.mxu0 %v1305
      %1321 = vmatpush.bf16.msra.mxu0 %v1304
      %1322 = vmatmul.bf16.gmra.mxu0 %v1309
      %v1323 = vpop.f32.mrf.mxu0
      %v1324 = vadd.f32 %v1287, %v1323
      %v1325 = vpop.f32.mrf.mxu0
      %v1326 = vadd.f32 %v1289, %v1325
      %1327 = vmatmul.bf16.gmra.mxu0 %v1312
      %v1328 = vpop.f32.mrf.mxu0
      %v1329 = vadd.f32 %v1292, %v1328
      %v1330 = vpop.f32.mrf.mxu0
      %v1331 = vadd.f32 %v1294, %v1330
      %1332 = vdwg.mxu0
      %v1333 = vld [vmem:[%s192 + $0x3e] sm:$0xff]
      %v1334 = vld [vmem:[%s192 + $0x46] sm:$0xff]
      %v1335 = vld [vmem:[%s192 + $0x4e] sm:$0xff]
      %v1336 = vld [vmem:[%s192 + $0x56] sm:$0x3f]
      %v1337 = vpack.c.bf16 %v1334, %v1333
      %v1338 = vpack.c.bf16 %v1336, %v1335
      %v1339 = vld [vmem:[%s304] sm:$0xf]
      %v1340 = vld [vmem:[%s304 + $0x4] sm:$0xf]
      %v1341 = vld [vmem:[%s304 + $0x8] sm:$0xf]
      %v1342 = vld [vmem:[%s304 + $0xc] sm:$0xf]
      %v1347 = vunpack.c.l.b16 %v1339
      %v1348 = vunpack.c.l.b16 %v1340
      %v1349 = vunpack.c.l.b16 %v1341
      %v1350 = vunpack.c.l.b16 %v1342
      %v1351 = vpack.c.b16 %v1348, %v1347
      %v1352 = vpack.c.b16 %v1350, %v1349
      %v1356 = vsel %vm235, %v1337, 0
      %v1359 = vsel %vm235, %v1338, 0
      %1361 = vmatpush.bf16.msra.mxu0 0
      %1362 = vmatpush.bf16.msra.mxu0 0
      %1363 = vmatpush.bf16.msra.mxu0 0
      %1364 = vmatpush.bf16.msra.mxu0 0
      %1365 = vmatpush.bf16.msra.mxu0 0
      %1366 = vmatpush.bf16.msra.mxu0 0
      %1367 = vmatpush.bf16.msra.mxu0 %v1352
      %1368 = vmatpush.bf16.msra.mxu0 %v1351
      %1369 = vmatmul.bf16.gmra.mxu0 %v1356
      %v1370 = vpop.f32.mrf.mxu0
      %v1371 = vadd.f32 0.0, %v1370
      %v1372 = vpop.f32.mrf.mxu0
      %v1373 = vadd.f32 0.0, %v1372
      %1374 = vmatmul.bf16.gmra.mxu0 %v1359
      %v1375 = vpop.f32.mrf.mxu0
      %v1376 = vadd.f32 0.0, %v1375
      %v1377 = vpop.f32.mrf.mxu0
      %v1378 = vadd.f32 0.0, %v1377
      %1379 = vdwg.mxu0
      %v1380 = vadd.f32 %v1324, %v1371
      %v1381 = vadd.f32 %v1326, %v1373
      %v1382 = vadd.f32 %v1329, %v1376
      %v1383 = vadd.f32 %v1331, %v1378
      %v1384 = vld [vmem:[%s192 + $0x4b] sm:$0xff]
      %v1385 = vld [vmem:[%s192 + $0x53] sm:$0xff]
      %v1386 = vld [vmem:[%s192 + $0x5b] sm:$0xff]
      %v1387 = vld [vmem:[%s192 + $0x63] sm:$0x3f]
      %v1388 = vpack.c.bf16 %v1385, %v1384
      %v1389 = vpack.c.bf16 %v1387, %v1386
      %v1390 = vld [vmem:[%s356] sm:$0xf]
      %v1391 = vld [vmem:[%s356 + $0x4] sm:$0xf]
      %v1392 = vld [vmem:[%s356 + $0x8] sm:$0xf]
      %v1393 = vld [vmem:[%s356 + $0xc] sm:$0xf]
      %v1398 = vunpack.c.l.b16 %v1390
      %v1399 = vunpack.c.l.b16 %v1391
      %v1400 = vunpack.c.l.b16 %v1392
      %v1401 = vunpack.c.l.b16 %v1393
      %v1402 = vpack.c.b16 %v1399, %v1398
      %v1403 = vpack.c.b16 %v1401, %v1400
      %v1407 = vsel %vm235, %v1388, 0
      %v1410 = vsel %vm235, %v1389, 0
      %1412 = vmatpush.bf16.msra.mxu0 0
      %1413 = vmatpush.bf16.msra.mxu0 0
      %1414 = vmatpush.bf16.msra.mxu0 0
      %1415 = vmatpush.bf16.msra.mxu0 0
      %1416 = vmatpush.bf16.msra.mxu0 0
      %1417 = vmatpush.bf16.msra.mxu0 0
      %1418 = vmatpush.bf16.msra.mxu0 %v1403
      %1419 = vmatpush.bf16.msra.mxu0 %v1402
      %1420 = vmatmul.bf16.gmra.mxu0 %v1407
      %v1421 = vpop.f32.mrf.mxu0
      %v1422 = vadd.f32 0.0, %v1421
      %v1423 = vpop.f32.mrf.mxu0
      %v1424 = vadd.f32 0.0, %v1423
      %1425 = vmatmul.bf16.gmra.mxu0 %v1410
      %v1426 = vpop.f32.mrf.mxu0
      %v1427 = vadd.f32 0.0, %v1426
      %v1428 = vpop.f32.mrf.mxu0
      %v1429 = vadd.f32 0.0, %v1428
      %1430 = vdwg.mxu0
      %v1431 = vadd.f32 %v1380, %v1422
      %v1432 = vadd.f32 %v1381, %v1424
      %v1433 = vadd.f32 %v1382, %v1427
      %v1434 = vadd.f32 %v1383, %v1429
      %v1435 = vld [vmem:[%s192 + $0x4c] sm:$0xff]
      %v1436 = vld [vmem:[%s192 + $0x54] sm:$0xff]
      %v1437 = vld [vmem:[%s192 + $0x5c] sm:$0xff]
      %v1438 = vld [vmem:[%s192 + $0x64] sm:$0x3f]
      %v1439 = vpack.c.bf16 %v1436, %v1435
      %v1440 = vpack.c.bf16 %v1438, %v1437
      %v1441 = vld [vmem:[%s408] sm:$0xf]
      %v1442 = vld [vmem:[%s408 + $0x4] sm:$0xf]
      %v1443 = vld [vmem:[%s408 + $0x8] sm:$0xf]
      %v1444 = vld [vmem:[%s408 + $0xc] sm:$0xf]
      %v1449 = vunpack.c.l.b16 %v1441
      %v1450 = vunpack.c.l.b16 %v1442
      %v1451 = vunpack.c.l.b16 %v1443
      %v1452 = vunpack.c.l.b16 %v1444
      %v1453 = vpack.c.b16 %v1450, %v1449
      %v1454 = vpack.c.b16 %v1452, %v1451
      %v1458 = vsel %vm235, %v1439, 0
      %v1461 = vsel %vm235, %v1440, 0
      %1463 = vmatpush.bf16.msra.mxu0 0
      %1464 = vmatpush.bf16.msra.mxu0 0
      %1465 = vmatpush.bf16.msra.mxu0 0
      %1466 = vmatpush.bf16.msra.mxu0 0
      %1467 = vmatpush.bf16.msra.mxu0 0
      %1468 = vmatpush.bf16.msra.mxu0 0
      %1469 = vmatpush.bf16.msra.mxu0 %v1454
      %1470 = vmatpush.bf16.msra.mxu0 %v1453
      %1471 = vmatmul.bf16.gmra.mxu0 %v1458
      %v1472 = vpop.f32.mrf.mxu0
      %v1473 = vadd.f32 0.0, %v1472
      %v1474 = vpop.f32.mrf.mxu0
      %v1475 = vadd.f32 0.0, %v1474
      %1476 = vmatmul.bf16.gmra.mxu0 %v1461
      %v1477 = vpop.f32.mrf.mxu0
      %v1478 = vadd.f32 0.0, %v1477
      %v1479 = vpop.f32.mrf.mxu0
      %v1480 = vadd.f32 0.0, %v1479
      %1481 = vdwg.mxu0
      %v1482 = vadd.f32 %v1431, %v1473
      %v1483 = vadd.f32 %v1432, %v1475
      %v1484 = vadd.f32 %v1433, %v1478
      %v1485 = vadd.f32 %v1434, %v1480
      %v1486 = vld [vmem:[%s192 + $0x4d] sm:$0xff]
      %v1487 = vld [vmem:[%s192 + $0x55] sm:$0xff]
      %v1488 = vld [vmem:[%s192 + $0x5d] sm:$0xff]
      %v1489 = vld [vmem:[%s192 + $0x65] sm:$0x3f]
      %v1490 = vpack.c.bf16 %v1487, %v1486
      %v1491 = vpack.c.bf16 %v1489, %v1488
      %v1492 = vld [vmem:[%s460] sm:$0xf]
      %v1493 = vld [vmem:[%s460 + $0x4] sm:$0xf]
      %v1494 = vld [vmem:[%s460 + $0x8] sm:$0xf]
      %v1495 = vld [vmem:[%s460 + $0xc] sm:$0xf]
      %v1500 = vunpack.c.l.b16 %v1492
      %v1501 = vunpack.c.l.b16 %v1493
      %v1502 = vunpack.c.l.b16 %v1494
      %v1503 = vunpack.c.l.b16 %v1495
      %v1504 = vpack.c.b16 %v1501, %v1500
      %v1505 = vpack.c.b16 %v1503, %v1502
      %v1509 = vsel %vm235, %v1490, 0
      %v1512 = vsel %vm235, %v1491, 0
      %1514 = vmatpush.bf16.msra.mxu0 0
      %1515 = vmatpush.bf16.msra.mxu0 0
      %1516 = vmatpush.bf16.msra.mxu0 0
      %1517 = vmatpush.bf16.msra.mxu0 0
      %1518 = vmatpush.bf16.msra.mxu0 0
      %1519 = vmatpush.bf16.msra.mxu0 0
      %1520 = vmatpush.bf16.msra.mxu0 %v1505
      %1521 = vmatpush.bf16.msra.mxu0 %v1504
      %1522 = vmatmul.bf16.gmra.mxu0 %v1509
      %v1523 = vpop.f32.mrf.mxu0
      %v1524 = vadd.f32 0.0, %v1523
      %v1525 = vpop.f32.mrf.mxu0
      %v1526 = vadd.f32 0.0, %v1525
      %1527 = vmatmul.bf16.gmra.mxu0 %v1512
      %v1528 = vpop.f32.mrf.mxu0
      %v1529 = vadd.f32 0.0, %v1528
      %v1530 = vpop.f32.mrf.mxu0
      %v1531 = vadd.f32 0.0, %v1530
      %1532 = vdwg.mxu0
      %v1533 = vadd.f32 %v1482, %v1524
      %v1534 = vadd.f32 %v1483, %v1526
      %v1535 = vadd.f32 %v1484, %v1529
      %v1536 = vadd.f32 %v1485, %v1531
      %v1537 = vld [vmem:[%s192 + $0x5a] sm:$0xff]
      %v1538 = vld [vmem:[%s192 + $0x62] sm:$0xff]
      %v1539 = vld [vmem:[%s192 + $0x6a] sm:$0xff]
      %v1540 = vld [vmem:[%s192 + $0x72] sm:$0x3f]
      %v1541 = vpack.c.bf16 %v1538, %v1537
      %v1542 = vpack.c.bf16 %v1540, %v1539
      %v1543 = vld [vmem:[%s512] sm:$0xf]
      %v1544 = vld [vmem:[%s512 + $0x4] sm:$0xf]
      %v1545 = vld [vmem:[%s512 + $0x8] sm:$0xf]
      %v1546 = vld [vmem:[%s512 + $0xc] sm:$0xf]
      %v1551 = vunpack.c.l.b16 %v1543
      %v1552 = vunpack.c.l.b16 %v1544
      %v1553 = vunpack.c.l.b16 %v1545
      %v1554 = vunpack.c.l.b16 %v1546
      %v1555 = vpack.c.b16 %v1552, %v1551
      %v1556 = vpack.c.b16 %v1554, %v1553
      %v1560 = vsel %vm235, %v1541, 0
      %v1563 = vsel %vm235, %v1542, 0
      %1565 = vmatpush.bf16.msra.mxu0 0
      %1566 = vmatpush.bf16.msra.mxu0 0
      %1567 = vmatpush.bf16.msra.mxu0 0
      %1568 = vmatpush.bf16.msra.mxu0 0
      %1569 = vmatpush.bf16.msra.mxu0 0
      %1570 = vmatpush.bf16.msra.mxu0 0
      %1571 = vmatpush.bf16.msra.mxu0 %v1556
      %1572 = vmatpush.bf16.msra.mxu0 %v1555
      %1573 = vmatmul.bf16.gmra.mxu0 %v1560
      %v1574 = vpop.f32.mrf.mxu0
      %v1575 = vadd.f32 0.0, %v1574
      %v1576 = vpop.f32.mrf.mxu0
      %v1577 = vadd.f32 0.0, %v1576
      %1578 = vmatmul.bf16.gmra.mxu0 %v1563
      %v1579 = vpop.f32.mrf.mxu0
      %v1580 = vadd.f32 0.0, %v1579
      %v1581 = vpop.f32.mrf.mxu0
      %v1582 = vadd.f32 0.0, %v1581
      %1583 = vdwg.mxu0
      %v1584 = vadd.f32 %v1533, %v1575
      %v1585 = vadd.f32 %v1534, %v1577
      %v1586 = vadd.f32 %v1535, %v1580
      %v1587 = vadd.f32 %v1536, %v1582
      %v1588 = vld [vmem:[%s192 + $0x5b] sm:$0xff]
      %v1589 = vld [vmem:[%s192 + $0x63] sm:$0xff]
      %v1590 = vld [vmem:[%s192 + $0x6b] sm:$0xff]
      %v1591 = vld [vmem:[%s192 + $0x73] sm:$0x3f]
      %v1592 = vpack.c.bf16 %v1589, %v1588
      %v1593 = vpack.c.bf16 %v1591, %v1590
      %v1594 = vld [vmem:[%s564] sm:$0xf]
      %v1595 = vld [vmem:[%s564 + $0x4] sm:$0xf]
      %v1596 = vld [vmem:[%s564 + $0x8] sm:$0xf]
      %v1597 = vld [vmem:[%s564 + $0xc] sm:$0xf]
      %v1602 = vunpack.c.l.b16 %v1594
      %v1603 = vunpack.c.l.b16 %v1595
      %v1604 = vunpack.c.l.b16 %v1596
      %v1605 = vunpack.c.l.b16 %v1597
      %v1606 = vpack.c.b16 %v1603, %v1602
      %v1607 = vpack.c.b16 %v1605, %v1604
      %v1611 = vsel %vm235, %v1592, 0
      %v1614 = vsel %vm235, %v1593, 0
      %1616 = vmatpush.bf16.msra.mxu0 0
      %1617 = vmatpush.bf16.msra.mxu0 0
      %1618 = vmatpush.bf16.msra.mxu0 0
      %1619 = vmatpush.bf16.msra.mxu0 0
      %1620 = vmatpush.bf16.msra.mxu0 0
      %1621 = vmatpush.bf16.msra.mxu0 0
      %1622 = vmatpush.bf16.msra.mxu0 %v1607
      %1623 = vmatpush.bf16.msra.mxu0 %v1606
      %1624 = vmatmul.bf16.gmra.mxu0 %v1611
      %v1625 = vpop.f32.mrf.mxu0
      %v1626 = vadd.f32 0.0, %v1625
      %v1627 = vpop.f32.mrf.mxu0
      %v1628 = vadd.f32 0.0, %v1627
      %1629 = vmatmul.bf16.gmra.mxu0 %v1614
      %v1630 = vpop.f32.mrf.mxu0
      %v1631 = vadd.f32 0.0, %v1630
      %v1632 = vpop.f32.mrf.mxu0
      %v1633 = vadd.f32 0.0, %v1632
      %1634 = vdwg.mxu0
      %v1635 = vadd.f32 %v1584, %v1626
      %v1636 = vadd.f32 %v1585, %v1628
      %v1637 = vadd.f32 %v1586, %v1631
      %v1638 = vadd.f32 %v1587, %v1633
      %v1639 = vld [vmem:[%s192 + $0x5c] sm:$0xff]
      %v1640 = vld [vmem:[%s192 + $0x64] sm:$0xff]
      %v1641 = vld [vmem:[%s192 + $0x6c] sm:$0xff]
      %v1642 = vld [vmem:[%s192 + $0x74] sm:$0x3f]
      %v1643 = vpack.c.bf16 %v1640, %v1639
      %v1644 = vpack.c.bf16 %v1642, %v1641
      %v1645 = vld [vmem:[%s616] sm:$0xf]
      %v1646 = vld [vmem:[%s616 + $0x4] sm:$0xf]
      %v1647 = vld [vmem:[%s616 + $0x8] sm:$0xf]
      %v1648 = vld [vmem:[%s616 + $0xc] sm:$0xf]
      %v1653 = vunpack.c.l.b16 %v1645
      %v1654 = vunpack.c.l.b16 %v1646
      %v1655 = vunpack.c.l.b16 %v1647
      %v1656 = vunpack.c.l.b16 %v1648
      %v1657 = vpack.c.b16 %v1654, %v1653
      %v1658 = vpack.c.b16 %v1656, %v1655
      %v1662 = vsel %vm235, %v1643, 0
      %v1665 = vsel %vm235, %v1644, 0
      %1667 = vmatpush.bf16.msra.mxu0 0
      %1668 = vmatpush.bf16.msra.mxu0 0
      %1669 = vmatpush.bf16.msra.mxu0 0
      %1670 = vmatpush.bf16.msra.mxu0 0
      %1671 = vmatpush.bf16.msra.mxu0 0
      %1672 = vmatpush.bf16.msra.mxu0 0
      %1673 = vmatpush.bf16.msra.mxu0 %v1658
      %1674 = vmatpush.bf16.msra.mxu0 %v1657
      %1675 = vmatmul.bf16.gmra.mxu0 %v1662
      %v1676 = vpop.f32.mrf.mxu0
      %v1677 = vadd.f32 0.0, %v1676
      %v1678 = vpop.f32.mrf.mxu0
      %v1679 = vadd.f32 0.0, %v1678
      %1680 = vmatmul.bf16.gmra.mxu0 %v1665
      %v1681 = vpop.f32.mrf.mxu0
      %v1682 = vadd.f32 0.0, %v1681
      %v1683 = vpop.f32.mrf.mxu0
      %v1684 = vadd.f32 0.0, %v1683
      %1685 = vdwg.mxu0
      %v1686 = vadd.f32 %v1635, %v1677
      %v1687 = vadd.f32 %v1636, %v1679
      %v1688 = vadd.f32 %v1637, %v1682
      %v1689 = vadd.f32 %v1638, %v1684
      %v1690 = vld [vmem:[%s2] sm:$0x1]
      %v1692 = vperm.slane %v1690, 0
      %v1694 = vadd.f32 %v1686, %v1692
      %v1695 = vadd.f32 %v1687, %v1692
      %v1696 = vadd.f32 %v1688, %v1692
      %v1697 = vadd.f32 %v1689, %v1692
      %v1698 = vmax.f32 %v1694, 0.0
      %v1699 = vmax.f32 %v1695, 0.0
      %v1700 = vmax.f32 %v1696, 0.0
      %v1701 = vmax.f32 %v1697, 0.0
      %v1705 = vrot.slane %v1699, 7
      %v1706 = vrot.slane %v1700, 7
      %v1707 = vsel %vm677, %v1705, %v1706
      %v1708 = vrot.slane %v1701, 7
      %v1709 = vsel %vm677, %v1706, %v1708
      %v1712 = vmax.f32 %v1698, %v1707
      %v1713 = vmax.f32 %v1699, %v1709
      %v1714 = vpack.c.bf16 %v1713, %v1712
      %v1716 = vand.u32 %v1714, %v695
      %1718 = vmatpush.bf16.msra.mxu0 0
      %1719 = vmatpush.bf16.msra.mxu0 0
      %1720 = vmatpush.bf16.msra.mxu0 0
      %1721 = vmatpush.bf16.msra.mxu0 0
      %1722 = vmatpush.bf16.msra.mxu0 0
      %1723 = vmatpush.bf16.msra.mxu0 0
      %1724 = vmatpush.bf16.msra.mxu0 0
      %1725 = vmatpush.bf16.msra.mxu0 %v1716
      %1726 = vmatmul.bf16.gmra.mxu0 %v690
      %v1727 = vpop.f32.mrf.mxu0
      %v1728 = vadd.f32 0.0, %v1727
      %v1729 = vpop.f32.mrf.mxu0
      %1730 = vdwg.mxu0
      %1731 = vmatpush.bf16.msra.mxu0 0
      %1732 = vmatpush.bf16.msra.mxu0 0
      %1733 = vmatpush.bf16.msra.mxu0 0
      %1734 = vmatpush.bf16.msra.mxu0 0
      %1735 = vmatpush.bf16.msra.mxu0 0
      %1736 = vmatpush.bf16.msra.mxu0 0
      %1737 = vmatpush.bf16.msra.mxu0 0
      %1738 = vmatpush.bf16.msra.mxu0 %v1716
      %1739 = vmatmul.bf16.gmra.mxu0 %v713
      %v1740 = vpop.f32.mrf.mxu0
      %v1741 = vadd.f32 0.0, %v1740
      %v1742 = vpop.f32.mrf.mxu0
      %1743 = vdwg.mxu0
      %v1744 = vmax.f32 %v1728, %v1741
      %s1745 = scalar_lea.vmem %s197, 16
      %1746 = vst.msk [vmem:[%s1745] sm:$0x3f] %vm729, %v1744
      %v1747 = vld [vmem:[%s192 + $0x5a] sm:$0xff]
      %v1748 = vld [vmem:[%s192 + $0x62] sm:$0xff]
      %v1749 = vld [vmem:[%s192 + $0x6a] sm:$0xff]
      %v1750 = vld [vmem:[%s192 + $0x72] sm:$0x3f]
      %v1751 = vpack.c.bf16 %v1748, %v1747
      %v1752 = vpack.c.bf16 %v1750, %v1749
      %v1753 = vld [vmem:[%s1] sm:$0xf]
      %v1754 = vld [vmem:[%s1 + $0x4] sm:$0xf]
      %v1755 = vld [vmem:[%s1 + $0x8] sm:$0xf]
      %v1756 = vld [vmem:[%s1 + $0xc] sm:$0xf]
      %v1757 = vld [vmem:[%s192 + $0x5b] sm:$0xff]
      %v1758 = vld [vmem:[%s192 + $0x63] sm:$0xff]
      %v1759 = vld [vmem:[%s192 + $0x6b] sm:$0xff]
      %v1760 = vld [vmem:[%s192 + $0x73] sm:$0x3f]
      %v1761 = vpack.c.bf16 %v1758, %v1757
      %v1762 = vpack.c.bf16 %v1760, %v1759
      %v1763 = vld [vmem:[%s218] sm:$0xf]
      %v1764 = vld [vmem:[%s218 + $0x4] sm:$0xf]
      %v1765 = vld [vmem:[%s218 + $0x8] sm:$0xf]
      %v1766 = vld [vmem:[%s218 + $0xc] sm:$0xf]
      %v1771 = vunpack.c.l.b16 %v1763
      %v1772 = vunpack.c.l.b16 %v1764
      %v1773 = vunpack.c.l.b16 %v1765
      %v1774 = vunpack.c.l.b16 %v1766
      %v1775 = vpack.c.b16 %v1772, %v1771
      %v1776 = vpack.c.b16 %v1774, %v1773
      %v1780 = vsel %vm235, %v1761, 0
      %v1783 = vsel %vm235, %v1762, 0
      %1785 = vmatpush.bf16.msra.mxu0 0
      %1786 = vmatpush.bf16.msra.mxu0 0
      %1787 = vmatpush.bf16.msra.mxu0 0
      %1788 = vmatpush.bf16.msra.mxu0 0
      %1789 = vmatpush.bf16.msra.mxu0 0
      %1790 = vmatpush.bf16.msra.mxu0 0
      %1791 = vmatpush.bf16.msra.mxu0 %v1776
      %1792 = vmatpush.bf16.msra.mxu0 %v1775
      %1793 = vmatmul.bf16.gmra.mxu0 %v1780
      %v1794 = vpop.f32.mrf.mxu0
      %v1795 = vadd.f32 0.0, %v1794
      %v1796 = vpop.f32.mrf.mxu0
      %v1797 = vadd.f32 0.0, %v1796
      %1798 = vmatmul.bf16.gmra.mxu0 %v1783
      %v1799 = vpop.f32.mrf.mxu0
      %v1800 = vadd.f32 0.0, %v1799
      %v1801 = vpop.f32.mrf.mxu0
      %v1802 = vadd.f32 0.0, %v1801
      %1803 = vdwg.mxu0
      %v1808 = vunpack.c.l.b16 %v1753
      %v1809 = vunpack.c.l.b16 %v1754
      %v1810 = vunpack.c.l.b16 %v1755
      %v1811 = vunpack.c.l.b16 %v1756
      %v1812 = vpack.c.b16 %v1809, %v1808
      %v1813 = vpack.c.b16 %v1811, %v1810
      %v1817 = vsel %vm235, %v1751, 0
      %v1820 = vsel %vm235, %v1752, 0
      %1822 = vmatpush.bf16.msra.mxu0 0
      %1823 = vmatpush.bf16.msra.mxu0 0
      %1824 = vmatpush.bf16.msra.mxu0 0
      %1825 = vmatpush.bf16.msra.mxu0 0
      %1826 = vmatpush.bf16.msra.mxu0 0
      %1827 = vmatpush.bf16.msra.mxu0 0
      %1828 = vmatpush.bf16.msra.mxu0 %v1813
      %1829 = vmatpush.bf16.msra.mxu0 %v1812
      %1830 = vmatmul.bf16.gmra.mxu0 %v1817
      %v1831 = vpop.f32.mrf.mxu0
      %v1832 = vadd.f32 %v1795, %v1831
      %v1833 = vpop.f32.mrf.mxu0
      %v1834 = vadd.f32 %v1797, %v1833
      %1835 = vmatmul.bf16.gmra.mxu0 %v1820
      %v1836 = vpop.f32.mrf.mxu0
      %v1837 = vadd.f32 %v1800, %v1836
      %v1838 = vpop.f32.mrf.mxu0
      %v1839 = vadd.f32 %v1802, %v1838
      %1840 = vdwg.mxu0
      %v1841 = vld [vmem:[%s192 + $0x5c] sm:$0xff]
      %v1842 = vld [vmem:[%s192 + $0x64] sm:$0xff]
      %v1843 = vld [vmem:[%s192 + $0x6c] sm:$0xff]
      %v1844 = vld [vmem:[%s192 + $0x74] sm:$0x3f]
      %v1845 = vpack.c.bf16 %v1842, %v1841
      %v1846 = vpack.c.bf16 %v1844, %v1843
      %v1847 = vld [vmem:[%s304] sm:$0xf]
      %v1848 = vld [vmem:[%s304 + $0x4] sm:$0xf]
      %v1849 = vld [vmem:[%s304 + $0x8] sm:$0xf]
      %v1850 = vld [vmem:[%s304 + $0xc] sm:$0xf]
      %v1855 = vunpack.c.l.b16 %v1847
      %v1856 = vunpack.c.l.b16 %v1848
      %v1857 = vunpack.c.l.b16 %v1849
      %v1858 = vunpack.c.l.b16 %v1850
      %v1859 = vpack.c.b16 %v1856, %v1855
      %v1860 = vpack.c.b16 %v1858, %v1857
      %v1864 = vsel %vm235, %v1845, 0
      %v1867 = vsel %vm235, %v1846, 0
      %1869 = vmatpush.bf16.msra.mxu0 0
      %1870 = vmatpush.bf16.msra.mxu0 0
      %1871 = vmatpush.bf16.msra.mxu0 0
      %1872 = vmatpush.bf16.msra.mxu0 0
      %1873 = vmatpush.bf16.msra.mxu0 0
      %1874 = vmatpush.bf16.msra.mxu0 0
      %1875 = vmatpush.bf16.msra.mxu0 %v1860
      %1876 = vmatpush.bf16.msra.mxu0 %v1859
      %1877 = vmatmul.bf16.gmra.mxu0 %v1864
      %v1878 = vpop.f32.mrf.mxu0
      %v1879 = vadd.f32 0.0, %v1878
      %v1880 = vpop.f32.mrf.mxu0
      %v1881 = vadd.f32 0.0, %v1880
      %1882 = vmatmul.bf16.gmra.mxu0 %v1867
      %v1883 = vpop.f32.mrf.mxu0
      %v1884 = vadd.f32 0.0, %v1883
      %v1885 = vpop.f32.mrf.mxu0
      %v1886 = vadd.f32 0.0, %v1885
      %1887 = vdwg.mxu0
      %v1888 = vadd.f32 %v1832, %v1879
      %v1889 = vadd.f32 %v1834, %v1881
      %v1890 = vadd.f32 %v1837, %v1884
      %v1891 = vadd.f32 %v1839, %v1886
      %v1892 = vld [vmem:[%s192 + $0x69] sm:$0xff]
      %v1893 = vld [vmem:[%s192 + $0x71] sm:$0xff]
      %v1894 = vld [vmem:[%s192 + $0x79] sm:$0xff]
      %v1895 = vld [vmem:[%s192 + $0x81] sm:$0x3f]
      %v1896 = vpack.c.bf16 %v1893, %v1892
      %v1897 = vpack.c.bf16 %v1895, %v1894
      %v1898 = vld [vmem:[%s356] sm:$0xf]
      %v1899 = vld [vmem:[%s356 + $0x4] sm:$0xf]
      %v1900 = vld [vmem:[%s356 + $0x8] sm:$0xf]
      %v1901 = vld [vmem:[%s356 + $0xc] sm:$0xf]
      %v1906 = vunpack.c.l.b16 %v1898
      %v1907 = vunpack.c.l.b16 %v1899
      %v1908 = vunpack.c.l.b16 %v1900
      %v1909 = vunpack.c.l.b16 %v1901
      %v1910 = vpack.c.b16 %v1907, %v1906
      %v1911 = vpack.c.b16 %v1909, %v1908
      %v1915 = vsel %vm235, %v1896, 0
      %v1918 = vsel %vm235, %v1897, 0
      %1920 = vmatpush.bf16.msra.mxu0 0
      %1921 = vmatpush.bf16.msra.mxu0 0
      %1922 = vmatpush.bf16.msra.mxu0 0
      %1923 = vmatpush.bf16.msra.mxu0 0
      %1924 = vmatpush.bf16.msra.mxu0 0
      %1925 = vmatpush.bf16.msra.mxu0 0
      %1926 = vmatpush.bf16.msra.mxu0 %v1911
      %1927 = vmatpush.bf16.msra.mxu0 %v1910
      %1928 = vmatmul.bf16.gmra.mxu0 %v1915
      %v1929 = vpop.f32.mrf.mxu0
      %v1930 = vadd.f32 0.0, %v1929
      %v1931 = vpop.f32.mrf.mxu0
      %v1932 = vadd.f32 0.0, %v1931
      %1933 = vmatmul.bf16.gmra.mxu0 %v1918
      %v1934 = vpop.f32.mrf.mxu0
      %v1935 = vadd.f32 0.0, %v1934
      %v1936 = vpop.f32.mrf.mxu0
      %v1937 = vadd.f32 0.0, %v1936
      %1938 = vdwg.mxu0
      %v1939 = vadd.f32 %v1888, %v1930
      %v1940 = vadd.f32 %v1889, %v1932
      %v1941 = vadd.f32 %v1890, %v1935
      %v1942 = vadd.f32 %v1891, %v1937
      %v1943 = vld [vmem:[%s192 + $0x6a] sm:$0xff]
      %v1944 = vld [vmem:[%s192 + $0x72] sm:$0xff]
      %v1945 = vld [vmem:[%s192 + $0x7a] sm:$0xff]
      %v1946 = vld [vmem:[%s192 + $0x82] sm:$0x3f]
      %v1947 = vpack.c.bf16 %v1944, %v1943
      %v1948 = vpack.c.bf16 %v1946, %v1945
      %v1949 = vld [vmem:[%s408] sm:$0xf]
      %v1950 = vld [vmem:[%s408 + $0x4] sm:$0xf]
      %v1951 = vld [vmem:[%s408 + $0x8] sm:$0xf]
      %v1952 = vld [vmem:[%s408 + $0xc] sm:$0xf]
      %v1957 = vunpack.c.l.b16 %v1949
      %v1958 = vunpack.c.l.b16 %v1950
      %v1959 = vunpack.c.l.b16 %v1951
      %v1960 = vunpack.c.l.b16 %v1952
      %v1961 = vpack.c.b16 %v1958, %v1957
      %v1962 = vpack.c.b16 %v1960, %v1959
      %v1966 = vsel %vm235, %v1947, 0
      %v1969 = vsel %vm235, %v1948, 0
      %1971 = vmatpush.bf16.msra.mxu0 0
      %1972 = vmatpush.bf16.msra.mxu0 0
      %1973 = vmatpush.bf16.msra.mxu0 0
      %1974 = vmatpush.bf16.msra.mxu0 0
      %1975 = vmatpush.bf16.msra.mxu0 0
      %1976 = vmatpush.bf16.msra.mxu0 0
      %1977 = vmatpush.bf16.msra.mxu0 %v1962
      %1978 = vmatpush.bf16.msra.mxu0 %v1961
      %1979 = vmatmul.bf16.gmra.mxu0 %v1966
      %v1980 = vpop.f32.mrf.mxu0
      %v1981 = vadd.f32 0.0, %v1980
      %v1982 = vpop.f32.mrf.mxu0
      %v1983 = vadd.f32 0.0, %v1982
      %1984 = vmatmul.bf16.gmra.mxu0 %v1969
      %v1985 = vpop.f32.mrf.mxu0
      %v1986 = vadd.f32 0.0, %v1985
      %v1987 = vpop.f32.mrf.mxu0
      %v1988 = vadd.f32 0.0, %v1987
      %1989 = vdwg.mxu0
      %v1990 = vadd.f32 %v1939, %v1981
      %v1991 = vadd.f32 %v1940, %v1983
      %v1992 = vadd.f32 %v1941, %v1986
      %v1993 = vadd.f32 %v1942, %v1988
      %v1994 = vld [vmem:[%s192 + $0x6b] sm:$0xff]
      %v1995 = vld [vmem:[%s192 + $0x73] sm:$0xff]
      %v1996 = vld [vmem:[%s192 + $0x7b] sm:$0xff]
      %v1997 = vld [vmem:[%s192 + $0x83] sm:$0x3f]
      %v1998 = vpack.c.bf16 %v1995, %v1994
      %v1999 = vpack.c.bf16 %v1997, %v1996
      %v2000 = vld [vmem:[%s460] sm:$0xf]
      %v2001 = vld [vmem:[%s460 + $0x4] sm:$0xf]
      %v2002 = vld [vmem:[%s460 + $0x8] sm:$0xf]
      %v2003 = vld [vmem:[%s460 + $0xc] sm:$0xf]
      %v2008 = vunpack.c.l.b16 %v2000
      %v2009 = vunpack.c.l.b16 %v2001
      %v2010 = vunpack.c.l.b16 %v2002
      %v2011 = vunpack.c.l.b16 %v2003
      %v2012 = vpack.c.b16 %v2009, %v2008
      %v2013 = vpack.c.b16 %v2011, %v2010
      %v2017 = vsel %vm235, %v1998, 0
      %v2020 = vsel %vm235, %v1999, 0
      %2022 = vmatpush.bf16.msra.mxu0 0
      %2023 = vmatpush.bf16.msra.mxu0 0
      %2024 = vmatpush.bf16.msra.mxu0 0
      %2025 = vmatpush.bf16.msra.mxu0 0
      %2026 = vmatpush.bf16.msra.mxu0 0
      %2027 = vmatpush.bf16.msra.mxu0 0
      %2028 = vmatpush.bf16.msra.mxu0 %v2013
      %2029 = vmatpush.bf16.msra.mxu0 %v2012
      %2030 = vmatmul.bf16.gmra.mxu0 %v2017
      %v2031 = vpop.f32.mrf.mxu0
      %v2032 = vadd.f32 0.0, %v2031
      %v2033 = vpop.f32.mrf.mxu0
      %v2034 = vadd.f32 0.0, %v2033
      %2035 = vmatmul.bf16.gmra.mxu0 %v2020
      %v2036 = vpop.f32.mrf.mxu0
      %v2037 = vadd.f32 0.0, %v2036
      %v2038 = vpop.f32.mrf.mxu0
      %v2039 = vadd.f32 0.0, %v2038
      %2040 = vdwg.mxu0
      %v2041 = vadd.f32 %v1990, %v2032
      %v2042 = vadd.f32 %v1991, %v2034
      %v2043 = vadd.f32 %v1992, %v2037
      %v2044 = vadd.f32 %v1993, %v2039
      %v2045 = vld [vmem:[%s192 + $0x78] sm:$0xff]
      %v2046 = vld [vmem:[%s192 + $0x80] sm:$0xff]
      %v2047 = vld [vmem:[%s192 + $0x88] sm:$0xff]
      %v2048 = vld [vmem:[%s192 + $0x90] sm:$0x3f]
      %v2049 = vpack.c.bf16 %v2046, %v2045
      %v2050 = vpack.c.bf16 %v2048, %v2047
      %v2051 = vld [vmem:[%s512] sm:$0xf]
      %v2052 = vld [vmem:[%s512 + $0x4] sm:$0xf]
      %v2053 = vld [vmem:[%s512 + $0x8] sm:$0xf]
      %v2054 = vld [vmem:[%s512 + $0xc] sm:$0xf]
      %v2059 = vunpack.c.l.b16 %v2051
      %v2060 = vunpack.c.l.b16 %v2052
      %v2061 = vunpack.c.l.b16 %v2053
      %v2062 = vunpack.c.l.b16 %v2054
      %v2063 = vpack.c.b16 %v2060, %v2059
      %v2064 = vpack.c.b16 %v2062, %v2061
      %v2068 = vsel %vm235, %v2049, 0
      %v2071 = vsel %vm235, %v2050, 0
      %2073 = vmatpush.bf16.msra.mxu0 0
      %2074 = vmatpush.bf16.msra.mxu0 0
      %2075 = vmatpush.bf16.msra.mxu0 0
      %2076 = vmatpush.bf16.msra.mxu0 0
      %2077 = vmatpush.bf16.msra.mxu0 0
      %2078 = vmatpush.bf16.msra.mxu0 0
      %2079 = vmatpush.bf16.msra.mxu0 %v2064
      %2080 = vmatpush.bf16.msra.mxu0 %v2063
      %2081 = vmatmul.bf16.gmra.mxu0 %v2068
      %v2082 = vpop.f32.mrf.mxu0
      %v2083 = vadd.f32 0.0, %v2082
      %v2084 = vpop.f32.mrf.mxu0
      %v2085 = vadd.f32 0.0, %v2084
      %2086 = vmatmul.bf16.gmra.mxu0 %v2071
      %v2087 = vpop.f32.mrf.mxu0
      %v2088 = vadd.f32 0.0, %v2087
      %v2089 = vpop.f32.mrf.mxu0
      %v2090 = vadd.f32 0.0, %v2089
      %2091 = vdwg.mxu0
      %v2092 = vadd.f32 %v2041, %v2083
      %v2093 = vadd.f32 %v2042, %v2085
      %v2094 = vadd.f32 %v2043, %v2088
      %v2095 = vadd.f32 %v2044, %v2090
      %v2096 = vld [vmem:[%s192 + $0x79] sm:$0xff]
      %v2097 = vld [vmem:[%s192 + $0x81] sm:$0xff]
      %v2098 = vld [vmem:[%s192 + $0x89] sm:$0xff]
      %v2099 = vld [vmem:[%s192 + $0x91] sm:$0x3f]
      %v2100 = vpack.c.bf16 %v2097, %v2096
      %v2101 = vpack.c.bf16 %v2099, %v2098
      %v2102 = vld [vmem:[%s564] sm:$0xf]
      %v2103 = vld [vmem:[%s564 + $0x4] sm:$0xf]
      %v2104 = vld [vmem:[%s564 + $0x8] sm:$0xf]
      %v2105 = vld [vmem:[%s564 + $0xc] sm:$0xf]
      %v2110 = vunpack.c.l.b16 %v2102
      %v2111 = vunpack.c.l.b16 %v2103
      %v2112 = vunpack.c.l.b16 %v2104
      %v2113 = vunpack.c.l.b16 %v2105
      %v2114 = vpack.c.b16 %v2111, %v2110
      %v2115 = vpack.c.b16 %v2113, %v2112
      %v2119 = vsel %vm235, %v2100, 0
      %v2122 = vsel %vm235, %v2101, 0
      %2124 = vmatpush.bf16.msra.mxu0 0
      %2125 = vmatpush.bf16.msra.mxu0 0
      %2126 = vmatpush.bf16.msra.mxu0 0
      %2127 = vmatpush.bf16.msra.mxu0 0
      %2128 = vmatpush.bf16.msra.mxu0 0
      %2129 = vmatpush.bf16.msra.mxu0 0
      %2130 = vmatpush.bf16.msra.mxu0 %v2115
      %2131 = vmatpush.bf16.msra.mxu0 %v2114
      %2132 = vmatmul.bf16.gmra.mxu0 %v2119
      %v2133 = vpop.f32.mrf.mxu0
      %v2134 = vadd.f32 0.0, %v2133
      %v2135 = vpop.f32.mrf.mxu0
      %v2136 = vadd.f32 0.0, %v2135
      %2137 = vmatmul.bf16.gmra.mxu0 %v2122
      %v2138 = vpop.f32.mrf.mxu0
      %v2139 = vadd.f32 0.0, %v2138
      %v2140 = vpop.f32.mrf.mxu0
      %v2141 = vadd.f32 0.0, %v2140
      %2142 = vdwg.mxu0
      %v2143 = vadd.f32 %v2092, %v2134
      %v2144 = vadd.f32 %v2093, %v2136
      %v2145 = vadd.f32 %v2094, %v2139
      %v2146 = vadd.f32 %v2095, %v2141
      %v2147 = vld [vmem:[%s192 + $0x7a] sm:$0xff]
      %v2148 = vld [vmem:[%s192 + $0x82] sm:$0xff]
      %v2149 = vld [vmem:[%s192 + $0x8a] sm:$0xff]
      %v2150 = vld [vmem:[%s192 + $0x92] sm:$0x3f]
      %v2151 = vpack.c.bf16 %v2148, %v2147
      %v2152 = vpack.c.bf16 %v2150, %v2149
      %v2153 = vld [vmem:[%s616] sm:$0xf]
      %v2154 = vld [vmem:[%s616 + $0x4] sm:$0xf]
      %v2155 = vld [vmem:[%s616 + $0x8] sm:$0xf]
      %v2156 = vld [vmem:[%s616 + $0xc] sm:$0xf]
      %v2161 = vunpack.c.l.b16 %v2153
      %v2162 = vunpack.c.l.b16 %v2154
      %v2163 = vunpack.c.l.b16 %v2155
      %v2164 = vunpack.c.l.b16 %v2156
      %v2165 = vpack.c.b16 %v2162, %v2161
      %v2166 = vpack.c.b16 %v2164, %v2163
      %v2170 = vsel %vm235, %v2151, 0
      %v2173 = vsel %vm235, %v2152, 0
      %2175 = vmatpush.bf16.msra.mxu0 0
      %2176 = vmatpush.bf16.msra.mxu0 0
      %2177 = vmatpush.bf16.msra.mxu0 0
      %2178 = vmatpush.bf16.msra.mxu0 0
      %2179 = vmatpush.bf16.msra.mxu0 0
      %2180 = vmatpush.bf16.msra.mxu0 0
      %2181 = vmatpush.bf16.msra.mxu0 %v2166
      %2182 = vmatpush.bf16.msra.mxu0 %v2165
      %2183 = vmatmul.bf16.gmra.mxu0 %v2170
      %v2184 = vpop.f32.mrf.mxu0
      %v2185 = vadd.f32 0.0, %v2184
      %v2186 = vpop.f32.mrf.mxu0
      %v2187 = vadd.f32 0.0, %v2186
      %2188 = vmatmul.bf16.gmra.mxu0 %v2173
      %v2189 = vpop.f32.mrf.mxu0
      %v2190 = vadd.f32 0.0, %v2189
      %v2191 = vpop.f32.mrf.mxu0
      %v2192 = vadd.f32 0.0, %v2191
      %2193 = vdwg.mxu0
      %v2194 = vadd.f32 %v2143, %v2185
      %v2195 = vadd.f32 %v2144, %v2187
      %v2196 = vadd.f32 %v2145, %v2190
      %v2197 = vadd.f32 %v2146, %v2192
      %v2198 = vld [vmem:[%s2] sm:$0x1]
      %v2200 = vperm.slane %v2198, 0
      %v2202 = vadd.f32 %v2194, %v2200
      %v2203 = vadd.f32 %v2195, %v2200
      %v2204 = vadd.f32 %v2196, %v2200
      %v2205 = vadd.f32 %v2197, %v2200
      %v2206 = vmax.f32 %v2202, 0.0
      %v2207 = vmax.f32 %v2203, 0.0
      %v2208 = vmax.f32 %v2204, 0.0
      %v2209 = vmax.f32 %v2205, 0.0
      %v2213 = vrot.slane %v2207, 7
      %v2214 = vrot.slane %v2208, 7
      %v2215 = vsel %vm677, %v2213, %v2214
      %v2216 = vrot.slane %v2209, 7
      %v2217 = vsel %vm677, %v2214, %v2216
      %v2220 = vmax.f32 %v2206, %v2215
      %v2221 = vmax.f32 %v2207, %v2217
      %v2222 = vpack.c.bf16 %v2221, %v2220
      %v2224 = vand.u32 %v2222, %v695
      %2226 = vmatpush.bf16.msra.mxu0 0
      %2227 = vmatpush.bf16.msra.mxu0 0
      %2228 = vmatpush.bf16.msra.mxu0 0
      %2229 = vmatpush.bf16.msra.mxu0 0
      %2230 = vmatpush.bf16.msra.mxu0 0
      %2231 = vmatpush.bf16.msra.mxu0 0
      %2232 = vmatpush.bf16.msra.mxu0 0
      %2233 = vmatpush.bf16.msra.mxu0 %v2224
      %2234 = vmatmul.bf16.gmra.mxu0 %v690
      %v2235 = vpop.f32.mrf.mxu0
      %v2236 = vadd.f32 0.0, %v2235
      %v2237 = vpop.f32.mrf.mxu0
      %2238 = vdwg.mxu0
      %2239 = vmatpush.bf16.msra.mxu0 0
      %2240 = vmatpush.bf16.msra.mxu0 0
      %2241 = vmatpush.bf16.msra.mxu0 0
      %2242 = vmatpush.bf16.msra.mxu0 0
      %2243 = vmatpush.bf16.msra.mxu0 0
      %2244 = vmatpush.bf16.msra.mxu0 0
      %2245 = vmatpush.bf16.msra.mxu0 0
      %2246 = vmatpush.bf16.msra.mxu0 %v2224
      %2247 = vmatmul.bf16.gmra.mxu0 %v713
      %v2248 = vpop.f32.mrf.mxu0
      %v2249 = vadd.f32 0.0, %v2248
      %v2250 = vpop.f32.mrf.mxu0
      %2251 = vdwg.mxu0
      %v2252 = vmax.f32 %v2236, %v2249
      %s2253 = scalar_lea.vmem %s197, 24
      %2254 = vst.msk [vmem:[%s2253] sm:$0x3f] %vm729, %v2252
      %v2255 = vld [vmem:[%s192 + $0x78] sm:$0xff]
      %v2256 = vld [vmem:[%s192 + $0x80] sm:$0xff]
      %v2257 = vld [vmem:[%s192 + $0x88] sm:$0xff]
      %v2258 = vld [vmem:[%s192 + $0x90] sm:$0x3f]
      %v2259 = vpack.c.bf16 %v2256, %v2255
      %v2260 = vpack.c.bf16 %v2258, %v2257
      %v2261 = vld [vmem:[%s1] sm:$0xf]
      %v2262 = vld [vmem:[%s1 + $0x4] sm:$0xf]
      %v2263 = vld [vmem:[%s1 + $0x8] sm:$0xf]
      %v2264 = vld [vmem:[%s1 + $0xc] sm:$0xf]
      %v2265 = vld [vmem:[%s192 + $0x79] sm:$0xff]
      %v2266 = vld [vmem:[%s192 + $0x81] sm:$0xff]
      %v2267 = vld [vmem:[%s192 + $0x89] sm:$0xff]
      %v2268 = vld [vmem:[%s192 + $0x91] sm:$0x3f]
      %v2269 = vpack.c.bf16 %v2266, %v2265
      %v2270 = vpack.c.bf16 %v2268, %v2267
      %v2271 = vld [vmem:[%s218] sm:$0xf]
      %v2272 = vld [vmem:[%s218 + $0x4] sm:$0xf]
      %v2273 = vld [vmem:[%s218 + $0x8] sm:$0xf]
      %v2274 = vld [vmem:[%s218 + $0xc] sm:$0xf]
      %v2279 = vunpack.c.l.b16 %v2271
      %v2280 = vunpack.c.l.b16 %v2272
      %v2281 = vunpack.c.l.b16 %v2273
      %v2282 = vunpack.c.l.b16 %v2274
      %v2283 = vpack.c.b16 %v2280, %v2279
      %v2284 = vpack.c.b16 %v2282, %v2281
      %v2288 = vsel %vm235, %v2269, 0
      %v2291 = vsel %vm235, %v2270, 0
      %2293 = vmatpush.bf16.msra.mxu0 0
      %2294 = vmatpush.bf16.msra.mxu0 0
      %2295 = vmatpush.bf16.msra.mxu0 0
      %2296 = vmatpush.bf16.msra.mxu0 0
      %2297 = vmatpush.bf16.msra.mxu0 0
      %2298 = vmatpush.bf16.msra.mxu0 0
      %2299 = vmatpush.bf16.msra.mxu0 %v2284
      %2300 = vmatpush.bf16.msra.mxu0 %v2283
      %2301 = vmatmul.bf16.gmra.mxu0 %v2288
      %v2302 = vpop.f32.mrf.mxu0
      %v2303 = vadd.f32 0.0, %v2302
      %v2304 = vpop.f32.mrf.mxu0
      %v2305 = vadd.f32 0.0, %v2304
      %2306 = vmatmul.bf16.gmra.mxu0 %v2291
      %v2307 = vpop.f32.mrf.mxu0
      %v2308 = vadd.f32 0.0, %v2307
      %v2309 = vpop.f32.mrf.mxu0
      %v2310 = vadd.f32 0.0, %v2309
      %2311 = vdwg.mxu0
      %v2316 = vunpack.c.l.b16 %v2261
      %v2317 = vunpack.c.l.b16 %v2262
      %v2318 = vunpack.c.l.b16 %v2263
      %v2319 = vunpack.c.l.b16 %v2264
      %v2320 = vpack.c.b16 %v2317, %v2316
      %v2321 = vpack.c.b16 %v2319, %v2318
      %v2325 = vsel %vm235, %v2259, 0
      %v2328 = vsel %vm235, %v2260, 0
      %2330 = vmatpush.bf16.msra.mxu0 0
      %2331 = vmatpush.bf16.msra.mxu0 0
      %2332 = vmatpush.bf16.msra.mxu0 0
      %2333 = vmatpush.bf16.msra.mxu0 0
      %2334 = vmatpush.bf16.msra.mxu0 0
      %2335 = vmatpush.bf16.msra.mxu0 0
      %2336 = vmatpush.bf16.msra.mxu0 %v2321
      %2337 = vmatpush.bf16.msra.mxu0 %v2320
      %2338 = vmatmul.bf16.gmra.mxu0 %v2325
      %v2339 = vpop.f32.mrf.mxu0
      %v2340 = vadd.f32 %v2303, %v2339
      %v2341 = vpop.f32.mrf.mxu0
      %v2342 = vadd.f32 %v2305, %v2341
      %2343 = vmatmul.bf16.gmra.mxu0 %v2328
      %v2344 = vpop.f32.mrf.mxu0
      %v2345 = vadd.f32 %v2308, %v2344
      %v2346 = vpop.f32.mrf.mxu0
      %v2347 = vadd.f32 %v2310, %v2346
      %2348 = vdwg.mxu0
      %v2349 = vld [vmem:[%s192 + $0x7a] sm:$0xff]
      %v2350 = vld [vmem:[%s192 + $0x82] sm:$0xff]
      %v2351 = vld [vmem:[%s192 + $0x8a] sm:$0xff]
      %v2352 = vld [vmem:[%s192 + $0x92] sm:$0x3f]
      %v2353 = vpack.c.bf16 %v2350, %v2349
      %v2354 = vpack.c.bf16 %v2352, %v2351
      %v2355 = vld [vmem:[%s304] sm:$0xf]
      %v2356 = vld [vmem:[%s304 + $0x4] sm:$0xf]
      %v2357 = vld [vmem:[%s304 + $0x8] sm:$0xf]
      %v2358 = vld [vmem:[%s304 + $0xc] sm:$0xf]
      %v2363 = vunpack.c.l.b16 %v2355
      %v2364 = vunpack.c.l.b16 %v2356
      %v2365 = vunpack.c.l.b16 %v2357
      %v2366 = vunpack.c.l.b16 %v2358
      %v2367 = vpack.c.b16 %v2364, %v2363
      %v2368 = vpack.c.b16 %v2366, %v2365
      %v2372 = vsel %vm235, %v2353, 0
      %v2375 = vsel %vm235, %v2354, 0
      %2377 = vmatpush.bf16.msra.mxu0 0
      %2378 = vmatpush.bf16.msra.mxu0 0
      %2379 = vmatpush.bf16.msra.mxu0 0
      %2380 = vmatpush.bf16.msra.mxu0 0
      %2381 = vmatpush.bf16.msra.mxu0 0
      %2382 = vmatpush.bf16.msra.mxu0 0
      %2383 = vmatpush.bf16.msra.mxu0 %v2368
      %2384 = vmatpush.bf16.msra.mxu0 %v2367
      %2385 = vmatmul.bf16.gmra.mxu0 %v2372
      %v2386 = vpop.f32.mrf.mxu0
      %v2387 = vadd.f32 0.0, %v2386
      %v2388 = vpop.f32.mrf.mxu0
      %v2389 = vadd.f32 0.0, %v2388
      %2390 = vmatmul.bf16.gmra.mxu0 %v2375
      %v2391 = vpop.f32.mrf.mxu0
      %v2392 = vadd.f32 0.0, %v2391
      %v2393 = vpop.f32.mrf.mxu0
      %v2394 = vadd.f32 0.0, %v2393
      %2395 = vdwg.mxu0
      %v2396 = vadd.f32 %v2340, %v2387
      %v2397 = vadd.f32 %v2342, %v2389
      %v2398 = vadd.f32 %v2345, %v2392
      %v2399 = vadd.f32 %v2347, %v2394
      %v2400 = vld [vmem:[%s192 + $0x87] sm:$0xff]
      %v2401 = vld [vmem:[%s192 + $0x8f] sm:$0xff]
      %v2402 = vld [vmem:[%s192 + $0x97] sm:$0xff]
      %v2403 = vld [vmem:[%s192 + $0x9f] sm:$0x3f]
      %v2404 = vpack.c.bf16 %v2401, %v2400
      %v2405 = vpack.c.bf16 %v2403, %v2402
      %v2406 = vld [vmem:[%s356] sm:$0xf]
      %v2407 = vld [vmem:[%s356 + $0x4] sm:$0xf]
      %v2408 = vld [vmem:[%s356 + $0x8] sm:$0xf]
      %v2409 = vld [vmem:[%s356 + $0xc] sm:$0xf]
      %v2414 = vunpack.c.l.b16 %v2406
      %v2415 = vunpack.c.l.b16 %v2407
      %v2416 = vunpack.c.l.b16 %v2408
      %v2417 = vunpack.c.l.b16 %v2409
      %v2418 = vpack.c.b16 %v2415, %v2414
      %v2419 = vpack.c.b16 %v2417, %v2416
      %v2423 = vsel %vm235, %v2404, 0
      %v2426 = vsel %vm235, %v2405, 0
      %2428 = vmatpush.bf16.msra.mxu0 0
      %2429 = vmatpush.bf16.msra.mxu0 0
      %2430 = vmatpush.bf16.msra.mxu0 0
      %2431 = vmatpush.bf16.msra.mxu0 0
      %2432 = vmatpush.bf16.msra.mxu0 0
      %2433 = vmatpush.bf16.msra.mxu0 0
      %2434 = vmatpush.bf16.msra.mxu0 %v2419
      %2435 = vmatpush.bf16.msra.mxu0 %v2418
      %2436 = vmatmul.bf16.gmra.mxu0 %v2423
      %v2437 = vpop.f32.mrf.mxu0
      %v2438 = vadd.f32 0.0, %v2437
      %v2439 = vpop.f32.mrf.mxu0
      %v2440 = vadd.f32 0.0, %v2439
      %2441 = vmatmul.bf16.gmra.mxu0 %v2426
      %v2442 = vpop.f32.mrf.mxu0
      %v2443 = vadd.f32 0.0, %v2442
      %v2444 = vpop.f32.mrf.mxu0
      %v2445 = vadd.f32 0.0, %v2444
      %2446 = vdwg.mxu0
      %v2447 = vadd.f32 %v2396, %v2438
      %v2448 = vadd.f32 %v2397, %v2440
      %v2449 = vadd.f32 %v2398, %v2443
      %v2450 = vadd.f32 %v2399, %v2445
      %v2451 = vld [vmem:[%s192 + $0x88] sm:$0xff]
      %v2452 = vld [vmem:[%s192 + $0x90] sm:$0xff]
      %v2453 = vld [vmem:[%s192 + $0x98] sm:$0xff]
      %v2454 = vld [vmem:[%s192 + $0xa0] sm:$0x3f]
      %v2455 = vpack.c.bf16 %v2452, %v2451
      %v2456 = vpack.c.bf16 %v2454, %v2453
      %v2457 = vld [vmem:[%s408] sm:$0xf]
      %v2458 = vld [vmem:[%s408 + $0x4] sm:$0xf]
      %v2459 = vld [vmem:[%s408 + $0x8] sm:$0xf]
      %v2460 = vld [vmem:[%s408 + $0xc] sm:$0xf]
      %v2465 = vunpack.c.l.b16 %v2457
      %v2466 = vunpack.c.l.b16 %v2458
      %v2467 = vunpack.c.l.b16 %v2459
      %v2468 = vunpack.c.l.b16 %v2460
      %v2469 = vpack.c.b16 %v2466, %v2465
      %v2470 = vpack.c.b16 %v2468, %v2467
      %v2474 = vsel %vm235, %v2455, 0
      %v2477 = vsel %vm235, %v2456, 0
      %2479 = vmatpush.bf16.msra.mxu0 0
      %2480 = vmatpush.bf16.msra.mxu0 0
      %2481 = vmatpush.bf16.msra.mxu0 0
      %2482 = vmatpush.bf16.msra.mxu0 0
      %2483 = vmatpush.bf16.msra.mxu0 0
      %2484 = vmatpush.bf16.msra.mxu0 0
      %2485 = vmatpush.bf16.msra.mxu0 %v2470
      %2486 = vmatpush.bf16.msra.mxu0 %v2469
      %2487 = vmatmul.bf16.gmra.mxu0 %v2474
      %v2488 = vpop.f32.mrf.mxu0
      %v2489 = vadd.f32 0.0, %v2488
      %v2490 = vpop.f32.mrf.mxu0
      %v2491 = vadd.f32 0.0, %v2490
      %2492 = vmatmul.bf16.gmra.mxu0 %v2477
      %v2493 = vpop.f32.mrf.mxu0
      %v2494 = vadd.f32 0.0, %v2493
      %v2495 = vpop.f32.mrf.mxu0
      %v2496 = vadd.f32 0.0, %v2495
      %2497 = vdwg.mxu0
      %v2498 = vadd.f32 %v2447, %v2489
      %v2499 = vadd.f32 %v2448, %v2491
      %v2500 = vadd.f32 %v2449, %v2494
      %v2501 = vadd.f32 %v2450, %v2496
      %v2502 = vld [vmem:[%s192 + $0x89] sm:$0xff]
      %v2503 = vld [vmem:[%s192 + $0x91] sm:$0xff]
      %v2504 = vld [vmem:[%s192 + $0x99] sm:$0xff]
      %v2505 = vld [vmem:[%s192 + $0xa1] sm:$0x3f]
      %v2506 = vpack.c.bf16 %v2503, %v2502
      %v2507 = vpack.c.bf16 %v2505, %v2504
      %v2508 = vld [vmem:[%s460] sm:$0xf]
      %v2509 = vld [vmem:[%s460 + $0x4] sm:$0xf]
      %v2510 = vld [vmem:[%s460 + $0x8] sm:$0xf]
      %v2511 = vld [vmem:[%s460 + $0xc] sm:$0xf]
      %v2516 = vunpack.c.l.b16 %v2508
      %v2517 = vunpack.c.l.b16 %v2509
      %v2518 = vunpack.c.l.b16 %v2510
      %v2519 = vunpack.c.l.b16 %v2511
      %v2520 = vpack.c.b16 %v2517, %v2516
      %v2521 = vpack.c.b16 %v2519, %v2518
      %v2525 = vsel %vm235, %v2506, 0
      %v2528 = vsel %vm235, %v2507, 0
      %2530 = vmatpush.bf16.msra.mxu0 0
      %2531 = vmatpush.bf16.msra.mxu0 0
      %2532 = vmatpush.bf16.msra.mxu0 0
      %2533 = vmatpush.bf16.msra.mxu0 0
      %2534 = vmatpush.bf16.msra.mxu0 0
      %2535 = vmatpush.bf16.msra.mxu0 0
      %2536 = vmatpush.bf16.msra.mxu0 %v2521
      %2537 = vmatpush.bf16.msra.mxu0 %v2520
      %2538 = vmatmul.bf16.gmra.mxu0 %v2525
      %v2539 = vpop.f32.mrf.mxu0
      %v2540 = vadd.f32 0.0, %v2539
      %v2541 = vpop.f32.mrf.mxu0
      %v2542 = vadd.f32 0.0, %v2541
      %2543 = vmatmul.bf16.gmra.mxu0 %v2528
      %v2544 = vpop.f32.mrf.mxu0
      %v2545 = vadd.f32 0.0, %v2544
      %v2546 = vpop.f32.mrf.mxu0
      %v2547 = vadd.f32 0.0, %v2546
      %2548 = vdwg.mxu0
      %v2549 = vadd.f32 %v2498, %v2540
      %v2550 = vadd.f32 %v2499, %v2542
      %v2551 = vadd.f32 %v2500, %v2545
      %v2552 = vadd.f32 %v2501, %v2547
      %v2553 = vld [vmem:[%s192 + $0x96] sm:$0xff]
      %v2554 = vld [vmem:[%s192 + $0x9e] sm:$0xff]
      %v2555 = vld [vmem:[%s192 + $0xa6] sm:$0xff]
      %v2556 = vld [vmem:[%s192 + $0xae] sm:$0x3f]
      %v2557 = vpack.c.bf16 %v2554, %v2553
      %v2558 = vpack.c.bf16 %v2556, %v2555
      %v2559 = vld [vmem:[%s512] sm:$0xf]
      %v2560 = vld [vmem:[%s512 + $0x4] sm:$0xf]
      %v2561 = vld [vmem:[%s512 + $0x8] sm:$0xf]
      %v2562 = vld [vmem:[%s512 + $0xc] sm:$0xf]
      %v2567 = vunpack.c.l.b16 %v2559
      %v2568 = vunpack.c.l.b16 %v2560
      %v2569 = vunpack.c.l.b16 %v2561
      %v2570 = vunpack.c.l.b16 %v2562
      %v2571 = vpack.c.b16 %v2568, %v2567
      %v2572 = vpack.c.b16 %v2570, %v2569
      %v2576 = vsel %vm235, %v2557, 0
      %v2579 = vsel %vm235, %v2558, 0
      %2581 = vmatpush.bf16.msra.mxu0 0
      %2582 = vmatpush.bf16.msra.mxu0 0
      %2583 = vmatpush.bf16.msra.mxu0 0
      %2584 = vmatpush.bf16.msra.mxu0 0
      %2585 = vmatpush.bf16.msra.mxu0 0
      %2586 = vmatpush.bf16.msra.mxu0 0
      %2587 = vmatpush.bf16.msra.mxu0 %v2572
      %2588 = vmatpush.bf16.msra.mxu0 %v2571
      %2589 = vmatmul.bf16.gmra.mxu0 %v2576
      %v2590 = vpop.f32.mrf.mxu0
      %v2591 = vadd.f32 0.0, %v2590
      %v2592 = vpop.f32.mrf.mxu0
      %v2593 = vadd.f32 0.0, %v2592
      %2594 = vmatmul.bf16.gmra.mxu0 %v2579
      %v2595 = vpop.f32.mrf.mxu0
      %v2596 = vadd.f32 0.0, %v2595
      %v2597 = vpop.f32.mrf.mxu0
      %v2598 = vadd.f32 0.0, %v2597
      %2599 = vdwg.mxu0
      %v2600 = vadd.f32 %v2549, %v2591
      %v2601 = vadd.f32 %v2550, %v2593
      %v2602 = vadd.f32 %v2551, %v2596
      %v2603 = vadd.f32 %v2552, %v2598
      %v2604 = vld [vmem:[%s192 + $0x97] sm:$0xff]
      %v2605 = vld [vmem:[%s192 + $0x9f] sm:$0xff]
      %v2606 = vld [vmem:[%s192 + $0xa7] sm:$0xff]
      %v2607 = vld [vmem:[%s192 + $0xaf] sm:$0x3f]
      %v2608 = vpack.c.bf16 %v2605, %v2604
      %v2609 = vpack.c.bf16 %v2607, %v2606
      %v2610 = vld [vmem:[%s564] sm:$0xf]
      %v2611 = vld [vmem:[%s564 + $0x4] sm:$0xf]
      %v2612 = vld [vmem:[%s564 + $0x8] sm:$0xf]
      %v2613 = vld [vmem:[%s564 + $0xc] sm:$0xf]
      %v2618 = vunpack.c.l.b16 %v2610
      %v2619 = vunpack.c.l.b16 %v2611
      %v2620 = vunpack.c.l.b16 %v2612
      %v2621 = vunpack.c.l.b16 %v2613
      %v2622 = vpack.c.b16 %v2619, %v2618
      %v2623 = vpack.c.b16 %v2621, %v2620
      %v2627 = vsel %vm235, %v2608, 0
      %v2630 = vsel %vm235, %v2609, 0
      %2632 = vmatpush.bf16.msra.mxu0 0
      %2633 = vmatpush.bf16.msra.mxu0 0
      %2634 = vmatpush.bf16.msra.mxu0 0
      %2635 = vmatpush.bf16.msra.mxu0 0
      %2636 = vmatpush.bf16.msra.mxu0 0
      %2637 = vmatpush.bf16.msra.mxu0 0
      %2638 = vmatpush.bf16.msra.mxu0 %v2623
      %2639 = vmatpush.bf16.msra.mxu0 %v2622
      %2640 = vmatmul.bf16.gmra.mxu0 %v2627
      %v2641 = vpop.f32.mrf.mxu0
      %v2642 = vadd.f32 0.0, %v2641
      %v2643 = vpop.f32.mrf.mxu0
      %v2644 = vadd.f32 0.0, %v2643
      %2645 = vmatmul.bf16.gmra.mxu0 %v2630
      %v2646 = vpop.f32.mrf.mxu0
      %v2647 = vadd.f32 0.0, %v2646
      %v2648 = vpop.f32.mrf.mxu0
      %v2649 = vadd.f32 0.0, %v2648
      %2650 = vdwg.mxu0
      %v2651 = vadd.f32 %v2600, %v2642
      %v2652 = vadd.f32 %v2601, %v2644
      %v2653 = vadd.f32 %v2602, %v2647
      %v2654 = vadd.f32 %v2603, %v2649
      %v2655 = vld [vmem:[%s192 + $0x98] sm:$0xff]
      %v2656 = vld [vmem:[%s192 + $0xa0] sm:$0xff]
      %v2657 = vld [vmem:[%s192 + $0xa8] sm:$0xff]
      %v2658 = vld [vmem:[%s192 + $0xb0] sm:$0x3f]
      %v2659 = vpack.c.bf16 %v2656, %v2655
      %v2660 = vpack.c.bf16 %v2658, %v2657
      %v2661 = vld [vmem:[%s616] sm:$0xf]
      %v2662 = vld [vmem:[%s616 + $0x4] sm:$0xf]
      %v2663 = vld [vmem:[%s616 + $0x8] sm:$0xf]
      %v2664 = vld [vmem:[%s616 + $0xc] sm:$0xf]
      %v2669 = vunpack.c.l.b16 %v2661
      %v2670 = vunpack.c.l.b16 %v2662
      %v2671 = vunpack.c.l.b16 %v2663
      %v2672 = vunpack.c.l.b16 %v2664
      %v2673 = vpack.c.b16 %v2670, %v2669
      %v2674 = vpack.c.b16 %v2672, %v2671
      %v2678 = vsel %vm235, %v2659, 0
      %v2681 = vsel %vm235, %v2660, 0
      %2683 = vmatpush.bf16.msra.mxu0 0
      %2684 = vmatpush.bf16.msra.mxu0 0
      %2685 = vmatpush.bf16.msra.mxu0 0
      %2686 = vmatpush.bf16.msra.mxu0 0
      %2687 = vmatpush.bf16.msra.mxu0 0
      %2688 = vmatpush.bf16.msra.mxu0 0
      %2689 = vmatpush.bf16.msra.mxu0 %v2674
      %2690 = vmatpush.bf16.msra.mxu0 %v2673
      %2691 = vmatmul.bf16.gmra.mxu0 %v2678
      %v2692 = vpop.f32.mrf.mxu0
      %v2693 = vadd.f32 0.0, %v2692
      %v2694 = vpop.f32.mrf.mxu0
      %v2695 = vadd.f32 0.0, %v2694
      %2696 = vmatmul.bf16.gmra.mxu0 %v2681
      %v2697 = vpop.f32.mrf.mxu0
      %v2698 = vadd.f32 0.0, %v2697
      %v2699 = vpop.f32.mrf.mxu0
      %v2700 = vadd.f32 0.0, %v2699
      %2701 = vdwg.mxu0
      %v2702 = vadd.f32 %v2651, %v2693
      %v2703 = vadd.f32 %v2652, %v2695
      %v2704 = vadd.f32 %v2653, %v2698
      %v2705 = vadd.f32 %v2654, %v2700
      %v2706 = vld [vmem:[%s2] sm:$0x1]
      %v2708 = vperm.slane %v2706, 0
      %v2710 = vadd.f32 %v2702, %v2708
      %v2711 = vadd.f32 %v2703, %v2708
      %v2712 = vadd.f32 %v2704, %v2708
      %v2713 = vadd.f32 %v2705, %v2708
      %v2714 = vmax.f32 %v2710, 0.0
      %v2715 = vmax.f32 %v2711, 0.0
      %v2716 = vmax.f32 %v2712, 0.0
      %v2717 = vmax.f32 %v2713, 0.0
      %v2721 = vrot.slane %v2715, 7
      %v2722 = vrot.slane %v2716, 7
      %v2723 = vsel %vm677, %v2721, %v2722
      %v2724 = vrot.slane %v2717, 7
      %v2725 = vsel %vm677, %v2722, %v2724
      %v2728 = vmax.f32 %v2714, %v2723
      %v2729 = vmax.f32 %v2715, %v2725
      %v2730 = vpack.c.bf16 %v2729, %v2728
      %v2732 = vand.u32 %v2730, %v695
      %2734 = vmatpush.bf16.msra.mxu0 0
      %2735 = vmatpush.bf16.msra.mxu0 0
      %2736 = vmatpush.bf16.msra.mxu0 0
      %2737 = vmatpush.bf16.msra.mxu0 0
      %2738 = vmatpush.bf16.msra.mxu0 0
      %2739 = vmatpush.bf16.msra.mxu0 0
      %2740 = vmatpush.bf16.msra.mxu0 0
      %2741 = vmatpush.bf16.msra.mxu0 %v2732
      %2742 = vmatmul.bf16.gmra.mxu0 %v690
      %v2743 = vpop.f32.mrf.mxu0
      %v2744 = vadd.f32 0.0, %v2743
      %v2745 = vpop.f32.mrf.mxu0
      %2746 = vdwg.mxu0
      %2747 = vmatpush.bf16.msra.mxu0 0
      %2748 = vmatpush.bf16.msra.mxu0 0
      %2749 = vmatpush.bf16.msra.mxu0 0
      %2750 = vmatpush.bf16.msra.mxu0 0
      %2751 = vmatpush.bf16.msra.mxu0 0
      %2752 = vmatpush.bf16.msra.mxu0 0
      %2753 = vmatpush.bf16.msra.mxu0 0
      %2754 = vmatpush.bf16.msra.mxu0 %v2732
      %2755 = vmatmul.bf16.gmra.mxu0 %v713
      %v2756 = vpop.f32.mrf.mxu0
      %v2757 = vadd.f32 0.0, %v2756
      %v2758 = vpop.f32.mrf.mxu0
      %2759 = vdwg.mxu0
      %v2760 = vmax.f32 %v2744, %v2757
      %s2761 = scalar_lea.vmem %s197, 32
      %2762 = vst.msk [vmem:[%s2761] sm:$0x3f] %vm729, %v2760
      %v2763 = vld [vmem:[%s192 + $0x96] sm:$0xff]
      %v2764 = vld [vmem:[%s192 + $0x9e] sm:$0xff]
      %v2765 = vld [vmem:[%s192 + $0xa6] sm:$0xff]
      %v2766 = vld [vmem:[%s192 + $0xae] sm:$0x3f]
      %v2767 = vpack.c.bf16 %v2764, %v2763
      %v2768 = vpack.c.bf16 %v2766, %v2765
      %v2769 = vld [vmem:[%s1] sm:$0xf]
      %v2770 = vld [vmem:[%s1 + $0x4] sm:$0xf]
      %v2771 = vld [vmem:[%s1 + $0x8] sm:$0xf]
      %v2772 = vld [vmem:[%s1 + $0xc] sm:$0xf]
      %v2773 = vld [vmem:[%s192 + $0x97] sm:$0xff]
      %v2774 = vld [vmem:[%s192 + $0x9f] sm:$0xff]
      %v2775 = vld [vmem:[%s192 + $0xa7] sm:$0xff]
      %v2776 = vld [vmem:[%s192 + $0xaf] sm:$0x3f]
      %v2777 = vpack.c.bf16 %v2774, %v2773
      %v2778 = vpack.c.bf16 %v2776, %v2775
      %v2779 = vld [vmem:[%s218] sm:$0xf]
      %v2780 = vld [vmem:[%s218 + $0x4] sm:$0xf]
      %v2781 = vld [vmem:[%s218 + $0x8] sm:$0xf]
      %v2782 = vld [vmem:[%s218 + $0xc] sm:$0xf]
      %v2787 = vunpack.c.l.b16 %v2779
      %v2788 = vunpack.c.l.b16 %v2780
      %v2789 = vunpack.c.l.b16 %v2781
      %v2790 = vunpack.c.l.b16 %v2782
      %v2791 = vpack.c.b16 %v2788, %v2787
      %v2792 = vpack.c.b16 %v2790, %v2789
      %v2796 = vsel %vm235, %v2777, 0
      %v2799 = vsel %vm235, %v2778, 0
      %2801 = vmatpush.bf16.msra.mxu0 0
      %2802 = vmatpush.bf16.msra.mxu0 0
      %2803 = vmatpush.bf16.msra.mxu0 0
      %2804 = vmatpush.bf16.msra.mxu0 0
      %2805 = vmatpush.bf16.msra.mxu0 0
      %2806 = vmatpush.bf16.msra.mxu0 0
      %2807 = vmatpush.bf16.msra.mxu0 %v2792
      %2808 = vmatpush.bf16.msra.mxu0 %v2791
      %2809 = vmatmul.bf16.gmra.mxu0 %v2796
      %v2810 = vpop.f32.mrf.mxu0
      %v2811 = vadd.f32 0.0, %v2810
      %v2812 = vpop.f32.mrf.mxu0
      %v2813 = vadd.f32 0.0, %v2812
      %2814 = vmatmul.bf16.gmra.mxu0 %v2799
      %v2815 = vpop.f32.mrf.mxu0
      %v2816 = vadd.f32 0.0, %v2815
      %v2817 = vpop.f32.mrf.mxu0
      %v2818 = vadd.f32 0.0, %v2817
      %2819 = vdwg.mxu0
      %v2824 = vunpack.c.l.b16 %v2769
      %v2825 = vunpack.c.l.b16 %v2770
      %v2826 = vunpack.c.l.b16 %v2771
      %v2827 = vunpack.c.l.b16 %v2772
      %v2828 = vpack.c.b16 %v2825, %v2824
      %v2829 = vpack.c.b16 %v2827, %v2826
      %v2833 = vsel %vm235, %v2767, 0
      %v2836 = vsel %vm235, %v2768, 0
      %2838 = vmatpush.bf16.msra.mxu0 0
      %2839 = vmatpush.bf16.msra.mxu0 0
      %2840 = vmatpush.bf16.msra.mxu0 0
      %2841 = vmatpush.bf16.msra.mxu0 0
      %2842 = vmatpush.bf16.msra.mxu0 0
      %2843 = vmatpush.bf16.msra.mxu0 0
      %2844 = vmatpush.bf16.msra.mxu0 %v2829
      %2845 = vmatpush.bf16.msra.mxu0 %v2828
      %2846 = vmatmul.bf16.gmra.mxu0 %v2833
      %v2847 = vpop.f32.mrf.mxu0
      %v2848 = vadd.f32 %v2811, %v2847
      %v2849 = vpop.f32.mrf.mxu0
      %v2850 = vadd.f32 %v2813, %v2849
      %2851 = vmatmul.bf16.gmra.mxu0 %v2836
      %v2852 = vpop.f32.mrf.mxu0
      %v2853 = vadd.f32 %v2816, %v2852
      %v2854 = vpop.f32.mrf.mxu0
      %v2855 = vadd.f32 %v2818, %v2854
      %2856 = vdwg.mxu0
      %v2857 = vld [vmem:[%s192 + $0x98] sm:$0xff]
      %v2858 = vld [vmem:[%s192 + $0xa0] sm:$0xff]
      %v2859 = vld [vmem:[%s192 + $0xa8] sm:$0xff]
      %v2860 = vld [vmem:[%s192 + $0xb0] sm:$0x3f]
      %v2861 = vpack.c.bf16 %v2858, %v2857
      %v2862 = vpack.c.bf16 %v2860, %v2859
      %v2863 = vld [vmem:[%s304] sm:$0xf]
      %v2864 = vld [vmem:[%s304 + $0x4] sm:$0xf]
      %v2865 = vld [vmem:[%s304 + $0x8] sm:$0xf]
      %v2866 = vld [vmem:[%s304 + $0xc] sm:$0xf]
      %v2871 = vunpack.c.l.b16 %v2863
      %v2872 = vunpack.c.l.b16 %v2864
      %v2873 = vunpack.c.l.b16 %v2865
      %v2874 = vunpack.c.l.b16 %v2866
      %v2875 = vpack.c.b16 %v2872, %v2871
      %v2876 = vpack.c.b16 %v2874, %v2873
      %v2880 = vsel %vm235, %v2861, 0
      %v2883 = vsel %vm235, %v2862, 0
      %2885 = vmatpush.bf16.msra.mxu0 0
      %2886 = vmatpush.bf16.msra.mxu0 0
      %2887 = vmatpush.bf16.msra.mxu0 0
      %2888 = vmatpush.bf16.msra.mxu0 0
      %2889 = vmatpush.bf16.msra.mxu0 0
      %2890 = vmatpush.bf16.msra.mxu0 0
      %2891 = vmatpush.bf16.msra.mxu0 %v2876
      %2892 = vmatpush.bf16.msra.mxu0 %v2875
      %2893 = vmatmul.bf16.gmra.mxu0 %v2880
      %v2894 = vpop.f32.mrf.mxu0
      %v2895 = vadd.f32 0.0, %v2894
      %v2896 = vpop.f32.mrf.mxu0
      %v2897 = vadd.f32 0.0, %v2896
      %2898 = vmatmul.bf16.gmra.mxu0 %v2883
      %v2899 = vpop.f32.mrf.mxu0
      %v2900 = vadd.f32 0.0, %v2899
      %v2901 = vpop.f32.mrf.mxu0
      %v2902 = vadd.f32 0.0, %v2901
      %2903 = vdwg.mxu0
      %v2904 = vadd.f32 %v2848, %v2895
      %v2905 = vadd.f32 %v2850, %v2897
      %v2906 = vadd.f32 %v2853, %v2900
      %v2907 = vadd.f32 %v2855, %v2902
      %v2908 = vld [vmem:[%s192 + $0xa5] sm:$0xff]
      %v2909 = vld [vmem:[%s192 + $0xad] sm:$0xff]
      %v2910 = vld [vmem:[%s192 + $0xb5] sm:$0xff]
      %v2911 = vld [vmem:[%s192 + $0xbd] sm:$0x3f]
      %v2912 = vpack.c.bf16 %v2909, %v2908
      %v2913 = vpack.c.bf16 %v2911, %v2910
      %v2914 = vld [vmem:[%s356] sm:$0xf]
      %v2915 = vld [vmem:[%s356 + $0x4] sm:$0xf]
      %v2916 = vld [vmem:[%s356 + $0x8] sm:$0xf]
      %v2917 = vld [vmem:[%s356 + $0xc] sm:$0xf]
      %v2922 = vunpack.c.l.b16 %v2914
      %v2923 = vunpack.c.l.b16 %v2915
      %v2924 = vunpack.c.l.b16 %v2916
      %v2925 = vunpack.c.l.b16 %v2917
      %v2926 = vpack.c.b16 %v2923, %v2922
      %v2927 = vpack.c.b16 %v2925, %v2924
      %v2931 = vsel %vm235, %v2912, 0
      %v2934 = vsel %vm235, %v2913, 0
      %2936 = vmatpush.bf16.msra.mxu0 0
      %2937 = vmatpush.bf16.msra.mxu0 0
      %2938 = vmatpush.bf16.msra.mxu0 0
      %2939 = vmatpush.bf16.msra.mxu0 0
      %2940 = vmatpush.bf16.msra.mxu0 0
      %2941 = vmatpush.bf16.msra.mxu0 0
      %2942 = vmatpush.bf16.msra.mxu0 %v2927
      %2943 = vmatpush.bf16.msra.mxu0 %v2926
      %2944 = vmatmul.bf16.gmra.mxu0 %v2931
      %v2945 = vpop.f32.mrf.mxu0
      %v2946 = vadd.f32 0.0, %v2945
      %v2947 = vpop.f32.mrf.mxu0
      %v2948 = vadd.f32 0.0, %v2947
      %2949 = vmatmul.bf16.gmra.mxu0 %v2934
      %v2950 = vpop.f32.mrf.mxu0
      %v2951 = vadd.f32 0.0, %v2950
      %v2952 = vpop.f32.mrf.mxu0
      %v2953 = vadd.f32 0.0, %v2952
      %2954 = vdwg.mxu0
      %v2955 = vadd.f32 %v2904, %v2946
      %v2956 = vadd.f32 %v2905, %v2948
      %v2957 = vadd.f32 %v2906, %v2951
      %v2958 = vadd.f32 %v2907, %v2953
      %v2959 = vld [vmem:[%s192 + $0xa6] sm:$0xff]
      %v2960 = vld [vmem:[%s192 + $0xae] sm:$0xff]
      %v2961 = vld [vmem:[%s192 + $0xb6] sm:$0xff]
      %v2962 = vld [vmem:[%s192 + $0xbe] sm:$0x3f]
      %v2963 = vpack.c.bf16 %v2960, %v2959
      %v2964 = vpack.c.bf16 %v2962, %v2961
      %v2965 = vld [vmem:[%s408] sm:$0xf]
      %v2966 = vld [vmem:[%s408 + $0x4] sm:$0xf]
      %v2967 = vld [vmem:[%s408 + $0x8] sm:$0xf]
      %v2968 = vld [vmem:[%s408 + $0xc] sm:$0xf]
      %v2973 = vunpack.c.l.b16 %v2965
      %v2974 = vunpack.c.l.b16 %v2966
      %v2975 = vunpack.c.l.b16 %v2967
      %v2976 = vunpack.c.l.b16 %v2968
      %v2977 = vpack.c.b16 %v2974, %v2973
      %v2978 = vpack.c.b16 %v2976, %v2975
      %v2982 = vsel %vm235, %v2963, 0
      %v2985 = vsel %vm235, %v2964, 0
      %2987 = vmatpush.bf16.msra.mxu0 0
      %2988 = vmatpush.bf16.msra.mxu0 0
      %2989 = vmatpush.bf16.msra.mxu0 0
      %2990 = vmatpush.bf16.msra.mxu0 0
      %2991 = vmatpush.bf16.msra.mxu0 0
      %2992 = vmatpush.bf16.msra.mxu0 0
      %2993 = vmatpush.bf16.msra.mxu0 %v2978
      %2994 = vmatpush.bf16.msra.mxu0 %v2977
      %2995 = vmatmul.bf16.gmra.mxu0 %v2982
      %v2996 = vpop.f32.mrf.mxu0
      %v2997 = vadd.f32 0.0, %v2996
      %v2998 = vpop.f32.mrf.mxu0
      %v2999 = vadd.f32 0.0, %v2998
      %3000 = vmatmul.bf16.gmra.mxu0 %v2985
      %v3001 = vpop.f32.mrf.mxu0
      %v3002 = vadd.f32 0.0, %v3001
      %v3003 = vpop.f32.mrf.mxu0
      %v3004 = vadd.f32 0.0, %v3003
      %3005 = vdwg.mxu0
      %v3006 = vadd.f32 %v2955, %v2997
      %v3007 = vadd.f32 %v2956, %v2999
      %v3008 = vadd.f32 %v2957, %v3002
      %v3009 = vadd.f32 %v2958, %v3004
      %v3010 = vld [vmem:[%s192 + $0xa7] sm:$0xff]
      %v3011 = vld [vmem:[%s192 + $0xaf] sm:$0xff]
      %v3012 = vld [vmem:[%s192 + $0xb7] sm:$0xff]
      %v3013 = vld [vmem:[%s192 + $0xbf] sm:$0x3f]
      %v3014 = vpack.c.bf16 %v3011, %v3010
      %v3015 = vpack.c.bf16 %v3013, %v3012
      %v3016 = vld [vmem:[%s460] sm:$0xf]
      %v3017 = vld [vmem:[%s460 + $0x4] sm:$0xf]
      %v3018 = vld [vmem:[%s460 + $0x8] sm:$0xf]
      %v3019 = vld [vmem:[%s460 + $0xc] sm:$0xf]
      %v3024 = vunpack.c.l.b16 %v3016
      %v3025 = vunpack.c.l.b16 %v3017
      %v3026 = vunpack.c.l.b16 %v3018
      %v3027 = vunpack.c.l.b16 %v3019
      %v3028 = vpack.c.b16 %v3025, %v3024
      %v3029 = vpack.c.b16 %v3027, %v3026
      %v3033 = vsel %vm235, %v3014, 0
      %v3036 = vsel %vm235, %v3015, 0
      %3038 = vmatpush.bf16.msra.mxu0 0
      %3039 = vmatpush.bf16.msra.mxu0 0
      %3040 = vmatpush.bf16.msra.mxu0 0
      %3041 = vmatpush.bf16.msra.mxu0 0
      %3042 = vmatpush.bf16.msra.mxu0 0
      %3043 = vmatpush.bf16.msra.mxu0 0
      %3044 = vmatpush.bf16.msra.mxu0 %v3029
      %3045 = vmatpush.bf16.msra.mxu0 %v3028
      %3046 = vmatmul.bf16.gmra.mxu0 %v3033
      %v3047 = vpop.f32.mrf.mxu0
      %v3048 = vadd.f32 0.0, %v3047
      %v3049 = vpop.f32.mrf.mxu0
      %v3050 = vadd.f32 0.0, %v3049
      %3051 = vmatmul.bf16.gmra.mxu0 %v3036
      %v3052 = vpop.f32.mrf.mxu0
      %v3053 = vadd.f32 0.0, %v3052
      %v3054 = vpop.f32.mrf.mxu0
      %v3055 = vadd.f32 0.0, %v3054
      %3056 = vdwg.mxu0
      %v3057 = vadd.f32 %v3006, %v3048
      %v3058 = vadd.f32 %v3007, %v3050
      %v3059 = vadd.f32 %v3008, %v3053
      %v3060 = vadd.f32 %v3009, %v3055
      %v3061 = vld [vmem:[%s192 + $0xb4] sm:$0xff]
      %v3062 = vld [vmem:[%s192 + $0xbc] sm:$0xff]
      %v3063 = vld [vmem:[%s192 + $0xc4] sm:$0xff]
      %v3064 = vld [vmem:[%s192 + $0xcc] sm:$0x3f]
      %v3065 = vpack.c.bf16 %v3062, %v3061
      %v3066 = vpack.c.bf16 %v3064, %v3063
      %v3067 = vld [vmem:[%s512] sm:$0xf]
      %v3068 = vld [vmem:[%s512 + $0x4] sm:$0xf]
      %v3069 = vld [vmem:[%s512 + $0x8] sm:$0xf]
      %v3070 = vld [vmem:[%s512 + $0xc] sm:$0xf]
      %v3075 = vunpack.c.l.b16 %v3067
      %v3076 = vunpack.c.l.b16 %v3068
      %v3077 = vunpack.c.l.b16 %v3069
      %v3078 = vunpack.c.l.b16 %v3070
      %v3079 = vpack.c.b16 %v3076, %v3075
      %v3080 = vpack.c.b16 %v3078, %v3077
      %v3084 = vsel %vm235, %v3065, 0
      %v3087 = vsel %vm235, %v3066, 0
      %3089 = vmatpush.bf16.msra.mxu0 0
      %3090 = vmatpush.bf16.msra.mxu0 0
      %3091 = vmatpush.bf16.msra.mxu0 0
      %3092 = vmatpush.bf16.msra.mxu0 0
      %3093 = vmatpush.bf16.msra.mxu0 0
      %3094 = vmatpush.bf16.msra.mxu0 0
      %3095 = vmatpush.bf16.msra.mxu0 %v3080
      %3096 = vmatpush.bf16.msra.mxu0 %v3079
      %3097 = vmatmul.bf16.gmra.mxu0 %v3084
      %v3098 = vpop.f32.mrf.mxu0
      %v3099 = vadd.f32 0.0, %v3098
      %v3100 = vpop.f32.mrf.mxu0
      %v3101 = vadd.f32 0.0, %v3100
      %3102 = vmatmul.bf16.gmra.mxu0 %v3087
      %v3103 = vpop.f32.mrf.mxu0
      %v3104 = vadd.f32 0.0, %v3103
      %v3105 = vpop.f32.mrf.mxu0
      %v3106 = vadd.f32 0.0, %v3105
      %3107 = vdwg.mxu0
      %v3108 = vadd.f32 %v3057, %v3099
      %v3109 = vadd.f32 %v3058, %v3101
      %v3110 = vadd.f32 %v3059, %v3104
      %v3111 = vadd.f32 %v3060, %v3106
      %v3112 = vld [vmem:[%s192 + $0xb5] sm:$0xff]
      %v3113 = vld [vmem:[%s192 + $0xbd] sm:$0xff]
      %v3114 = vld [vmem:[%s192 + $0xc5] sm:$0xff]
      %v3115 = vld [vmem:[%s192 + $0xcd] sm:$0x3f]
      %v3116 = vpack.c.bf16 %v3113, %v3112
      %v3117 = vpack.c.bf16 %v3115, %v3114
      %v3118 = vld [vmem:[%s564] sm:$0xf]
      %v3119 = vld [vmem:[%s564 + $0x4] sm:$0xf]
      %v3120 = vld [vmem:[%s564 + $0x8] sm:$0xf]
      %v3121 = vld [vmem:[%s564 + $0xc] sm:$0xf]
      %v3126 = vunpack.c.l.b16 %v3118
      %v3127 = vunpack.c.l.b16 %v3119
      %v3128 = vunpack.c.l.b16 %v3120
      %v3129 = vunpack.c.l.b16 %v3121
      %v3130 = vpack.c.b16 %v3127, %v3126
      %v3131 = vpack.c.b16 %v3129, %v3128
      %v3135 = vsel %vm235, %v3116, 0
      %v3138 = vsel %vm235, %v3117, 0
      %3140 = vmatpush.bf16.msra.mxu0 0
      %3141 = vmatpush.bf16.msra.mxu0 0
      %3142 = vmatpush.bf16.msra.mxu0 0
      %3143 = vmatpush.bf16.msra.mxu0 0
      %3144 = vmatpush.bf16.msra.mxu0 0
      %3145 = vmatpush.bf16.msra.mxu0 0
      %3146 = vmatpush.bf16.msra.mxu0 %v3131
      %3147 = vmatpush.bf16.msra.mxu0 %v3130
      %3148 = vmatmul.bf16.gmra.mxu0 %v3135
      %v3149 = vpop.f32.mrf.mxu0
      %v3150 = vadd.f32 0.0, %v3149
      %v3151 = vpop.f32.mrf.mxu0
      %v3152 = vadd.f32 0.0, %v3151
      %3153 = vmatmul.bf16.gmra.mxu0 %v3138
      %v3154 = vpop.f32.mrf.mxu0
      %v3155 = vadd.f32 0.0, %v3154
      %v3156 = vpop.f32.mrf.mxu0
      %v3157 = vadd.f32 0.0, %v3156
      %3158 = vdwg.mxu0
      %v3159 = vadd.f32 %v3108, %v3150
      %v3160 = vadd.f32 %v3109, %v3152
      %v3161 = vadd.f32 %v3110, %v3155
      %v3162 = vadd.f32 %v3111, %v3157
      %v3163 = vld [vmem:[%s192 + $0xb6] sm:$0xff]
      %v3164 = vld [vmem:[%s192 + $0xbe] sm:$0xff]
      %v3165 = vld [vmem:[%s192 + $0xc6] sm:$0xff]
      %v3166 = vld [vmem:[%s192 + $0xce] sm:$0x3f]
      %v3167 = vpack.c.bf16 %v3164, %v3163
      %v3168 = vpack.c.bf16 %v3166, %v3165
      %v3169 = vld [vmem:[%s616] sm:$0xf]
      %v3170 = vld [vmem:[%s616 + $0x4] sm:$0xf]
      %v3171 = vld [vmem:[%s616 + $0x8] sm:$0xf]
      %v3172 = vld [vmem:[%s616 + $0xc] sm:$0xf]
      %v3177 = vunpack.c.l.b16 %v3169
      %v3178 = vunpack.c.l.b16 %v3170
      %v3179 = vunpack.c.l.b16 %v3171
      %v3180 = vunpack.c.l.b16 %v3172
      %v3181 = vpack.c.b16 %v3178, %v3177
      %v3182 = vpack.c.b16 %v3180, %v3179
      %v3186 = vsel %vm235, %v3167, 0
      %v3189 = vsel %vm235, %v3168, 0
      %3191 = vmatpush.bf16.msra.mxu0 0
      %3192 = vmatpush.bf16.msra.mxu0 0
      %3193 = vmatpush.bf16.msra.mxu0 0
      %3194 = vmatpush.bf16.msra.mxu0 0
      %3195 = vmatpush.bf16.msra.mxu0 0
      %3196 = vmatpush.bf16.msra.mxu0 0
      %3197 = vmatpush.bf16.msra.mxu0 %v3182
      %3198 = vmatpush.bf16.msra.mxu0 %v3181
      %3199 = vmatmul.bf16.gmra.mxu0 %v3186
      %v3200 = vpop.f32.mrf.mxu0
      %v3201 = vadd.f32 0.0, %v3200
      %v3202 = vpop.f32.mrf.mxu0
      %v3203 = vadd.f32 0.0, %v3202
      %3204 = vmatmul.bf16.gmra.mxu0 %v3189
      %v3205 = vpop.f32.mrf.mxu0
      %v3206 = vadd.f32 0.0, %v3205
      %v3207 = vpop.f32.mrf.mxu0
      %v3208 = vadd.f32 0.0, %v3207
      %3209 = vdwg.mxu0
      %v3210 = vadd.f32 %v3159, %v3201
      %v3211 = vadd.f32 %v3160, %v3203
      %v3212 = vadd.f32 %v3161, %v3206
      %v3213 = vadd.f32 %v3162, %v3208
      %v3214 = vld [vmem:[%s2] sm:$0x1]
      %v3216 = vperm.slane %v3214, 0
      %v3218 = vadd.f32 %v3210, %v3216
      %v3219 = vadd.f32 %v3211, %v3216
      %v3220 = vadd.f32 %v3212, %v3216
      %v3221 = vadd.f32 %v3213, %v3216
      %v3222 = vmax.f32 %v3218, 0.0
      %v3223 = vmax.f32 %v3219, 0.0
      %v3224 = vmax.f32 %v3220, 0.0
      %v3225 = vmax.f32 %v3221, 0.0
      %v3229 = vrot.slane %v3223, 7
      %v3230 = vrot.slane %v3224, 7
      %v3231 = vsel %vm677, %v3229, %v3230
      %v3232 = vrot.slane %v3225, 7
      %v3233 = vsel %vm677, %v3230, %v3232
      %v3236 = vmax.f32 %v3222, %v3231
      %v3237 = vmax.f32 %v3223, %v3233
      %v3238 = vpack.c.bf16 %v3237, %v3236
      %v3240 = vand.u32 %v3238, %v695
      %3242 = vmatpush.bf16.msra.mxu0 0
      %3243 = vmatpush.bf16.msra.mxu0 0
      %3244 = vmatpush.bf16.msra.mxu0 0
      %3245 = vmatpush.bf16.msra.mxu0 0
      %3246 = vmatpush.bf16.msra.mxu0 0
      %3247 = vmatpush.bf16.msra.mxu0 0
      %3248 = vmatpush.bf16.msra.mxu0 0
      %3249 = vmatpush.bf16.msra.mxu0 %v3240
      %3250 = vmatmul.bf16.gmra.mxu0 %v690
      %v3251 = vpop.f32.mrf.mxu0
      %v3252 = vadd.f32 0.0, %v3251
      %v3253 = vpop.f32.mrf.mxu0
      %3254 = vdwg.mxu0
      %3255 = vmatpush.bf16.msra.mxu0 0
      %3256 = vmatpush.bf16.msra.mxu0 0
      %3257 = vmatpush.bf16.msra.mxu0 0
      %3258 = vmatpush.bf16.msra.mxu0 0
      %3259 = vmatpush.bf16.msra.mxu0 0
      %3260 = vmatpush.bf16.msra.mxu0 0
      %3261 = vmatpush.bf16.msra.mxu0 0
      %3262 = vmatpush.bf16.msra.mxu0 %v3240
      %3263 = vmatmul.bf16.gmra.mxu0 %v713
      %v3264 = vpop.f32.mrf.mxu0
      %v3265 = vadd.f32 0.0, %v3264
      %v3266 = vpop.f32.mrf.mxu0
      %3267 = vdwg.mxu0
      %v3268 = vmax.f32 %v3252, %v3265
      %s3269 = scalar_lea.vmem %s197, 40
      %3270 = vst.msk [vmem:[%s3269] sm:$0x3f] %vm729, %v3268
      %p3271 = scmp.lt.s32.totalorder %s15, 1
      %s3272 = scalar_select %p3271, %s15, 1
      %s3273 = smul.addr %s3272, 6
      %s3274 = smul.addr %s3273, 8
      %s3275 = scalar_lea.vmem %s4, %s3274
      // Predicated region
      $region37: #{simple_cnn_forward.6} parent=35 // pred_check
        %p3276 = pneg %p122
      $region38: #{simple_cnn_forward.6} parent=35 // pred_check_branch
        %3278 = sbr.rel (%p3276) target = $region40
      $region39: #{simple_cnn_forward.6} parent=35 // pred_region
        _
      $region40: #{simple_cnn_forward.6} parent=35 // pred_fallthru
        _
    $region36: #{simple_cnn_forward.6} parent=5 // pred_fallthru
      _
    %p3279 = scmp.le.s32.totalorder 2, %s10
    // Predicated region
    $region41: #{simple_cnn_forward.6} parent=5 // pred_check
      %p3280 = pneg %p3279
    $region42: #{simple_cnn_forward.6} parent=5 // pred_check_branch
      %3282 = sbr.rel (%p3280) target = $region44
    $region43: #{simple_cnn_forward.6} parent=5 // pred_region
      %s3283 = ssub.s32 %s10, 2
      // Predicated region
      $region45: #{simple_cnn_forward.6} parent=43 // pred_check
        %p3284 = pneg %p128
      $region46: #{simple_cnn_forward.6} parent=43 // pred_check_branch
        %3286 = sbr.rel (%p3284) target = $region48
      $region47: #{simple_cnn_forward.6} parent=43 // pred_region
        %p3287 = scmp.lt.s32.totalorder %s16, 1
        %s3288 = scalar_select %p3287, %s16, 1
        %s3289 = smul.addr %s3288, 6
        %s3290 = smul.addr %s3289, 8
        %s3291 = scalar_lea.vmem %s4, %s3290
      $region48: #{simple_cnn_forward.6} parent=43 // pred_fallthru
        _
    $region44: #{simple_cnn_forward.6} parent=5 // pred_fallthru
      _
  $region6: #{simple_cnn_forward.6} parent=0 // loop_footer
    %s14 = sadd.s32 1, %s10
  $region7: #{simple_cnn_forward.6} parent=0 // loop_footer_branch
    %9 = sbr.rel target = $region3
  $region8: #{simple_cnn_forward.6} parent=0 // loop_exit
    _

</llo_original>
